<compile_context>
chip_gen: v7x
topology: tpu7x:2x2x1
jax: 0.10.0
libtpu: 0.0.40
codegen_flags: <defaults>
</compile_context>

<pallas_src>
import functools

import jax
import jax.numpy as jnp
from jax import lax
from jax.experimental import pallas as pl
from jax.experimental.pallas import tpu as pltpu


# ---------------------------------------------------------------------------
# Pallas kernels
# ---------------------------------------------------------------------------
def _matmul_bias_relu_kernel(a_ref, b_ref, bias_ref, o_ref):
    """o = relu(a @ b + bias).  Full K and N per block; M tiled by the grid."""
    acc = jnp.dot(a_ref[...], b_ref[...], preferred_element_type=jnp.float32)
    o_ref[...] = jnp.maximum(acc + bias_ref[...], 0.0).astype(o_ref.dtype)


def _maxpool3x3s2_kernel(ee_ref, eo_ref, oe_ref, oo_ref, o_ref, *, ho, wo):
    """3x3 / stride-2 max-pool from a 2x2 phase decomposition of the input.

    ee[h,w]=x[2h,2w], eo[h,w]=x[2h,2w+1], oe[h,w]=x[2h+1,2w], oo[h,w]=x[2h+1,2w+1],
    so out[oh,ow] = max of the nine unit-stride shifted phase slices below.
    """
    r = ee_ref[0, 0:ho, 0:wo, :]
    r = jnp.maximum(r, ee_ref[0, 0:ho, 1:wo + 1, :])
    r = jnp.maximum(r, ee_ref[0, 1:ho + 1, 0:wo, :])
    r = jnp.maximum(r, ee_ref[0, 1:ho + 1, 1:wo + 1, :])
    r = jnp.maximum(r, eo_ref[0, 0:ho, 0:wo, :])
    r = jnp.maximum(r, eo_ref[0, 1:ho + 1, 0:wo, :])
    r = jnp.maximum(r, oe_ref[0, 0:ho, 0:wo, :])
    r = jnp.maximum(r, oe_ref[0, 0:ho, 1:wo + 1, :])
    r = jnp.maximum(r, oo_ref[0, 0:ho, 0:wo, :])
    o_ref[0] = r


# ---------------------------------------------------------------------------
# Wrappers (glue is plain JAX: padding, im2col, reshapes, BN folding)
# ---------------------------------------------------------------------------
def _round_up(x, m):
    return (x + m - 1) // m * m


def _pick_tm(m):
    """>=2 M-blocks when possible (keeps both v7x TCs busy), each <=512 rows, 8-aligned."""
    if m < 16:
        return max(8, _round_up(m, 8))
    n_steps = max(2, -(-m // 512))
    return max(8, _round_up(-(-m // n_steps), 8))


def matmul_bias_relu(a, b, bias):
    """a: (M, K), b: (K, N), bias: (N,) -> relu(a @ b + bias), Pallas MXU matmul."""
    M, K = a.shape
    _, N = b.shape
    tm = _pick_tm(M)
    grid = (pl.cdiv(M, tm),)
    return pl.pallas_call(
        _matmul_bias_relu_kernel,
        out_shape=jax.ShapeDtypeStruct((M, N), jnp.float32),
        grid_spec=pltpu.PrefetchScalarGridSpec(
            num_scalar_prefetch=0,
            grid=grid,
            in_specs=[
                pl.BlockSpec((tm, K), lambda i: (i, 0)),   # A: read exactly once
                pl.BlockSpec((K, N), lambda i: (0, 0)),    # B: full, fetched once
                pl.BlockSpec((1, N), lambda i: (0, 0)),    # folded BN bias
            ],
            out_specs=pl.BlockSpec((tm, N), lambda i: (i, 0)),
        ),
        compiler_params=pltpu.CompilerParams(
            dimension_semantics=("parallel",)),
    )(a, b, bias.reshape(1, N))


def conv_bn_relu(x, w, bn_scale, bn_bias, *, stride=1, padding=(0, 0)):
    """x: (B,H,W,Cin) NHWC; w: (Cout,Cin,KH,KW) PyTorch layout; folded BN scale/bias."""
    B, H, W, Cin = x.shape
    Cout, _, KH, KW = w.shape
    ph, pw = padding
    xp = x
    if ph or pw:
        xp = jnp.pad(x, ((0, 0), (ph, ph), (pw, pw), (0, 0)))
    Hp, Wp = H + 2 * ph, W + 2 * pw
    Ho = (Hp - KH) // stride + 1
    Wo = (Wp - KW) // stride + 1

    if KH == 1 and KW == 1 and stride == 1:
        a = xp.reshape(B * Ho * Wo, Cin)                  # no im2col inflation
    else:
        patches = []
        for ky in range(KH):
            for kx in range(KW):
                patches.append(lax.slice(
                    xp,
                    (0, ky, kx, 0),
                    (B, ky + stride * (Ho - 1) + 1, kx + stride * (Wo - 1) + 1, Cin),
                    (1, stride, stride, 1)))
        # (B, Ho, Wo, KH*KW, Cin) -> (M, K); ordering (ky, kx, cin)
        a = jnp.stack(patches, axis=3).reshape(B * Ho * Wo, KH * KW * Cin)

    # (Cout, Cin, KH, KW) -> (KH*KW*Cin, Cout); fold the BN scale into the weights.
    wm = jnp.transpose(w, (2, 3, 1, 0)).reshape(KH * KW * Cin, Cout) * bn_scale[None, :]

    out = matmul_bias_relu(a, wm, bn_bias)
    return out.reshape(B, Ho, Wo, Cout)


def maxpool3x3s2(x):
    """NHWC max-pool, kernel=3, stride=2, no padding (F.max_pool2d(x, 3, 2))."""
    B, H, W, C = x.shape
    Ho = (H - 3) // 2 + 1
    Wo = (W - 3) // 2 + 1
    # 2x2 phase split (total size == input size; no 9x window stack in HBM).
    ee = x[:, 0::2, 0::2, :]
    eo = x[:, 0::2, 1::2, :]
    oe = x[:, 1::2, 0::2, :]
    oo = x[:, 1::2, 1::2, :]

    kernel = functools.partial(_maxpool3x3s2_kernel, ho=Ho, wo=Wo)
    return pl.pallas_call(
        kernel,
        out_shape=jax.ShapeDtypeStruct((B, Ho, Wo, C), x.dtype),
        grid_spec=pltpu.PrefetchScalarGridSpec(
            num_scalar_prefetch=0,
            grid=(B,),
            in_specs=[
                pl.BlockSpec((1,) + ee.shape[1:], lambda b: (b, 0, 0, 0)),
                pl.BlockSpec((1,) + eo.shape[1:], lambda b: (b, 0, 0, 0)),
                pl.BlockSpec((1,) + oe.shape[1:], lambda b: (b, 0, 0, 0)),
                pl.BlockSpec((1,) + oo.shape[1:], lambda b: (b, 0, 0, 0)),
            ],
            out_specs=pl.BlockSpec((1, Ho, Wo, C), lambda b: (b, 0, 0, 0)),
        ),
        compiler_params=pltpu.CompilerParams(
            dimension_semantics=("parallel",)),
    )(ee, eo, oe, oo)


# ---------------------------------------------------------------------------
# Parameters (synthetic, deterministic) and BN folding
# ---------------------------------------------------------------------------
BN_EPS = 1e-3


def _make_basic_conv_params(key, cin, cout, kh, kw):
    kw_, kg, kb, km, kv = jax.random.split(key, 5)
    fan_in = cin * kh * kw
    return {
        "w": jax.random.normal(kw_, (cout, cin, kh, kw), jnp.float32) / jnp.sqrt(fan_in),
        "gamma": 1.0 + 0.1 * jax.random.normal(kg, (cout,), jnp.float32),
        "beta": 0.1 * jax.random.normal(kb, (cout,), jnp.float32),
        "mean": 0.1 * jax.random.normal(km, (cout,), jnp.float32),
        "var": jnp.abs(jax.random.normal(kv, (cout,), jnp.float32)) + 0.5,
    }


def init_params(key, in_channels):
    specs = {
        "branch3x3_1": (in_channels, 192, 1, 1),
        "branch3x3_2": (192, 320, 3, 3),
        "branch7x7x3_1": (in_channels, 192, 1, 1),
        "branch7x7x3_2": (192, 192, 1, 7),
        "branch7x7x3_3": (192, 192, 7, 1),
        "branch7x7x3_4": (192, 192, 3, 3),
    }
    params = {}
    for k, (name, s) in zip(jax.random.split(key, len(specs)), specs.items()):
        params[name] = _make_basic_conv_params(k, *s)
    return params


def _fold_bn(p):
    scale = p["gamma"] * lax.rsqrt(p["var"] + BN_EPS)
    bias = p["beta"] - p["mean"] * scale
    return scale, bias


# ---------------------------------------------------------------------------
# InceptionD forward
# ---------------------------------------------------------------------------
def inception_d_forward(x_nchw, params):
    x = jnp.transpose(x_nchw, (0, 2, 3, 1)).astype(jnp.float32)  # NCHW -> NHWC

    def bconv(y, p, *, stride=1, padding=(0, 0)):
        s, b = _fold_bn(p)
        return conv_bn_relu(y, p["w"], s, b, stride=stride, padding=padding)

    # branch3x3
    b3 = bconv(x, params["branch3x3_1"])
    b3 = bconv(b3, params["branch3x3_2"], stride=2)

    # branch7x7x3
    b7 = bconv(x, params["branch7x7x3_1"])
    b7 = bconv(b7, params["branch7x7x3_2"], padding=(0, 3))
    b7 = bconv(b7, params["branch7x7x3_3"], padding=(3, 0))
    b7 = bconv(b7, params["branch7x7x3_4"], stride=2)

    # branch_pool
    bp = maxpool3x3s2(x)

    out = jnp.concatenate([b3, b7, bp], axis=-1)       # channel concat (NHWC)
    return jnp.transpose(out, (0, 3, 1, 2))            # back to NCHW like torch.cat(dim=1)


# ---------------------------------------------------------------------------
# Pure-JAX reference (for a correctness check only)
# ---------------------------------------------------------------------------
def _reference_forward(x_nchw, params):
    x = jnp.transpose(x_nchw, (0, 2, 3, 1)).astype(jnp.float32)

    def bconv(y, p, stride, padding):
        w = jnp.transpose(p["w"], (2, 3, 1, 0))  # HWIO
        y = lax.conv_general_dilated(
            y, w, window_strides=(stride, stride),
            padding=((padding[0], padding[0]), (padding[1], padding[1])),
            dimension_numbers=("NHWC", "HWIO", "NHWC"))
        y = (y - p["mean"]) * lax.rsqrt(p["var"] + BN_EPS) * p["gamma"] + p["beta"]
        return jnp.maximum(y, 0.0)

    b3 = bconv(x, params["branch3x3_1"], 1, (0, 0))
    b3 = bconv(b3, params["branch3x3_2"], 2, (0, 0))
    b7 = bconv(x, params["branch7x7x3_1"], 1, (0, 0))
    b7 = bconv(b7, params["branch7x7x3_2"], 1, (0, 3))
    b7 = bconv(b7, params["branch7x7x3_3"], 1, (3, 0))
    b7 = bconv(b7, params["branch7x7x3_4"], 2, (0, 0))
    bp = lax.reduce_window(x, -jnp.inf, lax.max, (1, 3, 3, 1), (1, 2, 2, 1), "VALID")
    out = jnp.concatenate([b3, b7, bp], axis=-1)
    return jnp.transpose(out, (0, 3, 1, 2))


if __name__ == "__main__":
    key = jax.random.PRNGKey(0)
    k_x, k_p = jax.random.split(key)
    B, C_IN, H, W = 2, 64, 17, 17                      # small, Inception-v3-like spatial
    x = jax.random.normal(k_x, (B, C_IN, H, W), jnp.float32)
    params = init_params(k_p, C_IN)

    fwd = jax.jit(inception_d_forward)
    out = jax.block_until_ready(fwd(x, params))

    assert out.shape == (B, 320 + 192 + C_IN, 8, 8), out.shape
    assert bool(jnp.all(jnp.isfinite(out)))

    ref = _reference_forward(x, params)
    max_err = float(jnp.max(jnp.abs(out - ref)))
    assert bool(jnp.allclose(out, ref, rtol=1e-3, atol=1e-3)), max_err

    print("KERNEL_OK")
</pallas_src>

<mosaic_0001>
module attributes {stable_mosaic.version = 11 : i64} {
  func.func @_maxpool3x3s2_kernel(%arg0: i32, %arg1: memref<1x9x9x64xf32, #tpu.memory_space<vmem>>, %arg2: memref<1x9x8x64xf32, #tpu.memory_space<vmem>>, %arg3: memref<1x8x9x64xf32, #tpu.memory_space<vmem>>, %arg4: memref<1x8x8x64xf32, #tpu.memory_space<vmem>>, %arg5: memref<1x8x8x64xf32, #tpu.memory_space<vmem>>) attributes {dimension_semantics = [#tpu.dimension_semantics<parallel>], iteration_bounds = array<i64: 2>, scalar_prefetch = 0 : i64, scratch_operands = 0 : i64, tpu.core_type = #tpu.core_type<tc>, window_params = [{transform_indices = @transform_0, window_bounds = array<i64: 1, 9, 9, 64>}, {transform_indices = @transform_1, window_bounds = array<i64: 1, 9, 8, 64>}, {transform_indices = @transform_2, window_bounds = array<i64: 1, 8, 9, 64>}, {transform_indices = @transform_3, window_bounds = array<i64: 1, 8, 8, 64>}, {transform_indices = @transform_4, window_bounds = array<i64: 1, 8, 8, 64>}]} {
    %c0 = arith.constant 0 : index
    %c0_0 = arith.constant 0 : index
    %c0_1 = arith.constant 0 : index
    %c0_2 = arith.constant 0 : index
    %0 = vector.load %arg1[%c0, %c0_0, %c0_1, %c0_2] : memref<1x9x9x64xf32, #tpu.memory_space<vmem>>, vector<1x8x8x64xf32>
    %1 = vector.shape_cast %0 : vector<1x8x8x64xf32> to vector<8x8x64xf32>
    %c0_3 = arith.constant 0 : index
    %c0_4 = arith.constant 0 : index
    %c1 = arith.constant 1 : index
    %c0_5 = arith.constant 0 : index
    %2 = vector.load %arg1[%c0_3, %c0_4, %c1, %c0_5] : memref<1x9x9x64xf32, #tpu.memory_space<vmem>>, vector<1x8x8x64xf32>
    %3 = vector.shape_cast %2 : vector<1x8x8x64xf32> to vector<8x8x64xf32>
    %4 = arith.maximumf %1, %3 : vector<8x8x64xf32>
    %c0_6 = arith.constant 0 : index
    %c1_7 = arith.constant 1 : index
    %c0_8 = arith.constant 0 : index
    %c0_9 = arith.constant 0 : index
    %5 = vector.load %arg1[%c0_6, %c1_7, %c0_8, %c0_9] : memref<1x9x9x64xf32, #tpu.memory_space<vmem>>, vector<1x8x8x64xf32>
    %6 = vector.shape_cast %5 : vector<1x8x8x64xf32> to vector<8x8x64xf32>
    %7 = arith.maximumf %4, %6 : vector<8x8x64xf32>
    %c0_10 = arith.constant 0 : index
    %c1_11 = arith.constant 1 : index
    %c1_12 = arith.constant 1 : index
    %c0_13 = arith.constant 0 : index
    %8 = vector.load %arg1[%c0_10, %c1_11, %c1_12, %c0_13] : memref<1x9x9x64xf32, #tpu.memory_space<vmem>>, vector<1x8x8x64xf32>
    %9 = vector.shape_cast %8 : vector<1x8x8x64xf32> to vector<8x8x64xf32>
    %10 = arith.maximumf %7, %9 : vector<8x8x64xf32>
    %c0_14 = arith.constant 0 : index
    %c0_15 = arith.constant 0 : index
    %c0_16 = arith.constant 0 : index
    %c0_17 = arith.constant 0 : index
    %11 = vector.load %arg2[%c0_14, %c0_15, %c0_16, %c0_17] : memref<1x9x8x64xf32, #tpu.memory_space<vmem>>, vector<1x8x8x64xf32>
    %12 = vector.shape_cast %11 : vector<1x8x8x64xf32> to vector<8x8x64xf32>
    %13 = arith.maximumf %10, %12 : vector<8x8x64xf32>
    %c0_18 = arith.constant 0 : index
    %c1_19 = arith.constant 1 : index
    %c0_20 = arith.constant 0 : index
    %c0_21 = arith.constant 0 : index
    %14 = vector.load %arg2[%c0_18, %c1_19, %c0_20, %c0_21] : memref<1x9x8x64xf32, #tpu.memory_space<vmem>>, vector<1x8x8x64xf32>
    %15 = vector.shape_cast %14 : vector<1x8x8x64xf32> to vector<8x8x64xf32>
    %16 = arith.maximumf %13, %15 : vector<8x8x64xf32>
    %c0_22 = arith.constant 0 : index
    %c0_23 = arith.constant 0 : index
    %c0_24 = arith.constant 0 : index
    %c0_25 = arith.constant 0 : index
    %17 = vector.load %arg3[%c0_22, %c0_23, %c0_24, %c0_25] : memref<1x8x9x64xf32, #tpu.memory_space<vmem>>, vector<1x8x8x64xf32>
    %18 = vector.shape_cast %17 : vector<1x8x8x64xf32> to vector<8x8x64xf32>
    %19 = arith.maximumf %16, %18 : vector<8x8x64xf32>
    %c0_26 = arith.constant 0 : index
    %c0_27 = arith.constant 0 : index
    %c1_28 = arith.constant 1 : index
    %c0_29 = arith.constant 0 : index
    %20 = vector.load %arg3[%c0_26, %c0_27, %c1_28, %c0_29] : memref<1x8x9x64xf32, #tpu.memory_space<vmem>>, vector<1x8x8x64xf32>
    %21 = vector.shape_cast %20 : vector<1x8x8x64xf32> to vector<8x8x64xf32>
    %22 = arith.maximumf %19, %21 : vector<8x8x64xf32>
    %c0_30 = arith.constant 0 : index
    %c0_31 = arith.constant 0 : index
    %c0_32 = arith.constant 0 : index
    %c0_33 = arith.constant 0 : index
    %23 = vector.load %arg4[%c0_30, %c0_31, %c0_32, %c0_33] : memref<1x8x8x64xf32, #tpu.memory_space<vmem>>, vector<1x8x8x64xf32>
    %24 = vector.shape_cast %23 : vector<1x8x8x64xf32> to vector<8x8x64xf32>
    %25 = arith.maximumf %22, %24 : vector<8x8x64xf32>
    %c0_34 = arith.constant 0 : index
    %c0_35 = arith.constant 0 : index
    %c0_36 = arith.constant 0 : index
    %c0_37 = arith.constant 0 : index
    %26 = vector.load %arg5[%c0_34, %c0_35, %c0_36, %c0_37] : memref<1x8x8x64xf32, #tpu.memory_space<vmem>>, vector<1x8x8x64xf32>
    %27 = vector.shape_cast %26 : vector<1x8x8x64xf32> to vector<8x8x64xf32>
    %28 = vector.shape_cast %25 : vector<8x8x64xf32> to vector<1x8x8x64xf32>
    tpu.vector_store %arg5[%c0_34, %c0_35, %c0_36, %c0_37], %28 {strides = array<i32>} : memref<1x8x8x64xf32, #tpu.memory_space<vmem>>, vector<1x8x8x64xf32>,
    return
  }
  func.func @transform_0(%arg0: i32) -> (i32, i32, i32, i32) {
    %c0_i32 = arith.constant 0 : i32
    %c0_i32_0 = arith.constant 0 : i32
    %c0_i32_1 = arith.constant 0 : i32
    %c0_i32_2 = arith.constant 0 : i32
    return %arg0, %c0_i32, %c0_i32_0, %c0_i32_1 : i32, i32, i32, i32
  }
  func.func @transform_1(%arg0: i32) -> (i32, i32, i32, i32) {
    %c0_i32 = arith.constant 0 : i32
    %c0_i32_0 = arith.constant 0 : i32
    %c0_i32_1 = arith.constant 0 : i32
    %c0_i32_2 = arith.constant 0 : i32
    return %arg0, %c0_i32, %c0_i32_0, %c0_i32_1 : i32, i32, i32, i32
  }
  func.func @transform_2(%arg0: i32) -> (i32, i32, i32, i32) {
    %c0_i32 = arith.constant 0 : i32
    %c0_i32_0 = arith.constant 0 : i32
    %c0_i32_1 = arith.constant 0 : i32
    %c0_i32_2 = arith.constant 0 : i32
    return %arg0, %c0_i32, %c0_i32_0, %c0_i32_1 : i32, i32, i32, i32
  }
  func.func @transform_3(%arg0: i32) -> (i32, i32, i32, i32) {
    %c0_i32 = arith.constant 0 : i32
    %c0_i32_0 = arith.constant 0 : i32
    %c0_i32_1 = arith.constant 0 : i32
    %c0_i32_2 = arith.constant 0 : i32
    return %arg0, %c0_i32, %c0_i32_0, %c0_i32_1 : i32, i32, i32, i32
  }
  func.func @transform_4(%arg0: i32) -> (i32, i32, i32, i32) {
    %c0_i32 = arith.constant 0 : i32
    %c0_i32_0 = arith.constant 0 : i32
    %c0_i32_1 = arith.constant 0 : i32
    %c0_i32_2 = arith.constant 0 : i32
    return %arg0, %c0_i32, %c0_i32_0, %c0_i32_1 : i32, i32, i32, i32
  }
}

module attributes {stable_mosaic.version = 11 : i64} {
  func.func @_matmul_bias_relu_kernel(%arg0: i32, %arg1: memref<296x64xf32, #tpu.memory_space<vmem>>, %arg2: memref<64x192xf32, #tpu.memory_space<vmem>>, %arg3: memref<1x192xf32, #tpu.memory_space<vmem>>, %arg4: memref<296x192xf32, #tpu.memory_space<vmem>>) attributes {dimension_semantics = [#tpu.dimension_semantics<parallel>], iteration_bounds = array<i64: 2>, scalar_prefetch = 0 : i64, scratch_operands = 0 : i64, tpu.core_type = #tpu.core_type<tc>, window_params = [{transform_indices = @transform_0, window_bounds = array<i64: 296, 64>}, {pipeline_mode = #tpu.pipeline_mode<synchronous>, transform_indices = @transform_1, window_bounds = array<i64: 64, 192>}, {pipeline_mode = #tpu.pipeline_mode<synchronous>, transform_indices = @transform_2, window_bounds = array<i64: 1, 192>}, {transform_indices = @transform_3, window_bounds = array<i64: 296, 192>}]} {
    %c0 = arith.constant 0 : index
    %c0_0 = arith.constant 0 : index
    %0 = vector.load %arg1[%c0, %c0_0] : memref<296x64xf32, #tpu.memory_space<vmem>>, vector<296x64xf32>
    %c0_1 = arith.constant 0 : index
    %c0_2 = arith.constant 0 : index
    %1 = vector.load %arg2[%c0_1, %c0_2] : memref<64x192xf32, #tpu.memory_space<vmem>>, vector<64x192xf32>
    %cst = arith.constant dense<0.000000e+00> : vector<296x192xf32>
    %2 = tpu.matmul %0, %1, %cst {dimension_numbers = #tpu.dot_dimension_numbers<[1], [0], [0], [1], [0, 0, 1, 1], [], []>} : vector<296x64xf32>, vector<64x192xf32>, vector<296x192xf32> -> vector<296x192xf32>
    %c0_3 = arith.constant 0 : index
    %c0_4 = arith.constant 0 : index
    %3 = vector.load %arg3[%c0_3, %c0_4] : memref<1x192xf32, #tpu.memory_space<vmem>>, vector<1x192xf32>
    %4 = vector.broadcast %3 : vector<1x192xf32> to vector<296x192xf32>
    %5 = arith.addf %2, %4 : vector<296x192xf32>
    %cst_5 = arith.constant 0.000000e+00 : f32
    %6 = vector.broadcast %cst_5 : f32 to vector<296x192xf32>
    %7 = arith.maximumf %5, %6 : vector<296x192xf32>
    %c0_6 = arith.constant 0 : index
    %c0_7 = arith.constant 0 : index
    %8 = vector.load %arg4[%c0_6, %c0_7] : memref<296x192xf32, #tpu.memory_space<vmem>>, vector<296x192xf32>
    tpu.vector_store %arg4[%c0_6, %c0_7], %7 {strides = array<i32>} : memref<296x192xf32, #tpu.memory_space<vmem>>, vector<296x192xf32>,
    return
  }
  func.func @transform_0(%arg0: i32) -> (i32, i32) {
    %c0_i32 = arith.constant 0 : i32
    %c0_i32_0 = arith.constant 0 : i32
    return %arg0, %c0_i32 : i32, i32
  }
  func.func @transform_1(%arg0: i32) -> (i32, i32) {
    %c0_i32 = arith.constant 0 : i32
    %c0_i32_0 = arith.constant 0 : i32
    %c0_i32_1 = arith.constant 0 : i32
    return %c0_i32, %c0_i32_0 : i32, i32
  }
  func.func @transform_2(%arg0: i32) -> (i32, i32) {
    %c0_i32 = arith.constant 0 : i32
    %c0_i32_0 = arith.constant 0 : i32
    %c0_i32_1 = arith.constant 0 : i32
    return %c0_i32, %c0_i32_0 : i32, i32
  }
  func.func @transform_3(%arg0: i32) -> (i32, i32) {
    %c0_i32 = arith.constant 0 : i32
    %c0_i32_0 = arith.constant 0 : i32
    return %arg0, %c0_i32 : i32, i32
  }
}

module attributes {stable_mosaic.version = 11 : i64} {
  func.func @_matmul_bias_relu_kernel(%arg0: i32, %arg1: memref<296x1344xf32, #tpu.memory_space<vmem>>, %arg2: memref<1344x192xf32, #tpu.memory_space<vmem>>, %arg3: memref<1x192xf32, #tpu.memory_space<vmem>>, %arg4: memref<296x192xf32, #tpu.memory_space<vmem>>) attributes {dimension_semantics = [#tpu.dimension_semantics<parallel>], iteration_bounds = array<i64: 2>, scalar_prefetch = 0 : i64, scratch_operands = 0 : i64, tpu.core_type = #tpu.core_type<tc>, window_params = [{transform_indices = @transform_0, window_bounds = array<i64: 296, 1344>}, {pipeline_mode = #tpu.pipeline_mode<synchronous>, transform_indices = @transform_1, window_bounds = array<i64: 1344, 192>}, {pipeline_mode = #tpu.pipeline_mode<synchronous>, transform_indices = @transform_2, window_bounds = array<i64: 1, 192>}, {transform_indices = @transform_3, window_bounds = array<i64: 296, 192>}]} {
    %c0 = arith.constant 0 : index
    %c0_0 = arith.constant 0 : index
    %0 = vector.load %arg1[%c0, %c0_0] : memref<296x1344xf32, #tpu.memory_space<vmem>>, vector<296x1344xf32>
    %c0_1 = arith.constant 0 : index
    %c0_2 = arith.constant 0 : index
    %1 = vector.load %arg2[%c0_1, %c0_2] : memref<1344x192xf32, #tpu.memory_space<vmem>>, vector<1344x192xf32>
    %cst = arith.constant dense<0.000000e+00> : vector<296x192xf32>
    %2 = tpu.matmul %0, %1, %cst {dimension_numbers = #tpu.dot_dimension_numbers<[1], [0], [0], [1], [0, 0, 1, 1], [], []>} : vector<296x1344xf32>, vector<1344x192xf32>, vector<296x192xf32> -> vector<296x192xf32>
    %c0_3 = arith.constant 0 : index
    %c0_4 = arith.constant 0 : index
    %3 = vector.load %arg3[%c0_3, %c0_4] : memref<1x192xf32, #tpu.memory_space<vmem>>, vector<1x192xf32>
    %4 = vector.broadcast %3 : vector<1x192xf32> to vector<296x192xf32>
    %5 = arith.addf %2, %4 : vector<296x192xf32>
    %cst_5 = arith.constant 0.000000e+00 : f32
    %6 = vector.broadcast %cst_5 : f32 to vector<296x192xf32>
    %7 = arith.maximumf %5, %6 : vector<296x192xf32>
    %c0_6 = arith.constant 0 : index
    %c0_7 = arith.constant 0 : index
    %8 = vector.load %arg4[%c0_6, %c0_7] : memref<296x192xf32, #tpu.memory_space<vmem>>, vector<296x192xf32>
    tpu.vector_store %arg4[%c0_6, %c0_7], %7 {strides = array<i32>} : memref<296x192xf32, #tpu.memory_space<vmem>>, vector<296x192xf32>,
    return
  }
  func.func @transform_0(%arg0: i32) -> (i32, i32) {
    %c0_i32 = arith.constant 0 : i32
    %c0_i32_0 = arith.constant 0 : i32
    return %arg0, %c0_i32 : i32, i32
  }
  func.func @transform_1(%arg0: i32) -> (i32, i32) {
    %c0_i32 = arith.constant 0 : i32
    %c0_i32_0 = arith.constant 0 : i32
    %c0_i32_1 = arith.constant 0 : i32
    return %c0_i32, %c0_i32_0 : i32, i32
  }
  func.func @transform_2(%arg0: i32) -> (i32, i32) {
    %c0_i32 = arith.constant 0 : i32
    %c0_i32_0 = arith.constant 0 : i32
    %c0_i32_1 = arith.constant 0 : i32
    return %c0_i32, %c0_i32_0 : i32, i32
  }
  func.func @transform_3(%arg0: i32) -> (i32, i32) {
    %c0_i32 = arith.constant 0 : i32
    %c0_i32_0 = arith.constant 0 : i32
    return %arg0, %c0_i32 : i32, i32
  }
}

module attributes {stable_mosaic.version = 11 : i64} {
  func.func @_matmul_bias_relu_kernel(%arg0: i32, %arg1: memref<64x1728xf32, #tpu.memory_space<vmem>>, %arg2: memref<1728x192xf32, #tpu.memory_space<vmem>>, %arg3: memref<1x192xf32, #tpu.memory_space<vmem>>, %arg4: memref<64x192xf32, #tpu.memory_space<vmem>>) attributes {dimension_semantics = [#tpu.dimension_semantics<parallel>], iteration_bounds = array<i64: 2>, scalar_prefetch = 0 : i64, scratch_operands = 0 : i64, tpu.core_type = #tpu.core_type<tc>, window_params = [{transform_indices = @transform_0, window_bounds = array<i64: 64, 1728>}, {pipeline_mode = #tpu.pipeline_mode<synchronous>, transform_indices = @transform_1, window_bounds = array<i64: 1728, 192>}, {pipeline_mode = #tpu.pipeline_mode<synchronous>, transform_indices = @transform_2, window_bounds = array<i64: 1, 192>}, {transform_indices = @transform_3, window_bounds = array<i64: 64, 192>}]} {
    %c0 = arith.constant 0 : index
    %c0_0 = arith.constant 0 : index
    %0 = vector.load %arg1[%c0, %c0_0] : memref<64x1728xf32, #tpu.memory_space<vmem>>, vector<64x1728xf32>
    %c0_1 = arith.constant 0 : index
    %c0_2 = arith.constant 0 : index
    %1 = vector.load %arg2[%c0_1, %c0_2] : memref<1728x192xf32, #tpu.memory_space<vmem>>, vector<1728x192xf32>
    %cst = arith.constant dense<0.000000e+00> : vector<64x192xf32>
    %2 = tpu.matmul %0, %1, %cst {dimension_numbers = #tpu.dot_dimension_numbers<[1], [0], [0], [1], [0, 0, 1, 1], [], []>} : vector<64x1728xf32>, vector<1728x192xf32>, vector<64x192xf32> -> vector<64x192xf32>
    %c0_3 = arith.constant 0 : index
    %c0_4 = arith.constant 0 : index
    %3 = vector.load %arg3[%c0_3, %c0_4] : memref<1x192xf32, #tpu.memory_space<vmem>>, vector<1x192xf32>
    %4 = vector.broadcast %3 : vector<1x192xf32> to vector<64x192xf32>
    %5 = arith.addf %2, %4 : vector<64x192xf32>
    %cst_5 = arith.constant 0.000000e+00 : f32
    %6 = vector.broadcast %cst_5 : f32 to vector<64x192xf32>
    %7 = arith.maximumf %5, %6 : vector<64x192xf32>
    %c0_6 = arith.constant 0 : index
    %c0_7 = arith.constant 0 : index
    %8 = vector.load %arg4[%c0_6, %c0_7] : memref<64x192xf32, #tpu.memory_space<vmem>>, vector<64x192xf32>
    tpu.vector_store %arg4[%c0_6, %c0_7], %7 {strides = array<i32>} : memref<64x192xf32, #tpu.memory_space<vmem>>, vector<64x192xf32>,
    return
  }
  func.func @transform_0(%arg0: i32) -> (i32, i32) {
    %c0_i32 = arith.constant 0 : i32
    %c0_i32_0 = arith.constant 0 : i32
    return %arg0, %c0_i32 : i32, i32
  }
  func.func @transform_1(%arg0: i32) -> (i32, i32) {
    %c0_i32 = arith.constant 0 : i32
    %c0_i32_0 = arith.constant 0 : i32
    %c0_i32_1 = arith.constant 0 : i32
    return %c0_i32, %c0_i32_0 : i32, i32
  }
  func.func @transform_2(%arg0: i32) -> (i32, i32) {
    %c0_i32 = arith.constant 0 : i32
    %c0_i32_0 = arith.constant 0 : i32
    %c0_i32_1 = arith.constant 0 : i32
    return %c0_i32, %c0_i32_0 : i32, i32
  }
  func.func @transform_3(%arg0: i32) -> (i32, i32) {
    %c0_i32 = arith.constant 0 : i32
    %c0_i32_0 = arith.constant 0 : i32
    return %arg0, %c0_i32 : i32, i32
  }
}

module attributes {stable_mosaic.version = 11 : i64} {
  func.func @_matmul_bias_relu_kernel(%arg0: i32, %arg1: memref<64x1728xf32, #tpu.memory_space<vmem>>, %arg2: memref<1728x320xf32, #tpu.memory_space<vmem>>, %arg3: memref<1x320xf32, #tpu.memory_space<vmem>>, %arg4: memref<64x320xf32, #tpu.memory_space<vmem>>) attributes {dimension_semantics = [#tpu.dimension_semantics<parallel>], iteration_bounds = array<i64: 2>, scalar_prefetch = 0 : i64, scratch_operands = 0 : i64, tpu.core_type = #tpu.core_type<tc>, window_params = [{transform_indices = @transform_0, window_bounds = array<i64: 64, 1728>}, {pipeline_mode = #tpu.pipeline_mode<synchronous>, transform_indices = @transform_1, window_bounds = array<i64: 1728, 320>}, {pipeline_mode = #tpu.pipeline_mode<synchronous>, transform_indices = @transform_2, window_bounds = array<i64: 1, 320>}, {transform_indices = @transform_3, window_bounds = array<i64: 64, 320>}]} {
    %c0 = arith.constant 0 : index
    %c0_0 = arith.constant 0 : index
    %0 = vector.load %arg1[%c0, %c0_0] : memref<64x1728xf32, #tpu.memory_space<vmem>>, vector<64x1728xf32>
    %c0_1 = arith.constant 0 : index
    %c0_2 = arith.constant 0 : index
    %1 = vector.load %arg2[%c0_1, %c0_2] : memref<1728x320xf32, #tpu.memory_space<vmem>>, vector<1728x320xf32>
    %cst = arith.constant dense<0.000000e+00> : vector<64x320xf32>
    %2 = tpu.matmul %0, %1, %cst {dimension_numbers = #tpu.dot_dimension_numbers<[1], [0], [0], [1], [0, 0, 1, 1], [], []>} : vector<64x1728xf32>, vector<1728x320xf32>, vector<64x320xf32> -> vector<64x320xf32>
    %c0_3 = arith.constant 0 : index
    %c0_4 = arith.constant 0 : index
    %3 = vector.load %arg3[%c0_3, %c0_4] : memref<1x320xf32, #tpu.memory_space<vmem>>, vector<1x320xf32>
    %4 = vector.broadcast %3 : vector<1x320xf32> to vector<64x320xf32>
    %5 = arith.addf %2, %4 : vector<64x320xf32>
    %cst_5 = arith.constant 0.000000e+00 : f32
    %6 = vector.broadcast %cst_5 : f32 to vector<64x320xf32>
    %7 = arith.maximumf %5, %6 : vector<64x320xf32>
    %c0_6 = arith.constant 0 : index
    %c0_7 = arith.constant 0 : index
    %8 = vector.load %arg4[%c0_6, %c0_7] : memref<64x320xf32, #tpu.memory_space<vmem>>, vector<64x320xf32>
    tpu.vector_store %arg4[%c0_6, %c0_7], %7 {strides = array<i32>} : memref<64x320xf32, #tpu.memory_space<vmem>>, vector<64x320xf32>,
    return
  }
  func.func @transform_0(%arg0: i32) -> (i32, i32) {
    %c0_i32 = arith.constant 0 : i32
    %c0_i32_0 = arith.constant 0 : i32
    return %arg0, %c0_i32 : i32, i32
  }
  func.func @transform_1(%arg0: i32) -> (i32, i32) {
    %c0_i32 = arith.constant 0 : i32
    %c0_i32_0 = arith.constant 0 : i32
    %c0_i32_1 = arith.constant 0 : i32
    return %c0_i32, %c0_i32_0 : i32, i32
  }
  func.func @transform_2(%arg0: i32) -> (i32, i32) {
    %c0_i32 = arith.constant 0 : i32
    %c0_i32_0 = arith.constant 0 : i32
    %c0_i32_1 = arith.constant 0 : i32
    return %c0_i32, %c0_i32_0 : i32, i32
  }
  func.func @transform_3(%arg0: i32) -> (i32, i32) {
    %c0_i32 = arith.constant 0 : i32
    %c0_i32_0 = arith.constant 0 : i32
    return %arg0, %c0_i32 : i32, i32
  }
}

</mosaic_0001>

<llo_original>
// kernel: inception_d_forward.13
$region0: #{inception_d_forward.13}
  #allocation0 [shape = 'u32[]', space=smem, size = 0x4, offset = 0x4, fixed_abs, tag = 'smem constant byte address 0x4 - core index']
  #allocation1 [shape = 'u32[144,128]{1,0:T(1,128)}', space=vmem, size = 0x12000, scoped, tag = 'internal scratch']
  %s0 = inlined_call_operand.vmem [shape: f32[2,9,9,64], index: 0, kind: input, shape index: {}]
  %s1 = inlined_call_operand.vmem [shape: f32[2,9,8,64], index: 1, kind: input, shape index: {}]
  %s2 = inlined_call_operand.vmem [shape: f32[2,8,9,64], index: 2, kind: input, shape index: {}]
  %s3 = inlined_call_operand.vmem [shape: f32[2,8,8,64], index: 3, kind: input, shape index: {}]
  %s4 = inlined_call_operand.vmem [shape: f32[2,8,8,64], index: 4, kind: output, shape index: {}]
  %s5 = sld [smem:[#allocation0]]
  $region49: #{inception_d_forward.13} parent=0
    _
  %s7 = ssub.s32 1, %s5
  %s8 = scalar_select 0, %s7, %s5
  loop: start=0, step=1, limit=4
  $region2: #{inception_d_forward.13} parent=0 // loop_pre_header
    _
  $region3: #{inception_d_forward.13} parent=0 // loop_header
    %s10 = sphi 0, %s14
    %p11 = scmp.ge.s32.totalorder %s10, 4
    %s20 = sphi 0, %s22
    %s23 = sphi 0, %s20
    %s24 = sphi 0, %s23
    %s40 = sphi 0, %s24
    %s46 = sphi 0, %s48
    %s49 = sphi 0, %s46
    %s50 = sphi 0, %s49
    %s66 = sphi 0, %s50
    %s72 = sphi 0, %s74
    %s75 = sphi 0, %s72
    %s76 = sphi 0, %s75
    %s92 = sphi 0, %s76
    %s98 = sphi 0, %s100
    %s101 = sphi 0, %s98
    %s102 = sphi 0, %s101
    %s118 = sphi 0, %s102
    %s124 = sphi 0, %s126
    %s127 = sphi 0, %s124
    %s128 = sphi 0, %s127
    %s144 = sphi 0, %s128
  $region4: #{inception_d_forward.13} parent=0 // loop_header_branch
    %13 = sbr.rel (%p11) target = $region8
  $region5: #{inception_d_forward.13} parent=0 // loop_body
    %s15 = ssub.s32 %s10, 1
    %s16 = ssub.s32 %s10, 2
    %s17 = sadd.s32 %s10, 1
    %s18 = ssub.s32 %s10, %s17
    %p19 = scmp.eq.s32.totalorder %s18, 0
    %s21 = sadd.s32 %s20, 1
    %s22 = scalar_select %p19, %s20, %s21
    %p25 = pneg %p19
    %p26 = scmp.eq.s32.totalorder %s10, 1
    %p27 = por %p25, %p26
    %p28 = scmp.ne.s32.totalorder %s20, %s23
    %p29 = scmp.eq.s32.totalorder %s10, 0
    %p30 = por %p28, %p29
    %p31 = scmp.ne.s32.totalorder %s20, %s23
    %p32 = scmp.eq.s32.totalorder %s15, 1
    %p33 = por %p31, %p32
    %p34 = scmp.ne.s32.totalorder %s23, %s24
    %p35 = scmp.eq.s32.totalorder %s15, 0
    %p36 = por %p34, %p35
    %p37 = scmp.ne.s32.totalorder %s23, %s24
    %p38 = scmp.eq.s32.totalorder %s16, 1
    %p39 = por %p37, %p38
    %p41 = scmp.ne.s32.totalorder %s24, %s40
    %p42 = scmp.eq.s32.totalorder %s16, 0
    %p43 = por %p41, %p42
    %s44 = ssub.s32 %s10, %s17
    %p45 = scmp.eq.s32.totalorder %s44, 0
    %s47 = sadd.s32 %s46, 1
    %s48 = scalar_select %p45, %s46, %s47
    %p51 = pneg %p45
    %p52 = scmp.eq.s32.totalorder %s10, 1
    %p53 = por %p51, %p52
    %p54 = scmp.ne.s32.totalorder %s46, %s49
    %p55 = scmp.eq.s32.totalorder %s10, 0
    %p56 = por %p54, %p55
    %p57 = scmp.ne.s32.totalorder %s46, %s49
    %p58 = scmp.eq.s32.totalorder %s15, 1
    %p59 = por %p57, %p58
    %p60 = scmp.ne.s32.totalorder %s49, %s50
    %p61 = scmp.eq.s32.totalorder %s15, 0
    %p62 = por %p60, %p61
    %p63 = scmp.ne.s32.totalorder %s49, %s50
    %p64 = scmp.eq.s32.totalorder %s16, 1
    %p65 = por %p63, %p64
    %p67 = scmp.ne.s32.totalorder %s50, %s66
    %p68 = scmp.eq.s32.totalorder %s16, 0
    %p69 = por %p67, %p68
    %s70 = ssub.s32 %s10, %s17
    %p71 = scmp.eq.s32.totalorder %s70, 0
    %s73 = sadd.s32 %s72, 1
    %s74 = scalar_select %p71, %s72, %s73
    %p77 = pneg %p71
    %p78 = scmp.eq.s32.totalorder %s10, 1
    %p79 = por %p77, %p78
    %p80 = scmp.ne.s32.totalorder %s72, %s75
    %p81 = scmp.eq.s32.totalorder %s10, 0
    %p82 = por %p80, %p81
    %p83 = scmp.ne.s32.totalorder %s72, %s75
    %p84 = scmp.eq.s32.totalorder %s15, 1
    %p85 = por %p83, %p84
    %p86 = scmp.ne.s32.totalorder %s75, %s76
    %p87 = scmp.eq.s32.totalorder %s15, 0
    %p88 = por %p86, %p87
    %p89 = scmp.ne.s32.totalorder %s75, %s76
    %p90 = scmp.eq.s32.totalorder %s16, 1
    %p91 = por %p89, %p90
    %p93 = scmp.ne.s32.totalorder %s76, %s92
    %p94 = scmp.eq.s32.totalorder %s16, 0
    %p95 = por %p93, %p94
    %s96 = ssub.s32 %s10, %s17
    %p97 = scmp.eq.s32.totalorder %s96, 0
    %s99 = sadd.s32 %s98, 1
    %s100 = scalar_select %p97, %s98, %s99
    %p103 = pneg %p97
    %p104 = scmp.eq.s32.totalorder %s10, 1
    %p105 = por %p103, %p104
    %p106 = scmp.ne.s32.totalorder %s98, %s101
    %p107 = scmp.eq.s32.totalorder %s10, 0
    %p108 = por %p106, %p107
    %p109 = scmp.ne.s32.totalorder %s98, %s101
    %p110 = scmp.eq.s32.totalorder %s15, 1
    %p111 = por %p109, %p110
    %p112 = scmp.ne.s32.totalorder %s101, %s102
    %p113 = scmp.eq.s32.totalorder %s15, 0
    %p114 = por %p112, %p113
    %p115 = scmp.ne.s32.totalorder %s101, %s102
    %p116 = scmp.eq.s32.totalorder %s16, 1
    %p117 = por %p115, %p116
    %p119 = scmp.ne.s32.totalorder %s102, %s118
    %p120 = scmp.eq.s32.totalorder %s16, 0
    %p121 = por %p119, %p120
    %s122 = ssub.s32 %s10, %s17
    %p123 = scmp.eq.s32.totalorder %s122, 0
    %s125 = sadd.s32 %s124, 1
    %s126 = scalar_select %p123, %s124, %s125
    %p129 = pneg %p123
    %p130 = scmp.eq.s32.totalorder %s10, 1
    %p131 = por %p129, %p130
    %p132 = scmp.ne.s32.totalorder %s124, %s127
    %p133 = scmp.eq.s32.totalorder %s10, 0
    %p134 = por %p132, %p133
    %p135 = scmp.ne.s32.totalorder %s124, %s127
    %p136 = scmp.eq.s32.totalorder %s15, 1
    %p137 = por %p135, %p136
    %p138 = scmp.ne.s32.totalorder %s127, %s128
    %p139 = scmp.eq.s32.totalorder %s15, 0
    %p140 = por %p138, %p139
    %p141 = scmp.ne.s32.totalorder %s127, %s128
    %p142 = scmp.eq.s32.totalorder %s16, 1
    %p143 = por %p141, %p142
    %p145 = scmp.ne.s32.totalorder %s128, %s144
    %p146 = scmp.eq.s32.totalorder %s16, 0
    %p147 = por %p145, %p146
    %p148 = scmp.le.s32.totalorder 1, %s10
    %p149 = scmp.lt.s32.totalorder %s10, 3
    %p150 = pnand %p148, %p149
    %p151 = pneg %p150
    // Predicated region
    $region9: #{inception_d_forward.13} parent=5 // pred_check
      _
    $region10: #{inception_d_forward.13} parent=5 // pred_check_branch
      %153 = sbr.rel (%p150) target = $region12
    $region11: #{inception_d_forward.13} parent=5 // pred_region
      %s154 = ssub.s32 %s10, 1
    $region12: #{inception_d_forward.13} parent=5 // pred_fallthru
      _
    %p155 = scmp.lt.s32.totalorder %s10, 2
    // Predicated region
    $region13: #{inception_d_forward.13} parent=5 // pred_check
      %p156 = pneg %p155
    $region14: #{inception_d_forward.13} parent=5 // pred_check_branch
      %158 = sbr.rel (%p156) target = $region16
    $region15: #{inception_d_forward.13} parent=5 // pred_region
      // Predicated region
      $region17: #{inception_d_forward.13} parent=15 // pred_check
        %p159 = pneg %p30
      $region18: #{inception_d_forward.13} parent=15 // pred_check_branch
        %161 = sbr.rel (%p159) target = $region20
      $region19: #{inception_d_forward.13} parent=15 // pred_region
        %p162 = scmp.lt.s32.totalorder %s10, 1
        %s163 = scalar_select %p162, %s10, 1
        %s164 = smul.addr %s163, 18
        %s165 = smul.addr %s164, 8
        %s166 = scalar_lea.vmem %s0, %s165
      $region20: #{inception_d_forward.13} parent=15 // pred_fallthru
        _
      // Predicated region
      $region21: #{inception_d_forward.13} parent=15 // pred_check
        %p167 = pneg %p56
      $region22: #{inception_d_forward.13} parent=15 // pred_check_branch
        %169 = sbr.rel (%p167) target = $region24
      $region23: #{inception_d_forward.13} parent=15 // pred_region
        %p170 = scmp.lt.s32.totalorder %s10, 1
        %s171 = scalar_select %p170, %s10, 1
        %s172 = smul.addr %s171, 9
        %s173 = smul.addr %s172, 8
        %s174 = scalar_lea.vmem %s1, %s173
      $region24: #{inception_d_forward.13} parent=15 // pred_fallthru
        _
      // Predicated region
      $region25: #{inception_d_forward.13} parent=15 // pred_check
        %p175 = pneg %p82
      $region26: #{inception_d_forward.13} parent=15 // pred_check_branch
        %177 = sbr.rel (%p175) target = $region28
      $region27: #{inception_d_forward.13} parent=15 // pred_region
        %p178 = scmp.lt.s32.totalorder %s10, 1
        %s179 = scalar_select %p178, %s10, 1
        %s180 = smul.addr %s179, 16
        %s181 = smul.addr %s180, 8
        %s182 = scalar_lea.vmem %s2, %s181
      $region28: #{inception_d_forward.13} parent=15 // pred_fallthru
        _
      // Predicated region
      $region29: #{inception_d_forward.13} parent=15 // pred_check
        %p183 = pneg %p108
      $region30: #{inception_d_forward.13} parent=15 // pred_check_branch
        %185 = sbr.rel (%p183) target = $region32
      $region31: #{inception_d_forward.13} parent=15 // pred_region
        %p186 = scmp.lt.s32.totalorder %s10, 1
        %s187 = scalar_select %p186, %s10, 1
        %s188 = smul.addr %s187, 8
        %s189 = smul.addr %s188, 8
        %s190 = scalar_lea.vmem %s3, %s189
      $region32: #{inception_d_forward.13} parent=15 // pred_fallthru
        _
    $region16: #{inception_d_forward.13} parent=5 // pred_fallthru
      _
    %p191 = scmp.le.s32.totalorder 1, %s10
    %p192 = scmp.lt.s32.totalorder %s10, 3
    %p193 = pnand %p191, %p192
    %p194 = pneg %p193
    // Predicated region
    $region33: #{inception_d_forward.13} parent=5 // pred_check
      _
    $region34: #{inception_d_forward.13} parent=5 // pred_check_branch
      %196 = sbr.rel (%p193) target = $region36
    $region35: #{inception_d_forward.13} parent=5 // pred_region
      %s197 = ssub.s32 %s10, 1
      %p198 = scmp.lt.s32.totalorder %s15, 1
      %s199 = scalar_select %p198, %s15, 1
      %s200 = smul.addr %s199, 18
      %s201 = smul.addr %s200, 8
      %s202 = scalar_lea.vmem %s0, %s201
      %p203 = pneg %p36
      %p204 = pneg %p33
      %p205 = scmp.lt.s32.totalorder %s15, 1
      %s206 = scalar_select %p205, %s15, 1
      %s207 = smul.addr %s206, 9
      %s208 = smul.addr %s207, 8
      %s209 = scalar_lea.vmem %s1, %s208
      %p210 = pneg %p62
      %p211 = pneg %p59
      %p212 = scmp.lt.s32.totalorder %s15, 1
      %s213 = scalar_select %p212, %s15, 1
      %s214 = smul.addr %s213, 16
      %s215 = smul.addr %s214, 8
      %s216 = scalar_lea.vmem %s2, %s215
      %p217 = pneg %p88
      %p218 = pneg %p85
      %p219 = scmp.lt.s32.totalorder %s15, 1
      %s220 = scalar_select %p219, %s15, 1
      %s221 = smul.addr %s220, 8
      %s222 = smul.addr %s221, 8
      %s223 = scalar_lea.vmem %s3, %s222
      %p224 = pneg %p114
      %p225 = pneg %p111
      %p226 = pneg %p140
      %p227 = pneg %p137
      %p228 = scmp.lt.s32.totalorder %s15, 1
      %s229 = scalar_select %p228, %s15, 1
      %s230 = smul.addr %s229, 8
      %s231 = smul.addr %s230, 8
      %s232 = scalar_lea.vmem %s4, %s231
      %p233 = scmp.lt.s32.totalorder %s15, 1
      %s234 = scalar_select %p233, %s15, 1
      %s235 = smul.addr %s234, 18
      %s236 = smul.addr %s235, 8
      %s237 = scalar_lea.vmem %s0, %s236
      %p238 = scmp.lt.s32.totalorder %s15, 1
      %s239 = scalar_select %p238, %s15, 1
      %s240 = smul.addr %s239, 9
      %s241 = smul.addr %s240, 8
      %s242 = scalar_lea.vmem %s1, %s241
      %p243 = scmp.lt.s32.totalorder %s15, 1
      %s244 = scalar_select %p243, %s15, 1
      %s245 = smul.addr %s244, 16
      %s246 = smul.addr %s245, 8
      %s247 = scalar_lea.vmem %s2, %s246
      %p248 = scmp.lt.s32.totalorder %s15, 1
      %s249 = scalar_select %p248, %s15, 1
      %s250 = smul.addr %s249, 8
      %s251 = smul.addr %s250, 8
      %s252 = scalar_lea.vmem %s3, %s251
      %p253 = scmp.lt.s32.totalorder %s15, 1
      %s254 = scalar_select %p253, %s15, 1
      %s255 = smul.addr %s254, 8
      %s256 = smul.addr %s255, 8
      %s257 = scalar_lea.vmem %s4, %s256
      %v258 = vld [vmem:[%s237] sm:$0xff]
      %v259 = vld [vmem:[%s237 + $0x10] sm:$0xff]
      %v260 = vld [vmem:[%s237 + $0x20] sm:$0xff]
      %v261 = vld [vmem:[%s237 + $0x30] sm:$0xff]
      %v262 = vld [vmem:[%s237 + $0x40] sm:$0xff]
      %v263 = vld [vmem:[%s237 + $0x50] sm:$0xff]
      %v264 = vld [vmem:[%s237 + $0x60] sm:$0xff]
      %v265 = vld [vmem:[%s237 + $0x70] sm:$0xff]
      %v266 = vld [vmem:[%s237 + $0x1] sm:$0xff]
      %v267 = vld [vmem:[%s237 + $0x11] sm:$0xff]
      %v268 = vld [vmem:[%s237 + $0x21] sm:$0xff]
      %v269 = vld [vmem:[%s237 + $0x31] sm:$0xff]
      %v270 = vld [vmem:[%s237 + $0x41] sm:$0xff]
      %v271 = vld [vmem:[%s237 + $0x51] sm:$0xff]
      %v272 = vld [vmem:[%s237 + $0x61] sm:$0xff]
      %v273 = vld [vmem:[%s237 + $0x71] sm:$0xff]
      %v274 = vmax.f32 %v258, %v266
      %v275 = vmax.f32 %v259, %v267
      %v276 = vmax.f32 %v260, %v268
      %v277 = vmax.f32 %v261, %v269
      %v278 = vmax.f32 %v262, %v270
      %v279 = vmax.f32 %v263, %v271
      %v280 = vmax.f32 %v264, %v272
      %v281 = vmax.f32 %v265, %v273
      %s282 = scalar_lea.vmem %s237, 16
      %v283 = vld [vmem:[%s282] sm:$0xff]
      %v284 = vld [vmem:[%s282 + $0x10] sm:$0xff]
      %v285 = vld [vmem:[%s282 + $0x20] sm:$0xff]
      %v286 = vld [vmem:[%s282 + $0x30] sm:$0xff]
      %v287 = vld [vmem:[%s282 + $0x40] sm:$0xff]
      %v288 = vld [vmem:[%s282 + $0x50] sm:$0xff]
      %v289 = vld [vmem:[%s282 + $0x60] sm:$0xff]
      %v290 = vld [vmem:[%s282 + $0x70] sm:$0xff]
      %v291 = vmax.f32 %v274, %v283
      %v292 = vmax.f32 %v275, %v284
      %v293 = vmax.f32 %v276, %v285
      %v294 = vmax.f32 %v277, %v286
      %v295 = vmax.f32 %v278, %v287
      %v296 = vmax.f32 %v279, %v288
      %v297 = vmax.f32 %v280, %v289
      %v298 = vmax.f32 %v281, %v290
      %v299 = vld [vmem:[%s282 + $0x1] sm:$0xff]
      %v300 = vld [vmem:[%s282 + $0x11] sm:$0xff]
      %v301 = vld [vmem:[%s282 + $0x21] sm:$0xff]
      %v302 = vld [vmem:[%s282 + $0x31] sm:$0xff]
      %v303 = vld [vmem:[%s282 + $0x41] sm:$0xff]
      %v304 = vld [vmem:[%s282 + $0x51] sm:$0xff]
      %v305 = vld [vmem:[%s282 + $0x61] sm:$0xff]
      %v306 = vld [vmem:[%s282 + $0x71] sm:$0xff]
      %v307 = vmax.f32 %v291, %v299
      %v308 = vmax.f32 %v292, %v300
      %v309 = vmax.f32 %v293, %v301
      %v310 = vmax.f32 %v294, %v302
      %v311 = vmax.f32 %v295, %v303
      %v312 = vmax.f32 %v296, %v304
      %v313 = vmax.f32 %v297, %v305
      %v314 = vmax.f32 %v298, %v306
      %v315 = vld [vmem:[%s242] sm:$0xff]
      %v316 = vld [vmem:[%s242 + $0x8] sm:$0xff]
      %v317 = vld [vmem:[%s242 + $0x10] sm:$0xff]
      %v318 = vld [vmem:[%s242 + $0x18] sm:$0xff]
      %v319 = vld [vmem:[%s242 + $0x20] sm:$0xff]
      %v320 = vld [vmem:[%s242 + $0x28] sm:$0xff]
      %v321 = vld [vmem:[%s242 + $0x30] sm:$0xff]
      %v322 = vld [vmem:[%s242 + $0x38] sm:$0xff]
      %v323 = vmax.f32 %v307, %v315
      %v324 = vmax.f32 %v308, %v316
      %v325 = vmax.f32 %v309, %v317
      %v326 = vmax.f32 %v310, %v318
      %v327 = vmax.f32 %v311, %v319
      %v328 = vmax.f32 %v312, %v320
      %v329 = vmax.f32 %v313, %v321
      %v330 = vmax.f32 %v314, %v322
      %s331 = scalar_lea.vmem %s242, 8
      %v332 = vld [vmem:[%s331] sm:$0xff]
      %v333 = vld [vmem:[%s331 + $0x8] sm:$0xff]
      %v334 = vld [vmem:[%s331 + $0x10] sm:$0xff]
      %v335 = vld [vmem:[%s331 + $0x18] sm:$0xff]
      %v336 = vld [vmem:[%s331 + $0x20] sm:$0xff]
      %v337 = vld [vmem:[%s331 + $0x28] sm:$0xff]
      %v338 = vld [vmem:[%s331 + $0x30] sm:$0xff]
      %v339 = vld [vmem:[%s331 + $0x38] sm:$0xff]
      %v340 = vmax.f32 %v323, %v332
      %v341 = vmax.f32 %v324, %v333
      %v342 = vmax.f32 %v325, %v334
      %v343 = vmax.f32 %v326, %v335
      %v344 = vmax.f32 %v327, %v336
      %v345 = vmax.f32 %v328, %v337
      %v346 = vmax.f32 %v329, %v338
      %v347 = vmax.f32 %v330, %v339
      %v348 = vld [vmem:[%s247] sm:$0xff]
      %v349 = vld [vmem:[%s247 + $0x10] sm:$0xff]
      %v350 = vld [vmem:[%s247 + $0x20] sm:$0xff]
      %v351 = vld [vmem:[%s247 + $0x30] sm:$0xff]
      %v352 = vld [vmem:[%s247 + $0x40] sm:$0xff]
      %v353 = vld [vmem:[%s247 + $0x50] sm:$0xff]
      %v354 = vld [vmem:[%s247 + $0x60] sm:$0xff]
      %v355 = vld [vmem:[%s247 + $0x70] sm:$0xff]
      %v356 = vmax.f32 %v340, %v348
      %v357 = vmax.f32 %v341, %v349
      %v358 = vmax.f32 %v342, %v350
      %v359 = vmax.f32 %v343, %v351
      %v360 = vmax.f32 %v344, %v352
      %v361 = vmax.f32 %v345, %v353
      %v362 = vmax.f32 %v346, %v354
      %v363 = vmax.f32 %v347, %v355
      %v364 = vld [vmem:[%s247 + $0x1] sm:$0xff]
      %v365 = vld [vmem:[%s247 + $0x11] sm:$0xff]
      %v366 = vld [vmem:[%s247 + $0x21] sm:$0xff]
      %v367 = vld [vmem:[%s247 + $0x31] sm:$0xff]
      %v368 = vld [vmem:[%s247 + $0x41] sm:$0xff]
      %v369 = vld [vmem:[%s247 + $0x51] sm:$0xff]
      %v370 = vld [vmem:[%s247 + $0x61] sm:$0xff]
      %v371 = vld [vmem:[%s247 + $0x71] sm:$0xff]
      %v372 = vmax.f32 %v356, %v364
      %v373 = vmax.f32 %v357, %v365
      %v374 = vmax.f32 %v358, %v366
      %v375 = vmax.f32 %v359, %v367
      %v376 = vmax.f32 %v360, %v368
      %v377 = vmax.f32 %v361, %v369
      %v378 = vmax.f32 %v362, %v370
      %v379 = vmax.f32 %v363, %v371
      %v380 = vld [vmem:[%s252] sm:$0xff]
      %v381 = vld [vmem:[%s252 + $0x8] sm:$0xff]
      %v382 = vld [vmem:[%s252 + $0x10] sm:$0xff]
      %v383 = vld [vmem:[%s252 + $0x18] sm:$0xff]
      %v384 = vld [vmem:[%s252 + $0x20] sm:$0xff]
      %v385 = vld [vmem:[%s252 + $0x28] sm:$0xff]
      %v386 = vld [vmem:[%s252 + $0x30] sm:$0xff]
      %v387 = vld [vmem:[%s252 + $0x38] sm:$0xff]
      %v388 = vmax.f32 %v372, %v380
      %v389 = vmax.f32 %v373, %v381
      %v390 = vmax.f32 %v374, %v382
      %v391 = vmax.f32 %v375, %v383
      %v392 = vmax.f32 %v376, %v384
      %v393 = vmax.f32 %v377, %v385
      %v394 = vmax.f32 %v378, %v386
      %v395 = vmax.f32 %v379, %v387
      %vm396 = vcmask 523264
      %397 = vst.msk [vmem:[%s257] sm:$0xff] %vm396, %v388
      %398 = vst.msk [vmem:[%s257 + $0x8] sm:$0xff] %vm396, %v389
      %399 = vst.msk [vmem:[%s257 + $0x10] sm:$0xff] %vm396, %v390
      %400 = vst.msk [vmem:[%s257 + $0x18] sm:$0xff] %vm396, %v391
      %401 = vst.msk [vmem:[%s257 + $0x20] sm:$0xff] %vm396, %v392
      %402 = vst.msk [vmem:[%s257 + $0x28] sm:$0xff] %vm396, %v393
      %403 = vst.msk [vmem:[%s257 + $0x30] sm:$0xff] %vm396, %v394
      %404 = vst.msk [vmem:[%s257 + $0x38] sm:$0xff] %vm396, %v395
      %p405 = scmp.lt.s32.totalorder %s15, 1
      %s406 = scalar_select %p405, %s15, 1
      %s407 = smul.addr %s406, 8
      %s408 = smul.addr %s407, 8
      %s409 = scalar_lea.vmem %s4, %s408
      // Predicated region
      $region37: #{inception_d_forward.13} parent=35 // pred_check
        %p410 = pneg %p137
      $region38: #{inception_d_forward.13} parent=35 // pred_check_branch
        %412 = sbr.rel (%p410) target = $region40
      $region39: #{inception_d_forward.13} parent=35 // pred_region
        _
      $region40: #{inception_d_forward.13} parent=35 // pred_fallthru
        _
    $region36: #{inception_d_forward.13} parent=5 // pred_fallthru
      _
    %p413 = scmp.le.s32.totalorder 2, %s10
    // Predicated region
    $region41: #{inception_d_forward.13} parent=5 // pred_check
      %p414 = pneg %p413
    $region42: #{inception_d_forward.13} parent=5 // pred_check_branch
      %416 = sbr.rel (%p414) target = $region44
    $region43: #{inception_d_forward.13} parent=5 // pred_region
      %s417 = ssub.s32 %s10, 2
      // Predicated region
      $region45: #{inception_d_forward.13} parent=43 // pred_check
        %p418 = pneg %p143
      $region46: #{inception_d_forward.13} parent=43 // pred_check_branch
        %420 = sbr.rel (%p418) target = $region48
      $region47: #{inception_d_forward.13} parent=43 // pred_region
        %p421 = scmp.lt.s32.totalorder %s16, 1
        %s422 = scalar_select %p421, %s16, 1
        %s423 = smul.addr %s422, 8
        %s424 = smul.addr %s423, 8
        %s425 = scalar_lea.vmem %s4, %s424
      $region48: #{inception_d_forward.13} parent=43 // pred_fallthru
        _
    $region44: #{inception_d_forward.13} parent=5 // pred_fallthru
      _
  $region6: #{inception_d_forward.13} parent=0 // loop_footer
    %s14 = sadd.s32 1, %s10
  $region7: #{inception_d_forward.13} parent=0 // loop_footer_branch
    %9 = sbr.rel target = $region3
  $region8: #{inception_d_forward.13} parent=0 // loop_exit
    _

// kernel: inception_d_forward.9
$region0: #{inception_d_forward.9}
  #allocation0 [shape = 'u32[]', space=smem, size = 0x4, offset = 0x4, fixed_abs, tag = 'smem constant byte address 0x4 - core index']
  #allocation1 [shape = 'u32[144,128]{1,0:T(1,128)}', space=vmem, size = 0x12000, scoped, tag = 'internal scratch']
  %s0 = inlined_call_operand.vmem [shape: f32[578,64], index: 0, kind: input, shape index: {}]
  %s1 = inlined_call_operand.vmem [shape: f32[64,192], index: 1, kind: input, shape index: {}]
  %s2 = inlined_call_operand.vmem [shape: f32[1,192], index: 2, kind: input, shape index: {}]
  %s3 = inlined_call_operand.vmem [shape: f32[578,192], index: 3, kind: output, shape index: {}]
  %s4 = sld [smem:[#allocation0]]
  $region71: #{inception_d_forward.9} parent=0
    _
  %s6 = ssub.s32 1, %s4
  %s7 = scalar_select 0, %s6, %s4
  $region1: #{inception_d_forward.9} parent=0
    #allocation2 [shape = 'u8[606208]{0}', space=vmem, size = 0x94000, scoped, tag = 'output window, operand 0']
    loop: start=0, step=1, limit=4
    $region2: #{inception_d_forward.9} parent=1 // loop_pre_header
      _
    $region3: #{inception_d_forward.9} parent=1 // loop_header
      %s9 = sphi 0, %s13
      %p10 = scmp.ge.s32.totalorder %s9, 4
      %s19 = sphi 0, %s21
      %s22 = sphi 0, %s19
      %s23 = sphi 0, %s22
      %s39 = sphi 0, %s23
      %s43 = sphi 0, %s43
      %s45 = sphi 0, %s43
      %s46 = sphi 0, %s45
      %s60 = sphi 0, %s46
      %s64 = sphi 0, %s64
      %s66 = sphi 0, %s64
      %s67 = sphi 0, %s66
      %s81 = sphi 0, %s67
      %s87 = sphi 0, %s89
      %s90 = sphi 0, %s87
      %s91 = sphi 0, %s90
      %s107 = sphi 0, %s91
    $region4: #{inception_d_forward.9} parent=1 // loop_header_branch
      %12 = sbr.rel (%p10) target = $region8
    $region5: #{inception_d_forward.9} parent=1 // loop_body
      %s14 = ssub.s32 %s9, 1
      %s15 = ssub.s32 %s9, 2
      %s16 = sadd.s32 %s9, 1
      %s17 = ssub.s32 %s9, %s16
      %p18 = scmp.eq.s32.totalorder %s17, 0
      %s20 = sadd.s32 %s19, 1
      %s21 = scalar_select %p18, %s19, %s20
      %p24 = pneg %p18
      %p25 = scmp.eq.s32.totalorder %s9, 1
      %p26 = por %p24, %p25
      %p27 = scmp.ne.s32.totalorder %s19, %s22
      %p28 = scmp.eq.s32.totalorder %s9, 0
      %p29 = por %p27, %p28
      %p30 = scmp.ne.s32.totalorder %s19, %s22
      %p31 = scmp.eq.s32.totalorder %s14, 1
      %p32 = por %p30, %p31
      %p33 = scmp.ne.s32.totalorder %s22, %s23
      %p34 = scmp.eq.s32.totalorder %s14, 0
      %p35 = por %p33, %p34
      %p36 = scmp.ne.s32.totalorder %s22, %s23
      %p37 = scmp.eq.s32.totalorder %s15, 1
      %p38 = por %p36, %p37
      %p40 = scmp.ne.s32.totalorder %s23, %s39
      %p41 = scmp.eq.s32.totalorder %s15, 0
      %p42 = por %p40, %p41
      %s44 = sadd.s32 %s43, 1
      %p47 = scmp.eq.s32.totalorder %s9, 1
      %p48 = scmp.ne.s32.totalorder %s43, %s45
      %p49 = scmp.eq.s32.totalorder %s9, 0
      %p50 = por %p48, %p49
      %p51 = scmp.ne.s32.totalorder %s43, %s45
      %p52 = scmp.eq.s32.totalorder %s14, 1
      %p53 = por %p51, %p52
      %p54 = scmp.ne.s32.totalorder %s45, %s46
      %p55 = scmp.eq.s32.totalorder %s14, 0
      %p56 = por %p54, %p55
      %p57 = scmp.ne.s32.totalorder %s45, %s46
      %p58 = scmp.eq.s32.totalorder %s15, 1
      %p59 = por %p57, %p58
      %p61 = scmp.ne.s32.totalorder %s46, %s60
      %p62 = scmp.eq.s32.totalorder %s15, 0
      %p63 = por %p61, %p62
      %s65 = sadd.s32 %s64, 1
      %p68 = scmp.eq.s32.totalorder %s9, 1
      %p69 = scmp.ne.s32.totalorder %s64, %s66
      %p70 = scmp.eq.s32.totalorder %s9, 0
      %p71 = por %p69, %p70
      %p72 = scmp.ne.s32.totalorder %s64, %s66
      %p73 = scmp.eq.s32.totalorder %s14, 1
      %p74 = por %p72, %p73
      %p75 = scmp.ne.s32.totalorder %s66, %s67
      %p76 = scmp.eq.s32.totalorder %s14, 0
      %p77 = por %p75, %p76
      %p78 = scmp.ne.s32.totalorder %s66, %s67
      %p79 = scmp.eq.s32.totalorder %s15, 1
      %p80 = por %p78, %p79
      %p82 = scmp.ne.s32.totalorder %s67, %s81
      %p83 = scmp.eq.s32.totalorder %s15, 0
      %p84 = por %p82, %p83
      %s85 = ssub.s32 %s9, %s16
      %p86 = scmp.eq.s32.totalorder %s85, 0
      %s88 = sadd.s32 %s87, 1
      %s89 = scalar_select %p86, %s87, %s88
      %p92 = pneg %p86
      %p93 = scmp.eq.s32.totalorder %s9, 1
      %p94 = por %p92, %p93
      %p95 = scmp.ne.s32.totalorder %s87, %s90
      %p96 = scmp.eq.s32.totalorder %s9, 0
      %p97 = por %p95, %p96
      %p98 = scmp.ne.s32.totalorder %s87, %s90
      %p99 = scmp.eq.s32.totalorder %s14, 1
      %p100 = por %p98, %p99
      %p101 = scmp.ne.s32.totalorder %s90, %s91
      %p102 = scmp.eq.s32.totalorder %s14, 0
      %p103 = por %p101, %p102
      %p104 = scmp.ne.s32.totalorder %s90, %s91
      %p105 = scmp.eq.s32.totalorder %s15, 1
      %p106 = por %p104, %p105
      %p108 = scmp.ne.s32.totalorder %s91, %s107
      %p109 = scmp.eq.s32.totalorder %s15, 0
      %p110 = por %p108, %p109
      %p111 = scmp.le.s32.totalorder 1, %s9
      %p112 = scmp.lt.s32.totalorder %s9, 3
      %p113 = pnand %p111, %p112
      %p114 = pneg %p113
      // Predicated region
      $region9: #{inception_d_forward.9} parent=5 // pred_check
        _
      $region10: #{inception_d_forward.9} parent=5 // pred_check_branch
        %116 = sbr.rel (%p113) target = $region12
      $region11: #{inception_d_forward.9} parent=5 // pred_region
        %s117 = ssub.s32 %s9, 1
        // Predicated region
        $region13: #{inception_d_forward.9} parent=11 // pred_check
          %p118 = pneg %p56
        $region14: #{inception_d_forward.9} parent=11 // pred_check_branch
          %120 = sbr.rel (%p118) target = $region16
        $region15: #{inception_d_forward.9} parent=11 // pred_region
          _
        $region16: #{inception_d_forward.9} parent=11 // pred_fallthru
          _
        // Predicated region
        $region17: #{inception_d_forward.9} parent=11 // pred_check
          %p121 = pneg %p77
        $region18: #{inception_d_forward.9} parent=11 // pred_check_branch
          %123 = sbr.rel (%p121) target = $region20
        $region19: #{inception_d_forward.9} parent=11 // pred_region
          _
        $region20: #{inception_d_forward.9} parent=11 // pred_fallthru
          _
      $region12: #{inception_d_forward.9} parent=5 // pred_fallthru
        _
      %p124 = scmp.lt.s32.totalorder %s9, 2
      // Predicated region
      $region21: #{inception_d_forward.9} parent=5 // pred_check
        %p125 = pneg %p124
      $region22: #{inception_d_forward.9} parent=5 // pred_check_branch
        %127 = sbr.rel (%p125) target = $region24
      $region23: #{inception_d_forward.9} parent=5 // pred_region
        // Predicated region
        $region25: #{inception_d_forward.9} parent=23 // pred_check
          %p128 = pneg %p29
        $region26: #{inception_d_forward.9} parent=23 // pred_check_branch
          %130 = sbr.rel (%p128) target = $region28
        $region27: #{inception_d_forward.9} parent=23 // pred_region
          %s131 = smul.u32 37, %s9
          %s132 = ssub.s32 73, %s131
          %p133 = scmp.lt.s32.totalorder %s132, 37
          %s134 = scalar_select %p133, %s132, 37
          %s135 = smul.u32 128, %s134
          %p136 = scmp.lt.s32.totalorder %s131, 72
          %s137 = scalar_select %p136, %s131, 72
          %s138 = smul.addr %s137, 8
          %s139 = scalar_lea.vmem %s0, %s138
          %s140 = smul.u32 37, %s9
          %s141 = ssub.s32 73, %s140
          %p142 = scmp.lt.s32.totalorder %s141, 37
          %s143 = scalar_select %p142, %s141, 37
          %s144 = smul.u32 128, %s143
        $region28: #{inception_d_forward.9} parent=23 // pred_fallthru
          _
      $region24: #{inception_d_forward.9} parent=5 // pred_fallthru
        _
      %p145 = scmp.le.s32.totalorder 1, %s9
      %p146 = scmp.lt.s32.totalorder %s9, 3
      %p147 = pnand %p145, %p146
      %p148 = pneg %p147
      // Predicated region
      $region29: #{inception_d_forward.9} parent=5 // pred_check
        _
      $region30: #{inception_d_forward.9} parent=5 // pred_check_branch
        %150 = sbr.rel (%p147) target = $region32
      $region31: #{inception_d_forward.9} parent=5 // pred_region
        %s151 = ssub.s32 %s9, 1
        %s152 = smul.u32 37, %s14
        %s153 = ssub.s32 73, %s152
        %p154 = scmp.lt.s32.totalorder %s153, 37
        %s155 = scalar_select %p154, %s153, 37
        %s156 = smul.u32 128, %s155
        %p157 = scmp.lt.s32.totalorder %s152, 72
        %s158 = scalar_select %p157, %s152, 72
        %s159 = smul.addr %s158, 8
        %s160 = scalar_lea.vmem %s0, %s159
        %p161 = pneg %p35
        %p162 = pneg %p32
        %p163 = pneg %p56
        %p164 = pneg %p53
        %p165 = pneg %p77
        %p166 = pneg %p74
        %p167 = pneg %p103
        %p168 = pneg %p100
        %s169 = sand.u32 %s90, 1
        %s170 = sand.u32 %s90, 1
        %s171 = smul.addr %s170, 592
        %s172 = scalar_lea.vmem [#allocation2], %s171
        %s173 = smul.u32 37, %s14
        %s174 = ssub.s32 73, %s173
        %p175 = scmp.lt.s32.totalorder %s174, 37
        %s176 = scalar_select %p175, %s174, 37
        %s177 = smul.u32 128, %s176
        %p178 = scmp.lt.s32.totalorder %s173, 72
        %s179 = scalar_select %p178, %s173, 72
        %s180 = smul.addr %s179, 8
        %s181 = scalar_lea.vmem %s0, %s180
        %s182 = smul.u32 37, %s14
        %s183 = ssub.s32 73, %s182
        %p184 = scmp.lt.s32.totalorder %s183, 37
        %s185 = scalar_select %p184, %s183, 37
        %s186 = smul.u32 128, %s185
        %s187 = smul.u32 37, %s14
        %s188 = ssub.s32 73, %s187
        %p189 = scmp.lt.s32.totalorder %s188, 37
        %s190 = scalar_select %p189, %s188, 37
        %s191 = smul.u32 128, %s190
        %s192 = smul.u32 %s191, 2
        %v193 = vld [vmem:[%s181] sm:$0xff]
        %v194 = vld [vmem:[%s181 + $0x8] sm:$0xff]
        %v195 = vld [vmem:[%s181 + $0x10] sm:$0xff]
        %v196 = vld [vmem:[%s181 + $0x18] sm:$0xff]
        %v197 = vld [vmem:[%s181 + $0x20] sm:$0xff]
        %v198 = vld [vmem:[%s181 + $0x28] sm:$0xff]
        %v199 = vld [vmem:[%s181 + $0x30] sm:$0xff]
        %v200 = vld [vmem:[%s181 + $0x38] sm:$0xff]
        %v201 = vld [vmem:[%s181 + $0x40] sm:$0xff]
        %v202 = vld [vmem:[%s181 + $0x48] sm:$0xff]
        %v203 = vld [vmem:[%s181 + $0x50] sm:$0xff]
        %v204 = vld [vmem:[%s181 + $0x58] sm:$0xff]
        %v205 = vld [vmem:[%s181 + $0x60] sm:$0xff]
        %v206 = vld [vmem:[%s181 + $0x68] sm:$0xff]
        %v207 = vld [vmem:[%s181 + $0x70] sm:$0xff]
        %v208 = vld [vmem:[%s181 + $0x78] sm:$0xff]
        %v209 = vld [vmem:[%s181 + $0x80] sm:$0xff]
        %v210 = vld [vmem:[%s181 + $0x88] sm:$0xff]
        %v211 = vld [vmem:[%s181 + $0x90] sm:$0xff]
        %v212 = vld [vmem:[%s181 + $0x98] sm:$0xff]
        %v213 = vld [vmem:[%s181 + $0xa0] sm:$0xff]
        %v214 = vld [vmem:[%s181 + $0xa8] sm:$0xff]
        %v215 = vld [vmem:[%s181 + $0xb0] sm:$0xff]
        %v216 = vld [vmem:[%s181 + $0xb8] sm:$0xff]
        %v217 = vld [vmem:[%s181 + $0xc0] sm:$0xff]
        %v218 = vld [vmem:[%s181 + $0xc8] sm:$0xff]
        %v219 = vld [vmem:[%s181 + $0xd0] sm:$0xff]
        %v220 = vld [vmem:[%s181 + $0xd8] sm:$0xff]
        %v221 = vld [vmem:[%s181 + $0xe0] sm:$0xff]
        %v222 = vld [vmem:[%s181 + $0xe8] sm:$0xff]
        %v223 = vld [vmem:[%s181 + $0xf0] sm:$0xff]
        %v224 = vld [vmem:[%s181 + $0xf8] sm:$0xff]
        %v225 = vld [vmem:[%s181 + $0x100] sm:$0xff]
        %v226 = vld [vmem:[%s181 + $0x108] sm:$0xff]
        %v227 = vld [vmem:[%s181 + $0x110] sm:$0xff]
        %v228 = vld [vmem:[%s181 + $0x118] sm:$0xff]
        %v229 = vld [vmem:[%s181 + $0x120] sm:$0xff]
        %v230 = vld [vmem:[%s1] sm:$0xff]
        %v231 = vld [vmem:[%s1 + $0x8] sm:$0xff]
        %v232 = vld [vmem:[%s1 + $0x10] sm:$0xff]
        %v233 = vld [vmem:[%s1 + $0x18] sm:$0xff]
        %v234 = vld [vmem:[%s1 + $0x20] sm:$0xff]
        %v235 = vld [vmem:[%s1 + $0x28] sm:$0xff]
        %v236 = vld [vmem:[%s1 + $0x30] sm:$0xff]
        %v237 = vld [vmem:[%s1 + $0x38] sm:$0xff]
        %v238 = vld [vmem:[%s1 + $0x40] sm:$0xff]
        %v239 = vld [vmem:[%s1 + $0x48] sm:$0xff]
        %v240 = vld [vmem:[%s1 + $0x50] sm:$0xff]
        %v241 = vld [vmem:[%s1 + $0x58] sm:$0xff]
        %v242 = vld [vmem:[%s1 + $0x60] sm:$0xff]
        %v243 = vld [vmem:[%s1 + $0x68] sm:$0xff]
        %v244 = vld [vmem:[%s1 + $0x70] sm:$0xff]
        %v245 = vld [vmem:[%s1 + $0x78] sm:$0xff]
        %v246 = vld [vmem:[%s2] sm:$0x3]
        %v248 = vlaneseq
        %v249 = vshrl.u32 %v248, 7
        %v250 = vsub.s32 0, %v249
        %v251 = vrot.slane %v246, %v250
        %v252 = vlaneseq
        %v253 = vshrl.u32 %v252, 7
        %v254 = vsub.s32 1, %v253
        %v255 = vrot.slane %v246, %v254
        %vm258 = vcmask 523264
        %v260 = vsel %vm258, %v193, 0
        %v263 = vsel %vm258, %v194, 0
        %v266 = vsel %vm258, %v195, 0
        %v269 = vsel %vm258, %v196, 0
        %v272 = vsel %vm258, %v197, 0
        %v275 = vsel %vm258, %v198, 0
        %v278 = vsel %vm258, %v199, 0
        %v281 = vsel %vm258, %v200, 0
        %v284 = vsel %vm258, %v201, 0
        %v287 = vsel %vm258, %v202, 0
        %v290 = vsel %vm258, %v203, 0
        %v293 = vsel %vm258, %v204, 0
        %v296 = vsel %vm258, %v205, 0
        %v299 = vsel %vm258, %v206, 0
        %v302 = vsel %vm258, %v207, 0
        %v305 = vsel %vm258, %v208, 0
        %v308 = vsel %vm258, %v209, 0
        %v311 = vsel %vm258, %v210, 0
        %v314 = vsel %vm258, %v211, 0
        %v317 = vsel %vm258, %v212, 0
        %v320 = vsel %vm258, %v213, 0
        %v323 = vsel %vm258, %v214, 0
        %v326 = vsel %vm258, %v215, 0
        %v329 = vsel %vm258, %v216, 0
        %v332 = vsel %vm258, %v217, 0
        %v335 = vsel %vm258, %v218, 0
        %v338 = vsel %vm258, %v219, 0
        %v341 = vsel %vm258, %v220, 0
        %v344 = vsel %vm258, %v221, 0
        %v347 = vsel %vm258, %v222, 0
        %v350 = vsel %vm258, %v223, 0
        %v353 = vsel %vm258, %v224, 0
        %v356 = vsel %vm258, %v225, 0
        %v359 = vsel %vm258, %v226, 0
        %v362 = vsel %vm258, %v227, 0
        %v365 = vsel %vm258, %v228, 0
        %v368 = vsel %vm258, %v229, 0
        %370 = vmatprep.subr.mxu0 %v231
        %371 = vmatpush1.msra.mxu0 %v230
        %372 = vmatprep.subr.mxu0 %v233
        %373 = vmatpush1.msra.mxu0 %v232
        %374 = vmatprep.subr.mxu0 %v235
        %375 = vmatpush1.msra.mxu0 %v234
        %376 = vmatprep.subr.mxu0 %v237
        %377 = vmatpush1.msra.mxu0 %v236
        %378 = vmatprep.subr.mxu0 %v239
        %379 = vmatpush1.msra.mxu0 %v238
        %380 = vmatprep.subr.mxu0 %v241
        %381 = vmatpush1.msra.mxu0 %v240
        %382 = vmatprep.subr.mxu0 %v243
        %383 = vmatpush1.msra.mxu0 %v242
        %384 = vmatprep.subr.mxu0 %v245
        %385 = vmatpush1.msra.mxu0 %v244
        %386 = vmatprep.subr.mxu0 0.0
        %387 = vmatpush1.msra.mxu0 0.0
        %388 = vmatprep.subr.mxu0 0.0
        %389 = vmatpush1.msra.mxu0 0.0
        %390 = vmatprep.subr.mxu0 0.0
        %391 = vmatpush1.msra.mxu0 0.0
        %392 = vmatprep.subr.mxu0 0.0
        %393 = vmatpush1.msra.mxu0 0.0
        %394 = vmatprep.subr.mxu0 0.0
        %395 = vmatpush1.msra.mxu0 0.0
        %396 = vmatprep.subr.mxu0 0.0
        %397 = vmatpush1.msra.mxu0 0.0
        %398 = vmatprep.subr.mxu0 0.0
        %399 = vmatpush1.msra.mxu0 0.0
        %400 = vmatprep.subr.mxu0 0.0
        %401 = vmatpush1.msra.mxu0 0.0
        %402 = vmatprep.subr.mxu0 0.0
        %403 = vmatpush1.msra.mxu0 0.0
        %404 = vmatprep.subr.mxu0 0.0
        %405 = vmatpush1.msra.mxu0 0.0
        %406 = vmatprep.subr.mxu0 0.0
        %407 = vmatpush1.msra.mxu0 0.0
        %408 = vmatprep.subr.mxu0 0.0
        %409 = vmatpush1.msra.mxu0 0.0
        %410 = vmatprep.subr.mxu0 0.0
        %411 = vmatpush1.msra.mxu0 0.0
        %412 = vmatprep.subr.mxu0 0.0
        %413 = vmatpush1.msra.mxu0 0.0
        %414 = vmatprep.subr.mxu0 0.0
        %415 = vmatpush1.msra.mxu0 0.0
        %416 = vmatprep.subr.mxu0 0.0
        %417 = vmatpush1.msra.mxu0 0.0
        %418 = vmatprep.subr.mxu0 0.0
        %419 = vmatpush1.msra.mxu0 0.0
        %420 = vmatprep.subr.mxu0 0.0
        %421 = vmatpush1.msra.mxu0 0.0
        %422 = vmatprep.subr.mxu0 0.0
        %423 = vmatpush1.msra.mxu0 0.0
        %424 = vmatprep.subr.mxu0 0.0
        %425 = vmatpush1.msra.mxu0 0.0
        %426 = vmatprep.subr.mxu0 0.0
        %427 = vmatpush1.msra.mxu0 0.0
        %428 = vmatprep.subr.mxu0 0.0
        %429 = vmatpush1.msra.mxu0 0.0
        %430 = vmatprep.subr.mxu0 0.0
        %431 = vmatpush1.msra.mxu0 0.0
        %432 = vmatprep.subr.mxu0 0.0
        %433 = vmatpush1.msra.mxu0 0.0
        %434 = vmatprep.mubr.f32.mxu0 0.0
        %435 = vmatmul.mubr.f32.gmra.mrb[0].mxu0 %v260
        %v436 = vpop.f32.mrb[0].mxu0
        %v437 = vadd.f32 %v251, %v436
        %v438 = vpop.f32.mrb[0].mxu0
        %v439 = vadd.f32 %v255, %v438
        %440 = vmatprep.mubr.f32.mxu0 0.0
        %441 = vmatmul.mubr.f32.gmra.mrb[0].mxu0 %v263
        %v442 = vpop.f32.mrb[0].mxu0
        %v443 = vadd.f32 %v251, %v442
        %v444 = vpop.f32.mrb[0].mxu0
        %v445 = vadd.f32 %v255, %v444
        %446 = vmatprep.mubr.f32.mxu0 0.0
        %447 = vmatmul.mubr.f32.gmra.mrb[0].mxu0 %v266
        %v448 = vpop.f32.mrb[0].mxu0
        %v449 = vadd.f32 %v251, %v448
        %v450 = vpop.f32.mrb[0].mxu0
        %v451 = vadd.f32 %v255, %v450
        %452 = vmatprep.mubr.f32.mxu0 0.0
        %453 = vmatmul.mubr.f32.gmra.mrb[0].mxu0 %v269
        %v454 = vpop.f32.mrb[0].mxu0
        %v455 = vadd.f32 %v251, %v454
        %v456 = vpop.f32.mrb[0].mxu0
        %v457 = vadd.f32 %v255, %v456
        %458 = vmatprep.mubr.f32.mxu0 0.0
        %459 = vmatmul.mubr.f32.gmra.mrb[0].mxu0 %v272
        %v460 = vpop.f32.mrb[0].mxu0
        %v461 = vadd.f32 %v251, %v460
        %v462 = vpop.f32.mrb[0].mxu0
        %v463 = vadd.f32 %v255, %v462
        %464 = vmatprep.mubr.f32.mxu0 0.0
        %465 = vmatmul.mubr.f32.gmra.mrb[0].mxu0 %v275
        %v466 = vpop.f32.mrb[0].mxu0
        %v467 = vadd.f32 %v251, %v466
        %v468 = vpop.f32.mrb[0].mxu0
        %v469 = vadd.f32 %v255, %v468
        %470 = vmatprep.mubr.f32.mxu0 0.0
        %471 = vmatmul.mubr.f32.gmra.mrb[0].mxu0 %v278
        %v472 = vpop.f32.mrb[0].mxu0
        %v473 = vadd.f32 %v251, %v472
        %v474 = vpop.f32.mrb[0].mxu0
        %v475 = vadd.f32 %v255, %v474
        %476 = vmatprep.mubr.f32.mxu0 0.0
        %477 = vmatmul.mubr.f32.gmra.mrb[0].mxu0 %v281
        %v478 = vpop.f32.mrb[0].mxu0
        %v479 = vadd.f32 %v251, %v478
        %v480 = vpop.f32.mrb[0].mxu0
        %v481 = vadd.f32 %v255, %v480
        %482 = vmatprep.mubr.f32.mxu0 0.0
        %483 = vmatmul.mubr.f32.gmra.mrb[0].mxu0 %v284
        %v484 = vpop.f32.mrb[0].mxu0
        %v485 = vadd.f32 %v251, %v484
        %v486 = vpop.f32.mrb[0].mxu0
        %v487 = vadd.f32 %v255, %v486
        %488 = vmatprep.mubr.f32.mxu0 0.0
        %489 = vmatmul.mubr.f32.gmra.mrb[0].mxu0 %v287
        %v490 = vpop.f32.mrb[0].mxu0
        %v491 = vadd.f32 %v251, %v490
        %v492 = vpop.f32.mrb[0].mxu0
        %v493 = vadd.f32 %v255, %v492
        %494 = vmatprep.mubr.f32.mxu0 0.0
        %495 = vmatmul.mubr.f32.gmra.mrb[0].mxu0 %v290
        %v496 = vpop.f32.mrb[0].mxu0
        %v497 = vadd.f32 %v251, %v496
        %v498 = vpop.f32.mrb[0].mxu0
        %v499 = vadd.f32 %v255, %v498
        %500 = vmatprep.mubr.f32.mxu0 0.0
        %501 = vmatmul.mubr.f32.gmra.mrb[0].mxu0 %v293
        %v502 = vpop.f32.mrb[0].mxu0
        %v503 = vadd.f32 %v251, %v502
        %v504 = vpop.f32.mrb[0].mxu0
        %v505 = vadd.f32 %v255, %v504
        %506 = vmatprep.mubr.f32.mxu0 0.0
        %507 = vmatmul.mubr.f32.gmra.mrb[0].mxu0 %v296
        %v508 = vpop.f32.mrb[0].mxu0
        %v509 = vadd.f32 %v251, %v508
        %v510 = vpop.f32.mrb[0].mxu0
        %v511 = vadd.f32 %v255, %v510
        %512 = vmatprep.mubr.f32.mxu0 0.0
        %513 = vmatmul.mubr.f32.gmra.mrb[0].mxu0 %v299
        %v514 = vpop.f32.mrb[0].mxu0
        %v515 = vadd.f32 %v251, %v514
        %v516 = vpop.f32.mrb[0].mxu0
        %v517 = vadd.f32 %v255, %v516
        %518 = vmatprep.mubr.f32.mxu0 0.0
        %519 = vmatmul.mubr.f32.gmra.mrb[0].mxu0 %v302
        %v520 = vpop.f32.mrb[0].mxu0
        %v521 = vadd.f32 %v251, %v520
        %v522 = vpop.f32.mrb[0].mxu0
        %v523 = vadd.f32 %v255, %v522
        %524 = vmatprep.mubr.f32.mxu0 0.0
        %525 = vmatmul.mubr.f32.gmra.mrb[0].mxu0 %v305
        %v526 = vpop.f32.mrb[0].mxu0
        %v527 = vadd.f32 %v251, %v526
        %v528 = vpop.f32.mrb[0].mxu0
        %v529 = vadd.f32 %v255, %v528
        %530 = vmatprep.mubr.f32.mxu0 0.0
        %531 = vmatmul.mubr.f32.gmra.mrb[0].mxu0 %v308
        %v532 = vpop.f32.mrb[0].mxu0
        %v533 = vadd.f32 %v251, %v532
        %v534 = vpop.f32.mrb[0].mxu0
        %v535 = vadd.f32 %v255, %v534
        %536 = vmatprep.mubr.f32.mxu0 0.0
        %537 = vmatmul.mubr.f32.gmra.mrb[0].mxu0 %v311
        %v538 = vpop.f32.mrb[0].mxu0
        %v539 = vadd.f32 %v251, %v538
        %v540 = vpop.f32.mrb[0].mxu0
        %v541 = vadd.f32 %v255, %v540
        %542 = vmatprep.mubr.f32.mxu0 0.0
        %543 = vmatmul.mubr.f32.gmra.mrb[0].mxu0 %v314
        %v544 = vpop.f32.mrb[0].mxu0
        %v545 = vadd.f32 %v251, %v544
        %v546 = vpop.f32.mrb[0].mxu0
        %v547 = vadd.f32 %v255, %v546
        %548 = vmatprep.mubr.f32.mxu0 0.0
        %549 = vmatmul.mubr.f32.gmra.mrb[0].mxu0 %v317
        %v550 = vpop.f32.mrb[0].mxu0
        %v551 = vadd.f32 %v251, %v550
        %v552 = vpop.f32.mrb[0].mxu0
        %v553 = vadd.f32 %v255, %v552
        %554 = vmatprep.mubr.f32.mxu0 0.0
        %555 = vmatmul.mubr.f32.gmra.mrb[0].mxu0 %v320
        %v556 = vpop.f32.mrb[0].mxu0
        %v557 = vadd.f32 %v251, %v556
        %v558 = vpop.f32.mrb[0].mxu0
        %v559 = vadd.f32 %v255, %v558
        %560 = vmatprep.mubr.f32.mxu0 0.0
        %561 = vmatmul.mubr.f32.gmra.mrb[0].mxu0 %v323
        %v562 = vpop.f32.mrb[0].mxu0
        %v563 = vadd.f32 %v251, %v562
        %v564 = vpop.f32.mrb[0].mxu0
        %v565 = vadd.f32 %v255, %v564
        %566 = vmatprep.mubr.f32.mxu0 0.0
        %567 = vmatmul.mubr.f32.gmra.mrb[0].mxu0 %v326
        %v568 = vpop.f32.mrb[0].mxu0
        %v569 = vadd.f32 %v251, %v568
        %v570 = vpop.f32.mrb[0].mxu0
        %v571 = vadd.f32 %v255, %v570
        %572 = vmatprep.mubr.f32.mxu0 0.0
        %573 = vmatmul.mubr.f32.gmra.mrb[0].mxu0 %v329
        %v574 = vpop.f32.mrb[0].mxu0
        %v575 = vadd.f32 %v251, %v574
        %v576 = vpop.f32.mrb[0].mxu0
        %v577 = vadd.f32 %v255, %v576
        %578 = vmatprep.mubr.f32.mxu0 0.0
        %579 = vmatmul.mubr.f32.gmra.mrb[0].mxu0 %v332
        %v580 = vpop.f32.mrb[0].mxu0
        %v581 = vadd.f32 %v251, %v580
        %v582 = vpop.f32.mrb[0].mxu0
        %v583 = vadd.f32 %v255, %v582
        %584 = vmatprep.mubr.f32.mxu0 0.0
        %585 = vmatmul.mubr.f32.gmra.mrb[0].mxu0 %v335
        %v586 = vpop.f32.mrb[0].mxu0
        %v587 = vadd.f32 %v251, %v586
        %v588 = vpop.f32.mrb[0].mxu0
        %v589 = vadd.f32 %v255, %v588
        %590 = vmatprep.mubr.f32.mxu0 0.0
        %591 = vmatmul.mubr.f32.gmra.mrb[0].mxu0 %v338
        %v592 = vpop.f32.mrb[0].mxu0
        %v593 = vadd.f32 %v251, %v592
        %v594 = vpop.f32.mrb[0].mxu0
        %v595 = vadd.f32 %v255, %v594
        %596 = vmatprep.mubr.f32.mxu0 0.0
        %597 = vmatmul.mubr.f32.gmra.mrb[0].mxu0 %v341
        %v598 = vpop.f32.mrb[0].mxu0
        %v599 = vadd.f32 %v251, %v598
        %v600 = vpop.f32.mrb[0].mxu0
        %v601 = vadd.f32 %v255, %v600
        %602 = vmatprep.mubr.f32.mxu0 0.0
        %603 = vmatmul.mubr.f32.gmra.mrb[0].mxu0 %v344
        %v604 = vpop.f32.mrb[0].mxu0
        %v605 = vadd.f32 %v251, %v604
        %v606 = vpop.f32.mrb[0].mxu0
        %v607 = vadd.f32 %v255, %v606
        %608 = vmatprep.mubr.f32.mxu0 0.0
        %609 = vmatmul.mubr.f32.gmra.mrb[0].mxu0 %v347
        %v610 = vpop.f32.mrb[0].mxu0
        %v611 = vadd.f32 %v251, %v610
        %v612 = vpop.f32.mrb[0].mxu0
        %v613 = vadd.f32 %v255, %v612
        %614 = vmatprep.mubr.f32.mxu0 0.0
        %615 = vmatmul.mubr.f32.gmra.mrb[0].mxu0 %v350
        %v616 = vpop.f32.mrb[0].mxu0
        %v617 = vadd.f32 %v251, %v616
        %v618 = vpop.f32.mrb[0].mxu0
        %v619 = vadd.f32 %v255, %v618
        %620 = vmatprep.mubr.f32.mxu0 0.0
        %621 = vmatmul.mubr.f32.gmra.mrb[0].mxu0 %v353
        %v622 = vpop.f32.mrb[0].mxu0
        %v623 = vadd.f32 %v251, %v622
        %v624 = vpop.f32.mrb[0].mxu0
        %v625 = vadd.f32 %v255, %v624
        %626 = vmatprep.mubr.f32.mxu0 0.0
        %627 = vmatmul.mubr.f32.gmra.mrb[0].mxu0 %v356
        %v628 = vpop.f32.mrb[0].mxu0
        %v629 = vadd.f32 %v251, %v628
        %v630 = vpop.f32.mrb[0].mxu0
        %v631 = vadd.f32 %v255, %v630
        %632 = vmatprep.mubr.f32.mxu0 0.0
        %633 = vmatmul.mubr.f32.gmra.mrb[0].mxu0 %v359
        %v634 = vpop.f32.mrb[0].mxu0
        %v635 = vadd.f32 %v251, %v634
        %v636 = vpop.f32.mrb[0].mxu0
        %v637 = vadd.f32 %v255, %v636
        %638 = vmatprep.mubr.f32.mxu0 0.0
        %639 = vmatmul.mubr.f32.gmra.mrb[0].mxu0 %v362
        %v640 = vpop.f32.mrb[0].mxu0
        %v641 = vadd.f32 %v251, %v640
        %v642 = vpop.f32.mrb[0].mxu0
        %v643 = vadd.f32 %v255, %v642
        %644 = vmatprep.mubr.f32.mxu0 0.0
        %645 = vmatmul.mubr.f32.gmra.mrb[0].mxu0 %v365
        %v646 = vpop.f32.mrb[0].mxu0
        %v647 = vadd.f32 %v251, %v646
        %v648 = vpop.f32.mrb[0].mxu0
        %v649 = vadd.f32 %v255, %v648
        %650 = vmatprep.mubr.f32.mxu0 0.0
        %651 = vmatmul.mubr.f32.gmra.mrb[0].mxu0 %v368
        %v652 = vpop.f32.mrb[0].mxu0
        %v653 = vadd.f32 %v251, %v652
        %v654 = vpop.f32.mrb[0].mxu0
        %v655 = vadd.f32 %v255, %v654
        %656 = vdwg.mxu0
        %v657 = vmax.f32 %v437, 0.0
        %v658 = vmax.f32 %v439, 0.0
        %v659 = vmax.f32 %v443, 0.0
        %v660 = vmax.f32 %v445, 0.0
        %v661 = vmax.f32 %v449, 0.0
        %v662 = vmax.f32 %v451, 0.0
        %v663 = vmax.f32 %v455, 0.0
        %v664 = vmax.f32 %v457, 0.0
        %v665 = vmax.f32 %v461, 0.0
        %v666 = vmax.f32 %v463, 0.0
        %v667 = vmax.f32 %v467, 0.0
        %v668 = vmax.f32 %v469, 0.0
        %v669 = vmax.f32 %v473, 0.0
        %v670 = vmax.f32 %v475, 0.0
        %v671 = vmax.f32 %v479, 0.0
        %v672 = vmax.f32 %v481, 0.0
        %v673 = vmax.f32 %v485, 0.0
        %v674 = vmax.f32 %v487, 0.0
        %v675 = vmax.f32 %v491, 0.0
        %v676 = vmax.f32 %v493, 0.0
        %v677 = vmax.f32 %v497, 0.0
        %v678 = vmax.f32 %v499, 0.0
        %v679 = vmax.f32 %v503, 0.0
        %v680 = vmax.f32 %v505, 0.0
        %v681 = vmax.f32 %v509, 0.0
        %v682 = vmax.f32 %v511, 0.0
        %v683 = vmax.f32 %v515, 0.0
        %v684 = vmax.f32 %v517, 0.0
        %v685 = vmax.f32 %v521, 0.0
        %v686 = vmax.f32 %v523, 0.0
        %v687 = vmax.f32 %v527, 0.0
        %v688 = vmax.f32 %v529, 0.0
        %v689 = vmax.f32 %v533, 0.0
        %v690 = vmax.f32 %v535, 0.0
        %v691 = vmax.f32 %v539, 0.0
        %v692 = vmax.f32 %v541, 0.0
        %v693 = vmax.f32 %v545, 0.0
        %v694 = vmax.f32 %v547, 0.0
        %v695 = vmax.f32 %v551, 0.0
        %v696 = vmax.f32 %v553, 0.0
        %v697 = vmax.f32 %v557, 0.0
        %v698 = vmax.f32 %v559, 0.0
        %v699 = vmax.f32 %v563, 0.0
        %v700 = vmax.f32 %v565, 0.0
        %v701 = vmax.f32 %v569, 0.0
        %v702 = vmax.f32 %v571, 0.0
        %v703 = vmax.f32 %v575, 0.0
        %v704 = vmax.f32 %v577, 0.0
        %v705 = vmax.f32 %v581, 0.0
        %v706 = vmax.f32 %v583, 0.0
        %v707 = vmax.f32 %v587, 0.0
        %v708 = vmax.f32 %v589, 0.0
        %v709 = vmax.f32 %v593, 0.0
        %v710 = vmax.f32 %v595, 0.0
        %v711 = vmax.f32 %v599, 0.0
        %v712 = vmax.f32 %v601, 0.0
        %v713 = vmax.f32 %v605, 0.0
        %v714 = vmax.f32 %v607, 0.0
        %v715 = vmax.f32 %v611, 0.0
        %v716 = vmax.f32 %v613, 0.0
        %v717 = vmax.f32 %v617, 0.0
        %v718 = vmax.f32 %v619, 0.0
        %v719 = vmax.f32 %v623, 0.0
        %v720 = vmax.f32 %v625, 0.0
        %v721 = vmax.f32 %v629, 0.0
        %v722 = vmax.f32 %v631, 0.0
        %v723 = vmax.f32 %v635, 0.0
        %v724 = vmax.f32 %v637, 0.0
        %v725 = vmax.f32 %v641, 0.0
        %v726 = vmax.f32 %v643, 0.0
        %v727 = vmax.f32 %v647, 0.0
        %v728 = vmax.f32 %v649, 0.0
        %v729 = vmax.f32 %v653, 0.0
        %v730 = vmax.f32 %v655, 0.0
        %731 = vst [vmem:[%s172] sm:$0xff] %v657
        %732 = vst.msk [vmem:[%s172 + $0x8] sm:$0xff] %vm258, %v658
        %733 = vst [vmem:[%s172 + $0x10] sm:$0xff] %v659
        %734 = vst.msk [vmem:[%s172 + $0x18] sm:$0xff] %vm258, %v660
        %735 = vst [vmem:[%s172 + $0x20] sm:$0xff] %v661
        %736 = vst.msk [vmem:[%s172 + $0x28] sm:$0xff] %vm258, %v662
        %737 = vst [vmem:[%s172 + $0x30] sm:$0xff] %v663
        %738 = vst.msk [vmem:[%s172 + $0x38] sm:$0xff] %vm258, %v664
        %739 = vst [vmem:[%s172 + $0x40] sm:$0xff] %v665
        %740 = vst.msk [vmem:[%s172 + $0x48] sm:$0xff] %vm258, %v666
        %741 = vst [vmem:[%s172 + $0x50] sm:$0xff] %v667
        %742 = vst.msk [vmem:[%s172 + $0x58] sm:$0xff] %vm258, %v668
        %743 = vst [vmem:[%s172 + $0x60] sm:$0xff] %v669
        %744 = vst.msk [vmem:[%s172 + $0x68] sm:$0xff] %vm258, %v670
        %745 = vst [vmem:[%s172 + $0x70] sm:$0xff] %v671
        %746 = vst.msk [vmem:[%s172 + $0x78] sm:$0xff] %vm258, %v672
        %747 = vst [vmem:[%s172 + $0x80] sm:$0xff] %v673
        %748 = vst.msk [vmem:[%s172 + $0x88] sm:$0xff] %vm258, %v674
        %749 = vst [vmem:[%s172 + $0x90] sm:$0xff] %v675
        %750 = vst.msk [vmem:[%s172 + $0x98] sm:$0xff] %vm258, %v676
        %751 = vst [vmem:[%s172 + $0xa0] sm:$0xff] %v677
        %752 = vst.msk [vmem:[%s172 + $0xa8] sm:$0xff] %vm258, %v678
        %753 = vst [vmem:[%s172 + $0xb0] sm:$0xff] %v679
        %754 = vst.msk [vmem:[%s172 + $0xb8] sm:$0xff] %vm258, %v680
        %755 = vst [vmem:[%s172 + $0xc0] sm:$0xff] %v681
        %756 = vst.msk [vmem:[%s172 + $0xc8] sm:$0xff] %vm258, %v682
        %757 = vst [vmem:[%s172 + $0xd0] sm:$0xff] %v683
        %758 = vst.msk [vmem:[%s172 + $0xd8] sm:$0xff] %vm258, %v684
        %759 = vst [vmem:[%s172 + $0xe0] sm:$0xff] %v685
        %760 = vst.msk [vmem:[%s172 + $0xe8] sm:$0xff] %vm258, %v686
        %761 = vst [vmem:[%s172 + $0xf0] sm:$0xff] %v687
        %762 = vst.msk [vmem:[%s172 + $0xf8] sm:$0xff] %vm258, %v688
        %763 = vst [vmem:[%s172 + $0x100] sm:$0xff] %v689
        %764 = vst.msk [vmem:[%s172 + $0x108] sm:$0xff] %vm258, %v690
        %765 = vst [vmem:[%s172 + $0x110] sm:$0xff] %v691
        %766 = vst.msk [vmem:[%s172 + $0x118] sm:$0xff] %vm258, %v692
        %767 = vst [vmem:[%s172 + $0x120] sm:$0xff] %v693
        %768 = vst.msk [vmem:[%s172 + $0x128] sm:$0xff] %vm258, %v694
        %769 = vst [vmem:[%s172 + $0x130] sm:$0xff] %v695
        %770 = vst.msk [vmem:[%s172 + $0x138] sm:$0xff] %vm258, %v696
        %771 = vst [vmem:[%s172 + $0x140] sm:$0xff] %v697
        %772 = vst.msk [vmem:[%s172 + $0x148] sm:$0xff] %vm258, %v698
        %773 = vst [vmem:[%s172 + $0x150] sm:$0xff] %v699
        %774 = vst.msk [vmem:[%s172 + $0x158] sm:$0xff] %vm258, %v700
        %775 = vst [vmem:[%s172 + $0x160] sm:$0xff] %v701
        %776 = vst.msk [vmem:[%s172 + $0x168] sm:$0xff] %vm258, %v702
        %777 = vst [vmem:[%s172 + $0x170] sm:$0xff] %v703
        %778 = vst.msk [vmem:[%s172 + $0x178] sm:$0xff] %vm258, %v704
        %779 = vst [vmem:[%s172 + $0x180] sm:$0xff] %v705
        %780 = vst.msk [vmem:[%s172 + $0x188] sm:$0xff] %vm258, %v706
        %781 = vst [vmem:[%s172 + $0x190] sm:$0xff] %v707
        %782 = vst.msk [vmem:[%s172 + $0x198] sm:$0xff] %vm258, %v708
        %783 = vst [vmem:[%s172 + $0x1a0] sm:$0xff] %v709
        %784 = vst.msk [vmem:[%s172 + $0x1a8] sm:$0xff] %vm258, %v710
        %785 = vst [vmem:[%s172 + $0x1b0] sm:$0xff] %v711
        %786 = vst.msk [vmem:[%s172 + $0x1b8] sm:$0xff] %vm258, %v712
        %787 = vst [vmem:[%s172 + $0x1c0] sm:$0xff] %v713
        %788 = vst.msk [vmem:[%s172 + $0x1c8] sm:$0xff] %vm258, %v714
        %789 = vst [vmem:[%s172 + $0x1d0] sm:$0xff] %v715
        %790 = vst.msk [vmem:[%s172 + $0x1d8] sm:$0xff] %vm258, %v716
        %791 = vst [vmem:[%s172 + $0x1e0] sm:$0xff] %v717
        %792 = vst.msk [vmem:[%s172 + $0x1e8] sm:$0xff] %vm258, %v718
        %793 = vst [vmem:[%s172 + $0x1f0] sm:$0xff] %v719
        %794 = vst.msk [vmem:[%s172 + $0x1f8] sm:$0xff] %vm258, %v720
        %795 = vst [vmem:[%s172 + $0x200] sm:$0xff] %v721
        %796 = vst.msk [vmem:[%s172 + $0x208] sm:$0xff] %vm258, %v722
        %797 = vst [vmem:[%s172 + $0x210] sm:$0xff] %v723
        %798 = vst.msk [vmem:[%s172 + $0x218] sm:$0xff] %vm258, %v724
        %799 = vst [vmem:[%s172 + $0x220] sm:$0xff] %v725
        %800 = vst.msk [vmem:[%s172 + $0x228] sm:$0xff] %vm258, %v726
        %801 = vst [vmem:[%s172 + $0x230] sm:$0xff] %v727
        %802 = vst.msk [vmem:[%s172 + $0x238] sm:$0xff] %vm258, %v728
        %803 = vst [vmem:[%s172 + $0x240] sm:$0xff] %v729
        %804 = vst.msk [vmem:[%s172 + $0x248] sm:$0xff] %vm258, %v730
        %s805 = sand.u32 %s90, 1
        %s806 = sand.u32 %s90, 1
        %s807 = smul.addr %s806, 592
        %s808 = scalar_lea.vmem [#allocation2], %s807
        // Predicated region
        $region33: #{inception_d_forward.9} parent=31 // pred_check
          %p809 = pneg %p100
        $region34: #{inception_d_forward.9} parent=31 // pred_check_branch
          %811 = sbr.rel (%p809) target = $region36
        $region35: #{inception_d_forward.9} parent=31 // pred_region
          %s812 = smul.u32 37, %s14
          %s813 = ssub.s32 73, %s812
          %p814 = scmp.lt.s32.totalorder %s813, 37
          %s815 = scalar_select %p814, %s813, 37
          %s816 = smul.u32 128, %s815
          %s817 = smul.u32 %s816, 2
          %p818 = scmp.ne.s32.totalorder 0, %s817
          %s819 = smul.addr %s812, 2
          %s820 = smul.addr %s819, 8
          %s821 = scalar_lea.vmem %s3, %s820
          // Predicated region
          $region37: #{inception_d_forward.9} parent=35 // pred_check
            %p822 = pneg %p818
          $region38: #{inception_d_forward.9} parent=35 // pred_check_branch
            %824 = sbr.rel (%p822) target = $region40
          $region39: #{inception_d_forward.9} parent=35 // pred_region
            // Predicated region
            $region41: #{inception_d_forward.9} parent=39 // pred_check
              _
            $region42: #{inception_d_forward.9} parent=39 // pred_check_branch
              %826 = sbr.rel (0) target = $region44
            $region43: #{inception_d_forward.9} parent=39 // pred_region
              %s827 = sshrl.u32 %s815, 5
              // While loop
              $region45: #{inception_d_forward.9} parent=43 // loop_pre_header
                _
              $region46: #{inception_d_forward.9} parent=43 // loop_header
                %s829 = sphi 0, %s831
                %p830 = scmp.ge.s32.totalorder %s829, %s827
                %s834 = sphi 0, %s967
                %s835 = sphi %s808, %s970
                %s836 = sphi %s821, %s971
              $region47: #{inception_d_forward.9} parent=43 // loop_header_branch
                %833 = sbr.rel (%p830) target = $region51
              $region48: #{inception_d_forward.9} parent=43 // loop_body
                %v837 = vld [vmem:[%s835] sm:$0xff]
                %838 = vst [vmem:[%s836] sm:$0xff] %v837
                %v839 = vld [vmem:[%s835 + $0x10] sm:$0xff]
                %840 = vst [vmem:[%s836 + $0x10] sm:$0xff] %v839
                %v841 = vld [vmem:[%s835 + $0x20] sm:$0xff]
                %842 = vst [vmem:[%s836 + $0x20] sm:$0xff] %v841
                %v843 = vld [vmem:[%s835 + $0x30] sm:$0xff]
                %844 = vst [vmem:[%s836 + $0x30] sm:$0xff] %v843
                %v845 = vld [vmem:[%s835 + $0x40] sm:$0xff]
                %846 = vst [vmem:[%s836 + $0x40] sm:$0xff] %v845
                %v847 = vld [vmem:[%s835 + $0x50] sm:$0xff]
                %848 = vst [vmem:[%s836 + $0x50] sm:$0xff] %v847
                %v849 = vld [vmem:[%s835 + $0x60] sm:$0xff]
                %850 = vst [vmem:[%s836 + $0x60] sm:$0xff] %v849
                %v851 = vld [vmem:[%s835 + $0x70] sm:$0xff]
                %852 = vst [vmem:[%s836 + $0x70] sm:$0xff] %v851
                %v853 = vld [vmem:[%s835 + $0x80] sm:$0xff]
                %854 = vst [vmem:[%s836 + $0x80] sm:$0xff] %v853
                %v855 = vld [vmem:[%s835 + $0x90] sm:$0xff]
                %856 = vst [vmem:[%s836 + $0x90] sm:$0xff] %v855
                %v857 = vld [vmem:[%s835 + $0xa0] sm:$0xff]
                %858 = vst [vmem:[%s836 + $0xa0] sm:$0xff] %v857
                %v859 = vld [vmem:[%s835 + $0xb0] sm:$0xff]
                %860 = vst [vmem:[%s836 + $0xb0] sm:$0xff] %v859
                %v861 = vld [vmem:[%s835 + $0xc0] sm:$0xff]
                %862 = vst [vmem:[%s836 + $0xc0] sm:$0xff] %v861
                %v863 = vld [vmem:[%s835 + $0xd0] sm:$0xff]
                %864 = vst [vmem:[%s836 + $0xd0] sm:$0xff] %v863
                %v865 = vld [vmem:[%s835 + $0xe0] sm:$0xff]
                %866 = vst [vmem:[%s836 + $0xe0] sm:$0xff] %v865
                %v867 = vld [vmem:[%s835 + $0xf0] sm:$0xff]
                %868 = vst [vmem:[%s836 + $0xf0] sm:$0xff] %v867
                %v869 = vld [vmem:[%s835 + $0x100] sm:$0xff]
                %870 = vst [vmem:[%s836 + $0x100] sm:$0xff] %v869
                %v871 = vld [vmem:[%s835 + $0x110] sm:$0xff]
                %872 = vst [vmem:[%s836 + $0x110] sm:$0xff] %v871
                %v873 = vld [vmem:[%s835 + $0x120] sm:$0xff]
                %874 = vst [vmem:[%s836 + $0x120] sm:$0xff] %v873
                %v875 = vld [vmem:[%s835 + $0x130] sm:$0xff]
                %876 = vst [vmem:[%s836 + $0x130] sm:$0xff] %v875
                %v877 = vld [vmem:[%s835 + $0x140] sm:$0xff]
                %878 = vst [vmem:[%s836 + $0x140] sm:$0xff] %v877
                %v879 = vld [vmem:[%s835 + $0x150] sm:$0xff]
                %880 = vst [vmem:[%s836 + $0x150] sm:$0xff] %v879
                %v881 = vld [vmem:[%s835 + $0x160] sm:$0xff]
                %882 = vst [vmem:[%s836 + $0x160] sm:$0xff] %v881
                %v883 = vld [vmem:[%s835 + $0x170] sm:$0xff]
                %884 = vst [vmem:[%s836 + $0x170] sm:$0xff] %v883
                %v885 = vld [vmem:[%s835 + $0x180] sm:$0xff]
                %886 = vst [vmem:[%s836 + $0x180] sm:$0xff] %v885
                %v887 = vld [vmem:[%s835 + $0x190] sm:$0xff]
                %888 = vst [vmem:[%s836 + $0x190] sm:$0xff] %v887
                %v889 = vld [vmem:[%s835 + $0x1a0] sm:$0xff]
                %890 = vst [vmem:[%s836 + $0x1a0] sm:$0xff] %v889
                %v891 = vld [vmem:[%s835 + $0x1b0] sm:$0xff]
                %892 = vst [vmem:[%s836 + $0x1b0] sm:$0xff] %v891
                %v893 = vld [vmem:[%s835 + $0x1c0] sm:$0xff]
                %894 = vst [vmem:[%s836 + $0x1c0] sm:$0xff] %v893
                %v895 = vld [vmem:[%s835 + $0x1d0] sm:$0xff]
                %896 = vst [vmem:[%s836 + $0x1d0] sm:$0xff] %v895
                %v897 = vld [vmem:[%s835 + $0x1e0] sm:$0xff]
                %898 = vst [vmem:[%s836 + $0x1e0] sm:$0xff] %v897
                %v899 = vld [vmem:[%s835 + $0x1f0] sm:$0xff]
                %900 = vst [vmem:[%s836 + $0x1f0] sm:$0xff] %v899
                %v901 = vld [vmem:[%s835 + $0x8] sm:$0xff]
                %902 = vst [vmem:[%s836 + $0x8] sm:$0xff] %v901
                %v903 = vld [vmem:[%s835 + $0x18] sm:$0xff]
                %904 = vst [vmem:[%s836 + $0x18] sm:$0xff] %v903
                %v905 = vld [vmem:[%s835 + $0x28] sm:$0xff]
                %906 = vst [vmem:[%s836 + $0x28] sm:$0xff] %v905
                %v907 = vld [vmem:[%s835 + $0x38] sm:$0xff]
                %908 = vst [vmem:[%s836 + $0x38] sm:$0xff] %v907
                %v909 = vld [vmem:[%s835 + $0x48] sm:$0xff]
                %910 = vst [vmem:[%s836 + $0x48] sm:$0xff] %v909
                %v911 = vld [vmem:[%s835 + $0x58] sm:$0xff]
                %912 = vst [vmem:[%s836 + $0x58] sm:$0xff] %v911
                %v913 = vld [vmem:[%s835 + $0x68] sm:$0xff]
                %914 = vst [vmem:[%s836 + $0x68] sm:$0xff] %v913
                %v915 = vld [vmem:[%s835 + $0x78] sm:$0xff]
                %916 = vst [vmem:[%s836 + $0x78] sm:$0xff] %v915
                %v917 = vld [vmem:[%s835 + $0x88] sm:$0xff]
                %918 = vst [vmem:[%s836 + $0x88] sm:$0xff] %v917
                %v919 = vld [vmem:[%s835 + $0x98] sm:$0xff]
                %920 = vst [vmem:[%s836 + $0x98] sm:$0xff] %v919
                %v921 = vld [vmem:[%s835 + $0xa8] sm:$0xff]
                %922 = vst [vmem:[%s836 + $0xa8] sm:$0xff] %v921
                %v923 = vld [vmem:[%s835 + $0xb8] sm:$0xff]
                %924 = vst [vmem:[%s836 + $0xb8] sm:$0xff] %v923
                %v925 = vld [vmem:[%s835 + $0xc8] sm:$0xff]
                %926 = vst [vmem:[%s836 + $0xc8] sm:$0xff] %v925
                %v927 = vld [vmem:[%s835 + $0xd8] sm:$0xff]
                %928 = vst [vmem:[%s836 + $0xd8] sm:$0xff] %v927
                %v929 = vld [vmem:[%s835 + $0xe8] sm:$0xff]
                %930 = vst [vmem:[%s836 + $0xe8] sm:$0xff] %v929
                %v931 = vld [vmem:[%s835 + $0xf8] sm:$0xff]
                %932 = vst [vmem:[%s836 + $0xf8] sm:$0xff] %v931
                %v933 = vld [vmem:[%s835 + $0x108] sm:$0xff]
                %934 = vst [vmem:[%s836 + $0x108] sm:$0xff] %v933
                %v935 = vld [vmem:[%s835 + $0x118] sm:$0xff]
                %936 = vst [vmem:[%s836 + $0x118] sm:$0xff] %v935
                %v937 = vld [vmem:[%s835 + $0x128] sm:$0xff]
                %938 = vst [vmem:[%s836 + $0x128] sm:$0xff] %v937
                %v939 = vld [vmem:[%s835 + $0x138] sm:$0xff]
                %940 = vst [vmem:[%s836 + $0x138] sm:$0xff] %v939
                %v941 = vld [vmem:[%s835 + $0x148] sm:$0xff]
                %942 = vst [vmem:[%s836 + $0x148] sm:$0xff] %v941
                %v943 = vld [vmem:[%s835 + $0x158] sm:$0xff]
                %944 = vst [vmem:[%s836 + $0x158] sm:$0xff] %v943
                %v945 = vld [vmem:[%s835 + $0x168] sm:$0xff]
                %946 = vst [vmem:[%s836 + $0x168] sm:$0xff] %v945
                %v947 = vld [vmem:[%s835 + $0x178] sm:$0xff]
                %948 = vst [vmem:[%s836 + $0x178] sm:$0xff] %v947
                %v949 = vld [vmem:[%s835 + $0x188] sm:$0xff]
                %950 = vst [vmem:[%s836 + $0x188] sm:$0xff] %v949
                %v951 = vld [vmem:[%s835 + $0x198] sm:$0xff]
                %952 = vst [vmem:[%s836 + $0x198] sm:$0xff] %v951
                %v953 = vld [vmem:[%s835 + $0x1a8] sm:$0xff]
                %954 = vst [vmem:[%s836 + $0x1a8] sm:$0xff] %v953
                %v955 = vld [vmem:[%s835 + $0x1b8] sm:$0xff]
                %956 = vst [vmem:[%s836 + $0x1b8] sm:$0xff] %v955
                %v957 = vld [vmem:[%s835 + $0x1c8] sm:$0xff]
                %958 = vst [vmem:[%s836 + $0x1c8] sm:$0xff] %v957
                %v959 = vld [vmem:[%s835 + $0x1d8] sm:$0xff]
                %960 = vst [vmem:[%s836 + $0x1d8] sm:$0xff] %v959
                %v961 = vld [vmem:[%s835 + $0x1e8] sm:$0xff]
                %962 = vst [vmem:[%s836 + $0x1e8] sm:$0xff] %v961
                %v963 = vld [vmem:[%s835 + $0x1f8] sm:$0xff]
                %964 = vst [vmem:[%s836 + $0x1f8] sm:$0xff] %v963
                %s965 = sadd.s32 1, %s834
                %p966 = scmp.ge.s32.totalorder %s965, %s827
                %s967 = scalar_select %p966, 0, %s965
                %s968 = smul.u32 %s967, 512
                %s969 = smul.u32 %s967, 512
                %s970 = scalar_lea.vmem %s808, %s968 [#allocation2]
                %s971 = scalar_lea.vmem %s821, %s969
              $region49: #{inception_d_forward.9} parent=43 // loop_footer
                %s831 = sadd.s32 %s829, 1
              $region50: #{inception_d_forward.9} parent=43 // loop_footer_branch
                %828 = sbr.rel target = $region46
              $region51: #{inception_d_forward.9} parent=43 // loop_exit
                _
              %s972 = sshrl.u32 %s815, 5
              %s973 = sand.u32 %s815, 31
              %s974 = smul.u32 %s972, 32
              %s975 = smul.u32 16, %s974
              %s976 = scalar_lea.vmem %s808, %s975 [#allocation2]
              %s977 = smul.u32 16, %s974
              %s978 = scalar_lea.vmem %s821, %s977
              // While loop
              $region52: #{inception_d_forward.9} parent=43 // loop_pre_header
                _
              $region53: #{inception_d_forward.9} parent=43 // loop_header
                %s980 = sphi 0, %s982
                %p981 = scmp.ge.s32.totalorder %s980, %s973
                %s985 = sphi 0, %s994
                %s986 = sphi %s976, %s997
                %s987 = sphi %s978, %s998
              $region54: #{inception_d_forward.9} parent=43 // loop_header_branch
                %984 = sbr.rel (%p981) target = $region58
              $region55: #{inception_d_forward.9} parent=43 // loop_body
                %v988 = vld [vmem:[%s986] sm:$0xff]
                %989 = vst [vmem:[%s987] sm:$0xff] %v988
                %v990 = vld [vmem:[%s986 + $0x8] sm:$0xff]
                %991 = vst [vmem:[%s987 + $0x8] sm:$0xff] %v990
                %s992 = sadd.s32 1, %s985
                %p993 = scmp.ge.s32.totalorder %s992, %s973
                %s994 = scalar_select %p993, 0, %s992
                %s995 = smul.u32 %s994, 16
                %s996 = smul.u32 %s994, 16
                %s997 = scalar_lea.vmem %s976, %s995 [#allocation2]
                %s998 = scalar_lea.vmem %s978, %s996
              $region56: #{inception_d_forward.9} parent=43 // loop_footer
                %s982 = sadd.s32 %s980, 1
              $region57: #{inception_d_forward.9} parent=43 // loop_footer_branch
                %979 = sbr.rel target = $region53
              $region58: #{inception_d_forward.9} parent=43 // loop_exit
                _
            $region44: #{inception_d_forward.9} parent=39 // pred_fallthru
              _
            // Predicated region
            $region59: #{inception_d_forward.9} parent=39 // pred_check
              _
            $region60: #{inception_d_forward.9} parent=39 // pred_check_branch
              %1000 = sbr.rel target = $region62
            $region61: #{inception_d_forward.9} parent=39 // pred_region
              _
            $region62: #{inception_d_forward.9} parent=39 // pred_fallthru
              _
          $region40: #{inception_d_forward.9} parent=35 // pred_fallthru
            _
          %1001 = vnop
        $region36: #{inception_d_forward.9} parent=31 // pred_fallthru
          _
      $region32: #{inception_d_forward.9} parent=5 // pred_fallthru
        _
      %p1002 = scmp.le.s32.totalorder 2, %s9
      // Predicated region
      $region63: #{inception_d_forward.9} parent=5 // pred_check
        %p1003 = pneg %p1002
      $region64: #{inception_d_forward.9} parent=5 // pred_check_branch
        %1005 = sbr.rel (%p1003) target = $region66
      $region65: #{inception_d_forward.9} parent=5 // pred_region
        %s1006 = ssub.s32 %s9, 2
        // Predicated region
        $region67: #{inception_d_forward.9} parent=65 // pred_check
          %p1007 = pneg %p106
        $region68: #{inception_d_forward.9} parent=65 // pred_check_branch
          %1009 = sbr.rel (%p1007) target = $region70
        $region69: #{inception_d_forward.9} parent=65 // pred_region
          %s1010 = sand.u32 %s91, 1
          %s1011 = sand.u32 %s91, 1
          %s1012 = smul.addr %s1011, 592
          %s1013 = scalar_lea.vmem [#allocation2], %s1012
        $region70: #{inception_d_forward.9} parent=65 // pred_fallthru
          _
      $region66: #{inception_d_forward.9} parent=5 // pred_fallthru
        _
    $region6: #{inception_d_forward.9} parent=1 // loop_footer
      %s13 = sadd.s32 1, %s9
    $region7: #{inception_d_forward.9} parent=1 // loop_footer_branch
      %8 = sbr.rel target = $region3
    $region8: #{inception_d_forward.9} parent=1 // loop_exit
      _

// kernel: inception_d_forward.10
$region0: #{inception_d_forward.10}
  #allocation0 [shape = 'u32[]', space=smem, size = 0x4, offset = 0x4, fixed_abs, tag = 'smem constant byte address 0x4 - core index']
  #allocation1 [shape = 'u32[144,128]{1,0:T(1,128)}', space=vmem, size = 0x12000, scoped, tag = 'internal scratch']
  %s0 = inlined_call_operand.vmem [shape: f32[578,1344], index: 0, kind: input, shape index: {}]
  %s1 = inlined_call_operand.vmem [shape: f32[1344,192], index: 1, kind: input, shape index: {}]
  %s2 = inlined_call_operand.vmem [shape: f32[1,192], index: 2, kind: input, shape index: {}]
  %s3 = inlined_call_operand.vmem [shape: f32[578,192], index: 3, kind: output, shape index: {}]
  %s4 = sld [smem:[#allocation0]]
  $region71: #{inception_d_forward.10} parent=0
    _
  %s6 = ssub.s32 1, %s4
  %s7 = scalar_select 0, %s6, %s4
  $region1: #{inception_d_forward.10} parent=0
    #allocation2 [shape = 'u8[606208]{0}', space=vmem, size = 0x94000, scoped, tag = 'output window, operand 0']
    loop: start=0, step=1, limit=4
    $region2: #{inception_d_forward.10} parent=1 // loop_pre_header
      _
    $region3: #{inception_d_forward.10} parent=1 // loop_header
      %s9 = sphi 0, %s13
      %p10 = scmp.ge.s32.totalorder %s9, 4
      %s19 = sphi 0, %s21
      %s22 = sphi 0, %s19
      %s23 = sphi 0, %s22
      %s39 = sphi 0, %s23
      %s43 = sphi 0, %s43
      %s45 = sphi 0, %s43
      %s46 = sphi 0, %s45
      %s60 = sphi 0, %s46
      %s64 = sphi 0, %s64
      %s66 = sphi 0, %s64
      %s67 = sphi 0, %s66
      %s81 = sphi 0, %s67
      %s87 = sphi 0, %s89
      %s90 = sphi 0, %s87
      %s91 = sphi 0, %s90
      %s107 = sphi 0, %s91
    $region4: #{inception_d_forward.10} parent=1 // loop_header_branch
      %12 = sbr.rel (%p10) target = $region8
    $region5: #{inception_d_forward.10} parent=1 // loop_body
      %s14 = ssub.s32 %s9, 1
      %s15 = ssub.s32 %s9, 2
      %s16 = sadd.s32 %s9, 1
      %s17 = ssub.s32 %s9, %s16
      %p18 = scmp.eq.s32.totalorder %s17, 0
      %s20 = sadd.s32 %s19, 1
      %s21 = scalar_select %p18, %s19, %s20
      %p24 = pneg %p18
      %p25 = scmp.eq.s32.totalorder %s9, 1
      %p26 = por %p24, %p25
      %p27 = scmp.ne.s32.totalorder %s19, %s22
      %p28 = scmp.eq.s32.totalorder %s9, 0
      %p29 = por %p27, %p28
      %p30 = scmp.ne.s32.totalorder %s19, %s22
      %p31 = scmp.eq.s32.totalorder %s14, 1
      %p32 = por %p30, %p31
      %p33 = scmp.ne.s32.totalorder %s22, %s23
      %p34 = scmp.eq.s32.totalorder %s14, 0
      %p35 = por %p33, %p34
      %p36 = scmp.ne.s32.totalorder %s22, %s23
      %p37 = scmp.eq.s32.totalorder %s15, 1
      %p38 = por %p36, %p37
      %p40 = scmp.ne.s32.totalorder %s23, %s39
      %p41 = scmp.eq.s32.totalorder %s15, 0
      %p42 = por %p40, %p41
      %s44 = sadd.s32 %s43, 1
      %p47 = scmp.eq.s32.totalorder %s9, 1
      %p48 = scmp.ne.s32.totalorder %s43, %s45
      %p49 = scmp.eq.s32.totalorder %s9, 0
      %p50 = por %p48, %p49
      %p51 = scmp.ne.s32.totalorder %s43, %s45
      %p52 = scmp.eq.s32.totalorder %s14, 1
      %p53 = por %p51, %p52
      %p54 = scmp.ne.s32.totalorder %s45, %s46
      %p55 = scmp.eq.s32.totalorder %s14, 0
      %p56 = por %p54, %p55
      %p57 = scmp.ne.s32.totalorder %s45, %s46
      %p58 = scmp.eq.s32.totalorder %s15, 1
      %p59 = por %p57, %p58
      %p61 = scmp.ne.s32.totalorder %s46, %s60
      %p62 = scmp.eq.s32.totalorder %s15, 0
      %p63 = por %p61, %p62
      %s65 = sadd.s32 %s64, 1
      %p68 = scmp.eq.s32.totalorder %s9, 1
      %p69 = scmp.ne.s32.totalorder %s64, %s66
      %p70 = scmp.eq.s32.totalorder %s9, 0
      %p71 = por %p69, %p70
      %p72 = scmp.ne.s32.totalorder %s64, %s66
      %p73 = scmp.eq.s32.totalorder %s14, 1
      %p74 = por %p72, %p73
      %p75 = scmp.ne.s32.totalorder %s66, %s67
      %p76 = scmp.eq.s32.totalorder %s14, 0
      %p77 = por %p75, %p76
      %p78 = scmp.ne.s32.totalorder %s66, %s67
      %p79 = scmp.eq.s32.totalorder %s15, 1
      %p80 = por %p78, %p79
      %p82 = scmp.ne.s32.totalorder %s67, %s81
      %p83 = scmp.eq.s32.totalorder %s15, 0
      %p84 = por %p82, %p83
      %s85 = ssub.s32 %s9, %s16
      %p86 = scmp.eq.s32.totalorder %s85, 0
      %s88 = sadd.s32 %s87, 1
      %s89 = scalar_select %p86, %s87, %s88
      %p92 = pneg %p86
      %p93 = scmp.eq.s32.totalorder %s9, 1
      %p94 = por %p92, %p93
      %p95 = scmp.ne.s32.totalorder %s87, %s90
      %p96 = scmp.eq.s32.totalorder %s9, 0
      %p97 = por %p95, %p96
      %p98 = scmp.ne.s32.totalorder %s87, %s90
      %p99 = scmp.eq.s32.totalorder %s14, 1
      %p100 = por %p98, %p99
      %p101 = scmp.ne.s32.totalorder %s90, %s91
      %p102 = scmp.eq.s32.totalorder %s14, 0
      %p103 = por %p101, %p102
      %p104 = scmp.ne.s32.totalorder %s90, %s91
      %p105 = scmp.eq.s32.totalorder %s15, 1
      %p106 = por %p104, %p105
      %p108 = scmp.ne.s32.totalorder %s91, %s107
      %p109 = scmp.eq.s32.totalorder %s15, 0
      %p110 = por %p108, %p109
      %p111 = scmp.le.s32.totalorder 1, %s9
      %p112 = scmp.lt.s32.totalorder %s9, 3
      %p113 = pnand %p111, %p112
      %p114 = pneg %p113
      // Predicated region
      $region9: #{inception_d_forward.10} parent=5 // pred_check
        _
      $region10: #{inception_d_forward.10} parent=5 // pred_check_branch
        %116 = sbr.rel (%p113) target = $region12
      $region11: #{inception_d_forward.10} parent=5 // pred_region
        %s117 = ssub.s32 %s9, 1
        // Predicated region
        $region13: #{inception_d_forward.10} parent=11 // pred_check
          %p118 = pneg %p56
        $region14: #{inception_d_forward.10} parent=11 // pred_check_branch
          %120 = sbr.rel (%p118) target = $region16
        $region15: #{inception_d_forward.10} parent=11 // pred_region
          _
        $region16: #{inception_d_forward.10} parent=11 // pred_fallthru
          _
        // Predicated region
        $region17: #{inception_d_forward.10} parent=11 // pred_check
          %p121 = pneg %p77
        $region18: #{inception_d_forward.10} parent=11 // pred_check_branch
          %123 = sbr.rel (%p121) target = $region20
        $region19: #{inception_d_forward.10} parent=11 // pred_region
          _
        $region20: #{inception_d_forward.10} parent=11 // pred_fallthru
          _
      $region12: #{inception_d_forward.10} parent=5 // pred_fallthru
        _
      %p124 = scmp.lt.s32.totalorder %s9, 2
      // Predicated region
      $region21: #{inception_d_forward.10} parent=5 // pred_check
        %p125 = pneg %p124
      $region22: #{inception_d_forward.10} parent=5 // pred_check_branch
        %127 = sbr.rel (%p125) target = $region24
      $region23: #{inception_d_forward.10} parent=5 // pred_region
        // Predicated region
        $region25: #{inception_d_forward.10} parent=23 // pred_check
          %p128 = pneg %p29
        $region26: #{inception_d_forward.10} parent=23 // pred_check_branch
          %130 = sbr.rel (%p128) target = $region28
        $region27: #{inception_d_forward.10} parent=23 // pred_region
          %s131 = smul.u32 37, %s9
          %s132 = ssub.s32 73, %s131
          %p133 = scmp.lt.s32.totalorder %s132, 37
          %s134 = scalar_select %p133, %s132, 37
          %s135 = smul.u32 128, %s134
          %s136 = smul.u32 %s135, 11
          %p137 = scmp.lt.s32.totalorder %s131, 72
          %s138 = scalar_select %p137, %s131, 72
          %s139 = smul.addr %s138, 11
          %s140 = smul.addr %s139, 8
          %s141 = scalar_lea.vmem %s0, %s140
          %s142 = smul.u32 37, %s9
          %s143 = ssub.s32 73, %s142
          %p144 = scmp.lt.s32.totalorder %s143, 37
          %s145 = scalar_select %p144, %s143, 37
          %s146 = smul.u32 128, %s145
          %s147 = smul.u32 %s146, 11
        $region28: #{inception_d_forward.10} parent=23 // pred_fallthru
          _
      $region24: #{inception_d_forward.10} parent=5 // pred_fallthru
        _
      %p148 = scmp.le.s32.totalorder 1, %s9
      %p149 = scmp.lt.s32.totalorder %s9, 3
      %p150 = pnand %p148, %p149
      %p151 = pneg %p150
      // Predicated region
      $region29: #{inception_d_forward.10} parent=5 // pred_check
        _
      $region30: #{inception_d_forward.10} parent=5 // pred_check_branch
        %153 = sbr.rel (%p150) target = $region32
      $region31: #{inception_d_forward.10} parent=5 // pred_region
        %s154 = ssub.s32 %s9, 1
        %s155 = smul.u32 37, %s14
        %s156 = ssub.s32 73, %s155
        %p157 = scmp.lt.s32.totalorder %s156, 37
        %s158 = scalar_select %p157, %s156, 37
        %s159 = smul.u32 128, %s158
        %s160 = smul.u32 %s159, 11
        %p161 = scmp.lt.s32.totalorder %s155, 72
        %s162 = scalar_select %p161, %s155, 72
        %s163 = smul.addr %s162, 11
        %s164 = smul.addr %s163, 8
        %s165 = scalar_lea.vmem %s0, %s164
        %p166 = pneg %p35
        %p167 = pneg %p32
        %p168 = pneg %p56
        %p169 = pneg %p53
        %p170 = pneg %p77
        %p171 = pneg %p74
        %p172 = pneg %p103
        %p173 = pneg %p100
        %s174 = sand.u32 %s90, 1
        %s175 = sand.u32 %s90, 1
        %s176 = smul.addr %s175, 592
        %s177 = scalar_lea.vmem [#allocation2], %s176
        %s178 = smul.u32 37, %s14
        %s179 = ssub.s32 73, %s178
        %p180 = scmp.lt.s32.totalorder %s179, 37
        %s181 = scalar_select %p180, %s179, 37
        %s182 = smul.u32 128, %s181
        %s183 = smul.u32 %s182, 11
        %p184 = scmp.lt.s32.totalorder %s178, 72
        %s185 = scalar_select %p184, %s178, 72
        %s186 = smul.addr %s185, 11
        %s187 = smul.addr %s186, 8
        %s188 = scalar_lea.vmem %s0, %s187
        %s189 = smul.u32 37, %s14
        %s190 = ssub.s32 73, %s189
        %p191 = scmp.lt.s32.totalorder %s190, 37
        %s192 = scalar_select %p191, %s190, 37
        %s193 = smul.u32 128, %s192
        %s194 = smul.u32 %s193, 11
        %s195 = smul.u32 37, %s14
        %s196 = ssub.s32 73, %s195
        %p197 = scmp.lt.s32.totalorder %s196, 37
        %s198 = scalar_select %p197, %s196, 37
        %s199 = smul.u32 128, %s198
        %s200 = smul.u32 %s199, 2
        %v201 = vld [vmem:[%s188] sm:$0xff]
        %v202 = vld [vmem:[%s188 + $0x8] sm:$0xff]
        %v203 = vld [vmem:[%s188 + $0x10] sm:$0xff]
        %v204 = vld [vmem:[%s188 + $0x18] sm:$0xff]
        %v205 = vld [vmem:[%s188 + $0x20] sm:$0xff]
        %v206 = vld [vmem:[%s188 + $0x28] sm:$0xff]
        %v207 = vld [vmem:[%s188 + $0x30] sm:$0xff]
        %v208 = vld [vmem:[%s188 + $0x38] sm:$0xff]
        %v209 = vld [vmem:[%s188 + $0x40] sm:$0xff]
        %v210 = vld [vmem:[%s188 + $0x48] sm:$0xff]
        %v211 = vld [vmem:[%s188 + $0x50] sm:$0xff]
        %v212 = vld [vmem:[%s188 + $0x58] sm:$0xff]
        %v213 = vld [vmem:[%s188 + $0x60] sm:$0xff]
        %v214 = vld [vmem:[%s188 + $0x68] sm:$0xff]
        %v215 = vld [vmem:[%s188 + $0x70] sm:$0xff]
        %v216 = vld [vmem:[%s188 + $0x78] sm:$0xff]
        %v217 = vld [vmem:[%s188 + $0x80] sm:$0xff]
        %v218 = vld [vmem:[%s188 + $0x88] sm:$0xff]
        %v219 = vld [vmem:[%s188 + $0x90] sm:$0xff]
        %v220 = vld [vmem:[%s188 + $0x98] sm:$0xff]
        %v221 = vld [vmem:[%s188 + $0xa0] sm:$0xff]
        %v222 = vld [vmem:[%s188 + $0xa8] sm:$0xff]
        %v223 = vld [vmem:[%s188 + $0xb0] sm:$0xff]
        %v224 = vld [vmem:[%s188 + $0xb8] sm:$0xff]
        %v225 = vld [vmem:[%s188 + $0xc0] sm:$0xff]
        %v226 = vld [vmem:[%s188 + $0xc8] sm:$0xff]
        %v227 = vld [vmem:[%s188 + $0xd0] sm:$0xff]
        %v228 = vld [vmem:[%s188 + $0xd8] sm:$0xff]
        %v229 = vld [vmem:[%s188 + $0xe0] sm:$0xff]
        %v230 = vld [vmem:[%s188 + $0xe8] sm:$0xff]
        %v231 = vld [vmem:[%s188 + $0xf0] sm:$0xff]
        %v232 = vld [vmem:[%s188 + $0xf8] sm:$0xff]
        %v233 = vld [vmem:[%s188 + $0x100] sm:$0xff]
        %v234 = vld [vmem:[%s188 + $0x108] sm:$0xff]
        %v235 = vld [vmem:[%s188 + $0x110] sm:$0xff]
        %v236 = vld [vmem:[%s188 + $0x118] sm:$0xff]
        %v237 = vld [vmem:[%s188 + $0x120] sm:$0xff]
        %v238 = vld [vmem:[%s188 + $0x128] sm:$0xff]
        %v239 = vld [vmem:[%s188 + $0x130] sm:$0xff]
        %v240 = vld [vmem:[%s188 + $0x138] sm:$0xff]
        %v241 = vld [vmem:[%s188 + $0x140] sm:$0xff]
        %v242 = vld [vmem:[%s188 + $0x148] sm:$0xff]
        %v243 = vld [vmem:[%s188 + $0x150] sm:$0xff]
        %v244 = vld [vmem:[%s188 + $0x158] sm:$0xff]
        %v245 = vld [vmem:[%s188 + $0x160] sm:$0xff]
        %v246 = vld [vmem:[%s188 + $0x168] sm:$0xff]
        %v247 = vld [vmem:[%s188 + $0x170] sm:$0xff]
        %v248 = vld [vmem:[%s188 + $0x178] sm:$0xff]
        %v249 = vld [vmem:[%s188 + $0x180] sm:$0xff]
        %v250 = vld [vmem:[%s188 + $0x188] sm:$0xff]
        %v251 = vld [vmem:[%s188 + $0x190] sm:$0xff]
        %v252 = vld [vmem:[%s188 + $0x198] sm:$0xff]
        %v253 = vld [vmem:[%s188 + $0x1a0] sm:$0xff]
        %v254 = vld [vmem:[%s188 + $0x1a8] sm:$0xff]
        %v255 = vld [vmem:[%s188 + $0x1b0] sm:$0xff]
        %v256 = vld [vmem:[%s188 + $0x1b8] sm:$0xff]
        %v257 = vld [vmem:[%s188 + $0x1c0] sm:$0xff]
        %v258 = vld [vmem:[%s188 + $0x1c8] sm:$0xff]
        %v259 = vld [vmem:[%s188 + $0x1d0] sm:$0xff]
        %v260 = vld [vmem:[%s188 + $0x1d8] sm:$0xff]
        %v261 = vld [vmem:[%s188 + $0x1e0] sm:$0xff]
        %v262 = vld [vmem:[%s188 + $0x1e8] sm:$0xff]
        %v263 = vld [vmem:[%s188 + $0x1f0] sm:$0xff]
        %v264 = vld [vmem:[%s188 + $0x1f8] sm:$0xff]
        %v265 = vld [vmem:[%s188 + $0x200] sm:$0xff]
        %v266 = vld [vmem:[%s188 + $0x208] sm:$0xff]
        %v267 = vld [vmem:[%s188 + $0x210] sm:$0xff]
        %v268 = vld [vmem:[%s188 + $0x218] sm:$0xff]
        %v269 = vld [vmem:[%s188 + $0x220] sm:$0xff]
        %v270 = vld [vmem:[%s188 + $0x228] sm:$0xff]
        %v271 = vld [vmem:[%s188 + $0x230] sm:$0xff]
        %v272 = vld [vmem:[%s188 + $0x238] sm:$0xff]
        %v273 = vld [vmem:[%s188 + $0x240] sm:$0xff]
        %v274 = vld [vmem:[%s188 + $0x248] sm:$0xff]
        %v275 = vld [vmem:[%s188 + $0x250] sm:$0xff]
        %v276 = vld [vmem:[%s188 + $0x258] sm:$0xff]
        %v277 = vld [vmem:[%s188 + $0x260] sm:$0xff]
        %v278 = vld [vmem:[%s188 + $0x268] sm:$0xff]
        %v279 = vld [vmem:[%s188 + $0x270] sm:$0xff]
        %v280 = vld [vmem:[%s188 + $0x278] sm:$0xff]
        %v281 = vld [vmem:[%s188 + $0x280] sm:$0xff]
        %v282 = vld [vmem:[%s188 + $0x288] sm:$0xff]
        %v283 = vld [vmem:[%s188 + $0x290] sm:$0xff]
        %v284 = vld [vmem:[%s188 + $0x298] sm:$0xff]
        %v285 = vld [vmem:[%s188 + $0x2a0] sm:$0xff]
        %v286 = vld [vmem:[%s188 + $0x2a8] sm:$0xff]
        %v287 = vld [vmem:[%s188 + $0x2b0] sm:$0xff]
        %v288 = vld [vmem:[%s188 + $0x2b8] sm:$0xff]
        %v289 = vld [vmem:[%s188 + $0x2c0] sm:$0xff]
        %v290 = vld [vmem:[%s188 + $0x2c8] sm:$0xff]
        %v291 = vld [vmem:[%s188 + $0x2d0] sm:$0xff]
        %v292 = vld [vmem:[%s188 + $0x2d8] sm:$0xff]
        %v293 = vld [vmem:[%s188 + $0x2e0] sm:$0xff]
        %v294 = vld [vmem:[%s188 + $0x2e8] sm:$0xff]
        %v295 = vld [vmem:[%s188 + $0x2f0] sm:$0xff]
        %v296 = vld [vmem:[%s188 + $0x2f8] sm:$0xff]
        %v297 = vld [vmem:[%s188 + $0x300] sm:$0xff]
        %v298 = vld [vmem:[%s188 + $0x308] sm:$0xff]
        %v299 = vld [vmem:[%s188 + $0x310] sm:$0xff]
        %v300 = vld [vmem:[%s188 + $0x318] sm:$0xff]
        %v301 = vld [vmem:[%s188 + $0x320] sm:$0xff]
        %v302 = vld [vmem:[%s188 + $0x328] sm:$0xff]
        %v303 = vld [vmem:[%s188 + $0x330] sm:$0xff]
        %v304 = vld [vmem:[%s188 + $0x338] sm:$0xff]
        %v305 = vld [vmem:[%s188 + $0x340] sm:$0xff]
        %v306 = vld [vmem:[%s188 + $0x348] sm:$0xff]
        %v307 = vld [vmem:[%s188 + $0x350] sm:$0xff]
        %v308 = vld [vmem:[%s188 + $0x358] sm:$0xff]
        %v309 = vld [vmem:[%s188 + $0x360] sm:$0xff]
        %v310 = vld [vmem:[%s188 + $0x368] sm:$0xff]
        %v311 = vld [vmem:[%s188 + $0x370] sm:$0xff]
        %v312 = vld [vmem:[%s188 + $0x378] sm:$0xff]
        %v313 = vld [vmem:[%s188 + $0x380] sm:$0xff]
        %v314 = vld [vmem:[%s188 + $0x388] sm:$0xff]
        %v315 = vld [vmem:[%s188 + $0x390] sm:$0xff]
        %v316 = vld [vmem:[%s188 + $0x398] sm:$0xff]
        %v317 = vld [vmem:[%s188 + $0x3a0] sm:$0xff]
        %v318 = vld [vmem:[%s188 + $0x3a8] sm:$0xff]
        %v319 = vld [vmem:[%s188 + $0x3b0] sm:$0xff]
        %v320 = vld [vmem:[%s188 + $0x3b8] sm:$0xff]
        %v321 = vld [vmem:[%s188 + $0x3c0] sm:$0xff]
        %v322 = vld [vmem:[%s188 + $0x3c8] sm:$0xff]
        %v323 = vld [vmem:[%s188 + $0x3d0] sm:$0xff]
        %v324 = vld [vmem:[%s188 + $0x3d8] sm:$0xff]
        %v325 = vld [vmem:[%s188 + $0x3e0] sm:$0xff]
        %v326 = vld [vmem:[%s188 + $0x3e8] sm:$0xff]
        %v327 = vld [vmem:[%s188 + $0x3f0] sm:$0xff]
        %v328 = vld [vmem:[%s188 + $0x3f8] sm:$0xff]
        %v329 = vld [vmem:[%s188 + $0x400] sm:$0xff]
        %v330 = vld [vmem:[%s188 + $0x408] sm:$0xff]
        %v331 = vld [vmem:[%s188 + $0x410] sm:$0xff]
        %v332 = vld [vmem:[%s188 + $0x418] sm:$0xff]
        %v333 = vld [vmem:[%s188 + $0x420] sm:$0xff]
        %v334 = vld [vmem:[%s188 + $0x428] sm:$0xff]
        %v335 = vld [vmem:[%s188 + $0x430] sm:$0xff]
        %v336 = vld [vmem:[%s188 + $0x438] sm:$0xff]
        %v337 = vld [vmem:[%s188 + $0x440] sm:$0xff]
        %v338 = vld [vmem:[%s188 + $0x448] sm:$0xff]
        %v339 = vld [vmem:[%s188 + $0x450] sm:$0xff]
        %v340 = vld [vmem:[%s188 + $0x458] sm:$0xff]
        %v341 = vld [vmem:[%s188 + $0x460] sm:$0xff]
        %v342 = vld [vmem:[%s188 + $0x468] sm:$0xff]
        %v343 = vld [vmem:[%s188 + $0x470] sm:$0xff]
        %v344 = vld [vmem:[%s188 + $0x478] sm:$0xff]
        %v345 = vld [vmem:[%s188 + $0x480] sm:$0xff]
        %v346 = vld [vmem:[%s188 + $0x488] sm:$0xff]
        %v347 = vld [vmem:[%s188 + $0x490] sm:$0xff]
        %v348 = vld [vmem:[%s188 + $0x498] sm:$0xff]
        %v349 = vld [vmem:[%s188 + $0x4a0] sm:$0xff]
        %v350 = vld [vmem:[%s188 + $0x4a8] sm:$0xff]
        %v351 = vld [vmem:[%s188 + $0x4b0] sm:$0xff]
        %v352 = vld [vmem:[%s188 + $0x4b8] sm:$0xff]
        %v353 = vld [vmem:[%s188 + $0x4c0] sm:$0xff]
        %v354 = vld [vmem:[%s188 + $0x4c8] sm:$0xff]
        %v355 = vld [vmem:[%s188 + $0x4d0] sm:$0xff]
        %v356 = vld [vmem:[%s188 + $0x4d8] sm:$0xff]
        %v357 = vld [vmem:[%s188 + $0x4e0] sm:$0xff]
        %v358 = vld [vmem:[%s188 + $0x4e8] sm:$0xff]
        %v359 = vld [vmem:[%s188 + $0x4f0] sm:$0xff]
        %v360 = vld [vmem:[%s188 + $0x4f8] sm:$0xff]
        %v361 = vld [vmem:[%s188 + $0x500] sm:$0xff]
        %v362 = vld [vmem:[%s188 + $0x508] sm:$0xff]
        %v363 = vld [vmem:[%s188 + $0x510] sm:$0xff]
        %v364 = vld [vmem:[%s188 + $0x518] sm:$0xff]
        %v365 = vld [vmem:[%s188 + $0x520] sm:$0xff]
        %v366 = vld [vmem:[%s188 + $0x528] sm:$0xff]
        %v367 = vld [vmem:[%s188 + $0x530] sm:$0xff]
        %v368 = vld [vmem:[%s188 + $0x538] sm:$0xff]
        %v369 = vld [vmem:[%s188 + $0x540] sm:$0xff]
        %v370 = vld [vmem:[%s188 + $0x548] sm:$0xff]
        %v371 = vld [vmem:[%s188 + $0x550] sm:$0xff]
        %v372 = vld [vmem:[%s188 + $0x558] sm:$0xff]
        %v373 = vld [vmem:[%s188 + $0x560] sm:$0xff]
        %v374 = vld [vmem:[%s188 + $0x568] sm:$0xff]
        %v375 = vld [vmem:[%s188 + $0x570] sm:$0xff]
        %v376 = vld [vmem:[%s188 + $0x578] sm:$0xff]
        %v377 = vld [vmem:[%s188 + $0x580] sm:$0xff]
        %v378 = vld [vmem:[%s188 + $0x588] sm:$0xff]
        %v379 = vld [vmem:[%s188 + $0x590] sm:$0xff]
        %v380 = vld [vmem:[%s188 + $0x598] sm:$0xff]
        %v381 = vld [vmem:[%s188 + $0x5a0] sm:$0xff]
        %v382 = vld [vmem:[%s188 + $0x5a8] sm:$0xff]
        %v383 = vld [vmem:[%s188 + $0x5b0] sm:$0xff]
        %v384 = vld [vmem:[%s188 + $0x5b8] sm:$0xff]
        %v385 = vld [vmem:[%s188 + $0x5c0] sm:$0xff]
        %v386 = vld [vmem:[%s188 + $0x5c8] sm:$0xff]
        %v387 = vld [vmem:[%s188 + $0x5d0] sm:$0xff]
        %v388 = vld [vmem:[%s188 + $0x5d8] sm:$0xff]
        %v389 = vld [vmem:[%s188 + $0x5e0] sm:$0xff]
        %v390 = vld [vmem:[%s188 + $0x5e8] sm:$0xff]
        %v391 = vld [vmem:[%s188 + $0x5f0] sm:$0xff]
        %v392 = vld [vmem:[%s188 + $0x5f8] sm:$0xff]
        %v393 = vld [vmem:[%s188 + $0x600] sm:$0xff]
        %v394 = vld [vmem:[%s188 + $0x608] sm:$0xff]
        %v395 = vld [vmem:[%s188 + $0x610] sm:$0xff]
        %v396 = vld [vmem:[%s188 + $0x618] sm:$0xff]
        %v397 = vld [vmem:[%s188 + $0x620] sm:$0xff]
        %v398 = vld [vmem:[%s188 + $0x628] sm:$0xff]
        %v399 = vld [vmem:[%s188 + $0x630] sm:$0xff]
        %v400 = vld [vmem:[%s188 + $0x638] sm:$0xff]
        %v401 = vld [vmem:[%s188 + $0x640] sm:$0xff]
        %v402 = vld [vmem:[%s188 + $0x648] sm:$0xff]
        %v403 = vld [vmem:[%s188 + $0x650] sm:$0xff]
        %v404 = vld [vmem:[%s188 + $0x658] sm:$0xff]
        %v405 = vld [vmem:[%s188 + $0x660] sm:$0xff]
        %v406 = vld [vmem:[%s188 + $0x668] sm:$0xff]
        %v407 = vld [vmem:[%s188 + $0x670] sm:$0xff]
        %v408 = vld [vmem:[%s188 + $0x678] sm:$0xff]
        %v409 = vld [vmem:[%s188 + $0x680] sm:$0xff]
        %v410 = vld [vmem:[%s188 + $0x688] sm:$0xff]
        %v411 = vld [vmem:[%s188 + $0x690] sm:$0xff]
        %v412 = vld [vmem:[%s188 + $0x698] sm:$0xff]
        %v413 = vld [vmem:[%s188 + $0x6a0] sm:$0xff]
        %v414 = vld [vmem:[%s188 + $0x6a8] sm:$0xff]
        %v415 = vld [vmem:[%s188 + $0x6b0] sm:$0xff]
        %v416 = vld [vmem:[%s188 + $0x6b8] sm:$0xff]
        %v417 = vld [vmem:[%s188 + $0x6c0] sm:$0xff]
        %v418 = vld [vmem:[%s188 + $0x6c8] sm:$0xff]
        %v419 = vld [vmem:[%s188 + $0x6d0] sm:$0xff]
        %v420 = vld [vmem:[%s188 + $0x6d8] sm:$0xff]
        %v421 = vld [vmem:[%s188 + $0x6e0] sm:$0xff]
        %v422 = vld [vmem:[%s188 + $0x6e8] sm:$0xff]
        %v423 = vld [vmem:[%s188 + $0x6f0] sm:$0xff]
        %v424 = vld [vmem:[%s188 + $0x6f8] sm:$0xff]
        %v425 = vld [vmem:[%s188 + $0x700] sm:$0xff]
        %v426 = vld [vmem:[%s188 + $0x708] sm:$0xff]
        %v427 = vld [vmem:[%s188 + $0x710] sm:$0xff]
        %v428 = vld [vmem:[%s188 + $0x718] sm:$0xff]
        %v429 = vld [vmem:[%s188 + $0x720] sm:$0xff]
        %v430 = vld [vmem:[%s188 + $0x728] sm:$0xff]
        %v431 = vld [vmem:[%s188 + $0x730] sm:$0xff]
        %v432 = vld [vmem:[%s188 + $0x738] sm:$0xff]
        %v433 = vld [vmem:[%s188 + $0x740] sm:$0xff]
        %v434 = vld [vmem:[%s188 + $0x748] sm:$0xff]
        %v435 = vld [vmem:[%s188 + $0x750] sm:$0xff]
        %v436 = vld [vmem:[%s188 + $0x758] sm:$0xff]
        %v437 = vld [vmem:[%s188 + $0x760] sm:$0xff]
        %v438 = vld [vmem:[%s188 + $0x768] sm:$0xff]
        %v439 = vld [vmem:[%s188 + $0x770] sm:$0xff]
        %v440 = vld [vmem:[%s188 + $0x778] sm:$0xff]
        %v441 = vld [vmem:[%s188 + $0x780] sm:$0xff]
        %v442 = vld [vmem:[%s188 + $0x788] sm:$0xff]
        %v443 = vld [vmem:[%s188 + $0x790] sm:$0xff]
        %v444 = vld [vmem:[%s188 + $0x798] sm:$0xff]
        %v445 = vld [vmem:[%s188 + $0x7a0] sm:$0xff]
        %v446 = vld [vmem:[%s188 + $0x7a8] sm:$0xff]
        %v447 = vld [vmem:[%s188 + $0x7b0] sm:$0xff]
        %v448 = vld [vmem:[%s188 + $0x7b8] sm:$0xff]
        %v449 = vld [vmem:[%s188 + $0x7c0] sm:$0xff]
        %v450 = vld [vmem:[%s188 + $0x7c8] sm:$0xff]
        %v451 = vld [vmem:[%s188 + $0x7d0] sm:$0xff]
        %v452 = vld [vmem:[%s188 + $0x7d8] sm:$0xff]
        %v453 = vld [vmem:[%s188 + $0x7e0] sm:$0xff]
        %v454 = vld [vmem:[%s188 + $0x7e8] sm:$0xff]
        %v455 = vld [vmem:[%s188 + $0x7f0] sm:$0xff]
        %v456 = vld [vmem:[%s188 + $0x7f8] sm:$0xff]
        %v457 = vld [vmem:[%s188 + $0x800] sm:$0xff]
        %v458 = vld [vmem:[%s188 + $0x808] sm:$0xff]
        %v459 = vld [vmem:[%s188 + $0x810] sm:$0xff]
        %v460 = vld [vmem:[%s188 + $0x818] sm:$0xff]
        %v461 = vld [vmem:[%s188 + $0x820] sm:$0xff]
        %v462 = vld [vmem:[%s188 + $0x828] sm:$0xff]
        %v463 = vld [vmem:[%s188 + $0x830] sm:$0xff]
        %v464 = vld [vmem:[%s188 + $0x838] sm:$0xff]
        %v465 = vld [vmem:[%s188 + $0x840] sm:$0xff]
        %v466 = vld [vmem:[%s188 + $0x848] sm:$0xff]
        %v467 = vld [vmem:[%s188 + $0x850] sm:$0xff]
        %v468 = vld [vmem:[%s188 + $0x858] sm:$0xff]
        %v469 = vld [vmem:[%s188 + $0x860] sm:$0xff]
        %v470 = vld [vmem:[%s188 + $0x868] sm:$0xff]
        %v471 = vld [vmem:[%s188 + $0x870] sm:$0xff]
        %v472 = vld [vmem:[%s188 + $0x878] sm:$0xff]
        %v473 = vld [vmem:[%s188 + $0x880] sm:$0xff]
        %v474 = vld [vmem:[%s188 + $0x888] sm:$0xff]
        %v475 = vld [vmem:[%s188 + $0x890] sm:$0xff]
        %v476 = vld [vmem:[%s188 + $0x898] sm:$0xff]
        %v477 = vld [vmem:[%s188 + $0x8a0] sm:$0xff]
        %v478 = vld [vmem:[%s188 + $0x8a8] sm:$0xff]
        %v479 = vld [vmem:[%s188 + $0x8b0] sm:$0xff]
        %v480 = vld [vmem:[%s188 + $0x8b8] sm:$0xff]
        %v481 = vld [vmem:[%s188 + $0x8c0] sm:$0xff]
        %v482 = vld [vmem:[%s188 + $0x8c8] sm:$0xff]
        %v483 = vld [vmem:[%s188 + $0x8d0] sm:$0xff]
        %v484 = vld [vmem:[%s188 + $0x8d8] sm:$0xff]
        %v485 = vld [vmem:[%s188 + $0x8e0] sm:$0xff]
        %v486 = vld [vmem:[%s188 + $0x8e8] sm:$0xff]
        %v487 = vld [vmem:[%s188 + $0x8f0] sm:$0xff]
        %v488 = vld [vmem:[%s188 + $0x8f8] sm:$0xff]
        %v489 = vld [vmem:[%s188 + $0x900] sm:$0xff]
        %v490 = vld [vmem:[%s188 + $0x908] sm:$0xff]
        %v491 = vld [vmem:[%s188 + $0x910] sm:$0xff]
        %v492 = vld [vmem:[%s188 + $0x918] sm:$0xff]
        %v493 = vld [vmem:[%s188 + $0x920] sm:$0xff]
        %v494 = vld [vmem:[%s188 + $0x928] sm:$0xff]
        %v495 = vld [vmem:[%s188 + $0x930] sm:$0xff]
        %v496 = vld [vmem:[%s188 + $0x938] sm:$0xff]
        %v497 = vld [vmem:[%s188 + $0x940] sm:$0xff]
        %v498 = vld [vmem:[%s188 + $0x948] sm:$0xff]
        %v499 = vld [vmem:[%s188 + $0x950] sm:$0xff]
        %v500 = vld [vmem:[%s188 + $0x958] sm:$0xff]
        %v501 = vld [vmem:[%s188 + $0x960] sm:$0xff]
        %v502 = vld [vmem:[%s188 + $0x968] sm:$0xff]
        %v503 = vld [vmem:[%s188 + $0x970] sm:$0xff]
        %v504 = vld [vmem:[%s188 + $0x978] sm:$0xff]
        %v505 = vld [vmem:[%s188 + $0x980] sm:$0xff]
        %v506 = vld [vmem:[%s188 + $0x988] sm:$0xff]
        %v507 = vld [vmem:[%s188 + $0x990] sm:$0xff]
        %v508 = vld [vmem:[%s188 + $0x998] sm:$0xff]
        %v509 = vld [vmem:[%s188 + $0x9a0] sm:$0xff]
        %v510 = vld [vmem:[%s188 + $0x9a8] sm:$0xff]
        %v511 = vld [vmem:[%s188 + $0x9b0] sm:$0xff]
        %v512 = vld [vmem:[%s188 + $0x9b8] sm:$0xff]
        %v513 = vld [vmem:[%s188 + $0x9c0] sm:$0xff]
        %v514 = vld [vmem:[%s188 + $0x9c8] sm:$0xff]
        %v515 = vld [vmem:[%s188 + $0x9d0] sm:$0xff]
        %v516 = vld [vmem:[%s188 + $0x9d8] sm:$0xff]
        %v517 = vld [vmem:[%s188 + $0x9e0] sm:$0xff]
        %v518 = vld [vmem:[%s188 + $0x9e8] sm:$0xff]
        %v519 = vld [vmem:[%s188 + $0x9f0] sm:$0xff]
        %v520 = vld [vmem:[%s188 + $0x9f8] sm:$0xff]
        %v521 = vld [vmem:[%s188 + $0xa00] sm:$0xff]
        %v522 = vld [vmem:[%s188 + $0xa08] sm:$0xff]
        %v523 = vld [vmem:[%s188 + $0xa10] sm:$0xff]
        %v524 = vld [vmem:[%s188 + $0xa18] sm:$0xff]
        %v525 = vld [vmem:[%s188 + $0xa20] sm:$0xff]
        %v526 = vld [vmem:[%s188 + $0xa28] sm:$0xff]
        %v527 = vld [vmem:[%s188 + $0xa30] sm:$0xff]
        %v528 = vld [vmem:[%s188 + $0xa38] sm:$0xff]
        %v529 = vld [vmem:[%s188 + $0xa40] sm:$0xff]
        %v530 = vld [vmem:[%s188 + $0xa48] sm:$0xff]
        %v531 = vld [vmem:[%s188 + $0xa50] sm:$0xff]
        %v532 = vld [vmem:[%s188 + $0xa58] sm:$0xff]
        %v533 = vld [vmem:[%s188 + $0xa60] sm:$0xff]
        %v534 = vld [vmem:[%s188 + $0xa68] sm:$0xff]
        %v535 = vld [vmem:[%s188 + $0xa70] sm:$0xff]
        %v536 = vld [vmem:[%s188 + $0xa78] sm:$0xff]
        %v537 = vld [vmem:[%s188 + $0xa80] sm:$0xff]
        %v538 = vld [vmem:[%s188 + $0xa88] sm:$0xff]
        %v539 = vld [vmem:[%s188 + $0xa90] sm:$0xff]
        %v540 = vld [vmem:[%s188 + $0xa98] sm:$0xff]
        %v541 = vld [vmem:[%s188 + $0xaa0] sm:$0xff]
        %v542 = vld [vmem:[%s188 + $0xaa8] sm:$0xff]
        %v543 = vld [vmem:[%s188 + $0xab0] sm:$0xff]
        %v544 = vld [vmem:[%s188 + $0xab8] sm:$0xff]
        %v545 = vld [vmem:[%s188 + $0xac0] sm:$0xff]
        %v546 = vld [vmem:[%s188 + $0xac8] sm:$0xff]
        %v547 = vld [vmem:[%s188 + $0xad0] sm:$0xff]
        %v548 = vld [vmem:[%s188 + $0xad8] sm:$0xff]
        %v549 = vld [vmem:[%s188 + $0xae0] sm:$0xff]
        %v550 = vld [vmem:[%s188 + $0xae8] sm:$0xff]
        %v551 = vld [vmem:[%s188 + $0xaf0] sm:$0xff]
        %v552 = vld [vmem:[%s188 + $0xaf8] sm:$0xff]
        %v553 = vld [vmem:[%s188 + $0xb00] sm:$0xff]
        %v554 = vld [vmem:[%s188 + $0xb08] sm:$0xff]
        %v555 = vld [vmem:[%s188 + $0xb10] sm:$0xff]
        %v556 = vld [vmem:[%s188 + $0xb18] sm:$0xff]
        %v557 = vld [vmem:[%s188 + $0xb20] sm:$0xff]
        %v558 = vld [vmem:[%s188 + $0xb28] sm:$0xff]
        %v559 = vld [vmem:[%s188 + $0xb30] sm:$0xff]
        %v560 = vld [vmem:[%s188 + $0xb38] sm:$0xff]
        %v561 = vld [vmem:[%s188 + $0xb40] sm:$0xff]
        %v562 = vld [vmem:[%s188 + $0xb48] sm:$0xff]
        %v563 = vld [vmem:[%s188 + $0xb50] sm:$0xff]
        %v564 = vld [vmem:[%s188 + $0xb58] sm:$0xff]
        %v565 = vld [vmem:[%s188 + $0xb60] sm:$0xff]
        %v566 = vld [vmem:[%s188 + $0xb68] sm:$0xff]
        %v567 = vld [vmem:[%s188 + $0xb70] sm:$0xff]
        %v568 = vld [vmem:[%s188 + $0xb78] sm:$0xff]
        %v569 = vld [vmem:[%s188 + $0xb80] sm:$0xff]
        %v570 = vld [vmem:[%s188 + $0xb88] sm:$0xff]
        %v571 = vld [vmem:[%s188 + $0xb90] sm:$0xff]
        %v572 = vld [vmem:[%s188 + $0xb98] sm:$0xff]
        %v573 = vld [vmem:[%s188 + $0xba0] sm:$0xff]
        %v574 = vld [vmem:[%s188 + $0xba8] sm:$0xff]
        %v575 = vld [vmem:[%s188 + $0xbb0] sm:$0xff]
        %v576 = vld [vmem:[%s188 + $0xbb8] sm:$0xff]
        %v577 = vld [vmem:[%s188 + $0xbc0] sm:$0xff]
        %v578 = vld [vmem:[%s188 + $0xbc8] sm:$0xff]
        %v579 = vld [vmem:[%s188 + $0xbd0] sm:$0xff]
        %v580 = vld [vmem:[%s188 + $0xbd8] sm:$0xff]
        %v581 = vld [vmem:[%s188 + $0xbe0] sm:$0xff]
        %v582 = vld [vmem:[%s188 + $0xbe8] sm:$0xff]
        %v583 = vld [vmem:[%s188 + $0xbf0] sm:$0xff]
        %v584 = vld [vmem:[%s188 + $0xbf8] sm:$0xff]
        %v585 = vld [vmem:[%s188 + $0xc00] sm:$0xff]
        %v586 = vld [vmem:[%s188 + $0xc08] sm:$0xff]
        %v587 = vld [vmem:[%s188 + $0xc10] sm:$0xff]
        %v588 = vld [vmem:[%s188 + $0xc18] sm:$0xff]
        %v589 = vld [vmem:[%s188 + $0xc20] sm:$0xff]
        %v590 = vld [vmem:[%s188 + $0xc28] sm:$0xff]
        %v591 = vld [vmem:[%s188 + $0xc30] sm:$0xff]
        %v592 = vld [vmem:[%s188 + $0xc38] sm:$0xff]
        %v593 = vld [vmem:[%s188 + $0xc40] sm:$0xff]
        %v594 = vld [vmem:[%s188 + $0xc48] sm:$0xff]
        %v595 = vld [vmem:[%s188 + $0xc50] sm:$0xff]
        %v596 = vld [vmem:[%s188 + $0xc58] sm:$0xff]
        %v597 = vld [vmem:[%s188 + $0xc60] sm:$0xff]
        %v598 = vld [vmem:[%s188 + $0xc68] sm:$0xff]
        %v599 = vld [vmem:[%s188 + $0xc70] sm:$0xff]
        %v600 = vld [vmem:[%s188 + $0xc78] sm:$0xff]
        %v601 = vld [vmem:[%s188 + $0xc80] sm:$0xff]
        %v602 = vld [vmem:[%s188 + $0xc88] sm:$0xff]
        %v603 = vld [vmem:[%s188 + $0xc90] sm:$0xff]
        %v604 = vld [vmem:[%s188 + $0xc98] sm:$0xff]
        %v605 = vld [vmem:[%s188 + $0xca0] sm:$0xff]
        %v606 = vld [vmem:[%s188 + $0xca8] sm:$0xff]
        %v607 = vld [vmem:[%s188 + $0xcb0] sm:$0xff]
        %v608 = vld [vmem:[%s1] sm:$0xff]
        %v609 = vld [vmem:[%s1 + $0x8] sm:$0xff]
        %v610 = vld [vmem:[%s1 + $0x10] sm:$0xff]
        %v611 = vld [vmem:[%s1 + $0x18] sm:$0xff]
        %v612 = vld [vmem:[%s1 + $0x20] sm:$0xff]
        %v613 = vld [vmem:[%s1 + $0x28] sm:$0xff]
        %v614 = vld [vmem:[%s1 + $0x30] sm:$0xff]
        %v615 = vld [vmem:[%s1 + $0x38] sm:$0xff]
        %v616 = vld [vmem:[%s1 + $0x40] sm:$0xff]
        %v617 = vld [vmem:[%s1 + $0x48] sm:$0xff]
        %v618 = vld [vmem:[%s1 + $0x50] sm:$0xff]
        %v619 = vld [vmem:[%s1 + $0x58] sm:$0xff]
        %v620 = vld [vmem:[%s1 + $0x60] sm:$0xff]
        %v621 = vld [vmem:[%s1 + $0x68] sm:$0xff]
        %v622 = vld [vmem:[%s1 + $0x70] sm:$0xff]
        %v623 = vld [vmem:[%s1 + $0x78] sm:$0xff]
        %v624 = vld [vmem:[%s1 + $0x80] sm:$0xff]
        %v625 = vld [vmem:[%s1 + $0x88] sm:$0xff]
        %v626 = vld [vmem:[%s1 + $0x90] sm:$0xff]
        %v627 = vld [vmem:[%s1 + $0x98] sm:$0xff]
        %v628 = vld [vmem:[%s1 + $0xa0] sm:$0xff]
        %v629 = vld [vmem:[%s1 + $0xa8] sm:$0xff]
        %v630 = vld [vmem:[%s1 + $0xb0] sm:$0xff]
        %v631 = vld [vmem:[%s1 + $0xb8] sm:$0xff]
        %v632 = vld [vmem:[%s1 + $0xc0] sm:$0xff]
        %v633 = vld [vmem:[%s1 + $0xc8] sm:$0xff]
        %v634 = vld [vmem:[%s1 + $0xd0] sm:$0xff]
        %v635 = vld [vmem:[%s1 + $0xd8] sm:$0xff]
        %v636 = vld [vmem:[%s1 + $0xe0] sm:$0xff]
        %v637 = vld [vmem:[%s1 + $0xe8] sm:$0xff]
        %v638 = vld [vmem:[%s1 + $0xf0] sm:$0xff]
        %v639 = vld [vmem:[%s1 + $0xf8] sm:$0xff]
        %v640 = vld [vmem:[%s1 + $0x100] sm:$0xff]
        %v641 = vld [vmem:[%s1 + $0x108] sm:$0xff]
        %v642 = vld [vmem:[%s1 + $0x110] sm:$0xff]
        %v643 = vld [vmem:[%s1 + $0x118] sm:$0xff]
        %v644 = vld [vmem:[%s1 + $0x120] sm:$0xff]
        %v645 = vld [vmem:[%s1 + $0x128] sm:$0xff]
        %v646 = vld [vmem:[%s1 + $0x130] sm:$0xff]
        %v647 = vld [vmem:[%s1 + $0x138] sm:$0xff]
        %v648 = vld [vmem:[%s1 + $0x140] sm:$0xff]
        %v649 = vld [vmem:[%s1 + $0x148] sm:$0xff]
        %v650 = vld [vmem:[%s1 + $0x150] sm:$0xff]
        %v651 = vld [vmem:[%s1 + $0x158] sm:$0xff]
        %v652 = vld [vmem:[%s1 + $0x160] sm:$0xff]
        %v653 = vld [vmem:[%s1 + $0x168] sm:$0xff]
        %v654 = vld [vmem:[%s1 + $0x170] sm:$0xff]
        %v655 = vld [vmem:[%s1 + $0x178] sm:$0xff]
        %v656 = vld [vmem:[%s1 + $0x180] sm:$0xff]
        %v657 = vld [vmem:[%s1 + $0x188] sm:$0xff]
        %v658 = vld [vmem:[%s1 + $0x190] sm:$0xff]
        %v659 = vld [vmem:[%s1 + $0x198] sm:$0xff]
        %v660 = vld [vmem:[%s1 + $0x1a0] sm:$0xff]
        %v661 = vld [vmem:[%s1 + $0x1a8] sm:$0xff]
        %v662 = vld [vmem:[%s1 + $0x1b0] sm:$0xff]
        %v663 = vld [vmem:[%s1 + $0x1b8] sm:$0xff]
        %v664 = vld [vmem:[%s1 + $0x1c0] sm:$0xff]
        %v665 = vld [vmem:[%s1 + $0x1c8] sm:$0xff]
        %v666 = vld [vmem:[%s1 + $0x1d0] sm:$0xff]
        %v667 = vld [vmem:[%s1 + $0x1d8] sm:$0xff]
        %v668 = vld [vmem:[%s1 + $0x1e0] sm:$0xff]
        %v669 = vld [vmem:[%s1 + $0x1e8] sm:$0xff]
        %v670 = vld [vmem:[%s1 + $0x1f0] sm:$0xff]
        %v671 = vld [vmem:[%s1 + $0x1f8] sm:$0xff]
        %v672 = vld [vmem:[%s1 + $0x200] sm:$0xff]
        %v673 = vld [vmem:[%s1 + $0x208] sm:$0xff]
        %v674 = vld [vmem:[%s1 + $0x210] sm:$0xff]
        %v675 = vld [vmem:[%s1 + $0x218] sm:$0xff]
        %v676 = vld [vmem:[%s1 + $0x220] sm:$0xff]
        %v677 = vld [vmem:[%s1 + $0x228] sm:$0xff]
        %v678 = vld [vmem:[%s1 + $0x230] sm:$0xff]
        %v679 = vld [vmem:[%s1 + $0x238] sm:$0xff]
        %v680 = vld [vmem:[%s1 + $0x240] sm:$0xff]
        %v681 = vld [vmem:[%s1 + $0x248] sm:$0xff]
        %v682 = vld [vmem:[%s1 + $0x250] sm:$0xff]
        %v683 = vld [vmem:[%s1 + $0x258] sm:$0xff]
        %v684 = vld [vmem:[%s1 + $0x260] sm:$0xff]
        %v685 = vld [vmem:[%s1 + $0x268] sm:$0xff]
        %v686 = vld [vmem:[%s1 + $0x270] sm:$0xff]
        %v687 = vld [vmem:[%s1 + $0x278] sm:$0xff]
        %v688 = vld [vmem:[%s1 + $0x280] sm:$0xff]
        %v689 = vld [vmem:[%s1 + $0x288] sm:$0xff]
        %v690 = vld [vmem:[%s1 + $0x290] sm:$0xff]
        %v691 = vld [vmem:[%s1 + $0x298] sm:$0xff]
        %v692 = vld [vmem:[%s1 + $0x2a0] sm:$0xff]
        %v693 = vld [vmem:[%s1 + $0x2a8] sm:$0xff]
        %v694 = vld [vmem:[%s1 + $0x2b0] sm:$0xff]
        %v695 = vld [vmem:[%s1 + $0x2b8] sm:$0xff]
        %v696 = vld [vmem:[%s1 + $0x2c0] sm:$0xff]
        %v697 = vld [vmem:[%s1 + $0x2c8] sm:$0xff]
        %v698 = vld [vmem:[%s1 + $0x2d0] sm:$0xff]
        %v699 = vld [vmem:[%s1 + $0x2d8] sm:$0xff]
        %v700 = vld [vmem:[%s1 + $0x2e0] sm:$0xff]
        %v701 = vld [vmem:[%s1 + $0x2e8] sm:$0xff]
        %v702 = vld [vmem:[%s1 + $0x2f0] sm:$0xff]
        %v703 = vld [vmem:[%s1 + $0x2f8] sm:$0xff]
        %v704 = vld [vmem:[%s1 + $0x300] sm:$0xff]
        %v705 = vld [vmem:[%s1 + $0x308] sm:$0xff]
        %v706 = vld [vmem:[%s1 + $0x310] sm:$0xff]
        %v707 = vld [vmem:[%s1 + $0x318] sm:$0xff]
        %v708 = vld [vmem:[%s1 + $0x320] sm:$0xff]
        %v709 = vld [vmem:[%s1 + $0x328] sm:$0xff]
        %v710 = vld [vmem:[%s1 + $0x330] sm:$0xff]
        %v711 = vld [vmem:[%s1 + $0x338] sm:$0xff]
        %v712 = vld [vmem:[%s1 + $0x340] sm:$0xff]
        %v713 = vld [vmem:[%s1 + $0x348] sm:$0xff]
        %v714 = vld [vmem:[%s1 + $0x350] sm:$0xff]
        %v715 = vld [vmem:[%s1 + $0x358] sm:$0xff]
        %v716 = vld [vmem:[%s1 + $0x360] sm:$0xff]
        %v717 = vld [vmem:[%s1 + $0x368] sm:$0xff]
        %v718 = vld [vmem:[%s1 + $0x370] sm:$0xff]
        %v719 = vld [vmem:[%s1 + $0x378] sm:$0xff]
        %v720 = vld [vmem:[%s1 + $0x380] sm:$0xff]
        %v721 = vld [vmem:[%s1 + $0x388] sm:$0xff]
        %v722 = vld [vmem:[%s1 + $0x390] sm:$0xff]
        %v723 = vld [vmem:[%s1 + $0x398] sm:$0xff]
        %v724 = vld [vmem:[%s1 + $0x3a0] sm:$0xff]
        %v725 = vld [vmem:[%s1 + $0x3a8] sm:$0xff]
        %v726 = vld [vmem:[%s1 + $0x3b0] sm:$0xff]
        %v727 = vld [vmem:[%s1 + $0x3b8] sm:$0xff]
        %v728 = vld [vmem:[%s1 + $0x3c0] sm:$0xff]
        %v729 = vld [vmem:[%s1 + $0x3c8] sm:$0xff]
        %v730 = vld [vmem:[%s1 + $0x3d0] sm:$0xff]
        %v731 = vld [vmem:[%s1 + $0x3d8] sm:$0xff]
        %v732 = vld [vmem:[%s1 + $0x3e0] sm:$0xff]
        %v733 = vld [vmem:[%s1 + $0x3e8] sm:$0xff]
        %v734 = vld [vmem:[%s1 + $0x3f0] sm:$0xff]
        %v735 = vld [vmem:[%s1 + $0x3f8] sm:$0xff]
        %v736 = vld [vmem:[%s1 + $0x400] sm:$0xff]
        %v737 = vld [vmem:[%s1 + $0x408] sm:$0xff]
        %v738 = vld [vmem:[%s1 + $0x410] sm:$0xff]
        %v739 = vld [vmem:[%s1 + $0x418] sm:$0xff]
        %v740 = vld [vmem:[%s1 + $0x420] sm:$0xff]
        %v741 = vld [vmem:[%s1 + $0x428] sm:$0xff]
        %v742 = vld [vmem:[%s1 + $0x430] sm:$0xff]
        %v743 = vld [vmem:[%s1 + $0x438] sm:$0xff]
        %v744 = vld [vmem:[%s1 + $0x440] sm:$0xff]
        %v745 = vld [vmem:[%s1 + $0x448] sm:$0xff]
        %v746 = vld [vmem:[%s1 + $0x450] sm:$0xff]
        %v747 = vld [vmem:[%s1 + $0x458] sm:$0xff]
        %v748 = vld [vmem:[%s1 + $0x460] sm:$0xff]
        %v749 = vld [vmem:[%s1 + $0x468] sm:$0xff]
        %v750 = vld [vmem:[%s1 + $0x470] sm:$0xff]
        %v751 = vld [vmem:[%s1 + $0x478] sm:$0xff]
        %v752 = vld [vmem:[%s1 + $0x480] sm:$0xff]
        %v753 = vld [vmem:[%s1 + $0x488] sm:$0xff]
        %v754 = vld [vmem:[%s1 + $0x490] sm:$0xff]
        %v755 = vld [vmem:[%s1 + $0x498] sm:$0xff]
        %v756 = vld [vmem:[%s1 + $0x4a0] sm:$0xff]
        %v757 = vld [vmem:[%s1 + $0x4a8] sm:$0xff]
        %v758 = vld [vmem:[%s1 + $0x4b0] sm:$0xff]
        %v759 = vld [vmem:[%s1 + $0x4b8] sm:$0xff]
        %v760 = vld [vmem:[%s1 + $0x4c0] sm:$0xff]
        %v761 = vld [vmem:[%s1 + $0x4c8] sm:$0xff]
        %v762 = vld [vmem:[%s1 + $0x4d0] sm:$0xff]
        %v763 = vld [vmem:[%s1 + $0x4d8] sm:$0xff]
        %v764 = vld [vmem:[%s1 + $0x4e0] sm:$0xff]
        %v765 = vld [vmem:[%s1 + $0x4e8] sm:$0xff]
        %v766 = vld [vmem:[%s1 + $0x4f0] sm:$0xff]
        %v767 = vld [vmem:[%s1 + $0x4f8] sm:$0xff]
        %v768 = vld [vmem:[%s1 + $0x500] sm:$0xff]
        %v769 = vld [vmem:[%s1 + $0x508] sm:$0xff]
        %v770 = vld [vmem:[%s1 + $0x510] sm:$0xff]
        %v771 = vld [vmem:[%s1 + $0x518] sm:$0xff]
        %v772 = vld [vmem:[%s1 + $0x520] sm:$0xff]
        %v773 = vld [vmem:[%s1 + $0x528] sm:$0xff]
        %v774 = vld [vmem:[%s1 + $0x530] sm:$0xff]
        %v775 = vld [vmem:[%s1 + $0x538] sm:$0xff]
        %v776 = vld [vmem:[%s1 + $0x540] sm:$0xff]
        %v777 = vld [vmem:[%s1 + $0x548] sm:$0xff]
        %v778 = vld [vmem:[%s1 + $0x550] sm:$0xff]
        %v779 = vld [vmem:[%s1 + $0x558] sm:$0xff]
        %v780 = vld [vmem:[%s1 + $0x560] sm:$0xff]
        %v781 = vld [vmem:[%s1 + $0x568] sm:$0xff]
        %v782 = vld [vmem:[%s1 + $0x570] sm:$0xff]
        %v783 = vld [vmem:[%s1 + $0x578] sm:$0xff]
        %v784 = vld [vmem:[%s1 + $0x580] sm:$0xff]
        %v785 = vld [vmem:[%s1 + $0x588] sm:$0xff]
        %v786 = vld [vmem:[%s1 + $0x590] sm:$0xff]
        %v787 = vld [vmem:[%s1 + $0x598] sm:$0xff]
        %v788 = vld [vmem:[%s1 + $0x5a0] sm:$0xff]
        %v789 = vld [vmem:[%s1 + $0x5a8] sm:$0xff]
        %v790 = vld [vmem:[%s1 + $0x5b0] sm:$0xff]
        %v791 = vld [vmem:[%s1 + $0x5b8] sm:$0xff]
        %v792 = vld [vmem:[%s1 + $0x5c0] sm:$0xff]
        %v793 = vld [vmem:[%s1 + $0x5c8] sm:$0xff]
        %v794 = vld [vmem:[%s1 + $0x5d0] sm:$0xff]
        %v795 = vld [vmem:[%s1 + $0x5d8] sm:$0xff]
        %v796 = vld [vmem:[%s1 + $0x5e0] sm:$0xff]
        %v797 = vld [vmem:[%s1 + $0x5e8] sm:$0xff]
        %v798 = vld [vmem:[%s1 + $0x5f0] sm:$0xff]
        %v799 = vld [vmem:[%s1 + $0x5f8] sm:$0xff]
        %v800 = vld [vmem:[%s1 + $0x600] sm:$0xff]
        %v801 = vld [vmem:[%s1 + $0x608] sm:$0xff]
        %v802 = vld [vmem:[%s1 + $0x610] sm:$0xff]
        %v803 = vld [vmem:[%s1 + $0x618] sm:$0xff]
        %v804 = vld [vmem:[%s1 + $0x620] sm:$0xff]
        %v805 = vld [vmem:[%s1 + $0x628] sm:$0xff]
        %v806 = vld [vmem:[%s1 + $0x630] sm:$0xff]
        %v807 = vld [vmem:[%s1 + $0x638] sm:$0xff]
        %v808 = vld [vmem:[%s1 + $0x640] sm:$0xff]
        %v809 = vld [vmem:[%s1 + $0x648] sm:$0xff]
        %v810 = vld [vmem:[%s1 + $0x650] sm:$0xff]
        %v811 = vld [vmem:[%s1 + $0x658] sm:$0xff]
        %v812 = vld [vmem:[%s1 + $0x660] sm:$0xff]
        %v813 = vld [vmem:[%s1 + $0x668] sm:$0xff]
        %v814 = vld [vmem:[%s1 + $0x670] sm:$0xff]
        %v815 = vld [vmem:[%s1 + $0x678] sm:$0xff]
        %v816 = vld [vmem:[%s1 + $0x680] sm:$0xff]
        %v817 = vld [vmem:[%s1 + $0x688] sm:$0xff]
        %v818 = vld [vmem:[%s1 + $0x690] sm:$0xff]
        %v819 = vld [vmem:[%s1 + $0x698] sm:$0xff]
        %v820 = vld [vmem:[%s1 + $0x6a0] sm:$0xff]
        %v821 = vld [vmem:[%s1 + $0x6a8] sm:$0xff]
        %v822 = vld [vmem:[%s1 + $0x6b0] sm:$0xff]
        %v823 = vld [vmem:[%s1 + $0x6b8] sm:$0xff]
        %v824 = vld [vmem:[%s1 + $0x6c0] sm:$0xff]
        %v825 = vld [vmem:[%s1 + $0x6c8] sm:$0xff]
        %v826 = vld [vmem:[%s1 + $0x6d0] sm:$0xff]
        %v827 = vld [vmem:[%s1 + $0x6d8] sm:$0xff]
        %v828 = vld [vmem:[%s1 + $0x6e0] sm:$0xff]
        %v829 = vld [vmem:[%s1 + $0x6e8] sm:$0xff]
        %v830 = vld [vmem:[%s1 + $0x6f0] sm:$0xff]
        %v831 = vld [vmem:[%s1 + $0x6f8] sm:$0xff]
        %v832 = vld [vmem:[%s1 + $0x700] sm:$0xff]
        %v833 = vld [vmem:[%s1 + $0x708] sm:$0xff]
        %v834 = vld [vmem:[%s1 + $0x710] sm:$0xff]
        %v835 = vld [vmem:[%s1 + $0x718] sm:$0xff]
        %v836 = vld [vmem:[%s1 + $0x720] sm:$0xff]
        %v837 = vld [vmem:[%s1 + $0x728] sm:$0xff]
        %v838 = vld [vmem:[%s1 + $0x730] sm:$0xff]
        %v839 = vld [vmem:[%s1 + $0x738] sm:$0xff]
        %v840 = vld [vmem:[%s1 + $0x740] sm:$0xff]
        %v841 = vld [vmem:[%s1 + $0x748] sm:$0xff]
        %v842 = vld [vmem:[%s1 + $0x750] sm:$0xff]
        %v843 = vld [vmem:[%s1 + $0x758] sm:$0xff]
        %v844 = vld [vmem:[%s1 + $0x760] sm:$0xff]
        %v845 = vld [vmem:[%s1 + $0x768] sm:$0xff]
        %v846 = vld [vmem:[%s1 + $0x770] sm:$0xff]
        %v847 = vld [vmem:[%s1 + $0x778] sm:$0xff]
        %v848 = vld [vmem:[%s1 + $0x780] sm:$0xff]
        %v849 = vld [vmem:[%s1 + $0x788] sm:$0xff]
        %v850 = vld [vmem:[%s1 + $0x790] sm:$0xff]
        %v851 = vld [vmem:[%s1 + $0x798] sm:$0xff]
        %v852 = vld [vmem:[%s1 + $0x7a0] sm:$0xff]
        %v853 = vld [vmem:[%s1 + $0x7a8] sm:$0xff]
        %v854 = vld [vmem:[%s1 + $0x7b0] sm:$0xff]
        %v855 = vld [vmem:[%s1 + $0x7b8] sm:$0xff]
        %v856 = vld [vmem:[%s1 + $0x7c0] sm:$0xff]
        %v857 = vld [vmem:[%s1 + $0x7c8] sm:$0xff]
        %v858 = vld [vmem:[%s1 + $0x7d0] sm:$0xff]
        %v859 = vld [vmem:[%s1 + $0x7d8] sm:$0xff]
        %v860 = vld [vmem:[%s1 + $0x7e0] sm:$0xff]
        %v861 = vld [vmem:[%s1 + $0x7e8] sm:$0xff]
        %v862 = vld [vmem:[%s1 + $0x7f0] sm:$0xff]
        %v863 = vld [vmem:[%s1 + $0x7f8] sm:$0xff]
        %v864 = vld [vmem:[%s1 + $0x800] sm:$0xff]
        %v865 = vld [vmem:[%s1 + $0x808] sm:$0xff]
        %v866 = vld [vmem:[%s1 + $0x810] sm:$0xff]
        %v867 = vld [vmem:[%s1 + $0x818] sm:$0xff]
        %v868 = vld [vmem:[%s1 + $0x820] sm:$0xff]
        %v869 = vld [vmem:[%s1 + $0x828] sm:$0xff]
        %v870 = vld [vmem:[%s1 + $0x830] sm:$0xff]
        %v871 = vld [vmem:[%s1 + $0x838] sm:$0xff]
        %v872 = vld [vmem:[%s1 + $0x840] sm:$0xff]
        %v873 = vld [vmem:[%s1 + $0x848] sm:$0xff]
        %v874 = vld [vmem:[%s1 + $0x850] sm:$0xff]
        %v875 = vld [vmem:[%s1 + $0x858] sm:$0xff]
        %v876 = vld [vmem:[%s1 + $0x860] sm:$0xff]
        %v877 = vld [vmem:[%s1 + $0x868] sm:$0xff]
        %v878 = vld [vmem:[%s1 + $0x870] sm:$0xff]
        %v879 = vld [vmem:[%s1 + $0x878] sm:$0xff]
        %v880 = vld [vmem:[%s1 + $0x880] sm:$0xff]
        %v881 = vld [vmem:[%s1 + $0x888] sm:$0xff]
        %v882 = vld [vmem:[%s1 + $0x890] sm:$0xff]
        %v883 = vld [vmem:[%s1 + $0x898] sm:$0xff]
        %v884 = vld [vmem:[%s1 + $0x8a0] sm:$0xff]
        %v885 = vld [vmem:[%s1 + $0x8a8] sm:$0xff]
        %v886 = vld [vmem:[%s1 + $0x8b0] sm:$0xff]
        %v887 = vld [vmem:[%s1 + $0x8b8] sm:$0xff]
        %v888 = vld [vmem:[%s1 + $0x8c0] sm:$0xff]
        %v889 = vld [vmem:[%s1 + $0x8c8] sm:$0xff]
        %v890 = vld [vmem:[%s1 + $0x8d0] sm:$0xff]
        %v891 = vld [vmem:[%s1 + $0x8d8] sm:$0xff]
        %v892 = vld [vmem:[%s1 + $0x8e0] sm:$0xff]
        %v893 = vld [vmem:[%s1 + $0x8e8] sm:$0xff]
        %v894 = vld [vmem:[%s1 + $0x8f0] sm:$0xff]
        %v895 = vld [vmem:[%s1 + $0x8f8] sm:$0xff]
        %v896 = vld [vmem:[%s1 + $0x900] sm:$0xff]
        %v897 = vld [vmem:[%s1 + $0x908] sm:$0xff]
        %v898 = vld [vmem:[%s1 + $0x910] sm:$0xff]
        %v899 = vld [vmem:[%s1 + $0x918] sm:$0xff]
        %v900 = vld [vmem:[%s1 + $0x920] sm:$0xff]
        %v901 = vld [vmem:[%s1 + $0x928] sm:$0xff]
        %v902 = vld [vmem:[%s1 + $0x930] sm:$0xff]
        %v903 = vld [vmem:[%s1 + $0x938] sm:$0xff]
        %v904 = vld [vmem:[%s1 + $0x940] sm:$0xff]
        %v905 = vld [vmem:[%s1 + $0x948] sm:$0xff]
        %v906 = vld [vmem:[%s1 + $0x950] sm:$0xff]
        %v907 = vld [vmem:[%s1 + $0x958] sm:$0xff]
        %v908 = vld [vmem:[%s1 + $0x960] sm:$0xff]
        %v909 = vld [vmem:[%s1 + $0x968] sm:$0xff]
        %v910 = vld [vmem:[%s1 + $0x970] sm:$0xff]
        %v911 = vld [vmem:[%s1 + $0x978] sm:$0xff]
        %v912 = vld [vmem:[%s1 + $0x980] sm:$0xff]
        %v913 = vld [vmem:[%s1 + $0x988] sm:$0xff]
        %v914 = vld [vmem:[%s1 + $0x990] sm:$0xff]
        %v915 = vld [vmem:[%s1 + $0x998] sm:$0xff]
        %v916 = vld [vmem:[%s1 + $0x9a0] sm:$0xff]
        %v917 = vld [vmem:[%s1 + $0x9a8] sm:$0xff]
        %v918 = vld [vmem:[%s1 + $0x9b0] sm:$0xff]
        %v919 = vld [vmem:[%s1 + $0x9b8] sm:$0xff]
        %v920 = vld [vmem:[%s1 + $0x9c0] sm:$0xff]
        %v921 = vld [vmem:[%s1 + $0x9c8] sm:$0xff]
        %v922 = vld [vmem:[%s1 + $0x9d0] sm:$0xff]
        %v923 = vld [vmem:[%s1 + $0x9d8] sm:$0xff]
        %v924 = vld [vmem:[%s1 + $0x9e0] sm:$0xff]
        %v925 = vld [vmem:[%s1 + $0x9e8] sm:$0xff]
        %v926 = vld [vmem:[%s1 + $0x9f0] sm:$0xff]
        %v927 = vld [vmem:[%s1 + $0x9f8] sm:$0xff]
        %v928 = vld [vmem:[%s1 + $0xa00] sm:$0xff]
        %v929 = vld [vmem:[%s1 + $0xa08] sm:$0xff]
        %v930 = vld [vmem:[%s1 + $0xa10] sm:$0xff]
        %v931 = vld [vmem:[%s1 + $0xa18] sm:$0xff]
        %v932 = vld [vmem:[%s1 + $0xa20] sm:$0xff]
        %v933 = vld [vmem:[%s1 + $0xa28] sm:$0xff]
        %v934 = vld [vmem:[%s1 + $0xa30] sm:$0xff]
        %v935 = vld [vmem:[%s1 + $0xa38] sm:$0xff]
        %v936 = vld [vmem:[%s1 + $0xa40] sm:$0xff]
        %v937 = vld [vmem:[%s1 + $0xa48] sm:$0xff]
        %v938 = vld [vmem:[%s1 + $0xa50] sm:$0xff]
        %v939 = vld [vmem:[%s1 + $0xa58] sm:$0xff]
        %v940 = vld [vmem:[%s1 + $0xa60] sm:$0xff]
        %v941 = vld [vmem:[%s1 + $0xa68] sm:$0xff]
        %v942 = vld [vmem:[%s1 + $0xa70] sm:$0xff]
        %v943 = vld [vmem:[%s1 + $0xa78] sm:$0xff]
        %v944 = vld [vmem:[%s2] sm:$0x3]
        %v946 = vlaneseq
        %v947 = vshrl.u32 %v946, 7
        %v948 = vsub.s32 0, %v947
        %v949 = vrot.slane %v944, %v948
        %v950 = vlaneseq
        %v951 = vshrl.u32 %v950, 7
        %v952 = vsub.s32 1, %v951
        %v953 = vrot.slane %v944, %v952
        %vm956 = vcmask 523264
        %v958 = vsel %vm956, %v211, 0
        %v961 = vsel %vm956, %v222, 0
        %v964 = vsel %vm956, %v233, 0
        %v967 = vsel %vm956, %v244, 0
        %v970 = vsel %vm956, %v255, 0
        %v973 = vsel %vm956, %v266, 0
        %v976 = vsel %vm956, %v277, 0
        %v979 = vsel %vm956, %v288, 0
        %v982 = vsel %vm956, %v299, 0
        %v985 = vsel %vm956, %v310, 0
        %v988 = vsel %vm956, %v321, 0
        %v991 = vsel %vm956, %v332, 0
        %v994 = vsel %vm956, %v343, 0
        %v997 = vsel %vm956, %v354, 0
        %v1000 = vsel %vm956, %v365, 0
        %v1003 = vsel %vm956, %v376, 0
        %v1006 = vsel %vm956, %v387, 0
        %v1009 = vsel %vm956, %v398, 0
        %v1012 = vsel %vm956, %v409, 0
        %v1015 = vsel %vm956, %v420, 0
        %v1018 = vsel %vm956, %v431, 0
        %v1021 = vsel %vm956, %v442, 0
        %v1024 = vsel %vm956, %v453, 0
        %v1027 = vsel %vm956, %v464, 0
        %v1030 = vsel %vm956, %v475, 0
        %v1033 = vsel %vm956, %v486, 0
        %v1036 = vsel %vm956, %v497, 0
        %v1039 = vsel %vm956, %v508, 0
        %v1042 = vsel %vm956, %v519, 0
        %v1045 = vsel %vm956, %v530, 0
        %v1048 = vsel %vm956, %v541, 0
        %v1051 = vsel %vm956, %v552, 0
        %v1054 = vsel %vm956, %v563, 0
        %v1057 = vsel %vm956, %v574, 0
        %v1060 = vsel %vm956, %v585, 0
        %v1063 = vsel %vm956, %v596, 0
        %v1066 = vsel %vm956, %v607, 0
        %1068 = vmatprep.subr.mxu0 %v609
        %1069 = vmatpush1.msra.mxu0 %v608
        %1070 = vmatprep.subr.mxu0 %v611
        %1071 = vmatpush1.msra.mxu0 %v610
        %1072 = vmatprep.subr.mxu0 %v613
        %1073 = vmatpush1.msra.mxu0 %v612
        %1074 = vmatprep.subr.mxu0 %v615
        %1075 = vmatpush1.msra.mxu0 %v614
        %1076 = vmatprep.subr.mxu0 %v617
        %1077 = vmatpush1.msra.mxu0 %v616
        %1078 = vmatprep.subr.mxu0 %v619
        %1079 = vmatpush1.msra.mxu0 %v618
        %1080 = vmatprep.subr.mxu0 %v621
        %1081 = vmatpush1.msra.mxu0 %v620
        %1082 = vmatprep.subr.mxu0 %v623
        %1083 = vmatpush1.msra.mxu0 %v622
        %1084 = vmatprep.subr.mxu0 %v625
        %1085 = vmatpush1.msra.mxu0 %v624
        %1086 = vmatprep.subr.mxu0 %v627
        %1087 = vmatpush1.msra.mxu0 %v626
        %1088 = vmatprep.subr.mxu0 %v629
        %1089 = vmatpush1.msra.mxu0 %v628
        %1090 = vmatprep.subr.mxu0 %v631
        %1091 = vmatpush1.msra.mxu0 %v630
        %1092 = vmatprep.subr.mxu0 %v633
        %1093 = vmatpush1.msra.mxu0 %v632
        %1094 = vmatprep.subr.mxu0 %v635
        %1095 = vmatpush1.msra.mxu0 %v634
        %1096 = vmatprep.subr.mxu0 %v637
        %1097 = vmatpush1.msra.mxu0 %v636
        %1098 = vmatprep.subr.mxu0 %v639
        %1099 = vmatpush1.msra.mxu0 %v638
        %1100 = vmatprep.subr.mxu0 %v641
        %1101 = vmatpush1.msra.mxu0 %v640
        %1102 = vmatprep.subr.mxu0 %v643
        %1103 = vmatpush1.msra.mxu0 %v642
        %1104 = vmatprep.subr.mxu0 %v645
        %1105 = vmatpush1.msra.mxu0 %v644
        %1106 = vmatprep.subr.mxu0 %v647
        %1107 = vmatpush1.msra.mxu0 %v646
        %1108 = vmatprep.subr.mxu0 %v649
        %1109 = vmatpush1.msra.mxu0 %v648
        %1110 = vmatprep.subr.mxu0 %v651
        %1111 = vmatpush1.msra.mxu0 %v650
        %1112 = vmatprep.subr.mxu0 %v653
        %1113 = vmatpush1.msra.mxu0 %v652
        %1114 = vmatprep.subr.mxu0 %v655
        %1115 = vmatpush1.msra.mxu0 %v654
        %1116 = vmatprep.subr.mxu0 %v657
        %1117 = vmatpush1.msra.mxu0 %v656
        %1118 = vmatprep.subr.mxu0 %v659
        %1119 = vmatpush1.msra.mxu0 %v658
        %1120 = vmatprep.subr.mxu0 %v661
        %1121 = vmatpush1.msra.mxu0 %v660
        %1122 = vmatprep.subr.mxu0 %v663
        %1123 = vmatpush1.msra.mxu0 %v662
        %1124 = vmatprep.subr.mxu0 %v665
        %1125 = vmatpush1.msra.mxu0 %v664
        %1126 = vmatprep.subr.mxu0 %v667
        %1127 = vmatpush1.msra.mxu0 %v666
        %1128 = vmatprep.subr.mxu0 %v669
        %1129 = vmatpush1.msra.mxu0 %v668
        %1130 = vmatprep.subr.mxu0 %v671
        %1131 = vmatpush1.msra.mxu0 %v670
        %1132 = vmatprep.mubr.f32.mxu0 %v202
        %1133 = vmatmul.mubr.f32.gmra.mrb[0].mxu0 %v201
        %v1134 = vpop.f32.mrb[0].mxu0
        %v1135 = vadd.f32 %v949, %v1134
        %v1136 = vpop.f32.mrb[0].mxu0
        %v1137 = vadd.f32 %v953, %v1136
        %1138 = vmatprep.mubr.f32.mxu0 %v213
        %1139 = vmatmul.mubr.f32.gmra.mrb[0].mxu0 %v212
        %v1140 = vpop.f32.mrb[0].mxu0
        %v1141 = vadd.f32 %v949, %v1140
        %v1142 = vpop.f32.mrb[0].mxu0
        %v1143 = vadd.f32 %v953, %v1142
        %1144 = vmatprep.mubr.f32.mxu0 %v224
        %1145 = vmatmul.mubr.f32.gmra.mrb[0].mxu0 %v223
        %v1146 = vpop.f32.mrb[0].mxu0
        %v1147 = vadd.f32 %v949, %v1146
        %v1148 = vpop.f32.mrb[0].mxu0
        %v1149 = vadd.f32 %v953, %v1148
        %1150 = vmatprep.mubr.f32.mxu0 %v235
        %1151 = vmatmul.mubr.f32.gmra.mrb[0].mxu0 %v234
        %v1152 = vpop.f32.mrb[0].mxu0
        %v1153 = vadd.f32 %v949, %v1152
        %v1154 = vpop.f32.mrb[0].mxu0
        %v1155 = vadd.f32 %v953, %v1154
        %1156 = vmatprep.mubr.f32.mxu0 %v246
        %1157 = vmatmul.mubr.f32.gmra.mrb[0].mxu0 %v245
        %v1158 = vpop.f32.mrb[0].mxu0
        %v1159 = vadd.f32 %v949, %v1158
        %v1160 = vpop.f32.mrb[0].mxu0
        %v1161 = vadd.f32 %v953, %v1160
        %1162 = vmatprep.mubr.f32.mxu0 %v257
        %1163 = vmatmul.mubr.f32.gmra.mrb[0].mxu0 %v256
        %v1164 = vpop.f32.mrb[0].mxu0
        %v1165 = vadd.f32 %v949, %v1164
        %v1166 = vpop.f32.mrb[0].mxu0
        %v1167 = vadd.f32 %v953, %v1166
        %1168 = vmatprep.mubr.f32.mxu0 %v268
        %1169 = vmatmul.mubr.f32.gmra.mrb[0].mxu0 %v267
        %v1170 = vpop.f32.mrb[0].mxu0
        %v1171 = vadd.f32 %v949, %v1170
        %v1172 = vpop.f32.mrb[0].mxu0
        %v1173 = vadd.f32 %v953, %v1172
        %1174 = vmatprep.mubr.f32.mxu0 %v279
        %1175 = vmatmul.mubr.f32.gmra.mrb[0].mxu0 %v278
        %v1176 = vpop.f32.mrb[0].mxu0
        %v1177 = vadd.f32 %v949, %v1176
        %v1178 = vpop.f32.mrb[0].mxu0
        %v1179 = vadd.f32 %v953, %v1178
        %1180 = vmatprep.mubr.f32.mxu0 %v290
        %1181 = vmatmul.mubr.f32.gmra.mrb[0].mxu0 %v289
        %v1182 = vpop.f32.mrb[0].mxu0
        %v1183 = vadd.f32 %v949, %v1182
        %v1184 = vpop.f32.mrb[0].mxu0
        %v1185 = vadd.f32 %v953, %v1184
        %1186 = vmatprep.mubr.f32.mxu0 %v301
        %1187 = vmatmul.mubr.f32.gmra.mrb[0].mxu0 %v300
        %v1188 = vpop.f32.mrb[0].mxu0
        %v1189 = vadd.f32 %v949, %v1188
        %v1190 = vpop.f32.mrb[0].mxu0
        %v1191 = vadd.f32 %v953, %v1190
        %1192 = vmatprep.mubr.f32.mxu0 %v312
        %1193 = vmatmul.mubr.f32.gmra.mrb[0].mxu0 %v311
        %v1194 = vpop.f32.mrb[0].mxu0
        %v1195 = vadd.f32 %v949, %v1194
        %v1196 = vpop.f32.mrb[0].mxu0
        %v1197 = vadd.f32 %v953, %v1196
        %1198 = vmatprep.mubr.f32.mxu0 %v323
        %1199 = vmatmul.mubr.f32.gmra.mrb[0].mxu0 %v322
        %v1200 = vpop.f32.mrb[0].mxu0
        %v1201 = vadd.f32 %v949, %v1200
        %v1202 = vpop.f32.mrb[0].mxu0
        %v1203 = vadd.f32 %v953, %v1202
        %1204 = vmatprep.mubr.f32.mxu0 %v334
        %1205 = vmatmul.mubr.f32.gmra.mrb[0].mxu0 %v333
        %v1206 = vpop.f32.mrb[0].mxu0
        %v1207 = vadd.f32 %v949, %v1206
        %v1208 = vpop.f32.mrb[0].mxu0
        %v1209 = vadd.f32 %v953, %v1208
        %1210 = vmatprep.mubr.f32.mxu0 %v345
        %1211 = vmatmul.mubr.f32.gmra.mrb[0].mxu0 %v344
        %v1212 = vpop.f32.mrb[0].mxu0
        %v1213 = vadd.f32 %v949, %v1212
        %v1214 = vpop.f32.mrb[0].mxu0
        %v1215 = vadd.f32 %v953, %v1214
        %1216 = vmatprep.mubr.f32.mxu0 %v356
        %1217 = vmatmul.mubr.f32.gmra.mrb[0].mxu0 %v355
        %v1218 = vpop.f32.mrb[0].mxu0
        %v1219 = vadd.f32 %v949, %v1218
        %v1220 = vpop.f32.mrb[0].mxu0
        %v1221 = vadd.f32 %v953, %v1220
        %1222 = vmatprep.mubr.f32.mxu0 %v367
        %1223 = vmatmul.mubr.f32.gmra.mrb[0].mxu0 %v366
        %v1224 = vpop.f32.mrb[0].mxu0
        %v1225 = vadd.f32 %v949, %v1224
        %v1226 = vpop.f32.mrb[0].mxu0
        %v1227 = vadd.f32 %v953, %v1226
        %1228 = vmatprep.mubr.f32.mxu0 %v378
        %1229 = vmatmul.mubr.f32.gmra.mrb[0].mxu0 %v377
        %v1230 = vpop.f32.mrb[0].mxu0
        %v1231 = vadd.f32 %v949, %v1230
        %v1232 = vpop.f32.mrb[0].mxu0
        %v1233 = vadd.f32 %v953, %v1232
        %1234 = vmatprep.mubr.f32.mxu0 %v389
        %1235 = vmatmul.mubr.f32.gmra.mrb[0].mxu0 %v388
        %v1236 = vpop.f32.mrb[0].mxu0
        %v1237 = vadd.f32 %v949, %v1236
        %v1238 = vpop.f32.mrb[0].mxu0
        %v1239 = vadd.f32 %v953, %v1238
        %1240 = vmatprep.mubr.f32.mxu0 %v400
        %1241 = vmatmul.mubr.f32.gmra.mrb[0].mxu0 %v399
        %v1242 = vpop.f32.mrb[0].mxu0
        %v1243 = vadd.f32 %v949, %v1242
        %v1244 = vpop.f32.mrb[0].mxu0
        %v1245 = vadd.f32 %v953, %v1244
        %1246 = vmatprep.mubr.f32.mxu0 %v411
        %1247 = vmatmul.mubr.f32.gmra.mrb[0].mxu0 %v410
        %v1248 = vpop.f32.mrb[0].mxu0
        %v1249 = vadd.f32 %v949, %v1248
        %v1250 = vpop.f32.mrb[0].mxu0
        %v1251 = vadd.f32 %v953, %v1250
        %1252 = vmatprep.mubr.f32.mxu0 %v422
        %1253 = vmatmul.mubr.f32.gmra.mrb[0].mxu0 %v421
        %v1254 = vpop.f32.mrb[0].mxu0
        %v1255 = vadd.f32 %v949, %v1254
        %v1256 = vpop.f32.mrb[0].mxu0
        %v1257 = vadd.f32 %v953, %v1256
        %1258 = vmatprep.mubr.f32.mxu0 %v433
        %1259 = vmatmul.mubr.f32.gmra.mrb[0].mxu0 %v432
        %v1260 = vpop.f32.mrb[0].mxu0
        %v1261 = vadd.f32 %v949, %v1260
        %v1262 = vpop.f32.mrb[0].mxu0
        %v1263 = vadd.f32 %v953, %v1262
        %1264 = vmatprep.mubr.f32.mxu0 %v444
        %1265 = vmatmul.mubr.f32.gmra.mrb[0].mxu0 %v443
        %v1266 = vpop.f32.mrb[0].mxu0
        %v1267 = vadd.f32 %v949, %v1266
        %v1268 = vpop.f32.mrb[0].mxu0
        %v1269 = vadd.f32 %v953, %v1268
        %1270 = vmatprep.mubr.f32.mxu0 %v455
        %1271 = vmatmul.mubr.f32.gmra.mrb[0].mxu0 %v454
        %v1272 = vpop.f32.mrb[0].mxu0
        %v1273 = vadd.f32 %v949, %v1272
        %v1274 = vpop.f32.mrb[0].mxu0
        %v1275 = vadd.f32 %v953, %v1274
        %1276 = vmatprep.mubr.f32.mxu0 %v466
        %1277 = vmatmul.mubr.f32.gmra.mrb[0].mxu0 %v465
        %v1278 = vpop.f32.mrb[0].mxu0
        %v1279 = vadd.f32 %v949, %v1278
        %v1280 = vpop.f32.mrb[0].mxu0
        %v1281 = vadd.f32 %v953, %v1280
        %1282 = vmatprep.mubr.f32.mxu0 %v477
        %1283 = vmatmul.mubr.f32.gmra.mrb[0].mxu0 %v476
        %v1284 = vpop.f32.mrb[0].mxu0
        %v1285 = vadd.f32 %v949, %v1284
        %v1286 = vpop.f32.mrb[0].mxu0
        %v1287 = vadd.f32 %v953, %v1286
        %1288 = vmatprep.mubr.f32.mxu0 %v488
        %1289 = vmatmul.mubr.f32.gmra.mrb[0].mxu0 %v487
        %v1290 = vpop.f32.mrb[0].mxu0
        %v1291 = vadd.f32 %v949, %v1290
        %v1292 = vpop.f32.mrb[0].mxu0
        %v1293 = vadd.f32 %v953, %v1292
        %1294 = vmatprep.mubr.f32.mxu0 %v499
        %1295 = vmatmul.mubr.f32.gmra.mrb[0].mxu0 %v498
        %v1296 = vpop.f32.mrb[0].mxu0
        %v1297 = vadd.f32 %v949, %v1296
        %v1298 = vpop.f32.mrb[0].mxu0
        %v1299 = vadd.f32 %v953, %v1298
        %1300 = vmatprep.mubr.f32.mxu0 %v510
        %1301 = vmatmul.mubr.f32.gmra.mrb[0].mxu0 %v509
        %v1302 = vpop.f32.mrb[0].mxu0
        %v1303 = vadd.f32 %v949, %v1302
        %v1304 = vpop.f32.mrb[0].mxu0
        %v1305 = vadd.f32 %v953, %v1304
        %1306 = vmatprep.mubr.f32.mxu0 %v521
        %1307 = vmatmul.mubr.f32.gmra.mrb[0].mxu0 %v520
        %v1308 = vpop.f32.mrb[0].mxu0
        %v1309 = vadd.f32 %v949, %v1308
        %v1310 = vpop.f32.mrb[0].mxu0
        %v1311 = vadd.f32 %v953, %v1310
        %1312 = vmatprep.mubr.f32.mxu0 %v532
        %1313 = vmatmul.mubr.f32.gmra.mrb[0].mxu0 %v531
        %v1314 = vpop.f32.mrb[0].mxu0
        %v1315 = vadd.f32 %v949, %v1314
        %v1316 = vpop.f32.mrb[0].mxu0
        %v1317 = vadd.f32 %v953, %v1316
        %1318 = vmatprep.mubr.f32.mxu0 %v543
        %1319 = vmatmul.mubr.f32.gmra.mrb[0].mxu0 %v542
        %v1320 = vpop.f32.mrb[0].mxu0
        %v1321 = vadd.f32 %v949, %v1320
        %v1322 = vpop.f32.mrb[0].mxu0
        %v1323 = vadd.f32 %v953, %v1322
        %1324 = vmatprep.mubr.f32.mxu0 %v554
        %1325 = vmatmul.mubr.f32.gmra.mrb[0].mxu0 %v553
        %v1326 = vpop.f32.mrb[0].mxu0
        %v1327 = vadd.f32 %v949, %v1326
        %v1328 = vpop.f32.mrb[0].mxu0
        %v1329 = vadd.f32 %v953, %v1328
        %1330 = vmatprep.mubr.f32.mxu0 %v565
        %1331 = vmatmul.mubr.f32.gmra.mrb[0].mxu0 %v564
        %v1332 = vpop.f32.mrb[0].mxu0
        %v1333 = vadd.f32 %v949, %v1332
        %v1334 = vpop.f32.mrb[0].mxu0
        %v1335 = vadd.f32 %v953, %v1334
        %1336 = vmatprep.mubr.f32.mxu0 %v576
        %1337 = vmatmul.mubr.f32.gmra.mrb[0].mxu0 %v575
        %v1338 = vpop.f32.mrb[0].mxu0
        %v1339 = vadd.f32 %v949, %v1338
        %v1340 = vpop.f32.mrb[0].mxu0
        %v1341 = vadd.f32 %v953, %v1340
        %1342 = vmatprep.mubr.f32.mxu0 %v587
        %1343 = vmatmul.mubr.f32.gmra.mrb[0].mxu0 %v586
        %v1344 = vpop.f32.mrb[0].mxu0
        %v1345 = vadd.f32 %v949, %v1344
        %v1346 = vpop.f32.mrb[0].mxu0
        %v1347 = vadd.f32 %v953, %v1346
        %1348 = vmatprep.mubr.f32.mxu0 %v598
        %1349 = vmatmul.mubr.f32.gmra.mrb[0].mxu0 %v597
        %v1350 = vpop.f32.mrb[0].mxu0
        %v1351 = vadd.f32 %v949, %v1350
        %v1352 = vpop.f32.mrb[0].mxu0
        %v1353 = vadd.f32 %v953, %v1352
        %1354 = vdwg.mxu0
        %1355 = vmatprep.subr.mxu0 %v673
        %1356 = vmatpush1.msra.mxu0 %v672
        %1357 = vmatprep.subr.mxu0 %v675
        %1358 = vmatpush1.msra.mxu0 %v674
        %1359 = vmatprep.subr.mxu0 %v677
        %1360 = vmatpush1.msra.mxu0 %v676
        %1361 = vmatprep.subr.mxu0 %v679
        %1362 = vmatpush1.msra.mxu0 %v678
        %1363 = vmatprep.subr.mxu0 %v681
        %1364 = vmatpush1.msra.mxu0 %v680
        %1365 = vmatprep.subr.mxu0 %v683
        %1366 = vmatpush1.msra.mxu0 %v682
        %1367 = vmatprep.subr.mxu0 %v685
        %1368 = vmatpush1.msra.mxu0 %v684
        %1369 = vmatprep.subr.mxu0 %v687
        %1370 = vmatpush1.msra.mxu0 %v686
        %1371 = vmatprep.subr.mxu0 %v689
        %1372 = vmatpush1.msra.mxu0 %v688
        %1373 = vmatprep.subr.mxu0 %v691
        %1374 = vmatpush1.msra.mxu0 %v690
        %1375 = vmatprep.subr.mxu0 %v693
        %1376 = vmatpush1.msra.mxu0 %v692
        %1377 = vmatprep.subr.mxu0 %v695
        %1378 = vmatpush1.msra.mxu0 %v694
        %1379 = vmatprep.subr.mxu0 %v697
        %1380 = vmatpush1.msra.mxu0 %v696
        %1381 = vmatprep.subr.mxu0 %v699
        %1382 = vmatpush1.msra.mxu0 %v698
        %1383 = vmatprep.subr.mxu0 %v701
        %1384 = vmatpush1.msra.mxu0 %v700
        %1385 = vmatprep.subr.mxu0 %v703
        %1386 = vmatpush1.msra.mxu0 %v702
        %1387 = vmatprep.subr.mxu0 %v705
        %1388 = vmatpush1.msra.mxu0 %v704
        %1389 = vmatprep.subr.mxu0 %v707
        %1390 = vmatpush1.msra.mxu0 %v706
        %1391 = vmatprep.subr.mxu0 %v709
        %1392 = vmatpush1.msra.mxu0 %v708
        %1393 = vmatprep.subr.mxu0 %v711
        %1394 = vmatpush1.msra.mxu0 %v710
        %1395 = vmatprep.subr.mxu0 %v713
        %1396 = vmatpush1.msra.mxu0 %v712
        %1397 = vmatprep.subr.mxu0 %v715
        %1398 = vmatpush1.msra.mxu0 %v714
        %1399 = vmatprep.subr.mxu0 %v717
        %1400 = vmatpush1.msra.mxu0 %v716
        %1401 = vmatprep.subr.mxu0 %v719
        %1402 = vmatpush1.msra.mxu0 %v718
        %1403 = vmatprep.subr.mxu0 %v721
        %1404 = vmatpush1.msra.mxu0 %v720
        %1405 = vmatprep.subr.mxu0 %v723
        %1406 = vmatpush1.msra.mxu0 %v722
        %1407 = vmatprep.subr.mxu0 %v725
        %1408 = vmatpush1.msra.mxu0 %v724
        %1409 = vmatprep.subr.mxu0 %v727
        %1410 = vmatpush1.msra.mxu0 %v726
        %1411 = vmatprep.subr.mxu0 %v729
        %1412 = vmatpush1.msra.mxu0 %v728
        %1413 = vmatprep.subr.mxu0 %v731
        %1414 = vmatpush1.msra.mxu0 %v730
        %1415 = vmatprep.subr.mxu0 %v733
        %1416 = vmatpush1.msra.mxu0 %v732
        %1417 = vmatprep.subr.mxu0 %v735
        %1418 = vmatpush1.msra.mxu0 %v734
        %1419 = vmatprep.mubr.f32.mxu0 %v204
        %1420 = vmatmul.mubr.f32.gmra.mrb[0].mxu0 %v203
        %v1421 = vpop.f32.mrb[0].mxu0
        %v1422 = vadd.f32 %v1135, %v1421
        %v1423 = vpop.f32.mrb[0].mxu0
        %v1424 = vadd.f32 %v1137, %v1423
        %1425 = vmatprep.mubr.f32.mxu0 %v215
        %1426 = vmatmul.mubr.f32.gmra.mrb[0].mxu0 %v214
        %v1427 = vpop.f32.mrb[0].mxu0
        %v1428 = vadd.f32 %v1141, %v1427
        %v1429 = vpop.f32.mrb[0].mxu0
        %v1430 = vadd.f32 %v1143, %v1429
        %1431 = vmatprep.mubr.f32.mxu0 %v226
        %1432 = vmatmul.mubr.f32.gmra.mrb[0].mxu0 %v225
        %v1433 = vpop.f32.mrb[0].mxu0
        %v1434 = vadd.f32 %v1147, %v1433
        %v1435 = vpop.f32.mrb[0].mxu0
        %v1436 = vadd.f32 %v1149, %v1435
        %1437 = vmatprep.mubr.f32.mxu0 %v237
        %1438 = vmatmul.mubr.f32.gmra.mrb[0].mxu0 %v236
        %v1439 = vpop.f32.mrb[0].mxu0
        %v1440 = vadd.f32 %v1153, %v1439
        %v1441 = vpop.f32.mrb[0].mxu0
        %v1442 = vadd.f32 %v1155, %v1441
        %1443 = vmatprep.mubr.f32.mxu0 %v248
        %1444 = vmatmul.mubr.f32.gmra.mrb[0].mxu0 %v247
        %v1445 = vpop.f32.mrb[0].mxu0
        %v1446 = vadd.f32 %v1159, %v1445
        %v1447 = vpop.f32.mrb[0].mxu0
        %v1448 = vadd.f32 %v1161, %v1447
        %1449 = vmatprep.mubr.f32.mxu0 %v259
        %1450 = vmatmul.mubr.f32.gmra.mrb[0].mxu0 %v258
        %v1451 = vpop.f32.mrb[0].mxu0
        %v1452 = vadd.f32 %v1165, %v1451
        %v1453 = vpop.f32.mrb[0].mxu0
        %v1454 = vadd.f32 %v1167, %v1453
        %1455 = vmatprep.mubr.f32.mxu0 %v270
        %1456 = vmatmul.mubr.f32.gmra.mrb[0].mxu0 %v269
        %v1457 = vpop.f32.mrb[0].mxu0
        %v1458 = vadd.f32 %v1171, %v1457
        %v1459 = vpop.f32.mrb[0].mxu0
        %v1460 = vadd.f32 %v1173, %v1459
        %1461 = vmatprep.mubr.f32.mxu0 %v281
        %1462 = vmatmul.mubr.f32.gmra.mrb[0].mxu0 %v280
        %v1463 = vpop.f32.mrb[0].mxu0
        %v1464 = vadd.f32 %v1177, %v1463
        %v1465 = vpop.f32.mrb[0].mxu0
        %v1466 = vadd.f32 %v1179, %v1465
        %1467 = vmatprep.mubr.f32.mxu0 %v292
        %1468 = vmatmul.mubr.f32.gmra.mrb[0].mxu0 %v291
        %v1469 = vpop.f32.mrb[0].mxu0
        %v1470 = vadd.f32 %v1183, %v1469
        %v1471 = vpop.f32.mrb[0].mxu0
        %v1472 = vadd.f32 %v1185, %v1471
        %1473 = vmatprep.mubr.f32.mxu0 %v303
        %1474 = vmatmul.mubr.f32.gmra.mrb[0].mxu0 %v302
        %v1475 = vpop.f32.mrb[0].mxu0
        %v1476 = vadd.f32 %v1189, %v1475
        %v1477 = vpop.f32.mrb[0].mxu0
        %v1478 = vadd.f32 %v1191, %v1477
        %1479 = vmatprep.mubr.f32.mxu0 %v314
        %1480 = vmatmul.mubr.f32.gmra.mrb[0].mxu0 %v313
        %v1481 = vpop.f32.mrb[0].mxu0
        %v1482 = vadd.f32 %v1195, %v1481
        %v1483 = vpop.f32.mrb[0].mxu0
        %v1484 = vadd.f32 %v1197, %v1483
        %1485 = vmatprep.mubr.f32.mxu0 %v325
        %1486 = vmatmul.mubr.f32.gmra.mrb[0].mxu0 %v324
        %v1487 = vpop.f32.mrb[0].mxu0
        %v1488 = vadd.f32 %v1201, %v1487
        %v1489 = vpop.f32.mrb[0].mxu0
        %v1490 = vadd.f32 %v1203, %v1489
        %1491 = vmatprep.mubr.f32.mxu0 %v336
        %1492 = vmatmul.mubr.f32.gmra.mrb[0].mxu0 %v335
        %v1493 = vpop.f32.mrb[0].mxu0
        %v1494 = vadd.f32 %v1207, %v1493
        %v1495 = vpop.f32.mrb[0].mxu0
        %v1496 = vadd.f32 %v1209, %v1495
        %1497 = vmatprep.mubr.f32.mxu0 %v347
        %1498 = vmatmul.mubr.f32.gmra.mrb[0].mxu0 %v346
        %v1499 = vpop.f32.mrb[0].mxu0
        %v1500 = vadd.f32 %v1213, %v1499
        %v1501 = vpop.f32.mrb[0].mxu0
        %v1502 = vadd.f32 %v1215, %v1501
        %1503 = vmatprep.mubr.f32.mxu0 %v358
        %1504 = vmatmul.mubr.f32.gmra.mrb[0].mxu0 %v357
        %v1505 = vpop.f32.mrb[0].mxu0
        %v1506 = vadd.f32 %v1219, %v1505
        %v1507 = vpop.f32.mrb[0].mxu0
        %v1508 = vadd.f32 %v1221, %v1507
        %1509 = vmatprep.mubr.f32.mxu0 %v369
        %1510 = vmatmul.mubr.f32.gmra.mrb[0].mxu0 %v368
        %v1511 = vpop.f32.mrb[0].mxu0
        %v1512 = vadd.f32 %v1225, %v1511
        %v1513 = vpop.f32.mrb[0].mxu0
        %v1514 = vadd.f32 %v1227, %v1513
        %1515 = vmatprep.mubr.f32.mxu0 %v380
        %1516 = vmatmul.mubr.f32.gmra.mrb[0].mxu0 %v379
        %v1517 = vpop.f32.mrb[0].mxu0
        %v1518 = vadd.f32 %v1231, %v1517
        %v1519 = vpop.f32.mrb[0].mxu0
        %v1520 = vadd.f32 %v1233, %v1519
        %1521 = vmatprep.mubr.f32.mxu0 %v391
        %1522 = vmatmul.mubr.f32.gmra.mrb[0].mxu0 %v390
        %v1523 = vpop.f32.mrb[0].mxu0
        %v1524 = vadd.f32 %v1237, %v1523
        %v1525 = vpop.f32.mrb[0].mxu0
        %v1526 = vadd.f32 %v1239, %v1525
        %1527 = vmatprep.mubr.f32.mxu0 %v402
        %1528 = vmatmul.mubr.f32.gmra.mrb[0].mxu0 %v401
        %v1529 = vpop.f32.mrb[0].mxu0
        %v1530 = vadd.f32 %v1243, %v1529
        %v1531 = vpop.f32.mrb[0].mxu0
        %v1532 = vadd.f32 %v1245, %v1531
        %1533 = vmatprep.mubr.f32.mxu0 %v413
        %1534 = vmatmul.mubr.f32.gmra.mrb[0].mxu0 %v412
        %v1535 = vpop.f32.mrb[0].mxu0
        %v1536 = vadd.f32 %v1249, %v1535
        %v1537 = vpop.f32.mrb[0].mxu0
        %v1538 = vadd.f32 %v1251, %v1537
        %1539 = vmatprep.mubr.f32.mxu0 %v424
        %1540 = vmatmul.mubr.f32.gmra.mrb[0].mxu0 %v423
        %v1541 = vpop.f32.mrb[0].mxu0
        %v1542 = vadd.f32 %v1255, %v1541
        %v1543 = vpop.f32.mrb[0].mxu0
        %v1544 = vadd.f32 %v1257, %v1543
        %1545 = vmatprep.mubr.f32.mxu0 %v435
        %1546 = vmatmul.mubr.f32.gmra.mrb[0].mxu0 %v434
        %v1547 = vpop.f32.mrb[0].mxu0
        %v1548 = vadd.f32 %v1261, %v1547
        %v1549 = vpop.f32.mrb[0].mxu0
        %v1550 = vadd.f32 %v1263, %v1549
        %1551 = vmatprep.mubr.f32.mxu0 %v446
        %1552 = vmatmul.mubr.f32.gmra.mrb[0].mxu0 %v445
        %v1553 = vpop.f32.mrb[0].mxu0
        %v1554 = vadd.f32 %v1267, %v1553
        %v1555 = vpop.f32.mrb[0].mxu0
        %v1556 = vadd.f32 %v1269, %v1555
        %1557 = vmatprep.mubr.f32.mxu0 %v457
        %1558 = vmatmul.mubr.f32.gmra.mrb[0].mxu0 %v456
        %v1559 = vpop.f32.mrb[0].mxu0
        %v1560 = vadd.f32 %v1273, %v1559
        %v1561 = vpop.f32.mrb[0].mxu0
        %v1562 = vadd.f32 %v1275, %v1561
        %1563 = vmatprep.mubr.f32.mxu0 %v468
        %1564 = vmatmul.mubr.f32.gmra.mrb[0].mxu0 %v467
        %v1565 = vpop.f32.mrb[0].mxu0
        %v1566 = vadd.f32 %v1279, %v1565
        %v1567 = vpop.f32.mrb[0].mxu0
        %v1568 = vadd.f32 %v1281, %v1567
        %1569 = vmatprep.mubr.f32.mxu0 %v479
        %1570 = vmatmul.mubr.f32.gmra.mrb[0].mxu0 %v478
        %v1571 = vpop.f32.mrb[0].mxu0
        %v1572 = vadd.f32 %v1285, %v1571
        %v1573 = vpop.f32.mrb[0].mxu0
        %v1574 = vadd.f32 %v1287, %v1573
        %1575 = vmatprep.mubr.f32.mxu0 %v490
        %1576 = vmatmul.mubr.f32.gmra.mrb[0].mxu0 %v489
        %v1577 = vpop.f32.mrb[0].mxu0
        %v1578 = vadd.f32 %v1291, %v1577
        %v1579 = vpop.f32.mrb[0].mxu0
        %v1580 = vadd.f32 %v1293, %v1579
        %1581 = vmatprep.mubr.f32.mxu0 %v501
        %1582 = vmatmul.mubr.f32.gmra.mrb[0].mxu0 %v500
        %v1583 = vpop.f32.mrb[0].mxu0
        %v1584 = vadd.f32 %v1297, %v1583
        %v1585 = vpop.f32.mrb[0].mxu0
        %v1586 = vadd.f32 %v1299, %v1585
        %1587 = vmatprep.mubr.f32.mxu0 %v512
        %1588 = vmatmul.mubr.f32.gmra.mrb[0].mxu0 %v511
        %v1589 = vpop.f32.mrb[0].mxu0
        %v1590 = vadd.f32 %v1303, %v1589
        %v1591 = vpop.f32.mrb[0].mxu0
        %v1592 = vadd.f32 %v1305, %v1591
        %1593 = vmatprep.mubr.f32.mxu0 %v523
        %1594 = vmatmul.mubr.f32.gmra.mrb[0].mxu0 %v522
        %v1595 = vpop.f32.mrb[0].mxu0
        %v1596 = vadd.f32 %v1309, %v1595
        %v1597 = vpop.f32.mrb[0].mxu0
        %v1598 = vadd.f32 %v1311, %v1597
        %1599 = vmatprep.mubr.f32.mxu0 %v534
        %1600 = vmatmul.mubr.f32.gmra.mrb[0].mxu0 %v533
        %v1601 = vpop.f32.mrb[0].mxu0
        %v1602 = vadd.f32 %v1315, %v1601
        %v1603 = vpop.f32.mrb[0].mxu0
        %v1604 = vadd.f32 %v1317, %v1603
        %1605 = vmatprep.mubr.f32.mxu0 %v545
        %1606 = vmatmul.mubr.f32.gmra.mrb[0].mxu0 %v544
        %v1607 = vpop.f32.mrb[0].mxu0
        %v1608 = vadd.f32 %v1321, %v1607
        %v1609 = vpop.f32.mrb[0].mxu0
        %v1610 = vadd.f32 %v1323, %v1609
        %1611 = vmatprep.mubr.f32.mxu0 %v556
        %1612 = vmatmul.mubr.f32.gmra.mrb[0].mxu0 %v555
        %v1613 = vpop.f32.mrb[0].mxu0
        %v1614 = vadd.f32 %v1327, %v1613
        %v1615 = vpop.f32.mrb[0].mxu0
        %v1616 = vadd.f32 %v1329, %v1615
        %1617 = vmatprep.mubr.f32.mxu0 %v567
        %1618 = vmatmul.mubr.f32.gmra.mrb[0].mxu0 %v566
        %v1619 = vpop.f32.mrb[0].mxu0
        %v1620 = vadd.f32 %v1333, %v1619
        %v1621 = vpop.f32.mrb[0].mxu0
        %v1622 = vadd.f32 %v1335, %v1621
        %1623 = vmatprep.mubr.f32.mxu0 %v578
        %1624 = vmatmul.mubr.f32.gmra.mrb[0].mxu0 %v577
        %v1625 = vpop.f32.mrb[0].mxu0
        %v1626 = vadd.f32 %v1339, %v1625
        %v1627 = vpop.f32.mrb[0].mxu0
        %v1628 = vadd.f32 %v1341, %v1627
        %1629 = vmatprep.mubr.f32.mxu0 %v589
        %1630 = vmatmul.mubr.f32.gmra.mrb[0].mxu0 %v588
        %v1631 = vpop.f32.mrb[0].mxu0
        %v1632 = vadd.f32 %v1345, %v1631
        %v1633 = vpop.f32.mrb[0].mxu0
        %v1634 = vadd.f32 %v1347, %v1633
        %1635 = vmatprep.mubr.f32.mxu0 %v600
        %1636 = vmatmul.mubr.f32.gmra.mrb[0].mxu0 %v599
        %v1637 = vpop.f32.mrb[0].mxu0
        %v1638 = vadd.f32 %v1351, %v1637
        %v1639 = vpop.f32.mrb[0].mxu0
        %v1640 = vadd.f32 %v1353, %v1639
        %1641 = vdwg.mxu0
        %1642 = vmatprep.subr.mxu0 %v737
        %1643 = vmatpush1.msra.mxu0 %v736
        %1644 = vmatprep.subr.mxu0 %v739
        %1645 = vmatpush1.msra.mxu0 %v738
        %1646 = vmatprep.subr.mxu0 %v741
        %1647 = vmatpush1.msra.mxu0 %v740
        %1648 = vmatprep.subr.mxu0 %v743
        %1649 = vmatpush1.msra.mxu0 %v742
        %1650 = vmatprep.subr.mxu0 %v745
        %1651 = vmatpush1.msra.mxu0 %v744
        %1652 = vmatprep.subr.mxu0 %v747
        %1653 = vmatpush1.msra.mxu0 %v746
        %1654 = vmatprep.subr.mxu0 %v749
        %1655 = vmatpush1.msra.mxu0 %v748
        %1656 = vmatprep.subr.mxu0 %v751
        %1657 = vmatpush1.msra.mxu0 %v750
        %1658 = vmatprep.subr.mxu0 %v753
        %1659 = vmatpush1.msra.mxu0 %v752
        %1660 = vmatprep.subr.mxu0 %v755
        %1661 = vmatpush1.msra.mxu0 %v754
        %1662 = vmatprep.subr.mxu0 %v757
        %1663 = vmatpush1.msra.mxu0 %v756
        %1664 = vmatprep.subr.mxu0 %v759
        %1665 = vmatpush1.msra.mxu0 %v758
        %1666 = vmatprep.subr.mxu0 %v761
        %1667 = vmatpush1.msra.mxu0 %v760
        %1668 = vmatprep.subr.mxu0 %v763
        %1669 = vmatpush1.msra.mxu0 %v762
        %1670 = vmatprep.subr.mxu0 %v765
        %1671 = vmatpush1.msra.mxu0 %v764
        %1672 = vmatprep.subr.mxu0 %v767
        %1673 = vmatpush1.msra.mxu0 %v766
        %1674 = vmatprep.subr.mxu0 %v769
        %1675 = vmatpush1.msra.mxu0 %v768
        %1676 = vmatprep.subr.mxu0 %v771
        %1677 = vmatpush1.msra.mxu0 %v770
        %1678 = vmatprep.subr.mxu0 %v773
        %1679 = vmatpush1.msra.mxu0 %v772
        %1680 = vmatprep.subr.mxu0 %v775
        %1681 = vmatpush1.msra.mxu0 %v774
        %1682 = vmatprep.subr.mxu0 %v777
        %1683 = vmatpush1.msra.mxu0 %v776
        %1684 = vmatprep.subr.mxu0 %v779
        %1685 = vmatpush1.msra.mxu0 %v778
        %1686 = vmatprep.subr.mxu0 %v781
        %1687 = vmatpush1.msra.mxu0 %v780
        %1688 = vmatprep.subr.mxu0 %v783
        %1689 = vmatpush1.msra.mxu0 %v782
        %1690 = vmatprep.subr.mxu0 %v785
        %1691 = vmatpush1.msra.mxu0 %v784
        %1692 = vmatprep.subr.mxu0 %v787
        %1693 = vmatpush1.msra.mxu0 %v786
        %1694 = vmatprep.subr.mxu0 %v789
        %1695 = vmatpush1.msra.mxu0 %v788
        %1696 = vmatprep.subr.mxu0 %v791
        %1697 = vmatpush1.msra.mxu0 %v790
        %1698 = vmatprep.subr.mxu0 %v793
        %1699 = vmatpush1.msra.mxu0 %v792
        %1700 = vmatprep.subr.mxu0 %v795
        %1701 = vmatpush1.msra.mxu0 %v794
        %1702 = vmatprep.subr.mxu0 %v797
        %1703 = vmatpush1.msra.mxu0 %v796
        %1704 = vmatprep.subr.mxu0 %v799
        %1705 = vmatpush1.msra.mxu0 %v798
        %1706 = vmatprep.mubr.f32.mxu0 %v206
        %1707 = vmatmul.mubr.f32.gmra.mrb[0].mxu0 %v205
        %v1708 = vpop.f32.mrb[0].mxu0
        %v1709 = vadd.f32 %v1422, %v1708
        %v1710 = vpop.f32.mrb[0].mxu0
        %v1711 = vadd.f32 %v1424, %v1710
        %1712 = vmatprep.mubr.f32.mxu0 %v217
        %1713 = vmatmul.mubr.f32.gmra.mrb[0].mxu0 %v216
        %v1714 = vpop.f32.mrb[0].mxu0
        %v1715 = vadd.f32 %v1428, %v1714
        %v1716 = vpop.f32.mrb[0].mxu0
        %v1717 = vadd.f32 %v1430, %v1716
        %1718 = vmatprep.mubr.f32.mxu0 %v228
        %1719 = vmatmul.mubr.f32.gmra.mrb[0].mxu0 %v227
        %v1720 = vpop.f32.mrb[0].mxu0
        %v1721 = vadd.f32 %v1434, %v1720
        %v1722 = vpop.f32.mrb[0].mxu0
        %v1723 = vadd.f32 %v1436, %v1722
        %1724 = vmatprep.mubr.f32.mxu0 %v239
        %1725 = vmatmul.mubr.f32.gmra.mrb[0].mxu0 %v238
        %v1726 = vpop.f32.mrb[0].mxu0
        %v1727 = vadd.f32 %v1440, %v1726
        %v1728 = vpop.f32.mrb[0].mxu0
        %v1729 = vadd.f32 %v1442, %v1728
        %1730 = vmatprep.mubr.f32.mxu0 %v250
        %1731 = vmatmul.mubr.f32.gmra.mrb[0].mxu0 %v249
        %v1732 = vpop.f32.mrb[0].mxu0
        %v1733 = vadd.f32 %v1446, %v1732
        %v1734 = vpop.f32.mrb[0].mxu0
        %v1735 = vadd.f32 %v1448, %v1734
        %1736 = vmatprep.mubr.f32.mxu0 %v261
        %1737 = vmatmul.mubr.f32.gmra.mrb[0].mxu0 %v260
        %v1738 = vpop.f32.mrb[0].mxu0
        %v1739 = vadd.f32 %v1452, %v1738
        %v1740 = vpop.f32.mrb[0].mxu0
        %v1741 = vadd.f32 %v1454, %v1740
        %1742 = vmatprep.mubr.f32.mxu0 %v272
        %1743 = vmatmul.mubr.f32.gmra.mrb[0].mxu0 %v271
        %v1744 = vpop.f32.mrb[0].mxu0
        %v1745 = vadd.f32 %v1458, %v1744
        %v1746 = vpop.f32.mrb[0].mxu0
        %v1747 = vadd.f32 %v1460, %v1746
        %1748 = vmatprep.mubr.f32.mxu0 %v283
        %1749 = vmatmul.mubr.f32.gmra.mrb[0].mxu0 %v282
        %v1750 = vpop.f32.mrb[0].mxu0
        %v1751 = vadd.f32 %v1464, %v1750
        %v1752 = vpop.f32.mrb[0].mxu0
        %v1753 = vadd.f32 %v1466, %v1752
        %1754 = vmatprep.mubr.f32.mxu0 %v294
        %1755 = vmatmul.mubr.f32.gmra.mrb[0].mxu0 %v293
        %v1756 = vpop.f32.mrb[0].mxu0
        %v1757 = vadd.f32 %v1470, %v1756
        %v1758 = vpop.f32.mrb[0].mxu0
        %v1759 = vadd.f32 %v1472, %v1758
        %1760 = vmatprep.mubr.f32.mxu0 %v305
        %1761 = vmatmul.mubr.f32.gmra.mrb[0].mxu0 %v304
        %v1762 = vpop.f32.mrb[0].mxu0
        %v1763 = vadd.f32 %v1476, %v1762
        %v1764 = vpop.f32.mrb[0].mxu0
        %v1765 = vadd.f32 %v1478, %v1764
        %1766 = vmatprep.mubr.f32.mxu0 %v316
        %1767 = vmatmul.mubr.f32.gmra.mrb[0].mxu0 %v315
        %v1768 = vpop.f32.mrb[0].mxu0
        %v1769 = vadd.f32 %v1482, %v1768
        %v1770 = vpop.f32.mrb[0].mxu0
        %v1771 = vadd.f32 %v1484, %v1770
        %1772 = vmatprep.mubr.f32.mxu0 %v327
        %1773 = vmatmul.mubr.f32.gmra.mrb[0].mxu0 %v326
        %v1774 = vpop.f32.mrb[0].mxu0
        %v1775 = vadd.f32 %v1488, %v1774
        %v1776 = vpop.f32.mrb[0].mxu0
        %v1777 = vadd.f32 %v1490, %v1776
        %1778 = vmatprep.mubr.f32.mxu0 %v338
        %1779 = vmatmul.mubr.f32.gmra.mrb[0].mxu0 %v337
        %v1780 = vpop.f32.mrb[0].mxu0
        %v1781 = vadd.f32 %v1494, %v1780
        %v1782 = vpop.f32.mrb[0].mxu0
        %v1783 = vadd.f32 %v1496, %v1782
        %1784 = vmatprep.mubr.f32.mxu0 %v349
        %1785 = vmatmul.mubr.f32.gmra.mrb[0].mxu0 %v348
        %v1786 = vpop.f32.mrb[0].mxu0
        %v1787 = vadd.f32 %v1500, %v1786
        %v1788 = vpop.f32.mrb[0].mxu0
        %v1789 = vadd.f32 %v1502, %v1788
        %1790 = vmatprep.mubr.f32.mxu0 %v360
        %1791 = vmatmul.mubr.f32.gmra.mrb[0].mxu0 %v359
        %v1792 = vpop.f32.mrb[0].mxu0
        %v1793 = vadd.f32 %v1506, %v1792
        %v1794 = vpop.f32.mrb[0].mxu0
        %v1795 = vadd.f32 %v1508, %v1794
        %1796 = vmatprep.mubr.f32.mxu0 %v371
        %1797 = vmatmul.mubr.f32.gmra.mrb[0].mxu0 %v370
        %v1798 = vpop.f32.mrb[0].mxu0
        %v1799 = vadd.f32 %v1512, %v1798
        %v1800 = vpop.f32.mrb[0].mxu0
        %v1801 = vadd.f32 %v1514, %v1800
        %1802 = vmatprep.mubr.f32.mxu0 %v382
        %1803 = vmatmul.mubr.f32.gmra.mrb[0].mxu0 %v381
        %v1804 = vpop.f32.mrb[0].mxu0
        %v1805 = vadd.f32 %v1518, %v1804
        %v1806 = vpop.f32.mrb[0].mxu0
        %v1807 = vadd.f32 %v1520, %v1806
        %1808 = vmatprep.mubr.f32.mxu0 %v393
        %1809 = vmatmul.mubr.f32.gmra.mrb[0].mxu0 %v392
        %v1810 = vpop.f32.mrb[0].mxu0
        %v1811 = vadd.f32 %v1524, %v1810
        %v1812 = vpop.f32.mrb[0].mxu0
        %v1813 = vadd.f32 %v1526, %v1812
        %1814 = vmatprep.mubr.f32.mxu0 %v404
        %1815 = vmatmul.mubr.f32.gmra.mrb[0].mxu0 %v403
        %v1816 = vpop.f32.mrb[0].mxu0
        %v1817 = vadd.f32 %v1530, %v1816
        %v1818 = vpop.f32.mrb[0].mxu0
        %v1819 = vadd.f32 %v1532, %v1818
        %1820 = vmatprep.mubr.f32.mxu0 %v415
        %1821 = vmatmul.mubr.f32.gmra.mrb[0].mxu0 %v414
        %v1822 = vpop.f32.mrb[0].mxu0
        %v1823 = vadd.f32 %v1536, %v1822
        %v1824 = vpop.f32.mrb[0].mxu0
        %v1825 = vadd.f32 %v1538, %v1824
        %1826 = vmatprep.mubr.f32.mxu0 %v426
        %1827 = vmatmul.mubr.f32.gmra.mrb[0].mxu0 %v425
        %v1828 = vpop.f32.mrb[0].mxu0
        %v1829 = vadd.f32 %v1542, %v1828
        %v1830 = vpop.f32.mrb[0].mxu0
        %v1831 = vadd.f32 %v1544, %v1830
        %1832 = vmatprep.mubr.f32.mxu0 %v437
        %1833 = vmatmul.mubr.f32.gmra.mrb[0].mxu0 %v436
        %v1834 = vpop.f32.mrb[0].mxu0
        %v1835 = vadd.f32 %v1548, %v1834
        %v1836 = vpop.f32.mrb[0].mxu0
        %v1837 = vadd.f32 %v1550, %v1836
        %1838 = vmatprep.mubr.f32.mxu0 %v448
        %1839 = vmatmul.mubr.f32.gmra.mrb[0].mxu0 %v447
        %v1840 = vpop.f32.mrb[0].mxu0
        %v1841 = vadd.f32 %v1554, %v1840
        %v1842 = vpop.f32.mrb[0].mxu0
        %v1843 = vadd.f32 %v1556, %v1842
        %1844 = vmatprep.mubr.f32.mxu0 %v459
        %1845 = vmatmul.mubr.f32.gmra.mrb[0].mxu0 %v458
        %v1846 = vpop.f32.mrb[0].mxu0
        %v1847 = vadd.f32 %v1560, %v1846
        %v1848 = vpop.f32.mrb[0].mxu0
        %v1849 = vadd.f32 %v1562, %v1848
        %1850 = vmatprep.mubr.f32.mxu0 %v470
        %1851 = vmatmul.mubr.f32.gmra.mrb[0].mxu0 %v469
        %v1852 = vpop.f32.mrb[0].mxu0
        %v1853 = vadd.f32 %v1566, %v1852
        %v1854 = vpop.f32.mrb[0].mxu0
        %v1855 = vadd.f32 %v1568, %v1854
        %1856 = vmatprep.mubr.f32.mxu0 %v481
        %1857 = vmatmul.mubr.f32.gmra.mrb[0].mxu0 %v480
        %v1858 = vpop.f32.mrb[0].mxu0
        %v1859 = vadd.f32 %v1572, %v1858
        %v1860 = vpop.f32.mrb[0].mxu0
        %v1861 = vadd.f32 %v1574, %v1860
        %1862 = vmatprep.mubr.f32.mxu0 %v492
        %1863 = vmatmul.mubr.f32.gmra.mrb[0].mxu0 %v491
        %v1864 = vpop.f32.mrb[0].mxu0
        %v1865 = vadd.f32 %v1578, %v1864
        %v1866 = vpop.f32.mrb[0].mxu0
        %v1867 = vadd.f32 %v1580, %v1866
        %1868 = vmatprep.mubr.f32.mxu0 %v503
        %1869 = vmatmul.mubr.f32.gmra.mrb[0].mxu0 %v502
        %v1870 = vpop.f32.mrb[0].mxu0
        %v1871 = vadd.f32 %v1584, %v1870
        %v1872 = vpop.f32.mrb[0].mxu0
        %v1873 = vadd.f32 %v1586, %v1872
        %1874 = vmatprep.mubr.f32.mxu0 %v514
        %1875 = vmatmul.mubr.f32.gmra.mrb[0].mxu0 %v513
        %v1876 = vpop.f32.mrb[0].mxu0
        %v1877 = vadd.f32 %v1590, %v1876
        %v1878 = vpop.f32.mrb[0].mxu0
        %v1879 = vadd.f32 %v1592, %v1878
        %1880 = vmatprep.mubr.f32.mxu0 %v525
        %1881 = vmatmul.mubr.f32.gmra.mrb[0].mxu0 %v524
        %v1882 = vpop.f32.mrb[0].mxu0
        %v1883 = vadd.f32 %v1596, %v1882
        %v1884 = vpop.f32.mrb[0].mxu0
        %v1885 = vadd.f32 %v1598, %v1884
        %1886 = vmatprep.mubr.f32.mxu0 %v536
        %1887 = vmatmul.mubr.f32.gmra.mrb[0].mxu0 %v535
        %v1888 = vpop.f32.mrb[0].mxu0
        %v1889 = vadd.f32 %v1602, %v1888
        %v1890 = vpop.f32.mrb[0].mxu0
        %v1891 = vadd.f32 %v1604, %v1890
        %1892 = vmatprep.mubr.f32.mxu0 %v547
        %1893 = vmatmul.mubr.f32.gmra.mrb[0].mxu0 %v546
        %v1894 = vpop.f32.mrb[0].mxu0
        %v1895 = vadd.f32 %v1608, %v1894
        %v1896 = vpop.f32.mrb[0].mxu0
        %v1897 = vadd.f32 %v1610, %v1896
        %1898 = vmatprep.mubr.f32.mxu0 %v558
        %1899 = vmatmul.mubr.f32.gmra.mrb[0].mxu0 %v557
        %v1900 = vpop.f32.mrb[0].mxu0
        %v1901 = vadd.f32 %v1614, %v1900
        %v1902 = vpop.f32.mrb[0].mxu0
        %v1903 = vadd.f32 %v1616, %v1902
        %1904 = vmatprep.mubr.f32.mxu0 %v569
        %1905 = vmatmul.mubr.f32.gmra.mrb[0].mxu0 %v568
        %v1906 = vpop.f32.mrb[0].mxu0
        %v1907 = vadd.f32 %v1620, %v1906
        %v1908 = vpop.f32.mrb[0].mxu0
        %v1909 = vadd.f32 %v1622, %v1908
        %1910 = vmatprep.mubr.f32.mxu0 %v580
        %1911 = vmatmul.mubr.f32.gmra.mrb[0].mxu0 %v579
        %v1912 = vpop.f32.mrb[0].mxu0
        %v1913 = vadd.f32 %v1626, %v1912
        %v1914 = vpop.f32.mrb[0].mxu0
        %v1915 = vadd.f32 %v1628, %v1914
        %1916 = vmatprep.mubr.f32.mxu0 %v591
        %1917 = vmatmul.mubr.f32.gmra.mrb[0].mxu0 %v590
        %v1918 = vpop.f32.mrb[0].mxu0
        %v1919 = vadd.f32 %v1632, %v1918
        %v1920 = vpop.f32.mrb[0].mxu0
        %v1921 = vadd.f32 %v1634, %v1920
        %1922 = vmatprep.mubr.f32.mxu0 %v602
        %1923 = vmatmul.mubr.f32.gmra.mrb[0].mxu0 %v601
        %v1924 = vpop.f32.mrb[0].mxu0
        %v1925 = vadd.f32 %v1638, %v1924
        %v1926 = vpop.f32.mrb[0].mxu0
        %v1927 = vadd.f32 %v1640, %v1926
        %1928 = vdwg.mxu0
        %1929 = vmatprep.subr.mxu0 %v801
        %1930 = vmatpush1.msra.mxu0 %v800
        %1931 = vmatprep.subr.mxu0 %v803
        %1932 = vmatpush1.msra.mxu0 %v802
        %1933 = vmatprep.subr.mxu0 %v805
        %1934 = vmatpush1.msra.mxu0 %v804
        %1935 = vmatprep.subr.mxu0 %v807
        %1936 = vmatpush1.msra.mxu0 %v806
        %1937 = vmatprep.subr.mxu0 %v809
        %1938 = vmatpush1.msra.mxu0 %v808
        %1939 = vmatprep.subr.mxu0 %v811
        %1940 = vmatpush1.msra.mxu0 %v810
        %1941 = vmatprep.subr.mxu0 %v813
        %1942 = vmatpush1.msra.mxu0 %v812
        %1943 = vmatprep.subr.mxu0 %v815
        %1944 = vmatpush1.msra.mxu0 %v814
        %1945 = vmatprep.subr.mxu0 %v817
        %1946 = vmatpush1.msra.mxu0 %v816
        %1947 = vmatprep.subr.mxu0 %v819
        %1948 = vmatpush1.msra.mxu0 %v818
        %1949 = vmatprep.subr.mxu0 %v821
        %1950 = vmatpush1.msra.mxu0 %v820
        %1951 = vmatprep.subr.mxu0 %v823
        %1952 = vmatpush1.msra.mxu0 %v822
        %1953 = vmatprep.subr.mxu0 %v825
        %1954 = vmatpush1.msra.mxu0 %v824
        %1955 = vmatprep.subr.mxu0 %v827
        %1956 = vmatpush1.msra.mxu0 %v826
        %1957 = vmatprep.subr.mxu0 %v829
        %1958 = vmatpush1.msra.mxu0 %v828
        %1959 = vmatprep.subr.mxu0 %v831
        %1960 = vmatpush1.msra.mxu0 %v830
        %1961 = vmatprep.subr.mxu0 %v833
        %1962 = vmatpush1.msra.mxu0 %v832
        %1963 = vmatprep.subr.mxu0 %v835
        %1964 = vmatpush1.msra.mxu0 %v834
        %1965 = vmatprep.subr.mxu0 %v837
        %1966 = vmatpush1.msra.mxu0 %v836
        %1967 = vmatprep.subr.mxu0 %v839
        %1968 = vmatpush1.msra.mxu0 %v838
        %1969 = vmatprep.subr.mxu0 %v841
        %1970 = vmatpush1.msra.mxu0 %v840
        %1971 = vmatprep.subr.mxu0 %v843
        %1972 = vmatpush1.msra.mxu0 %v842
        %1973 = vmatprep.subr.mxu0 %v845
        %1974 = vmatpush1.msra.mxu0 %v844
        %1975 = vmatprep.subr.mxu0 %v847
        %1976 = vmatpush1.msra.mxu0 %v846
        %1977 = vmatprep.subr.mxu0 %v849
        %1978 = vmatpush1.msra.mxu0 %v848
        %1979 = vmatprep.subr.mxu0 %v851
        %1980 = vmatpush1.msra.mxu0 %v850
        %1981 = vmatprep.subr.mxu0 %v853
        %1982 = vmatpush1.msra.mxu0 %v852
        %1983 = vmatprep.subr.mxu0 %v855
        %1984 = vmatpush1.msra.mxu0 %v854
        %1985 = vmatprep.subr.mxu0 %v857
        %1986 = vmatpush1.msra.mxu0 %v856
        %1987 = vmatprep.subr.mxu0 %v859
        %1988 = vmatpush1.msra.mxu0 %v858
        %1989 = vmatprep.subr.mxu0 %v861
        %1990 = vmatpush1.msra.mxu0 %v860
        %1991 = vmatprep.subr.mxu0 %v863
        %1992 = vmatpush1.msra.mxu0 %v862
        %1993 = vmatprep.mubr.f32.mxu0 %v208
        %1994 = vmatmul.mubr.f32.gmra.mrb[0].mxu0 %v207
        %v1995 = vpop.f32.mrb[0].mxu0
        %v1996 = vadd.f32 %v1709, %v1995
        %v1997 = vpop.f32.mrb[0].mxu0
        %v1998 = vadd.f32 %v1711, %v1997
        %1999 = vmatprep.mubr.f32.mxu0 %v219
        %2000 = vmatmul.mubr.f32.gmra.mrb[0].mxu0 %v218
        %v2001 = vpop.f32.mrb[0].mxu0
        %v2002 = vadd.f32 %v1715, %v2001
        %v2003 = vpop.f32.mrb[0].mxu0
        %v2004 = vadd.f32 %v1717, %v2003
        %2005 = vmatprep.mubr.f32.mxu0 %v230
        %2006 = vmatmul.mubr.f32.gmra.mrb[0].mxu0 %v229
        %v2007 = vpop.f32.mrb[0].mxu0
        %v2008 = vadd.f32 %v1721, %v2007
        %v2009 = vpop.f32.mrb[0].mxu0
        %v2010 = vadd.f32 %v1723, %v2009
        %2011 = vmatprep.mubr.f32.mxu0 %v241
        %2012 = vmatmul.mubr.f32.gmra.mrb[0].mxu0 %v240
        %v2013 = vpop.f32.mrb[0].mxu0
        %v2014 = vadd.f32 %v1727, %v2013
        %v2015 = vpop.f32.mrb[0].mxu0
        %v2016 = vadd.f32 %v1729, %v2015
        %2017 = vmatprep.mubr.f32.mxu0 %v252
        %2018 = vmatmul.mubr.f32.gmra.mrb[0].mxu0 %v251
        %v2019 = vpop.f32.mrb[0].mxu0
        %v2020 = vadd.f32 %v1733, %v2019
        %v2021 = vpop.f32.mrb[0].mxu0
        %v2022 = vadd.f32 %v1735, %v2021
        %2023 = vmatprep.mubr.f32.mxu0 %v263
        %2024 = vmatmul.mubr.f32.gmra.mrb[0].mxu0 %v262
        %v2025 = vpop.f32.mrb[0].mxu0
        %v2026 = vadd.f32 %v1739, %v2025
        %v2027 = vpop.f32.mrb[0].mxu0
        %v2028 = vadd.f32 %v1741, %v2027
        %2029 = vmatprep.mubr.f32.mxu0 %v274
        %2030 = vmatmul.mubr.f32.gmra.mrb[0].mxu0 %v273
        %v2031 = vpop.f32.mrb[0].mxu0
        %v2032 = vadd.f32 %v1745, %v2031
        %v2033 = vpop.f32.mrb[0].mxu0
        %v2034 = vadd.f32 %v1747, %v2033
        %2035 = vmatprep.mubr.f32.mxu0 %v285
        %2036 = vmatmul.mubr.f32.gmra.mrb[0].mxu0 %v284
        %v2037 = vpop.f32.mrb[0].mxu0
        %v2038 = vadd.f32 %v1751, %v2037
        %v2039 = vpop.f32.mrb[0].mxu0
        %v2040 = vadd.f32 %v1753, %v2039
        %2041 = vmatprep.mubr.f32.mxu0 %v296
        %2042 = vmatmul.mubr.f32.gmra.mrb[0].mxu0 %v295
        %v2043 = vpop.f32.mrb[0].mxu0
        %v2044 = vadd.f32 %v1757, %v2043
        %v2045 = vpop.f32.mrb[0].mxu0
        %v2046 = vadd.f32 %v1759, %v2045
        %2047 = vmatprep.mubr.f32.mxu0 %v307
        %2048 = vmatmul.mubr.f32.gmra.mrb[0].mxu0 %v306
        %v2049 = vpop.f32.mrb[0].mxu0
        %v2050 = vadd.f32 %v1763, %v2049
        %v2051 = vpop.f32.mrb[0].mxu0
        %v2052 = vadd.f32 %v1765, %v2051
        %2053 = vmatprep.mubr.f32.mxu0 %v318
        %2054 = vmatmul.mubr.f32.gmra.mrb[0].mxu0 %v317
        %v2055 = vpop.f32.mrb[0].mxu0
        %v2056 = vadd.f32 %v1769, %v2055
        %v2057 = vpop.f32.mrb[0].mxu0
        %v2058 = vadd.f32 %v1771, %v2057
        %2059 = vmatprep.mubr.f32.mxu0 %v329
        %2060 = vmatmul.mubr.f32.gmra.mrb[0].mxu0 %v328
        %v2061 = vpop.f32.mrb[0].mxu0
        %v2062 = vadd.f32 %v1775, %v2061
        %v2063 = vpop.f32.mrb[0].mxu0
        %v2064 = vadd.f32 %v1777, %v2063
        %2065 = vmatprep.mubr.f32.mxu0 %v340
        %2066 = vmatmul.mubr.f32.gmra.mrb[0].mxu0 %v339
        %v2067 = vpop.f32.mrb[0].mxu0
        %v2068 = vadd.f32 %v1781, %v2067
        %v2069 = vpop.f32.mrb[0].mxu0
        %v2070 = vadd.f32 %v1783, %v2069
        %2071 = vmatprep.mubr.f32.mxu0 %v351
        %2072 = vmatmul.mubr.f32.gmra.mrb[0].mxu0 %v350
        %v2073 = vpop.f32.mrb[0].mxu0
        %v2074 = vadd.f32 %v1787, %v2073
        %v2075 = vpop.f32.mrb[0].mxu0
        %v2076 = vadd.f32 %v1789, %v2075
        %2077 = vmatprep.mubr.f32.mxu0 %v362
        %2078 = vmatmul.mubr.f32.gmra.mrb[0].mxu0 %v361
        %v2079 = vpop.f32.mrb[0].mxu0
        %v2080 = vadd.f32 %v1793, %v2079
        %v2081 = vpop.f32.mrb[0].mxu0
        %v2082 = vadd.f32 %v1795, %v2081
        %2083 = vmatprep.mubr.f32.mxu0 %v373
        %2084 = vmatmul.mubr.f32.gmra.mrb[0].mxu0 %v372
        %v2085 = vpop.f32.mrb[0].mxu0
        %v2086 = vadd.f32 %v1799, %v2085
        %v2087 = vpop.f32.mrb[0].mxu0
        %v2088 = vadd.f32 %v1801, %v2087
        %2089 = vmatprep.mubr.f32.mxu0 %v384
        %2090 = vmatmul.mubr.f32.gmra.mrb[0].mxu0 %v383
        %v2091 = vpop.f32.mrb[0].mxu0
        %v2092 = vadd.f32 %v1805, %v2091
        %v2093 = vpop.f32.mrb[0].mxu0
        %v2094 = vadd.f32 %v1807, %v2093
        %2095 = vmatprep.mubr.f32.mxu0 %v395
        %2096 = vmatmul.mubr.f32.gmra.mrb[0].mxu0 %v394
        %v2097 = vpop.f32.mrb[0].mxu0
        %v2098 = vadd.f32 %v1811, %v2097
        %v2099 = vpop.f32.mrb[0].mxu0
        %v2100 = vadd.f32 %v1813, %v2099
        %2101 = vmatprep.mubr.f32.mxu0 %v406
        %2102 = vmatmul.mubr.f32.gmra.mrb[0].mxu0 %v405
        %v2103 = vpop.f32.mrb[0].mxu0
        %v2104 = vadd.f32 %v1817, %v2103
        %v2105 = vpop.f32.mrb[0].mxu0
        %v2106 = vadd.f32 %v1819, %v2105
        %2107 = vmatprep.mubr.f32.mxu0 %v417
        %2108 = vmatmul.mubr.f32.gmra.mrb[0].mxu0 %v416
        %v2109 = vpop.f32.mrb[0].mxu0
        %v2110 = vadd.f32 %v1823, %v2109
        %v2111 = vpop.f32.mrb[0].mxu0
        %v2112 = vadd.f32 %v1825, %v2111
        %2113 = vmatprep.mubr.f32.mxu0 %v428
        %2114 = vmatmul.mubr.f32.gmra.mrb[0].mxu0 %v427
        %v2115 = vpop.f32.mrb[0].mxu0
        %v2116 = vadd.f32 %v1829, %v2115
        %v2117 = vpop.f32.mrb[0].mxu0
        %v2118 = vadd.f32 %v1831, %v2117
        %2119 = vmatprep.mubr.f32.mxu0 %v439
        %2120 = vmatmul.mubr.f32.gmra.mrb[0].mxu0 %v438
        %v2121 = vpop.f32.mrb[0].mxu0
        %v2122 = vadd.f32 %v1835, %v2121
        %v2123 = vpop.f32.mrb[0].mxu0
        %v2124 = vadd.f32 %v1837, %v2123
        %2125 = vmatprep.mubr.f32.mxu0 %v450
        %2126 = vmatmul.mubr.f32.gmra.mrb[0].mxu0 %v449
        %v2127 = vpop.f32.mrb[0].mxu0
        %v2128 = vadd.f32 %v1841, %v2127
        %v2129 = vpop.f32.mrb[0].mxu0
        %v2130 = vadd.f32 %v1843, %v2129
        %2131 = vmatprep.mubr.f32.mxu0 %v461
        %2132 = vmatmul.mubr.f32.gmra.mrb[0].mxu0 %v460
        %v2133 = vpop.f32.mrb[0].mxu0
        %v2134 = vadd.f32 %v1847, %v2133
        %v2135 = vpop.f32.mrb[0].mxu0
        %v2136 = vadd.f32 %v1849, %v2135
        %2137 = vmatprep.mubr.f32.mxu0 %v472
        %2138 = vmatmul.mubr.f32.gmra.mrb[0].mxu0 %v471
        %v2139 = vpop.f32.mrb[0].mxu0
        %v2140 = vadd.f32 %v1853, %v2139
        %v2141 = vpop.f32.mrb[0].mxu0
        %v2142 = vadd.f32 %v1855, %v2141
        %2143 = vmatprep.mubr.f32.mxu0 %v483
        %2144 = vmatmul.mubr.f32.gmra.mrb[0].mxu0 %v482
        %v2145 = vpop.f32.mrb[0].mxu0
        %v2146 = vadd.f32 %v1859, %v2145
        %v2147 = vpop.f32.mrb[0].mxu0
        %v2148 = vadd.f32 %v1861, %v2147
        %2149 = vmatprep.mubr.f32.mxu0 %v494
        %2150 = vmatmul.mubr.f32.gmra.mrb[0].mxu0 %v493
        %v2151 = vpop.f32.mrb[0].mxu0
        %v2152 = vadd.f32 %v1865, %v2151
        %v2153 = vpop.f32.mrb[0].mxu0
        %v2154 = vadd.f32 %v1867, %v2153
        %2155 = vmatprep.mubr.f32.mxu0 %v505
        %2156 = vmatmul.mubr.f32.gmra.mrb[0].mxu0 %v504
        %v2157 = vpop.f32.mrb[0].mxu0
        %v2158 = vadd.f32 %v1871, %v2157
        %v2159 = vpop.f32.mrb[0].mxu0
        %v2160 = vadd.f32 %v1873, %v2159
        %2161 = vmatprep.mubr.f32.mxu0 %v516
        %2162 = vmatmul.mubr.f32.gmra.mrb[0].mxu0 %v515
        %v2163 = vpop.f32.mrb[0].mxu0
        %v2164 = vadd.f32 %v1877, %v2163
        %v2165 = vpop.f32.mrb[0].mxu0
        %v2166 = vadd.f32 %v1879, %v2165
        %2167 = vmatprep.mubr.f32.mxu0 %v527
        %2168 = vmatmul.mubr.f32.gmra.mrb[0].mxu0 %v526
        %v2169 = vpop.f32.mrb[0].mxu0
        %v2170 = vadd.f32 %v1883, %v2169
        %v2171 = vpop.f32.mrb[0].mxu0
        %v2172 = vadd.f32 %v1885, %v2171
        %2173 = vmatprep.mubr.f32.mxu0 %v538
        %2174 = vmatmul.mubr.f32.gmra.mrb[0].mxu0 %v537
        %v2175 = vpop.f32.mrb[0].mxu0
        %v2176 = vadd.f32 %v1889, %v2175
        %v2177 = vpop.f32.mrb[0].mxu0
        %v2178 = vadd.f32 %v1891, %v2177
        %2179 = vmatprep.mubr.f32.mxu0 %v549
        %2180 = vmatmul.mubr.f32.gmra.mrb[0].mxu0 %v548
        %v2181 = vpop.f32.mrb[0].mxu0
        %v2182 = vadd.f32 %v1895, %v2181
        %v2183 = vpop.f32.mrb[0].mxu0
        %v2184 = vadd.f32 %v1897, %v2183
        %2185 = vmatprep.mubr.f32.mxu0 %v560
        %2186 = vmatmul.mubr.f32.gmra.mrb[0].mxu0 %v559
        %v2187 = vpop.f32.mrb[0].mxu0
        %v2188 = vadd.f32 %v1901, %v2187
        %v2189 = vpop.f32.mrb[0].mxu0
        %v2190 = vadd.f32 %v1903, %v2189
        %2191 = vmatprep.mubr.f32.mxu0 %v571
        %2192 = vmatmul.mubr.f32.gmra.mrb[0].mxu0 %v570
        %v2193 = vpop.f32.mrb[0].mxu0
        %v2194 = vadd.f32 %v1907, %v2193
        %v2195 = vpop.f32.mrb[0].mxu0
        %v2196 = vadd.f32 %v1909, %v2195
        %2197 = vmatprep.mubr.f32.mxu0 %v582
        %2198 = vmatmul.mubr.f32.gmra.mrb[0].mxu0 %v581
        %v2199 = vpop.f32.mrb[0].mxu0
        %v2200 = vadd.f32 %v1913, %v2199
        %v2201 = vpop.f32.mrb[0].mxu0
        %v2202 = vadd.f32 %v1915, %v2201
        %2203 = vmatprep.mubr.f32.mxu0 %v593
        %2204 = vmatmul.mubr.f32.gmra.mrb[0].mxu0 %v592
        %v2205 = vpop.f32.mrb[0].mxu0
        %v2206 = vadd.f32 %v1919, %v2205
        %v2207 = vpop.f32.mrb[0].mxu0
        %v2208 = vadd.f32 %v1921, %v2207
        %2209 = vmatprep.mubr.f32.mxu0 %v604
        %2210 = vmatmul.mubr.f32.gmra.mrb[0].mxu0 %v603
        %v2211 = vpop.f32.mrb[0].mxu0
        %v2212 = vadd.f32 %v1925, %v2211
        %v2213 = vpop.f32.mrb[0].mxu0
        %v2214 = vadd.f32 %v1927, %v2213
        %2215 = vdwg.mxu0
        %2216 = vmatprep.subr.mxu0 %v865
        %2217 = vmatpush1.msra.mxu0 %v864
        %2218 = vmatprep.subr.mxu0 %v867
        %2219 = vmatpush1.msra.mxu0 %v866
        %2220 = vmatprep.subr.mxu0 %v869
        %2221 = vmatpush1.msra.mxu0 %v868
        %2222 = vmatprep.subr.mxu0 %v871
        %2223 = vmatpush1.msra.mxu0 %v870
        %2224 = vmatprep.subr.mxu0 %v873
        %2225 = vmatpush1.msra.mxu0 %v872
        %2226 = vmatprep.subr.mxu0 %v875
        %2227 = vmatpush1.msra.mxu0 %v874
        %2228 = vmatprep.subr.mxu0 %v877
        %2229 = vmatpush1.msra.mxu0 %v876
        %2230 = vmatprep.subr.mxu0 %v879
        %2231 = vmatpush1.msra.mxu0 %v878
        %2232 = vmatprep.subr.mxu0 %v881
        %2233 = vmatpush1.msra.mxu0 %v880
        %2234 = vmatprep.subr.mxu0 %v883
        %2235 = vmatpush1.msra.mxu0 %v882
        %2236 = vmatprep.subr.mxu0 %v885
        %2237 = vmatpush1.msra.mxu0 %v884
        %2238 = vmatprep.subr.mxu0 %v887
        %2239 = vmatpush1.msra.mxu0 %v886
        %2240 = vmatprep.subr.mxu0 %v889
        %2241 = vmatpush1.msra.mxu0 %v888
        %2242 = vmatprep.subr.mxu0 %v891
        %2243 = vmatpush1.msra.mxu0 %v890
        %2244 = vmatprep.subr.mxu0 %v893
        %2245 = vmatpush1.msra.mxu0 %v892
        %2246 = vmatprep.subr.mxu0 %v895
        %2247 = vmatpush1.msra.mxu0 %v894
        %2248 = vmatprep.subr.mxu0 %v897
        %2249 = vmatpush1.msra.mxu0 %v896
        %2250 = vmatprep.subr.mxu0 %v899
        %2251 = vmatpush1.msra.mxu0 %v898
        %2252 = vmatprep.subr.mxu0 %v901
        %2253 = vmatpush1.msra.mxu0 %v900
        %2254 = vmatprep.subr.mxu0 %v903
        %2255 = vmatpush1.msra.mxu0 %v902
        %2256 = vmatprep.subr.mxu0 %v905
        %2257 = vmatpush1.msra.mxu0 %v904
        %2258 = vmatprep.subr.mxu0 %v907
        %2259 = vmatpush1.msra.mxu0 %v906
        %2260 = vmatprep.subr.mxu0 %v909
        %2261 = vmatpush1.msra.mxu0 %v908
        %2262 = vmatprep.subr.mxu0 %v911
        %2263 = vmatpush1.msra.mxu0 %v910
        %2264 = vmatprep.subr.mxu0 %v913
        %2265 = vmatpush1.msra.mxu0 %v912
        %2266 = vmatprep.subr.mxu0 %v915
        %2267 = vmatpush1.msra.mxu0 %v914
        %2268 = vmatprep.subr.mxu0 %v917
        %2269 = vmatpush1.msra.mxu0 %v916
        %2270 = vmatprep.subr.mxu0 %v919
        %2271 = vmatpush1.msra.mxu0 %v918
        %2272 = vmatprep.subr.mxu0 %v921
        %2273 = vmatpush1.msra.mxu0 %v920
        %2274 = vmatprep.subr.mxu0 %v923
        %2275 = vmatpush1.msra.mxu0 %v922
        %2276 = vmatprep.subr.mxu0 %v925
        %2277 = vmatpush1.msra.mxu0 %v924
        %2278 = vmatprep.subr.mxu0 %v927
        %2279 = vmatpush1.msra.mxu0 %v926
        %2280 = vmatprep.mubr.f32.mxu0 %v210
        %2281 = vmatmul.mubr.f32.gmra.mrb[0].mxu0 %v209
        %v2282 = vpop.f32.mrb[0].mxu0
        %v2283 = vadd.f32 %v1996, %v2282
        %v2284 = vpop.f32.mrb[0].mxu0
        %v2285 = vadd.f32 %v1998, %v2284
        %2286 = vmatprep.mubr.f32.mxu0 %v221
        %2287 = vmatmul.mubr.f32.gmra.mrb[0].mxu0 %v220
        %v2288 = vpop.f32.mrb[0].mxu0
        %v2289 = vadd.f32 %v2002, %v2288
        %v2290 = vpop.f32.mrb[0].mxu0
        %v2291 = vadd.f32 %v2004, %v2290
        %2292 = vmatprep.mubr.f32.mxu0 %v232
        %2293 = vmatmul.mubr.f32.gmra.mrb[0].mxu0 %v231
        %v2294 = vpop.f32.mrb[0].mxu0
        %v2295 = vadd.f32 %v2008, %v2294
        %v2296 = vpop.f32.mrb[0].mxu0
        %v2297 = vadd.f32 %v2010, %v2296
        %2298 = vmatprep.mubr.f32.mxu0 %v243
        %2299 = vmatmul.mubr.f32.gmra.mrb[0].mxu0 %v242
        %v2300 = vpop.f32.mrb[0].mxu0
        %v2301 = vadd.f32 %v2014, %v2300
        %v2302 = vpop.f32.mrb[0].mxu0
        %v2303 = vadd.f32 %v2016, %v2302
        %2304 = vmatprep.mubr.f32.mxu0 %v254
        %2305 = vmatmul.mubr.f32.gmra.mrb[0].mxu0 %v253
        %v2306 = vpop.f32.mrb[0].mxu0
        %v2307 = vadd.f32 %v2020, %v2306
        %v2308 = vpop.f32.mrb[0].mxu0
        %v2309 = vadd.f32 %v2022, %v2308
        %2310 = vmatprep.mubr.f32.mxu0 %v265
        %2311 = vmatmul.mubr.f32.gmra.mrb[0].mxu0 %v264
        %v2312 = vpop.f32.mrb[0].mxu0
        %v2313 = vadd.f32 %v2026, %v2312
        %v2314 = vpop.f32.mrb[0].mxu0
        %v2315 = vadd.f32 %v2028, %v2314
        %2316 = vmatprep.mubr.f32.mxu0 %v276
        %2317 = vmatmul.mubr.f32.gmra.mrb[0].mxu0 %v275
        %v2318 = vpop.f32.mrb[0].mxu0
        %v2319 = vadd.f32 %v2032, %v2318
        %v2320 = vpop.f32.mrb[0].mxu0
        %v2321 = vadd.f32 %v2034, %v2320
        %2322 = vmatprep.mubr.f32.mxu0 %v287
        %2323 = vmatmul.mubr.f32.gmra.mrb[0].mxu0 %v286
        %v2324 = vpop.f32.mrb[0].mxu0
        %v2325 = vadd.f32 %v2038, %v2324
        %v2326 = vpop.f32.mrb[0].mxu0
        %v2327 = vadd.f32 %v2040, %v2326
        %2328 = vmatprep.mubr.f32.mxu0 %v298
        %2329 = vmatmul.mubr.f32.gmra.mrb[0].mxu0 %v297
        %v2330 = vpop.f32.mrb[0].mxu0
        %v2331 = vadd.f32 %v2044, %v2330
        %v2332 = vpop.f32.mrb[0].mxu0
        %v2333 = vadd.f32 %v2046, %v2332
        %2334 = vmatprep.mubr.f32.mxu0 %v309
        %2335 = vmatmul.mubr.f32.gmra.mrb[0].mxu0 %v308
        %v2336 = vpop.f32.mrb[0].mxu0
        %v2337 = vadd.f32 %v2050, %v2336
        %v2338 = vpop.f32.mrb[0].mxu0
        %v2339 = vadd.f32 %v2052, %v2338
        %2340 = vmatprep.mubr.f32.mxu0 %v320
        %2341 = vmatmul.mubr.f32.gmra.mrb[0].mxu0 %v319
        %v2342 = vpop.f32.mrb[0].mxu0
        %v2343 = vadd.f32 %v2056, %v2342
        %v2344 = vpop.f32.mrb[0].mxu0
        %v2345 = vadd.f32 %v2058, %v2344
        %2346 = vmatprep.mubr.f32.mxu0 %v331
        %2347 = vmatmul.mubr.f32.gmra.mrb[0].mxu0 %v330
        %v2348 = vpop.f32.mrb[0].mxu0
        %v2349 = vadd.f32 %v2062, %v2348
        %v2350 = vpop.f32.mrb[0].mxu0
        %v2351 = vadd.f32 %v2064, %v2350
        %2352 = vmatprep.mubr.f32.mxu0 %v342
        %2353 = vmatmul.mubr.f32.gmra.mrb[0].mxu0 %v341
        %v2354 = vpop.f32.mrb[0].mxu0
        %v2355 = vadd.f32 %v2068, %v2354
        %v2356 = vpop.f32.mrb[0].mxu0
        %v2357 = vadd.f32 %v2070, %v2356
        %2358 = vmatprep.mubr.f32.mxu0 %v353
        %2359 = vmatmul.mubr.f32.gmra.mrb[0].mxu0 %v352
        %v2360 = vpop.f32.mrb[0].mxu0
        %v2361 = vadd.f32 %v2074, %v2360
        %v2362 = vpop.f32.mrb[0].mxu0
        %v2363 = vadd.f32 %v2076, %v2362
        %2364 = vmatprep.mubr.f32.mxu0 %v364
        %2365 = vmatmul.mubr.f32.gmra.mrb[0].mxu0 %v363
        %v2366 = vpop.f32.mrb[0].mxu0
        %v2367 = vadd.f32 %v2080, %v2366
        %v2368 = vpop.f32.mrb[0].mxu0
        %v2369 = vadd.f32 %v2082, %v2368
        %2370 = vmatprep.mubr.f32.mxu0 %v375
        %2371 = vmatmul.mubr.f32.gmra.mrb[0].mxu0 %v374
        %v2372 = vpop.f32.mrb[0].mxu0
        %v2373 = vadd.f32 %v2086, %v2372
        %v2374 = vpop.f32.mrb[0].mxu0
        %v2375 = vadd.f32 %v2088, %v2374
        %2376 = vmatprep.mubr.f32.mxu0 %v386
        %2377 = vmatmul.mubr.f32.gmra.mrb[0].mxu0 %v385
        %v2378 = vpop.f32.mrb[0].mxu0
        %v2379 = vadd.f32 %v2092, %v2378
        %v2380 = vpop.f32.mrb[0].mxu0
        %v2381 = vadd.f32 %v2094, %v2380
        %2382 = vmatprep.mubr.f32.mxu0 %v397
        %2383 = vmatmul.mubr.f32.gmra.mrb[0].mxu0 %v396
        %v2384 = vpop.f32.mrb[0].mxu0
        %v2385 = vadd.f32 %v2098, %v2384
        %v2386 = vpop.f32.mrb[0].mxu0
        %v2387 = vadd.f32 %v2100, %v2386
        %2388 = vmatprep.mubr.f32.mxu0 %v408
        %2389 = vmatmul.mubr.f32.gmra.mrb[0].mxu0 %v407
        %v2390 = vpop.f32.mrb[0].mxu0
        %v2391 = vadd.f32 %v2104, %v2390
        %v2392 = vpop.f32.mrb[0].mxu0
        %v2393 = vadd.f32 %v2106, %v2392
        %2394 = vmatprep.mubr.f32.mxu0 %v419
        %2395 = vmatmul.mubr.f32.gmra.mrb[0].mxu0 %v418
        %v2396 = vpop.f32.mrb[0].mxu0
        %v2397 = vadd.f32 %v2110, %v2396
        %v2398 = vpop.f32.mrb[0].mxu0
        %v2399 = vadd.f32 %v2112, %v2398
        %2400 = vmatprep.mubr.f32.mxu0 %v430
        %2401 = vmatmul.mubr.f32.gmra.mrb[0].mxu0 %v429
        %v2402 = vpop.f32.mrb[0].mxu0
        %v2403 = vadd.f32 %v2116, %v2402
        %v2404 = vpop.f32.mrb[0].mxu0
        %v2405 = vadd.f32 %v2118, %v2404
        %2406 = vmatprep.mubr.f32.mxu0 %v441
        %2407 = vmatmul.mubr.f32.gmra.mrb[0].mxu0 %v440
        %v2408 = vpop.f32.mrb[0].mxu0
        %v2409 = vadd.f32 %v2122, %v2408
        %v2410 = vpop.f32.mrb[0].mxu0
        %v2411 = vadd.f32 %v2124, %v2410
        %2412 = vmatprep.mubr.f32.mxu0 %v452
        %2413 = vmatmul.mubr.f32.gmra.mrb[0].mxu0 %v451
        %v2414 = vpop.f32.mrb[0].mxu0
        %v2415 = vadd.f32 %v2128, %v2414
        %v2416 = vpop.f32.mrb[0].mxu0
        %v2417 = vadd.f32 %v2130, %v2416
        %2418 = vmatprep.mubr.f32.mxu0 %v463
        %2419 = vmatmul.mubr.f32.gmra.mrb[0].mxu0 %v462
        %v2420 = vpop.f32.mrb[0].mxu0
        %v2421 = vadd.f32 %v2134, %v2420
        %v2422 = vpop.f32.mrb[0].mxu0
        %v2423 = vadd.f32 %v2136, %v2422
        %2424 = vmatprep.mubr.f32.mxu0 %v474
        %2425 = vmatmul.mubr.f32.gmra.mrb[0].mxu0 %v473
        %v2426 = vpop.f32.mrb[0].mxu0
        %v2427 = vadd.f32 %v2140, %v2426
        %v2428 = vpop.f32.mrb[0].mxu0
        %v2429 = vadd.f32 %v2142, %v2428
        %2430 = vmatprep.mubr.f32.mxu0 %v485
        %2431 = vmatmul.mubr.f32.gmra.mrb[0].mxu0 %v484
        %v2432 = vpop.f32.mrb[0].mxu0
        %v2433 = vadd.f32 %v2146, %v2432
        %v2434 = vpop.f32.mrb[0].mxu0
        %v2435 = vadd.f32 %v2148, %v2434
        %2436 = vmatprep.mubr.f32.mxu0 %v496
        %2437 = vmatmul.mubr.f32.gmra.mrb[0].mxu0 %v495
        %v2438 = vpop.f32.mrb[0].mxu0
        %v2439 = vadd.f32 %v2152, %v2438
        %v2440 = vpop.f32.mrb[0].mxu0
        %v2441 = vadd.f32 %v2154, %v2440
        %2442 = vmatprep.mubr.f32.mxu0 %v507
        %2443 = vmatmul.mubr.f32.gmra.mrb[0].mxu0 %v506
        %v2444 = vpop.f32.mrb[0].mxu0
        %v2445 = vadd.f32 %v2158, %v2444
        %v2446 = vpop.f32.mrb[0].mxu0
        %v2447 = vadd.f32 %v2160, %v2446
        %2448 = vmatprep.mubr.f32.mxu0 %v518
        %2449 = vmatmul.mubr.f32.gmra.mrb[0].mxu0 %v517
        %v2450 = vpop.f32.mrb[0].mxu0
        %v2451 = vadd.f32 %v2164, %v2450
        %v2452 = vpop.f32.mrb[0].mxu0
        %v2453 = vadd.f32 %v2166, %v2452
        %2454 = vmatprep.mubr.f32.mxu0 %v529
        %2455 = vmatmul.mubr.f32.gmra.mrb[0].mxu0 %v528
        %v2456 = vpop.f32.mrb[0].mxu0
        %v2457 = vadd.f32 %v2170, %v2456
        %v2458 = vpop.f32.mrb[0].mxu0
        %v2459 = vadd.f32 %v2172, %v2458
        %2460 = vmatprep.mubr.f32.mxu0 %v540
        %2461 = vmatmul.mubr.f32.gmra.mrb[0].mxu0 %v539
        %v2462 = vpop.f32.mrb[0].mxu0
        %v2463 = vadd.f32 %v2176, %v2462
        %v2464 = vpop.f32.mrb[0].mxu0
        %v2465 = vadd.f32 %v2178, %v2464
        %2466 = vmatprep.mubr.f32.mxu0 %v551
        %2467 = vmatmul.mubr.f32.gmra.mrb[0].mxu0 %v550
        %v2468 = vpop.f32.mrb[0].mxu0
        %v2469 = vadd.f32 %v2182, %v2468
        %v2470 = vpop.f32.mrb[0].mxu0
        %v2471 = vadd.f32 %v2184, %v2470
        %2472 = vmatprep.mubr.f32.mxu0 %v562
        %2473 = vmatmul.mubr.f32.gmra.mrb[0].mxu0 %v561
        %v2474 = vpop.f32.mrb[0].mxu0
        %v2475 = vadd.f32 %v2188, %v2474
        %v2476 = vpop.f32.mrb[0].mxu0
        %v2477 = vadd.f32 %v2190, %v2476
        %2478 = vmatprep.mubr.f32.mxu0 %v573
        %2479 = vmatmul.mubr.f32.gmra.mrb[0].mxu0 %v572
        %v2480 = vpop.f32.mrb[0].mxu0
        %v2481 = vadd.f32 %v2194, %v2480
        %v2482 = vpop.f32.mrb[0].mxu0
        %v2483 = vadd.f32 %v2196, %v2482
        %2484 = vmatprep.mubr.f32.mxu0 %v584
        %2485 = vmatmul.mubr.f32.gmra.mrb[0].mxu0 %v583
        %v2486 = vpop.f32.mrb[0].mxu0
        %v2487 = vadd.f32 %v2200, %v2486
        %v2488 = vpop.f32.mrb[0].mxu0
        %v2489 = vadd.f32 %v2202, %v2488
        %2490 = vmatprep.mubr.f32.mxu0 %v595
        %2491 = vmatmul.mubr.f32.gmra.mrb[0].mxu0 %v594
        %v2492 = vpop.f32.mrb[0].mxu0
        %v2493 = vadd.f32 %v2206, %v2492
        %v2494 = vpop.f32.mrb[0].mxu0
        %v2495 = vadd.f32 %v2208, %v2494
        %2496 = vmatprep.mubr.f32.mxu0 %v606
        %2497 = vmatmul.mubr.f32.gmra.mrb[0].mxu0 %v605
        %v2498 = vpop.f32.mrb[0].mxu0
        %v2499 = vadd.f32 %v2212, %v2498
        %v2500 = vpop.f32.mrb[0].mxu0
        %v2501 = vadd.f32 %v2214, %v2500
        %2502 = vdwg.mxu0
        %2503 = vmatprep.subr.mxu0 %v929
        %2504 = vmatpush1.msra.mxu0 %v928
        %2505 = vmatprep.subr.mxu0 %v931
        %2506 = vmatpush1.msra.mxu0 %v930
        %2507 = vmatprep.subr.mxu0 %v933
        %2508 = vmatpush1.msra.mxu0 %v932
        %2509 = vmatprep.subr.mxu0 %v935
        %2510 = vmatpush1.msra.mxu0 %v934
        %2511 = vmatprep.subr.mxu0 %v937
        %2512 = vmatpush1.msra.mxu0 %v936
        %2513 = vmatprep.subr.mxu0 %v939
        %2514 = vmatpush1.msra.mxu0 %v938
        %2515 = vmatprep.subr.mxu0 %v941
        %2516 = vmatpush1.msra.mxu0 %v940
        %2517 = vmatprep.subr.mxu0 %v943
        %2518 = vmatpush1.msra.mxu0 %v942
        %2519 = vmatprep.subr.mxu0 0.0
        %2520 = vmatpush1.msra.mxu0 0.0
        %2521 = vmatprep.subr.mxu0 0.0
        %2522 = vmatpush1.msra.mxu0 0.0
        %2523 = vmatprep.subr.mxu0 0.0
        %2524 = vmatpush1.msra.mxu0 0.0
        %2525 = vmatprep.subr.mxu0 0.0
        %2526 = vmatpush1.msra.mxu0 0.0
        %2527 = vmatprep.subr.mxu0 0.0
        %2528 = vmatpush1.msra.mxu0 0.0
        %2529 = vmatprep.subr.mxu0 0.0
        %2530 = vmatpush1.msra.mxu0 0.0
        %2531 = vmatprep.subr.mxu0 0.0
        %2532 = vmatpush1.msra.mxu0 0.0
        %2533 = vmatprep.subr.mxu0 0.0
        %2534 = vmatpush1.msra.mxu0 0.0
        %2535 = vmatprep.subr.mxu0 0.0
        %2536 = vmatpush1.msra.mxu0 0.0
        %2537 = vmatprep.subr.mxu0 0.0
        %2538 = vmatpush1.msra.mxu0 0.0
        %2539 = vmatprep.subr.mxu0 0.0
        %2540 = vmatpush1.msra.mxu0 0.0
        %2541 = vmatprep.subr.mxu0 0.0
        %2542 = vmatpush1.msra.mxu0 0.0
        %2543 = vmatprep.subr.mxu0 0.0
        %2544 = vmatpush1.msra.mxu0 0.0
        %2545 = vmatprep.subr.mxu0 0.0
        %2546 = vmatpush1.msra.mxu0 0.0
        %2547 = vmatprep.subr.mxu0 0.0
        %2548 = vmatpush1.msra.mxu0 0.0
        %2549 = vmatprep.subr.mxu0 0.0
        %2550 = vmatpush1.msra.mxu0 0.0
        %2551 = vmatprep.subr.mxu0 0.0
        %2552 = vmatpush1.msra.mxu0 0.0
        %2553 = vmatprep.subr.mxu0 0.0
        %2554 = vmatpush1.msra.mxu0 0.0
        %2555 = vmatprep.subr.mxu0 0.0
        %2556 = vmatpush1.msra.mxu0 0.0
        %2557 = vmatprep.subr.mxu0 0.0
        %2558 = vmatpush1.msra.mxu0 0.0
        %2559 = vmatprep.subr.mxu0 0.0
        %2560 = vmatpush1.msra.mxu0 0.0
        %2561 = vmatprep.subr.mxu0 0.0
        %2562 = vmatpush1.msra.mxu0 0.0
        %2563 = vmatprep.subr.mxu0 0.0
        %2564 = vmatpush1.msra.mxu0 0.0
        %2565 = vmatprep.subr.mxu0 0.0
        %2566 = vmatpush1.msra.mxu0 0.0
        %2567 = vmatprep.mubr.f32.mxu0 0.0
        %2568 = vmatmul.mubr.f32.gmra.mrb[0].mxu0 %v958
        %v2569 = vpop.f32.mrb[0].mxu0
        %v2570 = vadd.f32 %v2283, %v2569
        %v2571 = vpop.f32.mrb[0].mxu0
        %v2572 = vadd.f32 %v2285, %v2571
        %2573 = vmatprep.mubr.f32.mxu0 0.0
        %2574 = vmatmul.mubr.f32.gmra.mrb[0].mxu0 %v961
        %v2575 = vpop.f32.mrb[0].mxu0
        %v2576 = vadd.f32 %v2289, %v2575
        %v2577 = vpop.f32.mrb[0].mxu0
        %v2578 = vadd.f32 %v2291, %v2577
        %2579 = vmatprep.mubr.f32.mxu0 0.0
        %2580 = vmatmul.mubr.f32.gmra.mrb[0].mxu0 %v964
        %v2581 = vpop.f32.mrb[0].mxu0
        %v2582 = vadd.f32 %v2295, %v2581
        %v2583 = vpop.f32.mrb[0].mxu0
        %v2584 = vadd.f32 %v2297, %v2583
        %2585 = vmatprep.mubr.f32.mxu0 0.0
        %2586 = vmatmul.mubr.f32.gmra.mrb[0].mxu0 %v967
        %v2587 = vpop.f32.mrb[0].mxu0
        %v2588 = vadd.f32 %v2301, %v2587
        %v2589 = vpop.f32.mrb[0].mxu0
        %v2590 = vadd.f32 %v2303, %v2589
        %2591 = vmatprep.mubr.f32.mxu0 0.0
        %2592 = vmatmul.mubr.f32.gmra.mrb[0].mxu0 %v970
        %v2593 = vpop.f32.mrb[0].mxu0
        %v2594 = vadd.f32 %v2307, %v2593
        %v2595 = vpop.f32.mrb[0].mxu0
        %v2596 = vadd.f32 %v2309, %v2595
        %2597 = vmatprep.mubr.f32.mxu0 0.0
        %2598 = vmatmul.mubr.f32.gmra.mrb[0].mxu0 %v973
        %v2599 = vpop.f32.mrb[0].mxu0
        %v2600 = vadd.f32 %v2313, %v2599
        %v2601 = vpop.f32.mrb[0].mxu0
        %v2602 = vadd.f32 %v2315, %v2601
        %2603 = vmatprep.mubr.f32.mxu0 0.0
        %2604 = vmatmul.mubr.f32.gmra.mrb[0].mxu0 %v976
        %v2605 = vpop.f32.mrb[0].mxu0
        %v2606 = vadd.f32 %v2319, %v2605
        %v2607 = vpop.f32.mrb[0].mxu0
        %v2608 = vadd.f32 %v2321, %v2607
        %2609 = vmatprep.mubr.f32.mxu0 0.0
        %2610 = vmatmul.mubr.f32.gmra.mrb[0].mxu0 %v979
        %v2611 = vpop.f32.mrb[0].mxu0
        %v2612 = vadd.f32 %v2325, %v2611
        %v2613 = vpop.f32.mrb[0].mxu0
        %v2614 = vadd.f32 %v2327, %v2613
        %2615 = vmatprep.mubr.f32.mxu0 0.0
        %2616 = vmatmul.mubr.f32.gmra.mrb[0].mxu0 %v982
        %v2617 = vpop.f32.mrb[0].mxu0
        %v2618 = vadd.f32 %v2331, %v2617
        %v2619 = vpop.f32.mrb[0].mxu0
        %v2620 = vadd.f32 %v2333, %v2619
        %2621 = vmatprep.mubr.f32.mxu0 0.0
        %2622 = vmatmul.mubr.f32.gmra.mrb[0].mxu0 %v985
        %v2623 = vpop.f32.mrb[0].mxu0
        %v2624 = vadd.f32 %v2337, %v2623
        %v2625 = vpop.f32.mrb[0].mxu0
        %v2626 = vadd.f32 %v2339, %v2625
        %2627 = vmatprep.mubr.f32.mxu0 0.0
        %2628 = vmatmul.mubr.f32.gmra.mrb[0].mxu0 %v988
        %v2629 = vpop.f32.mrb[0].mxu0
        %v2630 = vadd.f32 %v2343, %v2629
        %v2631 = vpop.f32.mrb[0].mxu0
        %v2632 = vadd.f32 %v2345, %v2631
        %2633 = vmatprep.mubr.f32.mxu0 0.0
        %2634 = vmatmul.mubr.f32.gmra.mrb[0].mxu0 %v991
        %v2635 = vpop.f32.mrb[0].mxu0
        %v2636 = vadd.f32 %v2349, %v2635
        %v2637 = vpop.f32.mrb[0].mxu0
        %v2638 = vadd.f32 %v2351, %v2637
        %2639 = vmatprep.mubr.f32.mxu0 0.0
        %2640 = vmatmul.mubr.f32.gmra.mrb[0].mxu0 %v994
        %v2641 = vpop.f32.mrb[0].mxu0
        %v2642 = vadd.f32 %v2355, %v2641
        %v2643 = vpop.f32.mrb[0].mxu0
        %v2644 = vadd.f32 %v2357, %v2643
        %2645 = vmatprep.mubr.f32.mxu0 0.0
        %2646 = vmatmul.mubr.f32.gmra.mrb[0].mxu0 %v997
        %v2647 = vpop.f32.mrb[0].mxu0
        %v2648 = vadd.f32 %v2361, %v2647
        %v2649 = vpop.f32.mrb[0].mxu0
        %v2650 = vadd.f32 %v2363, %v2649
        %2651 = vmatprep.mubr.f32.mxu0 0.0
        %2652 = vmatmul.mubr.f32.gmra.mrb[0].mxu0 %v1000
        %v2653 = vpop.f32.mrb[0].mxu0
        %v2654 = vadd.f32 %v2367, %v2653
        %v2655 = vpop.f32.mrb[0].mxu0
        %v2656 = vadd.f32 %v2369, %v2655
        %2657 = vmatprep.mubr.f32.mxu0 0.0
        %2658 = vmatmul.mubr.f32.gmra.mrb[0].mxu0 %v1003
        %v2659 = vpop.f32.mrb[0].mxu0
        %v2660 = vadd.f32 %v2373, %v2659
        %v2661 = vpop.f32.mrb[0].mxu0
        %v2662 = vadd.f32 %v2375, %v2661
        %2663 = vmatprep.mubr.f32.mxu0 0.0
        %2664 = vmatmul.mubr.f32.gmra.mrb[0].mxu0 %v1006
        %v2665 = vpop.f32.mrb[0].mxu0
        %v2666 = vadd.f32 %v2379, %v2665
        %v2667 = vpop.f32.mrb[0].mxu0
        %v2668 = vadd.f32 %v2381, %v2667
        %2669 = vmatprep.mubr.f32.mxu0 0.0
        %2670 = vmatmul.mubr.f32.gmra.mrb[0].mxu0 %v1009
        %v2671 = vpop.f32.mrb[0].mxu0
        %v2672 = vadd.f32 %v2385, %v2671
        %v2673 = vpop.f32.mrb[0].mxu0
        %v2674 = vadd.f32 %v2387, %v2673
        %2675 = vmatprep.mubr.f32.mxu0 0.0
        %2676 = vmatmul.mubr.f32.gmra.mrb[0].mxu0 %v1012
        %v2677 = vpop.f32.mrb[0].mxu0
        %v2678 = vadd.f32 %v2391, %v2677
        %v2679 = vpop.f32.mrb[0].mxu0
        %v2680 = vadd.f32 %v2393, %v2679
        %2681 = vmatprep.mubr.f32.mxu0 0.0
        %2682 = vmatmul.mubr.f32.gmra.mrb[0].mxu0 %v1015
        %v2683 = vpop.f32.mrb[0].mxu0
        %v2684 = vadd.f32 %v2397, %v2683
        %v2685 = vpop.f32.mrb[0].mxu0
        %v2686 = vadd.f32 %v2399, %v2685
        %2687 = vmatprep.mubr.f32.mxu0 0.0
        %2688 = vmatmul.mubr.f32.gmra.mrb[0].mxu0 %v1018
        %v2689 = vpop.f32.mrb[0].mxu0
        %v2690 = vadd.f32 %v2403, %v2689
        %v2691 = vpop.f32.mrb[0].mxu0
        %v2692 = vadd.f32 %v2405, %v2691
        %2693 = vmatprep.mubr.f32.mxu0 0.0
        %2694 = vmatmul.mubr.f32.gmra.mrb[0].mxu0 %v1021
        %v2695 = vpop.f32.mrb[0].mxu0
        %v2696 = vadd.f32 %v2409, %v2695
        %v2697 = vpop.f32.mrb[0].mxu0
        %v2698 = vadd.f32 %v2411, %v2697
        %2699 = vmatprep.mubr.f32.mxu0 0.0
        %2700 = vmatmul.mubr.f32.gmra.mrb[0].mxu0 %v1024
        %v2701 = vpop.f32.mrb[0].mxu0
        %v2702 = vadd.f32 %v2415, %v2701
        %v2703 = vpop.f32.mrb[0].mxu0
        %v2704 = vadd.f32 %v2417, %v2703
        %2705 = vmatprep.mubr.f32.mxu0 0.0
        %2706 = vmatmul.mubr.f32.gmra.mrb[0].mxu0 %v1027
        %v2707 = vpop.f32.mrb[0].mxu0
        %v2708 = vadd.f32 %v2421, %v2707
        %v2709 = vpop.f32.mrb[0].mxu0
        %v2710 = vadd.f32 %v2423, %v2709
        %2711 = vmatprep.mubr.f32.mxu0 0.0
        %2712 = vmatmul.mubr.f32.gmra.mrb[0].mxu0 %v1030
        %v2713 = vpop.f32.mrb[0].mxu0
        %v2714 = vadd.f32 %v2427, %v2713
        %v2715 = vpop.f32.mrb[0].mxu0
        %v2716 = vadd.f32 %v2429, %v2715
        %2717 = vmatprep.mubr.f32.mxu0 0.0
        %2718 = vmatmul.mubr.f32.gmra.mrb[0].mxu0 %v1033
        %v2719 = vpop.f32.mrb[0].mxu0
        %v2720 = vadd.f32 %v2433, %v2719
        %v2721 = vpop.f32.mrb[0].mxu0
        %v2722 = vadd.f32 %v2435, %v2721
        %2723 = vmatprep.mubr.f32.mxu0 0.0
        %2724 = vmatmul.mubr.f32.gmra.mrb[0].mxu0 %v1036
        %v2725 = vpop.f32.mrb[0].mxu0
        %v2726 = vadd.f32 %v2439, %v2725
        %v2727 = vpop.f32.mrb[0].mxu0
        %v2728 = vadd.f32 %v2441, %v2727
        %2729 = vmatprep.mubr.f32.mxu0 0.0
        %2730 = vmatmul.mubr.f32.gmra.mrb[0].mxu0 %v1039
        %v2731 = vpop.f32.mrb[0].mxu0
        %v2732 = vadd.f32 %v2445, %v2731
        %v2733 = vpop.f32.mrb[0].mxu0
        %v2734 = vadd.f32 %v2447, %v2733
        %2735 = vmatprep.mubr.f32.mxu0 0.0
        %2736 = vmatmul.mubr.f32.gmra.mrb[0].mxu0 %v1042
        %v2737 = vpop.f32.mrb[0].mxu0
        %v2738 = vadd.f32 %v2451, %v2737
        %v2739 = vpop.f32.mrb[0].mxu0
        %v2740 = vadd.f32 %v2453, %v2739
        %2741 = vmatprep.mubr.f32.mxu0 0.0
        %2742 = vmatmul.mubr.f32.gmra.mrb[0].mxu0 %v1045
        %v2743 = vpop.f32.mrb[0].mxu0
        %v2744 = vadd.f32 %v2457, %v2743
        %v2745 = vpop.f32.mrb[0].mxu0
        %v2746 = vadd.f32 %v2459, %v2745
        %2747 = vmatprep.mubr.f32.mxu0 0.0
        %2748 = vmatmul.mubr.f32.gmra.mrb[0].mxu0 %v1048
        %v2749 = vpop.f32.mrb[0].mxu0
        %v2750 = vadd.f32 %v2463, %v2749
        %v2751 = vpop.f32.mrb[0].mxu0
        %v2752 = vadd.f32 %v2465, %v2751
        %2753 = vmatprep.mubr.f32.mxu0 0.0
        %2754 = vmatmul.mubr.f32.gmra.mrb[0].mxu0 %v1051
        %v2755 = vpop.f32.mrb[0].mxu0
        %v2756 = vadd.f32 %v2469, %v2755
        %v2757 = vpop.f32.mrb[0].mxu0
        %v2758 = vadd.f32 %v2471, %v2757
        %2759 = vmatprep.mubr.f32.mxu0 0.0
        %2760 = vmatmul.mubr.f32.gmra.mrb[0].mxu0 %v1054
        %v2761 = vpop.f32.mrb[0].mxu0
        %v2762 = vadd.f32 %v2475, %v2761
        %v2763 = vpop.f32.mrb[0].mxu0
        %v2764 = vadd.f32 %v2477, %v2763
        %2765 = vmatprep.mubr.f32.mxu0 0.0
        %2766 = vmatmul.mubr.f32.gmra.mrb[0].mxu0 %v1057
        %v2767 = vpop.f32.mrb[0].mxu0
        %v2768 = vadd.f32 %v2481, %v2767
        %v2769 = vpop.f32.mrb[0].mxu0
        %v2770 = vadd.f32 %v2483, %v2769
        %2771 = vmatprep.mubr.f32.mxu0 0.0
        %2772 = vmatmul.mubr.f32.gmra.mrb[0].mxu0 %v1060
        %v2773 = vpop.f32.mrb[0].mxu0
        %v2774 = vadd.f32 %v2487, %v2773
        %v2775 = vpop.f32.mrb[0].mxu0
        %v2776 = vadd.f32 %v2489, %v2775
        %2777 = vmatprep.mubr.f32.mxu0 0.0
        %2778 = vmatmul.mubr.f32.gmra.mrb[0].mxu0 %v1063
        %v2779 = vpop.f32.mrb[0].mxu0
        %v2780 = vadd.f32 %v2493, %v2779
        %v2781 = vpop.f32.mrb[0].mxu0
        %v2782 = vadd.f32 %v2495, %v2781
        %2783 = vmatprep.mubr.f32.mxu0 0.0
        %2784 = vmatmul.mubr.f32.gmra.mrb[0].mxu0 %v1066
        %v2785 = vpop.f32.mrb[0].mxu0
        %v2786 = vadd.f32 %v2499, %v2785
        %v2787 = vpop.f32.mrb[0].mxu0
        %v2788 = vadd.f32 %v2501, %v2787
        %2789 = vdwg.mxu0
        %v2790 = vmax.f32 %v2570, 0.0
        %v2791 = vmax.f32 %v2572, 0.0
        %v2792 = vmax.f32 %v2576, 0.0
        %v2793 = vmax.f32 %v2578, 0.0
        %v2794 = vmax.f32 %v2582, 0.0
        %v2795 = vmax.f32 %v2584, 0.0
        %v2796 = vmax.f32 %v2588, 0.0
        %v2797 = vmax.f32 %v2590, 0.0
        %v2798 = vmax.f32 %v2594, 0.0
        %v2799 = vmax.f32 %v2596, 0.0
        %v2800 = vmax.f32 %v2600, 0.0
        %v2801 = vmax.f32 %v2602, 0.0
        %v2802 = vmax.f32 %v2606, 0.0
        %v2803 = vmax.f32 %v2608, 0.0
        %v2804 = vmax.f32 %v2612, 0.0
        %v2805 = vmax.f32 %v2614, 0.0
        %v2806 = vmax.f32 %v2618, 0.0
        %v2807 = vmax.f32 %v2620, 0.0
        %v2808 = vmax.f32 %v2624, 0.0
        %v2809 = vmax.f32 %v2626, 0.0
        %v2810 = vmax.f32 %v2630, 0.0
        %v2811 = vmax.f32 %v2632, 0.0
        %v2812 = vmax.f32 %v2636, 0.0
        %v2813 = vmax.f32 %v2638, 0.0
        %v2814 = vmax.f32 %v2642, 0.0
        %v2815 = vmax.f32 %v2644, 0.0
        %v2816 = vmax.f32 %v2648, 0.0
        %v2817 = vmax.f32 %v2650, 0.0
        %v2818 = vmax.f32 %v2654, 0.0
        %v2819 = vmax.f32 %v2656, 0.0
        %v2820 = vmax.f32 %v2660, 0.0
        %v2821 = vmax.f32 %v2662, 0.0
        %v2822 = vmax.f32 %v2666, 0.0
        %v2823 = vmax.f32 %v2668, 0.0
        %v2824 = vmax.f32 %v2672, 0.0
        %v2825 = vmax.f32 %v2674, 0.0
        %v2826 = vmax.f32 %v2678, 0.0
        %v2827 = vmax.f32 %v2680, 0.0
        %v2828 = vmax.f32 %v2684, 0.0
        %v2829 = vmax.f32 %v2686, 0.0
        %v2830 = vmax.f32 %v2690, 0.0
        %v2831 = vmax.f32 %v2692, 0.0
        %v2832 = vmax.f32 %v2696, 0.0
        %v2833 = vmax.f32 %v2698, 0.0
        %v2834 = vmax.f32 %v2702, 0.0
        %v2835 = vmax.f32 %v2704, 0.0
        %v2836 = vmax.f32 %v2708, 0.0
        %v2837 = vmax.f32 %v2710, 0.0
        %v2838 = vmax.f32 %v2714, 0.0
        %v2839 = vmax.f32 %v2716, 0.0
        %v2840 = vmax.f32 %v2720, 0.0
        %v2841 = vmax.f32 %v2722, 0.0
        %v2842 = vmax.f32 %v2726, 0.0
        %v2843 = vmax.f32 %v2728, 0.0
        %v2844 = vmax.f32 %v2732, 0.0
        %v2845 = vmax.f32 %v2734, 0.0
        %v2846 = vmax.f32 %v2738, 0.0
        %v2847 = vmax.f32 %v2740, 0.0
        %v2848 = vmax.f32 %v2744, 0.0
        %v2849 = vmax.f32 %v2746, 0.0
        %v2850 = vmax.f32 %v2750, 0.0
        %v2851 = vmax.f32 %v2752, 0.0
        %v2852 = vmax.f32 %v2756, 0.0
        %v2853 = vmax.f32 %v2758, 0.0
        %v2854 = vmax.f32 %v2762, 0.0
        %v2855 = vmax.f32 %v2764, 0.0
        %v2856 = vmax.f32 %v2768, 0.0
        %v2857 = vmax.f32 %v2770, 0.0
        %v2858 = vmax.f32 %v2774, 0.0
        %v2859 = vmax.f32 %v2776, 0.0
        %v2860 = vmax.f32 %v2780, 0.0
        %v2861 = vmax.f32 %v2782, 0.0
        %v2862 = vmax.f32 %v2786, 0.0
        %v2863 = vmax.f32 %v2788, 0.0
        %2864 = vst [vmem:[%s177] sm:$0xff] %v2790
        %2865 = vst.msk [vmem:[%s177 + $0x8] sm:$0xff] %vm956, %v2791
        %2866 = vst [vmem:[%s177 + $0x10] sm:$0xff] %v2792
        %2867 = vst.msk [vmem:[%s177 + $0x18] sm:$0xff] %vm956, %v2793
        %2868 = vst [vmem:[%s177 + $0x20] sm:$0xff] %v2794
        %2869 = vst.msk [vmem:[%s177 + $0x28] sm:$0xff] %vm956, %v2795
        %2870 = vst [vmem:[%s177 + $0x30] sm:$0xff] %v2796
        %2871 = vst.msk [vmem:[%s177 + $0x38] sm:$0xff] %vm956, %v2797
        %2872 = vst [vmem:[%s177 + $0x40] sm:$0xff] %v2798
        %2873 = vst.msk [vmem:[%s177 + $0x48] sm:$0xff] %vm956, %v2799
        %2874 = vst [vmem:[%s177 + $0x50] sm:$0xff] %v2800
        %2875 = vst.msk [vmem:[%s177 + $0x58] sm:$0xff] %vm956, %v2801
        %2876 = vst [vmem:[%s177 + $0x60] sm:$0xff] %v2802
        %2877 = vst.msk [vmem:[%s177 + $0x68] sm:$0xff] %vm956, %v2803
        %2878 = vst [vmem:[%s177 + $0x70] sm:$0xff] %v2804
        %2879 = vst.msk [vmem:[%s177 + $0x78] sm:$0xff] %vm956, %v2805
        %2880 = vst [vmem:[%s177 + $0x80] sm:$0xff] %v2806
        %2881 = vst.msk [vmem:[%s177 + $0x88] sm:$0xff] %vm956, %v2807
        %2882 = vst [vmem:[%s177 + $0x90] sm:$0xff] %v2808
        %2883 = vst.msk [vmem:[%s177 + $0x98] sm:$0xff] %vm956, %v2809
        %2884 = vst [vmem:[%s177 + $0xa0] sm:$0xff] %v2810
        %2885 = vst.msk [vmem:[%s177 + $0xa8] sm:$0xff] %vm956, %v2811
        %2886 = vst [vmem:[%s177 + $0xb0] sm:$0xff] %v2812
        %2887 = vst.msk [vmem:[%s177 + $0xb8] sm:$0xff] %vm956, %v2813
        %2888 = vst [vmem:[%s177 + $0xc0] sm:$0xff] %v2814
        %2889 = vst.msk [vmem:[%s177 + $0xc8] sm:$0xff] %vm956, %v2815
        %2890 = vst [vmem:[%s177 + $0xd0] sm:$0xff] %v2816
        %2891 = vst.msk [vmem:[%s177 + $0xd8] sm:$0xff] %vm956, %v2817
        %2892 = vst [vmem:[%s177 + $0xe0] sm:$0xff] %v2818
        %2893 = vst.msk [vmem:[%s177 + $0xe8] sm:$0xff] %vm956, %v2819
        %2894 = vst [vmem:[%s177 + $0xf0] sm:$0xff] %v2820
        %2895 = vst.msk [vmem:[%s177 + $0xf8] sm:$0xff] %vm956, %v2821
        %2896 = vst [vmem:[%s177 + $0x100] sm:$0xff] %v2822
        %2897 = vst.msk [vmem:[%s177 + $0x108] sm:$0xff] %vm956, %v2823
        %2898 = vst [vmem:[%s177 + $0x110] sm:$0xff] %v2824
        %2899 = vst.msk [vmem:[%s177 + $0x118] sm:$0xff] %vm956, %v2825
        %2900 = vst [vmem:[%s177 + $0x120] sm:$0xff] %v2826
        %2901 = vst.msk [vmem:[%s177 + $0x128] sm:$0xff] %vm956, %v2827
        %2902 = vst [vmem:[%s177 + $0x130] sm:$0xff] %v2828
        %2903 = vst.msk [vmem:[%s177 + $0x138] sm:$0xff] %vm956, %v2829
        %2904 = vst [vmem:[%s177 + $0x140] sm:$0xff] %v2830
        %2905 = vst.msk [vmem:[%s177 + $0x148] sm:$0xff] %vm956, %v2831
        %2906 = vst [vmem:[%s177 + $0x150] sm:$0xff] %v2832
        %2907 = vst.msk [vmem:[%s177 + $0x158] sm:$0xff] %vm956, %v2833
        %2908 = vst [vmem:[%s177 + $0x160] sm:$0xff] %v2834
        %2909 = vst.msk [vmem:[%s177 + $0x168] sm:$0xff] %vm956, %v2835
        %2910 = vst [vmem:[%s177 + $0x170] sm:$0xff] %v2836
        %2911 = vst.msk [vmem:[%s177 + $0x178] sm:$0xff] %vm956, %v2837
        %2912 = vst [vmem:[%s177 + $0x180] sm:$0xff] %v2838
        %2913 = vst.msk [vmem:[%s177 + $0x188] sm:$0xff] %vm956, %v2839
        %2914 = vst [vmem:[%s177 + $0x190] sm:$0xff] %v2840
        %2915 = vst.msk [vmem:[%s177 + $0x198] sm:$0xff] %vm956, %v2841
        %2916 = vst [vmem:[%s177 + $0x1a0] sm:$0xff] %v2842
        %2917 = vst.msk [vmem:[%s177 + $0x1a8] sm:$0xff] %vm956, %v2843
        %2918 = vst [vmem:[%s177 + $0x1b0] sm:$0xff] %v2844
        %2919 = vst.msk [vmem:[%s177 + $0x1b8] sm:$0xff] %vm956, %v2845
        %2920 = vst [vmem:[%s177 + $0x1c0] sm:$0xff] %v2846
        %2921 = vst.msk [vmem:[%s177 + $0x1c8] sm:$0xff] %vm956, %v2847
        %2922 = vst [vmem:[%s177 + $0x1d0] sm:$0xff] %v2848
        %2923 = vst.msk [vmem:[%s177 + $0x1d8] sm:$0xff] %vm956, %v2849
        %2924 = vst [vmem:[%s177 + $0x1e0] sm:$0xff] %v2850
        %2925 = vst.msk [vmem:[%s177 + $0x1e8] sm:$0xff] %vm956, %v2851
        %2926 = vst [vmem:[%s177 + $0x1f0] sm:$0xff] %v2852
        %2927 = vst.msk [vmem:[%s177 + $0x1f8] sm:$0xff] %vm956, %v2853
        %2928 = vst [vmem:[%s177 + $0x200] sm:$0xff] %v2854
        %2929 = vst.msk [vmem:[%s177 + $0x208] sm:$0xff] %vm956, %v2855
        %2930 = vst [vmem:[%s177 + $0x210] sm:$0xff] %v2856
        %2931 = vst.msk [vmem:[%s177 + $0x218] sm:$0xff] %vm956, %v2857
        %2932 = vst [vmem:[%s177 + $0x220] sm:$0xff] %v2858
        %2933 = vst.msk [vmem:[%s177 + $0x228] sm:$0xff] %vm956, %v2859
        %2934 = vst [vmem:[%s177 + $0x230] sm:$0xff] %v2860
        %2935 = vst.msk [vmem:[%s177 + $0x238] sm:$0xff] %vm956, %v2861
        %2936 = vst [vmem:[%s177 + $0x240] sm:$0xff] %v2862
        %2937 = vst.msk [vmem:[%s177 + $0x248] sm:$0xff] %vm956, %v2863
        %s2938 = sand.u32 %s90, 1
        %s2939 = sand.u32 %s90, 1
        %s2940 = smul.addr %s2939, 592
        %s2941 = scalar_lea.vmem [#allocation2], %s2940
        // Predicated region
        $region33: #{inception_d_forward.10} parent=31 // pred_check
          %p2942 = pneg %p100
        $region34: #{inception_d_forward.10} parent=31 // pred_check_branch
          %2944 = sbr.rel (%p2942) target = $region36
        $region35: #{inception_d_forward.10} parent=31 // pred_region
          %s2945 = smul.u32 37, %s14
          %s2946 = ssub.s32 73, %s2945
          %p2947 = scmp.lt.s32.totalorder %s2946, 37
          %s2948 = scalar_select %p2947, %s2946, 37
          %s2949 = smul.u32 128, %s2948
          %s2950 = smul.u32 %s2949, 2
          %p2951 = scmp.ne.s32.totalorder 0, %s2950
          %s2952 = smul.addr %s2945, 2
          %s2953 = smul.addr %s2952, 8
          %s2954 = scalar_lea.vmem %s3, %s2953
          // Predicated region
          $region37: #{inception_d_forward.10} parent=35 // pred_check
            %p2955 = pneg %p2951
          $region38: #{inception_d_forward.10} parent=35 // pred_check_branch
            %2957 = sbr.rel (%p2955) target = $region40
          $region39: #{inception_d_forward.10} parent=35 // pred_region
            // Predicated region
            $region41: #{inception_d_forward.10} parent=39 // pred_check
              _
            $region42: #{inception_d_forward.10} parent=39 // pred_check_branch
              %2959 = sbr.rel (0) target = $region44
            $region43: #{inception_d_forward.10} parent=39 // pred_region
              %s2960 = sshrl.u32 %s2948, 5
              // While loop
              $region45: #{inception_d_forward.10} parent=43 // loop_pre_header
                _
              $region46: #{inception_d_forward.10} parent=43 // loop_header
                %s2962 = sphi 0, %s2964
                %p2963 = scmp.ge.s32.totalorder %s2962, %s2960
                %s2967 = sphi 0, %s3100
                %s2968 = sphi %s2941, %s3103
                %s2969 = sphi %s2954, %s3104
              $region47: #{inception_d_forward.10} parent=43 // loop_header_branch
                %2966 = sbr.rel (%p2963) target = $region51
              $region48: #{inception_d_forward.10} parent=43 // loop_body
                %v2970 = vld [vmem:[%s2968] sm:$0xff]
                %2971 = vst [vmem:[%s2969] sm:$0xff] %v2970
                %v2972 = vld [vmem:[%s2968 + $0x10] sm:$0xff]
                %2973 = vst [vmem:[%s2969 + $0x10] sm:$0xff] %v2972
                %v2974 = vld [vmem:[%s2968 + $0x20] sm:$0xff]
                %2975 = vst [vmem:[%s2969 + $0x20] sm:$0xff] %v2974
                %v2976 = vld [vmem:[%s2968 + $0x30] sm:$0xff]
                %2977 = vst [vmem:[%s2969 + $0x30] sm:$0xff] %v2976
                %v2978 = vld [vmem:[%s2968 + $0x40] sm:$0xff]
                %2979 = vst [vmem:[%s2969 + $0x40] sm:$0xff] %v2978
                %v2980 = vld [vmem:[%s2968 + $0x50] sm:$0xff]
                %2981 = vst [vmem:[%s2969 + $0x50] sm:$0xff] %v2980
                %v2982 = vld [vmem:[%s2968 + $0x60] sm:$0xff]
                %2983 = vst [vmem:[%s2969 + $0x60] sm:$0xff] %v2982
                %v2984 = vld [vmem:[%s2968 + $0x70] sm:$0xff]
                %2985 = vst [vmem:[%s2969 + $0x70] sm:$0xff] %v2984
                %v2986 = vld [vmem:[%s2968 + $0x80] sm:$0xff]
                %2987 = vst [vmem:[%s2969 + $0x80] sm:$0xff] %v2986
                %v2988 = vld [vmem:[%s2968 + $0x90] sm:$0xff]
                %2989 = vst [vmem:[%s2969 + $0x90] sm:$0xff] %v2988
                %v2990 = vld [vmem:[%s2968 + $0xa0] sm:$0xff]
                %2991 = vst [vmem:[%s2969 + $0xa0] sm:$0xff] %v2990
                %v2992 = vld [vmem:[%s2968 + $0xb0] sm:$0xff]
                %2993 = vst [vmem:[%s2969 + $0xb0] sm:$0xff] %v2992
                %v2994 = vld [vmem:[%s2968 + $0xc0] sm:$0xff]
                %2995 = vst [vmem:[%s2969 + $0xc0] sm:$0xff] %v2994
                %v2996 = vld [vmem:[%s2968 + $0xd0] sm:$0xff]
                %2997 = vst [vmem:[%s2969 + $0xd0] sm:$0xff] %v2996
                %v2998 = vld [vmem:[%s2968 + $0xe0] sm:$0xff]
                %2999 = vst [vmem:[%s2969 + $0xe0] sm:$0xff] %v2998
                %v3000 = vld [vmem:[%s2968 + $0xf0] sm:$0xff]
                %3001 = vst [vmem:[%s2969 + $0xf0] sm:$0xff] %v3000
                %v3002 = vld [vmem:[%s2968 + $0x100] sm:$0xff]
                %3003 = vst [vmem:[%s2969 + $0x100] sm:$0xff] %v3002
                %v3004 = vld [vmem:[%s2968 + $0x110] sm:$0xff]
                %3005 = vst [vmem:[%s2969 + $0x110] sm:$0xff] %v3004
                %v3006 = vld [vmem:[%s2968 + $0x120] sm:$0xff]
                %3007 = vst [vmem:[%s2969 + $0x120] sm:$0xff] %v3006
                %v3008 = vld [vmem:[%s2968 + $0x130] sm:$0xff]
                %3009 = vst [vmem:[%s2969 + $0x130] sm:$0xff] %v3008
                %v3010 = vld [vmem:[%s2968 + $0x140] sm:$0xff]
                %3011 = vst [vmem:[%s2969 + $0x140] sm:$0xff] %v3010
                %v3012 = vld [vmem:[%s2968 + $0x150] sm:$0xff]
                %3013 = vst [vmem:[%s2969 + $0x150] sm:$0xff] %v3012
                %v3014 = vld [vmem:[%s2968 + $0x160] sm:$0xff]
                %3015 = vst [vmem:[%s2969 + $0x160] sm:$0xff] %v3014
                %v3016 = vld [vmem:[%s2968 + $0x170] sm:$0xff]
                %3017 = vst [vmem:[%s2969 + $0x170] sm:$0xff] %v3016
                %v3018 = vld [vmem:[%s2968 + $0x180] sm:$0xff]
                %3019 = vst [vmem:[%s2969 + $0x180] sm:$0xff] %v3018
                %v3020 = vld [vmem:[%s2968 + $0x190] sm:$0xff]
                %3021 = vst [vmem:[%s2969 + $0x190] sm:$0xff] %v3020
                %v3022 = vld [vmem:[%s2968 + $0x1a0] sm:$0xff]
                %3023 = vst [vmem:[%s2969 + $0x1a0] sm:$0xff] %v3022
                %v3024 = vld [vmem:[%s2968 + $0x1b0] sm:$0xff]
                %3025 = vst [vmem:[%s2969 + $0x1b0] sm:$0xff] %v3024
                %v3026 = vld [vmem:[%s2968 + $0x1c0] sm:$0xff]
                %3027 = vst [vmem:[%s2969 + $0x1c0] sm:$0xff] %v3026
                %v3028 = vld [vmem:[%s2968 + $0x1d0] sm:$0xff]
                %3029 = vst [vmem:[%s2969 + $0x1d0] sm:$0xff] %v3028
                %v3030 = vld [vmem:[%s2968 + $0x1e0] sm:$0xff]
                %3031 = vst [vmem:[%s2969 + $0x1e0] sm:$0xff] %v3030
                %v3032 = vld [vmem:[%s2968 + $0x1f0] sm:$0xff]
                %3033 = vst [vmem:[%s2969 + $0x1f0] sm:$0xff] %v3032
                %v3034 = vld [vmem:[%s2968 + $0x8] sm:$0xff]
                %3035 = vst [vmem:[%s2969 + $0x8] sm:$0xff] %v3034
                %v3036 = vld [vmem:[%s2968 + $0x18] sm:$0xff]
                %3037 = vst [vmem:[%s2969 + $0x18] sm:$0xff] %v3036
                %v3038 = vld [vmem:[%s2968 + $0x28] sm:$0xff]
                %3039 = vst [vmem:[%s2969 + $0x28] sm:$0xff] %v3038
                %v3040 = vld [vmem:[%s2968 + $0x38] sm:$0xff]
                %3041 = vst [vmem:[%s2969 + $0x38] sm:$0xff] %v3040
                %v3042 = vld [vmem:[%s2968 + $0x48] sm:$0xff]
                %3043 = vst [vmem:[%s2969 + $0x48] sm:$0xff] %v3042
                %v3044 = vld [vmem:[%s2968 + $0x58] sm:$0xff]
                %3045 = vst [vmem:[%s2969 + $0x58] sm:$0xff] %v3044
                %v3046 = vld [vmem:[%s2968 + $0x68] sm:$0xff]
                %3047 = vst [vmem:[%s2969 + $0x68] sm:$0xff] %v3046
                %v3048 = vld [vmem:[%s2968 + $0x78] sm:$0xff]
                %3049 = vst [vmem:[%s2969 + $0x78] sm:$0xff] %v3048
                %v3050 = vld [vmem:[%s2968 + $0x88] sm:$0xff]
                %3051 = vst [vmem:[%s2969 + $0x88] sm:$0xff] %v3050
                %v3052 = vld [vmem:[%s2968 + $0x98] sm:$0xff]
                %3053 = vst [vmem:[%s2969 + $0x98] sm:$0xff] %v3052
                %v3054 = vld [vmem:[%s2968 + $0xa8] sm:$0xff]
                %3055 = vst [vmem:[%s2969 + $0xa8] sm:$0xff] %v3054
                %v3056 = vld [vmem:[%s2968 + $0xb8] sm:$0xff]
                %3057 = vst [vmem:[%s2969 + $0xb8] sm:$0xff] %v3056
                %v3058 = vld [vmem:[%s2968 + $0xc8] sm:$0xff]
                %3059 = vst [vmem:[%s2969 + $0xc8] sm:$0xff] %v3058
                %v3060 = vld [vmem:[%s2968 + $0xd8] sm:$0xff]
                %3061 = vst [vmem:[%s2969 + $0xd8] sm:$0xff] %v3060
                %v3062 = vld [vmem:[%s2968 + $0xe8] sm:$0xff]
                %3063 = vst [vmem:[%s2969 + $0xe8] sm:$0xff] %v3062
                %v3064 = vld [vmem:[%s2968 + $0xf8] sm:$0xff]
                %3065 = vst [vmem:[%s2969 + $0xf8] sm:$0xff] %v3064
                %v3066 = vld [vmem:[%s2968 + $0x108] sm:$0xff]
                %3067 = vst [vmem:[%s2969 + $0x108] sm:$0xff] %v3066
                %v3068 = vld [vmem:[%s2968 + $0x118] sm:$0xff]
                %3069 = vst [vmem:[%s2969 + $0x118] sm:$0xff] %v3068
                %v3070 = vld [vmem:[%s2968 + $0x128] sm:$0xff]
                %3071 = vst [vmem:[%s2969 + $0x128] sm:$0xff] %v3070
                %v3072 = vld [vmem:[%s2968 + $0x138] sm:$0xff]
                %3073 = vst [vmem:[%s2969 + $0x138] sm:$0xff] %v3072
                %v3074 = vld [vmem:[%s2968 + $0x148] sm:$0xff]
                %3075 = vst [vmem:[%s2969 + $0x148] sm:$0xff] %v3074
                %v3076 = vld [vmem:[%s2968 + $0x158] sm:$0xff]
                %3077 = vst [vmem:[%s2969 + $0x158] sm:$0xff] %v3076
                %v3078 = vld [vmem:[%s2968 + $0x168] sm:$0xff]
                %3079 = vst [vmem:[%s2969 + $0x168] sm:$0xff] %v3078
                %v3080 = vld [vmem:[%s2968 + $0x178] sm:$0xff]
                %3081 = vst [vmem:[%s2969 + $0x178] sm:$0xff] %v3080
                %v3082 = vld [vmem:[%s2968 + $0x188] sm:$0xff]
                %3083 = vst [vmem:[%s2969 + $0x188] sm:$0xff] %v3082
                %v3084 = vld [vmem:[%s2968 + $0x198] sm:$0xff]
                %3085 = vst [vmem:[%s2969 + $0x198] sm:$0xff] %v3084
                %v3086 = vld [vmem:[%s2968 + $0x1a8] sm:$0xff]
                %3087 = vst [vmem:[%s2969 + $0x1a8] sm:$0xff] %v3086
                %v3088 = vld [vmem:[%s2968 + $0x1b8] sm:$0xff]
                %3089 = vst [vmem:[%s2969 + $0x1b8] sm:$0xff] %v3088
                %v3090 = vld [vmem:[%s2968 + $0x1c8] sm:$0xff]
                %3091 = vst [vmem:[%s2969 + $0x1c8] sm:$0xff] %v3090
                %v3092 = vld [vmem:[%s2968 + $0x1d8] sm:$0xff]
                %3093 = vst [vmem:[%s2969 + $0x1d8] sm:$0xff] %v3092
                %v3094 = vld [vmem:[%s2968 + $0x1e8] sm:$0xff]
                %3095 = vst [vmem:[%s2969 + $0x1e8] sm:$0xff] %v3094
                %v3096 = vld [vmem:[%s2968 + $0x1f8] sm:$0xff]
                %3097 = vst [vmem:[%s2969 + $0x1f8] sm:$0xff] %v3096
                %s3098 = sadd.s32 1, %s2967
                %p3099 = scmp.ge.s32.totalorder %s3098, %s2960
                %s3100 = scalar_select %p3099, 0, %s3098
                %s3101 = smul.u32 %s3100, 512
                %s3102 = smul.u32 %s3100, 512
                %s3103 = scalar_lea.vmem %s2941, %s3101 [#allocation2]
                %s3104 = scalar_lea.vmem %s2954, %s3102
              $region49: #{inception_d_forward.10} parent=43 // loop_footer
                %s2964 = sadd.s32 %s2962, 1
              $region50: #{inception_d_forward.10} parent=43 // loop_footer_branch
                %2961 = sbr.rel target = $region46
              $region51: #{inception_d_forward.10} parent=43 // loop_exit
                _
              %s3105 = sshrl.u32 %s2948, 5
              %s3106 = sand.u32 %s2948, 31
              %s3107 = smul.u32 %s3105, 32
              %s3108 = smul.u32 16, %s3107
              %s3109 = scalar_lea.vmem %s2941, %s3108 [#allocation2]
              %s3110 = smul.u32 16, %s3107
              %s3111 = scalar_lea.vmem %s2954, %s3110
              // While loop
              $region52: #{inception_d_forward.10} parent=43 // loop_pre_header
                _
              $region53: #{inception_d_forward.10} parent=43 // loop_header
                %s3113 = sphi 0, %s3115
                %p3114 = scmp.ge.s32.totalorder %s3113, %s3106
                %s3118 = sphi 0, %s3127
                %s3119 = sphi %s3109, %s3130
                %s3120 = sphi %s3111, %s3131
              $region54: #{inception_d_forward.10} parent=43 // loop_header_branch
                %3117 = sbr.rel (%p3114) target = $region58
              $region55: #{inception_d_forward.10} parent=43 // loop_body
                %v3121 = vld [vmem:[%s3119] sm:$0xff]
                %3122 = vst [vmem:[%s3120] sm:$0xff] %v3121
                %v3123 = vld [vmem:[%s3119 + $0x8] sm:$0xff]
                %3124 = vst [vmem:[%s3120 + $0x8] sm:$0xff] %v3123
                %s3125 = sadd.s32 1, %s3118
                %p3126 = scmp.ge.s32.totalorder %s3125, %s3106
                %s3127 = scalar_select %p3126, 0, %s3125
                %s3128 = smul.u32 %s3127, 16
                %s3129 = smul.u32 %s3127, 16
                %s3130 = scalar_lea.vmem %s3109, %s3128 [#allocation2]
                %s3131 = scalar_lea.vmem %s3111, %s3129
              $region56: #{inception_d_forward.10} parent=43 // loop_footer
                %s3115 = sadd.s32 %s3113, 1
              $region57: #{inception_d_forward.10} parent=43 // loop_footer_branch
                %3112 = sbr.rel target = $region53
              $region58: #{inception_d_forward.10} parent=43 // loop_exit
                _
            $region44: #{inception_d_forward.10} parent=39 // pred_fallthru
              _
            // Predicated region
            $region59: #{inception_d_forward.10} parent=39 // pred_check
              _
            $region60: #{inception_d_forward.10} parent=39 // pred_check_branch
              %3133 = sbr.rel target = $region62
            $region61: #{inception_d_forward.10} parent=39 // pred_region
              _
            $region62: #{inception_d_forward.10} parent=39 // pred_fallthru
              _
          $region40: #{inception_d_forward.10} parent=35 // pred_fallthru
            _
          %3134 = vnop
        $region36: #{inception_d_forward.10} parent=31 // pred_fallthru
          _
      $region32: #{inception_d_forward.10} parent=5 // pred_fallthru
        _
      %p3135 = scmp.le.s32.totalorder 2, %s9
      // Predicated region
      $region63: #{inception_d_forward.10} parent=5 // pred_check
        %p3136 = pneg %p3135
      $region64: #{inception_d_forward.10} parent=5 // pred_check_branch
        %3138 = sbr.rel (%p3136) target = $region66
      $region65: #{inception_d_forward.10} parent=5 // pred_region
        %s3139 = ssub.s32 %s9, 2
        // Predicated region
        $region67: #{inception_d_forward.10} parent=65 // pred_check
          %p3140 = pneg %p106
        $region68: #{inception_d_forward.10} parent=65 // pred_check_branch
          %3142 = sbr.rel (%p3140) target = $region70
        $region69: #{inception_d_forward.10} parent=65 // pred_region
          %s3143 = sand.u32 %s91, 1
          %s3144 = sand.u32 %s91, 1
          %s3145 = smul.addr %s3144, 592
          %s3146 = scalar_lea.vmem [#allocation2], %s3145
        $region70: #{inception_d_forward.10} parent=65 // pred_fallthru
          _
      $region66: #{inception_d_forward.10} parent=5 // pred_fallthru
        _
    $region6: #{inception_d_forward.10} parent=1 // loop_footer
      %s13 = sadd.s32 1, %s9
    $region7: #{inception_d_forward.10} parent=1 // loop_footer_branch
      %8 = sbr.rel target = $region3
    $region8: #{inception_d_forward.10} parent=1 // loop_exit
      _

// kernel: inception_d_forward.12
$region0: #{inception_d_forward.12}
  #allocation0 [shape = 'u32[]', space=smem, size = 0x4, offset = 0x4, fixed_abs, tag = 'smem constant byte address 0x4 - core index']
  #allocation1 [shape = 'u32[144,128]{1,0:T(1,128)}', space=vmem, size = 0x12000, scoped, tag = 'internal scratch']
  %s0 = inlined_call_operand.vmem [shape: f32[128,1728], index: 0, kind: input, shape index: {}]
  %s1 = inlined_call_operand.vmem [shape: f32[1728,192], index: 1, kind: input, shape index: {}]
  %s2 = inlined_call_operand.vmem [shape: f32[1,192], index: 2, kind: input, shape index: {}]
  %s3 = inlined_call_operand.vmem [shape: f32[128,192], index: 3, kind: output, shape index: {}]
  %s4 = sld [smem:[#allocation0]]
  $region45: #{inception_d_forward.12} parent=0
    _
  %s6 = ssub.s32 1, %s4
  %s7 = scalar_select 0, %s6, %s4
  loop: start=0, step=1, limit=4
  $region2: #{inception_d_forward.12} parent=0 // loop_pre_header
    _
  $region3: #{inception_d_forward.12} parent=0 // loop_header
    %s9 = sphi 0, %s13
    %p10 = scmp.ge.s32.totalorder %s9, 4
    %s19 = sphi 0, %s21
    %s22 = sphi 0, %s19
    %s23 = sphi 0, %s22
    %s39 = sphi 0, %s23
    %s43 = sphi 0, %s43
    %s45 = sphi 0, %s43
    %s46 = sphi 0, %s45
    %s60 = sphi 0, %s46
    %s64 = sphi 0, %s64
    %s66 = sphi 0, %s64
    %s67 = sphi 0, %s66
    %s81 = sphi 0, %s67
    %s87 = sphi 0, %s89
    %s90 = sphi 0, %s87
    %s91 = sphi 0, %s90
    %s107 = sphi 0, %s91
  $region4: #{inception_d_forward.12} parent=0 // loop_header_branch
    %12 = sbr.rel (%p10) target = $region8
  $region5: #{inception_d_forward.12} parent=0 // loop_body
    %s14 = ssub.s32 %s9, 1
    %s15 = ssub.s32 %s9, 2
    %s16 = sadd.s32 %s9, 1
    %s17 = ssub.s32 %s9, %s16
    %p18 = scmp.eq.s32.totalorder %s17, 0
    %s20 = sadd.s32 %s19, 1
    %s21 = scalar_select %p18, %s19, %s20
    %p24 = pneg %p18
    %p25 = scmp.eq.s32.totalorder %s9, 1
    %p26 = por %p24, %p25
    %p27 = scmp.ne.s32.totalorder %s19, %s22
    %p28 = scmp.eq.s32.totalorder %s9, 0
    %p29 = por %p27, %p28
    %p30 = scmp.ne.s32.totalorder %s19, %s22
    %p31 = scmp.eq.s32.totalorder %s14, 1
    %p32 = por %p30, %p31
    %p33 = scmp.ne.s32.totalorder %s22, %s23
    %p34 = scmp.eq.s32.totalorder %s14, 0
    %p35 = por %p33, %p34
    %p36 = scmp.ne.s32.totalorder %s22, %s23
    %p37 = scmp.eq.s32.totalorder %s15, 1
    %p38 = por %p36, %p37
    %p40 = scmp.ne.s32.totalorder %s23, %s39
    %p41 = scmp.eq.s32.totalorder %s15, 0
    %p42 = por %p40, %p41
    %s44 = sadd.s32 %s43, 1
    %p47 = scmp.eq.s32.totalorder %s9, 1
    %p48 = scmp.ne.s32.totalorder %s43, %s45
    %p49 = scmp.eq.s32.totalorder %s9, 0
    %p50 = por %p48, %p49
    %p51 = scmp.ne.s32.totalorder %s43, %s45
    %p52 = scmp.eq.s32.totalorder %s14, 1
    %p53 = por %p51, %p52
    %p54 = scmp.ne.s32.totalorder %s45, %s46
    %p55 = scmp.eq.s32.totalorder %s14, 0
    %p56 = por %p54, %p55
    %p57 = scmp.ne.s32.totalorder %s45, %s46
    %p58 = scmp.eq.s32.totalorder %s15, 1
    %p59 = por %p57, %p58
    %p61 = scmp.ne.s32.totalorder %s46, %s60
    %p62 = scmp.eq.s32.totalorder %s15, 0
    %p63 = por %p61, %p62
    %s65 = sadd.s32 %s64, 1
    %p68 = scmp.eq.s32.totalorder %s9, 1
    %p69 = scmp.ne.s32.totalorder %s64, %s66
    %p70 = scmp.eq.s32.totalorder %s9, 0
    %p71 = por %p69, %p70
    %p72 = scmp.ne.s32.totalorder %s64, %s66
    %p73 = scmp.eq.s32.totalorder %s14, 1
    %p74 = por %p72, %p73
    %p75 = scmp.ne.s32.totalorder %s66, %s67
    %p76 = scmp.eq.s32.totalorder %s14, 0
    %p77 = por %p75, %p76
    %p78 = scmp.ne.s32.totalorder %s66, %s67
    %p79 = scmp.eq.s32.totalorder %s15, 1
    %p80 = por %p78, %p79
    %p82 = scmp.ne.s32.totalorder %s67, %s81
    %p83 = scmp.eq.s32.totalorder %s15, 0
    %p84 = por %p82, %p83
    %s85 = ssub.s32 %s9, %s16
    %p86 = scmp.eq.s32.totalorder %s85, 0
    %s88 = sadd.s32 %s87, 1
    %s89 = scalar_select %p86, %s87, %s88
    %p92 = pneg %p86
    %p93 = scmp.eq.s32.totalorder %s9, 1
    %p94 = por %p92, %p93
    %p95 = scmp.ne.s32.totalorder %s87, %s90
    %p96 = scmp.eq.s32.totalorder %s9, 0
    %p97 = por %p95, %p96
    %p98 = scmp.ne.s32.totalorder %s87, %s90
    %p99 = scmp.eq.s32.totalorder %s14, 1
    %p100 = por %p98, %p99
    %p101 = scmp.ne.s32.totalorder %s90, %s91
    %p102 = scmp.eq.s32.totalorder %s14, 0
    %p103 = por %p101, %p102
    %p104 = scmp.ne.s32.totalorder %s90, %s91
    %p105 = scmp.eq.s32.totalorder %s15, 1
    %p106 = por %p104, %p105
    %p108 = scmp.ne.s32.totalorder %s91, %s107
    %p109 = scmp.eq.s32.totalorder %s15, 0
    %p110 = por %p108, %p109
    %p111 = scmp.le.s32.totalorder 1, %s9
    %p112 = scmp.lt.s32.totalorder %s9, 3
    %p113 = pnand %p111, %p112
    %p114 = pneg %p113
    // Predicated region
    $region9: #{inception_d_forward.12} parent=5 // pred_check
      _
    $region10: #{inception_d_forward.12} parent=5 // pred_check_branch
      %116 = sbr.rel (%p113) target = $region12
    $region11: #{inception_d_forward.12} parent=5 // pred_region
      %s117 = ssub.s32 %s9, 1
      // Predicated region
      $region13: #{inception_d_forward.12} parent=11 // pred_check
        %p118 = pneg %p56
      $region14: #{inception_d_forward.12} parent=11 // pred_check_branch
        %120 = sbr.rel (%p118) target = $region16
      $region15: #{inception_d_forward.12} parent=11 // pred_region
        _
      $region16: #{inception_d_forward.12} parent=11 // pred_fallthru
        _
      // Predicated region
      $region17: #{inception_d_forward.12} parent=11 // pred_check
        %p121 = pneg %p77
      $region18: #{inception_d_forward.12} parent=11 // pred_check_branch
        %123 = sbr.rel (%p121) target = $region20
      $region19: #{inception_d_forward.12} parent=11 // pred_region
        _
      $region20: #{inception_d_forward.12} parent=11 // pred_fallthru
        _
    $region12: #{inception_d_forward.12} parent=5 // pred_fallthru
      _
    %p124 = scmp.lt.s32.totalorder %s9, 2
    // Predicated region
    $region21: #{inception_d_forward.12} parent=5 // pred_check
      %p125 = pneg %p124
    $region22: #{inception_d_forward.12} parent=5 // pred_check_branch
      %127 = sbr.rel (%p125) target = $region24
    $region23: #{inception_d_forward.12} parent=5 // pred_region
      // Predicated region
      $region25: #{inception_d_forward.12} parent=23 // pred_check
        %p128 = pneg %p29
      $region26: #{inception_d_forward.12} parent=23 // pred_check_branch
        %130 = sbr.rel (%p128) target = $region28
      $region27: #{inception_d_forward.12} parent=23 // pred_region
        %s131 = smul.u32 8, %s9
        %p132 = scmp.lt.s32.totalorder %s131, 15
        %s133 = scalar_select %p132, %s131, 15
        %s134 = smul.addr %s133, 14
        %s135 = smul.addr %s134, 8
        %s136 = scalar_lea.vmem %s0, %s135
        %s137 = smul.u32 8, %s9
      $region28: #{inception_d_forward.12} parent=23 // pred_fallthru
        _
    $region24: #{inception_d_forward.12} parent=5 // pred_fallthru
      _
    %p138 = scmp.le.s32.totalorder 1, %s9
    %p139 = scmp.lt.s32.totalorder %s9, 3
    %p140 = pnand %p138, %p139
    %p141 = pneg %p140
    // Predicated region
    $region29: #{inception_d_forward.12} parent=5 // pred_check
      _
    $region30: #{inception_d_forward.12} parent=5 // pred_check_branch
      %143 = sbr.rel (%p140) target = $region32
    $region31: #{inception_d_forward.12} parent=5 // pred_region
      %s144 = ssub.s32 %s9, 1
      %s145 = smul.u32 8, %s14
      %p146 = scmp.lt.s32.totalorder %s145, 15
      %s147 = scalar_select %p146, %s145, 15
      %s148 = smul.addr %s147, 14
      %s149 = smul.addr %s148, 8
      %s150 = scalar_lea.vmem %s0, %s149
      %p151 = pneg %p35
      %p152 = pneg %p32
      %p153 = pneg %p56
      %p154 = pneg %p53
      %p155 = pneg %p77
      %p156 = pneg %p74
      %p157 = pneg %p103
      %p158 = pneg %p100
      %s159 = smul.u32 8, %s14
      %p160 = scmp.lt.s32.totalorder %s159, 15
      %s161 = scalar_select %p160, %s159, 15
      %s162 = smul.addr %s161, 2
      %s163 = smul.addr %s162, 8
      %s164 = scalar_lea.vmem %s3, %s163
      %s165 = smul.u32 8, %s14
      %p166 = scmp.lt.s32.totalorder %s165, 15
      %s167 = scalar_select %p166, %s165, 15
      %s168 = smul.addr %s167, 14
      %s169 = smul.addr %s168, 8
      %s170 = scalar_lea.vmem %s0, %s169
      %s171 = smul.u32 8, %s14
      %s172 = smul.u32 8, %s14
      %p173 = scmp.lt.s32.totalorder %s172, 15
      %s174 = scalar_select %p173, %s172, 15
      %s175 = smul.addr %s174, 2
      %s176 = smul.addr %s175, 8
      %s177 = scalar_lea.vmem %s3, %s176
      %s178 = smul.u32 8, %s14
      %v179 = vld [vmem:[%s170] sm:$0xff]
      %v180 = vld [vmem:[%s170 + $0x8] sm:$0xff]
      %v181 = vld [vmem:[%s170 + $0x10] sm:$0xff]
      %v182 = vld [vmem:[%s170 + $0x18] sm:$0xff]
      %v183 = vld [vmem:[%s170 + $0x20] sm:$0xff]
      %v184 = vld [vmem:[%s170 + $0x28] sm:$0xff]
      %v185 = vld [vmem:[%s170 + $0x30] sm:$0xff]
      %v186 = vld [vmem:[%s170 + $0x38] sm:$0xff]
      %v187 = vld [vmem:[%s170 + $0x40] sm:$0xff]
      %v188 = vld [vmem:[%s170 + $0x48] sm:$0xff]
      %v189 = vld [vmem:[%s170 + $0x50] sm:$0xff]
      %v190 = vld [vmem:[%s170 + $0x58] sm:$0xff]
      %v191 = vld [vmem:[%s170 + $0x60] sm:$0xff]
      %v192 = vld [vmem:[%s170 + $0x68] sm:$0xff]
      %v193 = vld [vmem:[%s170 + $0x70] sm:$0xff]
      %v194 = vld [vmem:[%s170 + $0x78] sm:$0xff]
      %v195 = vld [vmem:[%s170 + $0x80] sm:$0xff]
      %v196 = vld [vmem:[%s170 + $0x88] sm:$0xff]
      %v197 = vld [vmem:[%s170 + $0x90] sm:$0xff]
      %v198 = vld [vmem:[%s170 + $0x98] sm:$0xff]
      %v199 = vld [vmem:[%s170 + $0xa0] sm:$0xff]
      %v200 = vld [vmem:[%s170 + $0xa8] sm:$0xff]
      %v201 = vld [vmem:[%s170 + $0xb0] sm:$0xff]
      %v202 = vld [vmem:[%s170 + $0xb8] sm:$0xff]
      %v203 = vld [vmem:[%s170 + $0xc0] sm:$0xff]
      %v204 = vld [vmem:[%s170 + $0xc8] sm:$0xff]
      %v205 = vld [vmem:[%s170 + $0xd0] sm:$0xff]
      %v206 = vld [vmem:[%s170 + $0xd8] sm:$0xff]
      %v207 = vld [vmem:[%s170 + $0xe0] sm:$0xff]
      %v208 = vld [vmem:[%s170 + $0xe8] sm:$0xff]
      %v209 = vld [vmem:[%s170 + $0xf0] sm:$0xff]
      %v210 = vld [vmem:[%s170 + $0xf8] sm:$0xff]
      %v211 = vld [vmem:[%s170 + $0x100] sm:$0xff]
      %v212 = vld [vmem:[%s170 + $0x108] sm:$0xff]
      %v213 = vld [vmem:[%s170 + $0x110] sm:$0xff]
      %v214 = vld [vmem:[%s170 + $0x118] sm:$0xff]
      %v215 = vld [vmem:[%s170 + $0x120] sm:$0xff]
      %v216 = vld [vmem:[%s170 + $0x128] sm:$0xff]
      %v217 = vld [vmem:[%s170 + $0x130] sm:$0xff]
      %v218 = vld [vmem:[%s170 + $0x138] sm:$0xff]
      %v219 = vld [vmem:[%s170 + $0x140] sm:$0xff]
      %v220 = vld [vmem:[%s170 + $0x148] sm:$0xff]
      %v221 = vld [vmem:[%s170 + $0x150] sm:$0xff]
      %v222 = vld [vmem:[%s170 + $0x158] sm:$0xff]
      %v223 = vld [vmem:[%s170 + $0x160] sm:$0xff]
      %v224 = vld [vmem:[%s170 + $0x168] sm:$0xff]
      %v225 = vld [vmem:[%s170 + $0x170] sm:$0xff]
      %v226 = vld [vmem:[%s170 + $0x178] sm:$0xff]
      %v227 = vld [vmem:[%s170 + $0x180] sm:$0xff]
      %v228 = vld [vmem:[%s170 + $0x188] sm:$0xff]
      %v229 = vld [vmem:[%s170 + $0x190] sm:$0xff]
      %v230 = vld [vmem:[%s170 + $0x198] sm:$0xff]
      %v231 = vld [vmem:[%s170 + $0x1a0] sm:$0xff]
      %v232 = vld [vmem:[%s170 + $0x1a8] sm:$0xff]
      %v233 = vld [vmem:[%s170 + $0x1b0] sm:$0xff]
      %v234 = vld [vmem:[%s170 + $0x1b8] sm:$0xff]
      %v235 = vld [vmem:[%s170 + $0x1c0] sm:$0xff]
      %v236 = vld [vmem:[%s170 + $0x1c8] sm:$0xff]
      %v237 = vld [vmem:[%s170 + $0x1d0] sm:$0xff]
      %v238 = vld [vmem:[%s170 + $0x1d8] sm:$0xff]
      %v239 = vld [vmem:[%s170 + $0x1e0] sm:$0xff]
      %v240 = vld [vmem:[%s170 + $0x1e8] sm:$0xff]
      %v241 = vld [vmem:[%s170 + $0x1f0] sm:$0xff]
      %v242 = vld [vmem:[%s170 + $0x1f8] sm:$0xff]
      %v243 = vld [vmem:[%s170 + $0x200] sm:$0xff]
      %v244 = vld [vmem:[%s170 + $0x208] sm:$0xff]
      %v245 = vld [vmem:[%s170 + $0x210] sm:$0xff]
      %v246 = vld [vmem:[%s170 + $0x218] sm:$0xff]
      %v247 = vld [vmem:[%s170 + $0x220] sm:$0xff]
      %v248 = vld [vmem:[%s170 + $0x228] sm:$0xff]
      %v249 = vld [vmem:[%s170 + $0x230] sm:$0xff]
      %v250 = vld [vmem:[%s170 + $0x238] sm:$0xff]
      %v251 = vld [vmem:[%s170 + $0x240] sm:$0xff]
      %v252 = vld [vmem:[%s170 + $0x248] sm:$0xff]
      %v253 = vld [vmem:[%s170 + $0x250] sm:$0xff]
      %v254 = vld [vmem:[%s170 + $0x258] sm:$0xff]
      %v255 = vld [vmem:[%s170 + $0x260] sm:$0xff]
      %v256 = vld [vmem:[%s170 + $0x268] sm:$0xff]
      %v257 = vld [vmem:[%s170 + $0x270] sm:$0xff]
      %v258 = vld [vmem:[%s170 + $0x278] sm:$0xff]
      %v259 = vld [vmem:[%s170 + $0x280] sm:$0xff]
      %v260 = vld [vmem:[%s170 + $0x288] sm:$0xff]
      %v261 = vld [vmem:[%s170 + $0x290] sm:$0xff]
      %v262 = vld [vmem:[%s170 + $0x298] sm:$0xff]
      %v263 = vld [vmem:[%s170 + $0x2a0] sm:$0xff]
      %v264 = vld [vmem:[%s170 + $0x2a8] sm:$0xff]
      %v265 = vld [vmem:[%s170 + $0x2b0] sm:$0xff]
      %v266 = vld [vmem:[%s170 + $0x2b8] sm:$0xff]
      %v267 = vld [vmem:[%s170 + $0x2c0] sm:$0xff]
      %v268 = vld [vmem:[%s170 + $0x2c8] sm:$0xff]
      %v269 = vld [vmem:[%s170 + $0x2d0] sm:$0xff]
      %v270 = vld [vmem:[%s170 + $0x2d8] sm:$0xff]
      %v271 = vld [vmem:[%s170 + $0x2e0] sm:$0xff]
      %v272 = vld [vmem:[%s170 + $0x2e8] sm:$0xff]
      %v273 = vld [vmem:[%s170 + $0x2f0] sm:$0xff]
      %v274 = vld [vmem:[%s170 + $0x2f8] sm:$0xff]
      %v275 = vld [vmem:[%s170 + $0x300] sm:$0xff]
      %v276 = vld [vmem:[%s170 + $0x308] sm:$0xff]
      %v277 = vld [vmem:[%s170 + $0x310] sm:$0xff]
      %v278 = vld [vmem:[%s170 + $0x318] sm:$0xff]
      %v279 = vld [vmem:[%s170 + $0x320] sm:$0xff]
      %v280 = vld [vmem:[%s170 + $0x328] sm:$0xff]
      %v281 = vld [vmem:[%s170 + $0x330] sm:$0xff]
      %v282 = vld [vmem:[%s170 + $0x338] sm:$0xff]
      %v283 = vld [vmem:[%s170 + $0x340] sm:$0xff]
      %v284 = vld [vmem:[%s170 + $0x348] sm:$0xff]
      %v285 = vld [vmem:[%s170 + $0x350] sm:$0xff]
      %v286 = vld [vmem:[%s170 + $0x358] sm:$0xff]
      %v287 = vld [vmem:[%s170 + $0x360] sm:$0xff]
      %v288 = vld [vmem:[%s170 + $0x368] sm:$0xff]
      %v289 = vld [vmem:[%s170 + $0x370] sm:$0xff]
      %v290 = vld [vmem:[%s170 + $0x378] sm:$0xff]
      %v291 = vld [vmem:[%s1] sm:$0xff]
      %v292 = vld [vmem:[%s1 + $0x8] sm:$0xff]
      %v293 = vld [vmem:[%s1 + $0x10] sm:$0xff]
      %v294 = vld [vmem:[%s1 + $0x18] sm:$0xff]
      %v295 = vld [vmem:[%s1 + $0x20] sm:$0xff]
      %v296 = vld [vmem:[%s1 + $0x28] sm:$0xff]
      %v297 = vld [vmem:[%s1 + $0x30] sm:$0xff]
      %v298 = vld [vmem:[%s1 + $0x38] sm:$0xff]
      %v299 = vld [vmem:[%s1 + $0x40] sm:$0xff]
      %v300 = vld [vmem:[%s1 + $0x48] sm:$0xff]
      %v301 = vld [vmem:[%s1 + $0x50] sm:$0xff]
      %v302 = vld [vmem:[%s1 + $0x58] sm:$0xff]
      %v303 = vld [vmem:[%s1 + $0x60] sm:$0xff]
      %v304 = vld [vmem:[%s1 + $0x68] sm:$0xff]
      %v305 = vld [vmem:[%s1 + $0x70] sm:$0xff]
      %v306 = vld [vmem:[%s1 + $0x78] sm:$0xff]
      %v307 = vld [vmem:[%s1 + $0x80] sm:$0xff]
      %v308 = vld [vmem:[%s1 + $0x88] sm:$0xff]
      %v309 = vld [vmem:[%s1 + $0x90] sm:$0xff]
      %v310 = vld [vmem:[%s1 + $0x98] sm:$0xff]
      %v311 = vld [vmem:[%s1 + $0xa0] sm:$0xff]
      %v312 = vld [vmem:[%s1 + $0xa8] sm:$0xff]
      %v313 = vld [vmem:[%s1 + $0xb0] sm:$0xff]
      %v314 = vld [vmem:[%s1 + $0xb8] sm:$0xff]
      %v315 = vld [vmem:[%s1 + $0xc0] sm:$0xff]
      %v316 = vld [vmem:[%s1 + $0xc8] sm:$0xff]
      %v317 = vld [vmem:[%s1 + $0xd0] sm:$0xff]
      %v318 = vld [vmem:[%s1 + $0xd8] sm:$0xff]
      %v319 = vld [vmem:[%s1 + $0xe0] sm:$0xff]
      %v320 = vld [vmem:[%s1 + $0xe8] sm:$0xff]
      %v321 = vld [vmem:[%s1 + $0xf0] sm:$0xff]
      %v322 = vld [vmem:[%s1 + $0xf8] sm:$0xff]
      %v323 = vld [vmem:[%s1 + $0x100] sm:$0xff]
      %v324 = vld [vmem:[%s1 + $0x108] sm:$0xff]
      %v325 = vld [vmem:[%s1 + $0x110] sm:$0xff]
      %v326 = vld [vmem:[%s1 + $0x118] sm:$0xff]
      %v327 = vld [vmem:[%s1 + $0x120] sm:$0xff]
      %v328 = vld [vmem:[%s1 + $0x128] sm:$0xff]
      %v329 = vld [vmem:[%s1 + $0x130] sm:$0xff]
      %v330 = vld [vmem:[%s1 + $0x138] sm:$0xff]
      %v331 = vld [vmem:[%s1 + $0x140] sm:$0xff]
      %v332 = vld [vmem:[%s1 + $0x148] sm:$0xff]
      %v333 = vld [vmem:[%s1 + $0x150] sm:$0xff]
      %v334 = vld [vmem:[%s1 + $0x158] sm:$0xff]
      %v335 = vld [vmem:[%s1 + $0x160] sm:$0xff]
      %v336 = vld [vmem:[%s1 + $0x168] sm:$0xff]
      %v337 = vld [vmem:[%s1 + $0x170] sm:$0xff]
      %v338 = vld [vmem:[%s1 + $0x178] sm:$0xff]
      %v339 = vld [vmem:[%s1 + $0x180] sm:$0xff]
      %v340 = vld [vmem:[%s1 + $0x188] sm:$0xff]
      %v341 = vld [vmem:[%s1 + $0x190] sm:$0xff]
      %v342 = vld [vmem:[%s1 + $0x198] sm:$0xff]
      %v343 = vld [vmem:[%s1 + $0x1a0] sm:$0xff]
      %v344 = vld [vmem:[%s1 + $0x1a8] sm:$0xff]
      %v345 = vld [vmem:[%s1 + $0x1b0] sm:$0xff]
      %v346 = vld [vmem:[%s1 + $0x1b8] sm:$0xff]
      %v347 = vld [vmem:[%s1 + $0x1c0] sm:$0xff]
      %v348 = vld [vmem:[%s1 + $0x1c8] sm:$0xff]
      %v349 = vld [vmem:[%s1 + $0x1d0] sm:$0xff]
      %v350 = vld [vmem:[%s1 + $0x1d8] sm:$0xff]
      %v351 = vld [vmem:[%s1 + $0x1e0] sm:$0xff]
      %v352 = vld [vmem:[%s1 + $0x1e8] sm:$0xff]
      %v353 = vld [vmem:[%s1 + $0x1f0] sm:$0xff]
      %v354 = vld [vmem:[%s1 + $0x1f8] sm:$0xff]
      %v355 = vld [vmem:[%s1 + $0x200] sm:$0xff]
      %v356 = vld [vmem:[%s1 + $0x208] sm:$0xff]
      %v357 = vld [vmem:[%s1 + $0x210] sm:$0xff]
      %v358 = vld [vmem:[%s1 + $0x218] sm:$0xff]
      %v359 = vld [vmem:[%s1 + $0x220] sm:$0xff]
      %v360 = vld [vmem:[%s1 + $0x228] sm:$0xff]
      %v361 = vld [vmem:[%s1 + $0x230] sm:$0xff]
      %v362 = vld [vmem:[%s1 + $0x238] sm:$0xff]
      %v363 = vld [vmem:[%s1 + $0x240] sm:$0xff]
      %v364 = vld [vmem:[%s1 + $0x248] sm:$0xff]
      %v365 = vld [vmem:[%s1 + $0x250] sm:$0xff]
      %v366 = vld [vmem:[%s1 + $0x258] sm:$0xff]
      %v367 = vld [vmem:[%s1 + $0x260] sm:$0xff]
      %v368 = vld [vmem:[%s1 + $0x268] sm:$0xff]
      %v369 = vld [vmem:[%s1 + $0x270] sm:$0xff]
      %v370 = vld [vmem:[%s1 + $0x278] sm:$0xff]
      %v371 = vld [vmem:[%s1 + $0x280] sm:$0xff]
      %v372 = vld [vmem:[%s1 + $0x288] sm:$0xff]
      %v373 = vld [vmem:[%s1 + $0x290] sm:$0xff]
      %v374 = vld [vmem:[%s1 + $0x298] sm:$0xff]
      %v375 = vld [vmem:[%s1 + $0x2a0] sm:$0xff]
      %v376 = vld [vmem:[%s1 + $0x2a8] sm:$0xff]
      %v377 = vld [vmem:[%s1 + $0x2b0] sm:$0xff]
      %v378 = vld [vmem:[%s1 + $0x2b8] sm:$0xff]
      %v379 = vld [vmem:[%s1 + $0x2c0] sm:$0xff]
      %v380 = vld [vmem:[%s1 + $0x2c8] sm:$0xff]
      %v381 = vld [vmem:[%s1 + $0x2d0] sm:$0xff]
      %v382 = vld [vmem:[%s1 + $0x2d8] sm:$0xff]
      %v383 = vld [vmem:[%s1 + $0x2e0] sm:$0xff]
      %v384 = vld [vmem:[%s1 + $0x2e8] sm:$0xff]
      %v385 = vld [vmem:[%s1 + $0x2f0] sm:$0xff]
      %v386 = vld [vmem:[%s1 + $0x2f8] sm:$0xff]
      %v387 = vld [vmem:[%s1 + $0x300] sm:$0xff]
      %v388 = vld [vmem:[%s1 + $0x308] sm:$0xff]
      %v389 = vld [vmem:[%s1 + $0x310] sm:$0xff]
      %v390 = vld [vmem:[%s1 + $0x318] sm:$0xff]
      %v391 = vld [vmem:[%s1 + $0x320] sm:$0xff]
      %v392 = vld [vmem:[%s1 + $0x328] sm:$0xff]
      %v393 = vld [vmem:[%s1 + $0x330] sm:$0xff]
      %v394 = vld [vmem:[%s1 + $0x338] sm:$0xff]
      %v395 = vld [vmem:[%s1 + $0x340] sm:$0xff]
      %v396 = vld [vmem:[%s1 + $0x348] sm:$0xff]
      %v397 = vld [vmem:[%s1 + $0x350] sm:$0xff]
      %v398 = vld [vmem:[%s1 + $0x358] sm:$0xff]
      %v399 = vld [vmem:[%s1 + $0x360] sm:$0xff]
      %v400 = vld [vmem:[%s1 + $0x368] sm:$0xff]
      %v401 = vld [vmem:[%s1 + $0x370] sm:$0xff]
      %v402 = vld [vmem:[%s1 + $0x378] sm:$0xff]
      %v403 = vld [vmem:[%s1 + $0x380] sm:$0xff]
      %v404 = vld [vmem:[%s1 + $0x388] sm:$0xff]
      %v405 = vld [vmem:[%s1 + $0x390] sm:$0xff]
      %v406 = vld [vmem:[%s1 + $0x398] sm:$0xff]
      %v407 = vld [vmem:[%s1 + $0x3a0] sm:$0xff]
      %v408 = vld [vmem:[%s1 + $0x3a8] sm:$0xff]
      %v409 = vld [vmem:[%s1 + $0x3b0] sm:$0xff]
      %v410 = vld [vmem:[%s1 + $0x3b8] sm:$0xff]
      %v411 = vld [vmem:[%s1 + $0x3c0] sm:$0xff]
      %v412 = vld [vmem:[%s1 + $0x3c8] sm:$0xff]
      %v413 = vld [vmem:[%s1 + $0x3d0] sm:$0xff]
      %v414 = vld [vmem:[%s1 + $0x3d8] sm:$0xff]
      %v415 = vld [vmem:[%s1 + $0x3e0] sm:$0xff]
      %v416 = vld [vmem:[%s1 + $0x3e8] sm:$0xff]
      %v417 = vld [vmem:[%s1 + $0x3f0] sm:$0xff]
      %v418 = vld [vmem:[%s1 + $0x3f8] sm:$0xff]
      %v419 = vld [vmem:[%s1 + $0x400] sm:$0xff]
      %v420 = vld [vmem:[%s1 + $0x408] sm:$0xff]
      %v421 = vld [vmem:[%s1 + $0x410] sm:$0xff]
      %v422 = vld [vmem:[%s1 + $0x418] sm:$0xff]
      %v423 = vld [vmem:[%s1 + $0x420] sm:$0xff]
      %v424 = vld [vmem:[%s1 + $0x428] sm:$0xff]
      %v425 = vld [vmem:[%s1 + $0x430] sm:$0xff]
      %v426 = vld [vmem:[%s1 + $0x438] sm:$0xff]
      %v427 = vld [vmem:[%s1 + $0x440] sm:$0xff]
      %v428 = vld [vmem:[%s1 + $0x448] sm:$0xff]
      %v429 = vld [vmem:[%s1 + $0x450] sm:$0xff]
      %v430 = vld [vmem:[%s1 + $0x458] sm:$0xff]
      %v431 = vld [vmem:[%s1 + $0x460] sm:$0xff]
      %v432 = vld [vmem:[%s1 + $0x468] sm:$0xff]
      %v433 = vld [vmem:[%s1 + $0x470] sm:$0xff]
      %v434 = vld [vmem:[%s1 + $0x478] sm:$0xff]
      %v435 = vld [vmem:[%s1 + $0x480] sm:$0xff]
      %v436 = vld [vmem:[%s1 + $0x488] sm:$0xff]
      %v437 = vld [vmem:[%s1 + $0x490] sm:$0xff]
      %v438 = vld [vmem:[%s1 + $0x498] sm:$0xff]
      %v439 = vld [vmem:[%s1 + $0x4a0] sm:$0xff]
      %v440 = vld [vmem:[%s1 + $0x4a8] sm:$0xff]
      %v441 = vld [vmem:[%s1 + $0x4b0] sm:$0xff]
      %v442 = vld [vmem:[%s1 + $0x4b8] sm:$0xff]
      %v443 = vld [vmem:[%s1 + $0x4c0] sm:$0xff]
      %v444 = vld [vmem:[%s1 + $0x4c8] sm:$0xff]
      %v445 = vld [vmem:[%s1 + $0x4d0] sm:$0xff]
      %v446 = vld [vmem:[%s1 + $0x4d8] sm:$0xff]
      %v447 = vld [vmem:[%s1 + $0x4e0] sm:$0xff]
      %v448 = vld [vmem:[%s1 + $0x4e8] sm:$0xff]
      %v449 = vld [vmem:[%s1 + $0x4f0] sm:$0xff]
      %v450 = vld [vmem:[%s1 + $0x4f8] sm:$0xff]
      %v451 = vld [vmem:[%s1 + $0x500] sm:$0xff]
      %v452 = vld [vmem:[%s1 + $0x508] sm:$0xff]
      %v453 = vld [vmem:[%s1 + $0x510] sm:$0xff]
      %v454 = vld [vmem:[%s1 + $0x518] sm:$0xff]
      %v455 = vld [vmem:[%s1 + $0x520] sm:$0xff]
      %v456 = vld [vmem:[%s1 + $0x528] sm:$0xff]
      %v457 = vld [vmem:[%s1 + $0x530] sm:$0xff]
      %v458 = vld [vmem:[%s1 + $0x538] sm:$0xff]
      %v459 = vld [vmem:[%s1 + $0x540] sm:$0xff]
      %v460 = vld [vmem:[%s1 + $0x548] sm:$0xff]
      %v461 = vld [vmem:[%s1 + $0x550] sm:$0xff]
      %v462 = vld [vmem:[%s1 + $0x558] sm:$0xff]
      %v463 = vld [vmem:[%s1 + $0x560] sm:$0xff]
      %v464 = vld [vmem:[%s1 + $0x568] sm:$0xff]
      %v465 = vld [vmem:[%s1 + $0x570] sm:$0xff]
      %v466 = vld [vmem:[%s1 + $0x578] sm:$0xff]
      %v467 = vld [vmem:[%s1 + $0x580] sm:$0xff]
      %v468 = vld [vmem:[%s1 + $0x588] sm:$0xff]
      %v469 = vld [vmem:[%s1 + $0x590] sm:$0xff]
      %v470 = vld [vmem:[%s1 + $0x598] sm:$0xff]
      %v471 = vld [vmem:[%s1 + $0x5a0] sm:$0xff]
      %v472 = vld [vmem:[%s1 + $0x5a8] sm:$0xff]
      %v473 = vld [vmem:[%s1 + $0x5b0] sm:$0xff]
      %v474 = vld [vmem:[%s1 + $0x5b8] sm:$0xff]
      %v475 = vld [vmem:[%s1 + $0x5c0] sm:$0xff]
      %v476 = vld [vmem:[%s1 + $0x5c8] sm:$0xff]
      %v477 = vld [vmem:[%s1 + $0x5d0] sm:$0xff]
      %v478 = vld [vmem:[%s1 + $0x5d8] sm:$0xff]
      %v479 = vld [vmem:[%s1 + $0x5e0] sm:$0xff]
      %v480 = vld [vmem:[%s1 + $0x5e8] sm:$0xff]
      %v481 = vld [vmem:[%s1 + $0x5f0] sm:$0xff]
      %v482 = vld [vmem:[%s1 + $0x5f8] sm:$0xff]
      %v483 = vld [vmem:[%s1 + $0x600] sm:$0xff]
      %v484 = vld [vmem:[%s1 + $0x608] sm:$0xff]
      %v485 = vld [vmem:[%s1 + $0x610] sm:$0xff]
      %v486 = vld [vmem:[%s1 + $0x618] sm:$0xff]
      %v487 = vld [vmem:[%s1 + $0x620] sm:$0xff]
      %v488 = vld [vmem:[%s1 + $0x628] sm:$0xff]
      %v489 = vld [vmem:[%s1 + $0x630] sm:$0xff]
      %v490 = vld [vmem:[%s1 + $0x638] sm:$0xff]
      %v491 = vld [vmem:[%s1 + $0x640] sm:$0xff]
      %v492 = vld [vmem:[%s1 + $0x648] sm:$0xff]
      %v493 = vld [vmem:[%s1 + $0x650] sm:$0xff]
      %v494 = vld [vmem:[%s1 + $0x658] sm:$0xff]
      %v495 = vld [vmem:[%s1 + $0x660] sm:$0xff]
      %v496 = vld [vmem:[%s1 + $0x668] sm:$0xff]
      %v497 = vld [vmem:[%s1 + $0x670] sm:$0xff]
      %v498 = vld [vmem:[%s1 + $0x678] sm:$0xff]
      %v499 = vld [vmem:[%s1 + $0x680] sm:$0xff]
      %v500 = vld [vmem:[%s1 + $0x688] sm:$0xff]
      %v501 = vld [vmem:[%s1 + $0x690] sm:$0xff]
      %v502 = vld [vmem:[%s1 + $0x698] sm:$0xff]
      %v503 = vld [vmem:[%s1 + $0x6a0] sm:$0xff]
      %v504 = vld [vmem:[%s1 + $0x6a8] sm:$0xff]
      %v505 = vld [vmem:[%s1 + $0x6b0] sm:$0xff]
      %v506 = vld [vmem:[%s1 + $0x6b8] sm:$0xff]
      %v507 = vld [vmem:[%s1 + $0x6c0] sm:$0xff]
      %v508 = vld [vmem:[%s1 + $0x6c8] sm:$0xff]
      %v509 = vld [vmem:[%s1 + $0x6d0] sm:$0xff]
      %v510 = vld [vmem:[%s1 + $0x6d8] sm:$0xff]
      %v511 = vld [vmem:[%s1 + $0x6e0] sm:$0xff]
      %v512 = vld [vmem:[%s1 + $0x6e8] sm:$0xff]
      %v513 = vld [vmem:[%s1 + $0x6f0] sm:$0xff]
      %v514 = vld [vmem:[%s1 + $0x6f8] sm:$0xff]
      %v515 = vld [vmem:[%s1 + $0x700] sm:$0xff]
      %v516 = vld [vmem:[%s1 + $0x708] sm:$0xff]
      %v517 = vld [vmem:[%s1 + $0x710] sm:$0xff]
      %v518 = vld [vmem:[%s1 + $0x718] sm:$0xff]
      %v519 = vld [vmem:[%s1 + $0x720] sm:$0xff]
      %v520 = vld [vmem:[%s1 + $0x728] sm:$0xff]
      %v521 = vld [vmem:[%s1 + $0x730] sm:$0xff]
      %v522 = vld [vmem:[%s1 + $0x738] sm:$0xff]
      %v523 = vld [vmem:[%s1 + $0x740] sm:$0xff]
      %v524 = vld [vmem:[%s1 + $0x748] sm:$0xff]
      %v525 = vld [vmem:[%s1 + $0x750] sm:$0xff]
      %v526 = vld [vmem:[%s1 + $0x758] sm:$0xff]
      %v527 = vld [vmem:[%s1 + $0x760] sm:$0xff]
      %v528 = vld [vmem:[%s1 + $0x768] sm:$0xff]
      %v529 = vld [vmem:[%s1 + $0x770] sm:$0xff]
      %v530 = vld [vmem:[%s1 + $0x778] sm:$0xff]
      %v531 = vld [vmem:[%s1 + $0x780] sm:$0xff]
      %v532 = vld [vmem:[%s1 + $0x788] sm:$0xff]
      %v533 = vld [vmem:[%s1 + $0x790] sm:$0xff]
      %v534 = vld [vmem:[%s1 + $0x798] sm:$0xff]
      %v535 = vld [vmem:[%s1 + $0x7a0] sm:$0xff]
      %v536 = vld [vmem:[%s1 + $0x7a8] sm:$0xff]
      %v537 = vld [vmem:[%s1 + $0x7b0] sm:$0xff]
      %v538 = vld [vmem:[%s1 + $0x7b8] sm:$0xff]
      %v539 = vld [vmem:[%s1 + $0x7c0] sm:$0xff]
      %v540 = vld [vmem:[%s1 + $0x7c8] sm:$0xff]
      %v541 = vld [vmem:[%s1 + $0x7d0] sm:$0xff]
      %v542 = vld [vmem:[%s1 + $0x7d8] sm:$0xff]
      %v543 = vld [vmem:[%s1 + $0x7e0] sm:$0xff]
      %v544 = vld [vmem:[%s1 + $0x7e8] sm:$0xff]
      %v545 = vld [vmem:[%s1 + $0x7f0] sm:$0xff]
      %v546 = vld [vmem:[%s1 + $0x7f8] sm:$0xff]
      %v547 = vld [vmem:[%s1 + $0x800] sm:$0xff]
      %v548 = vld [vmem:[%s1 + $0x808] sm:$0xff]
      %v549 = vld [vmem:[%s1 + $0x810] sm:$0xff]
      %v550 = vld [vmem:[%s1 + $0x818] sm:$0xff]
      %v551 = vld [vmem:[%s1 + $0x820] sm:$0xff]
      %v552 = vld [vmem:[%s1 + $0x828] sm:$0xff]
      %v553 = vld [vmem:[%s1 + $0x830] sm:$0xff]
      %v554 = vld [vmem:[%s1 + $0x838] sm:$0xff]
      %v555 = vld [vmem:[%s1 + $0x840] sm:$0xff]
      %v556 = vld [vmem:[%s1 + $0x848] sm:$0xff]
      %v557 = vld [vmem:[%s1 + $0x850] sm:$0xff]
      %v558 = vld [vmem:[%s1 + $0x858] sm:$0xff]
      %v559 = vld [vmem:[%s1 + $0x860] sm:$0xff]
      %v560 = vld [vmem:[%s1 + $0x868] sm:$0xff]
      %v561 = vld [vmem:[%s1 + $0x870] sm:$0xff]
      %v562 = vld [vmem:[%s1 + $0x878] sm:$0xff]
      %v563 = vld [vmem:[%s1 + $0x880] sm:$0xff]
      %v564 = vld [vmem:[%s1 + $0x888] sm:$0xff]
      %v565 = vld [vmem:[%s1 + $0x890] sm:$0xff]
      %v566 = vld [vmem:[%s1 + $0x898] sm:$0xff]
      %v567 = vld [vmem:[%s1 + $0x8a0] sm:$0xff]
      %v568 = vld [vmem:[%s1 + $0x8a8] sm:$0xff]
      %v569 = vld [vmem:[%s1 + $0x8b0] sm:$0xff]
      %v570 = vld [vmem:[%s1 + $0x8b8] sm:$0xff]
      %v571 = vld [vmem:[%s1 + $0x8c0] sm:$0xff]
      %v572 = vld [vmem:[%s1 + $0x8c8] sm:$0xff]
      %v573 = vld [vmem:[%s1 + $0x8d0] sm:$0xff]
      %v574 = vld [vmem:[%s1 + $0x8d8] sm:$0xff]
      %v575 = vld [vmem:[%s1 + $0x8e0] sm:$0xff]
      %v576 = vld [vmem:[%s1 + $0x8e8] sm:$0xff]
      %v577 = vld [vmem:[%s1 + $0x8f0] sm:$0xff]
      %v578 = vld [vmem:[%s1 + $0x8f8] sm:$0xff]
      %v579 = vld [vmem:[%s1 + $0x900] sm:$0xff]
      %v580 = vld [vmem:[%s1 + $0x908] sm:$0xff]
      %v581 = vld [vmem:[%s1 + $0x910] sm:$0xff]
      %v582 = vld [vmem:[%s1 + $0x918] sm:$0xff]
      %v583 = vld [vmem:[%s1 + $0x920] sm:$0xff]
      %v584 = vld [vmem:[%s1 + $0x928] sm:$0xff]
      %v585 = vld [vmem:[%s1 + $0x930] sm:$0xff]
      %v586 = vld [vmem:[%s1 + $0x938] sm:$0xff]
      %v587 = vld [vmem:[%s1 + $0x940] sm:$0xff]
      %v588 = vld [vmem:[%s1 + $0x948] sm:$0xff]
      %v589 = vld [vmem:[%s1 + $0x950] sm:$0xff]
      %v590 = vld [vmem:[%s1 + $0x958] sm:$0xff]
      %v591 = vld [vmem:[%s1 + $0x960] sm:$0xff]
      %v592 = vld [vmem:[%s1 + $0x968] sm:$0xff]
      %v593 = vld [vmem:[%s1 + $0x970] sm:$0xff]
      %v594 = vld [vmem:[%s1 + $0x978] sm:$0xff]
      %v595 = vld [vmem:[%s1 + $0x980] sm:$0xff]
      %v596 = vld [vmem:[%s1 + $0x988] sm:$0xff]
      %v597 = vld [vmem:[%s1 + $0x990] sm:$0xff]
      %v598 = vld [vmem:[%s1 + $0x998] sm:$0xff]
      %v599 = vld [vmem:[%s1 + $0x9a0] sm:$0xff]
      %v600 = vld [vmem:[%s1 + $0x9a8] sm:$0xff]
      %v601 = vld [vmem:[%s1 + $0x9b0] sm:$0xff]
      %v602 = vld [vmem:[%s1 + $0x9b8] sm:$0xff]
      %v603 = vld [vmem:[%s1 + $0x9c0] sm:$0xff]
      %v604 = vld [vmem:[%s1 + $0x9c8] sm:$0xff]
      %v605 = vld [vmem:[%s1 + $0x9d0] sm:$0xff]
      %v606 = vld [vmem:[%s1 + $0x9d8] sm:$0xff]
      %v607 = vld [vmem:[%s1 + $0x9e0] sm:$0xff]
      %v608 = vld [vmem:[%s1 + $0x9e8] sm:$0xff]
      %v609 = vld [vmem:[%s1 + $0x9f0] sm:$0xff]
      %v610 = vld [vmem:[%s1 + $0x9f8] sm:$0xff]
      %v611 = vld [vmem:[%s1 + $0xa00] sm:$0xff]
      %v612 = vld [vmem:[%s1 + $0xa08] sm:$0xff]
      %v613 = vld [vmem:[%s1 + $0xa10] sm:$0xff]
      %v614 = vld [vmem:[%s1 + $0xa18] sm:$0xff]
      %v615 = vld [vmem:[%s1 + $0xa20] sm:$0xff]
      %v616 = vld [vmem:[%s1 + $0xa28] sm:$0xff]
      %v617 = vld [vmem:[%s1 + $0xa30] sm:$0xff]
      %v618 = vld [vmem:[%s1 + $0xa38] sm:$0xff]
      %v619 = vld [vmem:[%s1 + $0xa40] sm:$0xff]
      %v620 = vld [vmem:[%s1 + $0xa48] sm:$0xff]
      %v621 = vld [vmem:[%s1 + $0xa50] sm:$0xff]
      %v622 = vld [vmem:[%s1 + $0xa58] sm:$0xff]
      %v623 = vld [vmem:[%s1 + $0xa60] sm:$0xff]
      %v624 = vld [vmem:[%s1 + $0xa68] sm:$0xff]
      %v625 = vld [vmem:[%s1 + $0xa70] sm:$0xff]
      %v626 = vld [vmem:[%s1 + $0xa78] sm:$0xff]
      %v627 = vld [vmem:[%s1 + $0xa80] sm:$0xff]
      %v628 = vld [vmem:[%s1 + $0xa88] sm:$0xff]
      %v629 = vld [vmem:[%s1 + $0xa90] sm:$0xff]
      %v630 = vld [vmem:[%s1 + $0xa98] sm:$0xff]
      %v631 = vld [vmem:[%s1 + $0xaa0] sm:$0xff]
      %v632 = vld [vmem:[%s1 + $0xaa8] sm:$0xff]
      %v633 = vld [vmem:[%s1 + $0xab0] sm:$0xff]
      %v634 = vld [vmem:[%s1 + $0xab8] sm:$0xff]
      %v635 = vld [vmem:[%s1 + $0xac0] sm:$0xff]
      %v636 = vld [vmem:[%s1 + $0xac8] sm:$0xff]
      %v637 = vld [vmem:[%s1 + $0xad0] sm:$0xff]
      %v638 = vld [vmem:[%s1 + $0xad8] sm:$0xff]
      %v639 = vld [vmem:[%s1 + $0xae0] sm:$0xff]
      %v640 = vld [vmem:[%s1 + $0xae8] sm:$0xff]
      %v641 = vld [vmem:[%s1 + $0xaf0] sm:$0xff]
      %v642 = vld [vmem:[%s1 + $0xaf8] sm:$0xff]
      %v643 = vld [vmem:[%s1 + $0xb00] sm:$0xff]
      %v644 = vld [vmem:[%s1 + $0xb08] sm:$0xff]
      %v645 = vld [vmem:[%s1 + $0xb10] sm:$0xff]
      %v646 = vld [vmem:[%s1 + $0xb18] sm:$0xff]
      %v647 = vld [vmem:[%s1 + $0xb20] sm:$0xff]
      %v648 = vld [vmem:[%s1 + $0xb28] sm:$0xff]
      %v649 = vld [vmem:[%s1 + $0xb30] sm:$0xff]
      %v650 = vld [vmem:[%s1 + $0xb38] sm:$0xff]
      %v651 = vld [vmem:[%s1 + $0xb40] sm:$0xff]
      %v652 = vld [vmem:[%s1 + $0xb48] sm:$0xff]
      %v653 = vld [vmem:[%s1 + $0xb50] sm:$0xff]
      %v654 = vld [vmem:[%s1 + $0xb58] sm:$0xff]
      %v655 = vld [vmem:[%s1 + $0xb60] sm:$0xff]
      %v656 = vld [vmem:[%s1 + $0xb68] sm:$0xff]
      %v657 = vld [vmem:[%s1 + $0xb70] sm:$0xff]
      %v658 = vld [vmem:[%s1 + $0xb78] sm:$0xff]
      %v659 = vld [vmem:[%s1 + $0xb80] sm:$0xff]
      %v660 = vld [vmem:[%s1 + $0xb88] sm:$0xff]
      %v661 = vld [vmem:[%s1 + $0xb90] sm:$0xff]
      %v662 = vld [vmem:[%s1 + $0xb98] sm:$0xff]
      %v663 = vld [vmem:[%s1 + $0xba0] sm:$0xff]
      %v664 = vld [vmem:[%s1 + $0xba8] sm:$0xff]
      %v665 = vld [vmem:[%s1 + $0xbb0] sm:$0xff]
      %v666 = vld [vmem:[%s1 + $0xbb8] sm:$0xff]
      %v667 = vld [vmem:[%s1 + $0xbc0] sm:$0xff]
      %v668 = vld [vmem:[%s1 + $0xbc8] sm:$0xff]
      %v669 = vld [vmem:[%s1 + $0xbd0] sm:$0xff]
      %v670 = vld [vmem:[%s1 + $0xbd8] sm:$0xff]
      %v671 = vld [vmem:[%s1 + $0xbe0] sm:$0xff]
      %v672 = vld [vmem:[%s1 + $0xbe8] sm:$0xff]
      %v673 = vld [vmem:[%s1 + $0xbf0] sm:$0xff]
      %v674 = vld [vmem:[%s1 + $0xbf8] sm:$0xff]
      %v675 = vld [vmem:[%s1 + $0xc00] sm:$0xff]
      %v676 = vld [vmem:[%s1 + $0xc08] sm:$0xff]
      %v677 = vld [vmem:[%s1 + $0xc10] sm:$0xff]
      %v678 = vld [vmem:[%s1 + $0xc18] sm:$0xff]
      %v679 = vld [vmem:[%s1 + $0xc20] sm:$0xff]
      %v680 = vld [vmem:[%s1 + $0xc28] sm:$0xff]
      %v681 = vld [vmem:[%s1 + $0xc30] sm:$0xff]
      %v682 = vld [vmem:[%s1 + $0xc38] sm:$0xff]
      %v683 = vld [vmem:[%s1 + $0xc40] sm:$0xff]
      %v684 = vld [vmem:[%s1 + $0xc48] sm:$0xff]
      %v685 = vld [vmem:[%s1 + $0xc50] sm:$0xff]
      %v686 = vld [vmem:[%s1 + $0xc58] sm:$0xff]
      %v687 = vld [vmem:[%s1 + $0xc60] sm:$0xff]
      %v688 = vld [vmem:[%s1 + $0xc68] sm:$0xff]
      %v689 = vld [vmem:[%s1 + $0xc70] sm:$0xff]
      %v690 = vld [vmem:[%s1 + $0xc78] sm:$0xff]
      %v691 = vld [vmem:[%s1 + $0xc80] sm:$0xff]
      %v692 = vld [vmem:[%s1 + $0xc88] sm:$0xff]
      %v693 = vld [vmem:[%s1 + $0xc90] sm:$0xff]
      %v694 = vld [vmem:[%s1 + $0xc98] sm:$0xff]
      %v695 = vld [vmem:[%s1 + $0xca0] sm:$0xff]
      %v696 = vld [vmem:[%s1 + $0xca8] sm:$0xff]
      %v697 = vld [vmem:[%s1 + $0xcb0] sm:$0xff]
      %v698 = vld [vmem:[%s1 + $0xcb8] sm:$0xff]
      %v699 = vld [vmem:[%s1 + $0xcc0] sm:$0xff]
      %v700 = vld [vmem:[%s1 + $0xcc8] sm:$0xff]
      %v701 = vld [vmem:[%s1 + $0xcd0] sm:$0xff]
      %v702 = vld [vmem:[%s1 + $0xcd8] sm:$0xff]
      %v703 = vld [vmem:[%s1 + $0xce0] sm:$0xff]
      %v704 = vld [vmem:[%s1 + $0xce8] sm:$0xff]
      %v705 = vld [vmem:[%s1 + $0xcf0] sm:$0xff]
      %v706 = vld [vmem:[%s1 + $0xcf8] sm:$0xff]
      %v707 = vld [vmem:[%s1 + $0xd00] sm:$0xff]
      %v708 = vld [vmem:[%s1 + $0xd08] sm:$0xff]
      %v709 = vld [vmem:[%s1 + $0xd10] sm:$0xff]
      %v710 = vld [vmem:[%s1 + $0xd18] sm:$0xff]
      %v711 = vld [vmem:[%s1 + $0xd20] sm:$0xff]
      %v712 = vld [vmem:[%s1 + $0xd28] sm:$0xff]
      %v713 = vld [vmem:[%s1 + $0xd30] sm:$0xff]
      %v714 = vld [vmem:[%s1 + $0xd38] sm:$0xff]
      %v715 = vld [vmem:[%s1 + $0xd40] sm:$0xff]
      %v716 = vld [vmem:[%s1 + $0xd48] sm:$0xff]
      %v717 = vld [vmem:[%s1 + $0xd50] sm:$0xff]
      %v718 = vld [vmem:[%s1 + $0xd58] sm:$0xff]
      %v719 = vld [vmem:[%s1 + $0xd60] sm:$0xff]
      %v720 = vld [vmem:[%s1 + $0xd68] sm:$0xff]
      %v721 = vld [vmem:[%s1 + $0xd70] sm:$0xff]
      %v722 = vld [vmem:[%s1 + $0xd78] sm:$0xff]
      %v723 = vld [vmem:[%s2] sm:$0x3]
      %v725 = vlaneseq
      %v726 = vshrl.u32 %v725, 7
      %v727 = vsub.s32 0, %v726
      %v728 = vrot.slane %v723, %v727
      %v729 = vlaneseq
      %v730 = vshrl.u32 %v729, 7
      %v731 = vsub.s32 1, %v730
      %v732 = vrot.slane %v723, %v731
      %vm735 = vcmask 523264
      %v737 = vsel %vm735, %v192, 0
      %v740 = vsel %vm735, %v206, 0
      %v743 = vsel %vm735, %v220, 0
      %v746 = vsel %vm735, %v234, 0
      %v749 = vsel %vm735, %v248, 0
      %v752 = vsel %vm735, %v262, 0
      %v755 = vsel %vm735, %v276, 0
      %v758 = vsel %vm735, %v290, 0
      %760 = vmatprep.subr.mxu0 %v292
      %761 = vmatpush1.msra.mxu0 %v291
      %762 = vmatprep.subr.mxu0 %v294
      %763 = vmatpush1.msra.mxu0 %v293
      %764 = vmatprep.subr.mxu0 %v296
      %765 = vmatpush1.msra.mxu0 %v295
      %766 = vmatprep.subr.mxu0 %v298
      %767 = vmatpush1.msra.mxu0 %v297
      %768 = vmatprep.subr.mxu0 %v300
      %769 = vmatpush1.msra.mxu0 %v299
      %770 = vmatprep.subr.mxu0 %v302
      %771 = vmatpush1.msra.mxu0 %v301
      %772 = vmatprep.subr.mxu0 %v304
      %773 = vmatpush1.msra.mxu0 %v303
      %774 = vmatprep.subr.mxu0 %v306
      %775 = vmatpush1.msra.mxu0 %v305
      %776 = vmatprep.subr.mxu0 %v308
      %777 = vmatpush1.msra.mxu0 %v307
      %778 = vmatprep.subr.mxu0 %v310
      %779 = vmatpush1.msra.mxu0 %v309
      %780 = vmatprep.subr.mxu0 %v312
      %781 = vmatpush1.msra.mxu0 %v311
      %782 = vmatprep.subr.mxu0 %v314
      %783 = vmatpush1.msra.mxu0 %v313
      %784 = vmatprep.subr.mxu0 %v316
      %785 = vmatpush1.msra.mxu0 %v315
      %786 = vmatprep.subr.mxu0 %v318
      %787 = vmatpush1.msra.mxu0 %v317
      %788 = vmatprep.subr.mxu0 %v320
      %789 = vmatpush1.msra.mxu0 %v319
      %790 = vmatprep.subr.mxu0 %v322
      %791 = vmatpush1.msra.mxu0 %v321
      %792 = vmatprep.subr.mxu0 %v324
      %793 = vmatpush1.msra.mxu0 %v323
      %794 = vmatprep.subr.mxu0 %v326
      %795 = vmatpush1.msra.mxu0 %v325
      %796 = vmatprep.subr.mxu0 %v328
      %797 = vmatpush1.msra.mxu0 %v327
      %798 = vmatprep.subr.mxu0 %v330
      %799 = vmatpush1.msra.mxu0 %v329
      %800 = vmatprep.subr.mxu0 %v332
      %801 = vmatpush1.msra.mxu0 %v331
      %802 = vmatprep.subr.mxu0 %v334
      %803 = vmatpush1.msra.mxu0 %v333
      %804 = vmatprep.subr.mxu0 %v336
      %805 = vmatpush1.msra.mxu0 %v335
      %806 = vmatprep.subr.mxu0 %v338
      %807 = vmatpush1.msra.mxu0 %v337
      %808 = vmatprep.subr.mxu0 %v340
      %809 = vmatpush1.msra.mxu0 %v339
      %810 = vmatprep.subr.mxu0 %v342
      %811 = vmatpush1.msra.mxu0 %v341
      %812 = vmatprep.subr.mxu0 %v344
      %813 = vmatpush1.msra.mxu0 %v343
      %814 = vmatprep.subr.mxu0 %v346
      %815 = vmatpush1.msra.mxu0 %v345
      %816 = vmatprep.subr.mxu0 %v348
      %817 = vmatpush1.msra.mxu0 %v347
      %818 = vmatprep.subr.mxu0 %v350
      %819 = vmatpush1.msra.mxu0 %v349
      %820 = vmatprep.subr.mxu0 %v352
      %821 = vmatpush1.msra.mxu0 %v351
      %822 = vmatprep.subr.mxu0 %v354
      %823 = vmatpush1.msra.mxu0 %v353
      %824 = vmatprep.mubr.f32.mxu0 %v180
      %825 = vmatmul.mubr.f32.gmra.mrb[0].mxu0 %v179
      %v826 = vpop.f32.mrb[0].mxu0
      %v827 = vadd.f32 %v728, %v826
      %v828 = vpop.f32.mrb[0].mxu0
      %v829 = vadd.f32 %v732, %v828
      %830 = vmatprep.mubr.f32.mxu0 %v194
      %831 = vmatmul.mubr.f32.gmra.mrb[0].mxu0 %v193
      %v832 = vpop.f32.mrb[0].mxu0
      %v833 = vadd.f32 %v728, %v832
      %v834 = vpop.f32.mrb[0].mxu0
      %v835 = vadd.f32 %v732, %v834
      %836 = vmatprep.mubr.f32.mxu0 %v208
      %837 = vmatmul.mubr.f32.gmra.mrb[0].mxu0 %v207
      %v838 = vpop.f32.mrb[0].mxu0
      %v839 = vadd.f32 %v728, %v838
      %v840 = vpop.f32.mrb[0].mxu0
      %v841 = vadd.f32 %v732, %v840
      %842 = vmatprep.mubr.f32.mxu0 %v222
      %843 = vmatmul.mubr.f32.gmra.mrb[0].mxu0 %v221
      %v844 = vpop.f32.mrb[0].mxu0
      %v845 = vadd.f32 %v728, %v844
      %v846 = vpop.f32.mrb[0].mxu0
      %v847 = vadd.f32 %v732, %v846
      %848 = vmatprep.mubr.f32.mxu0 %v236
      %849 = vmatmul.mubr.f32.gmra.mrb[0].mxu0 %v235
      %v850 = vpop.f32.mrb[0].mxu0
      %v851 = vadd.f32 %v728, %v850
      %v852 = vpop.f32.mrb[0].mxu0
      %v853 = vadd.f32 %v732, %v852
      %854 = vmatprep.mubr.f32.mxu0 %v250
      %855 = vmatmul.mubr.f32.gmra.mrb[0].mxu0 %v249
      %v856 = vpop.f32.mrb[0].mxu0
      %v857 = vadd.f32 %v728, %v856
      %v858 = vpop.f32.mrb[0].mxu0
      %v859 = vadd.f32 %v732, %v858
      %860 = vmatprep.mubr.f32.mxu0 %v264
      %861 = vmatmul.mubr.f32.gmra.mrb[0].mxu0 %v263
      %v862 = vpop.f32.mrb[0].mxu0
      %v863 = vadd.f32 %v728, %v862
      %v864 = vpop.f32.mrb[0].mxu0
      %v865 = vadd.f32 %v732, %v864
      %866 = vmatprep.mubr.f32.mxu0 %v278
      %867 = vmatmul.mubr.f32.gmra.mrb[0].mxu0 %v277
      %v868 = vpop.f32.mrb[0].mxu0
      %v869 = vadd.f32 %v728, %v868
      %v870 = vpop.f32.mrb[0].mxu0
      %v871 = vadd.f32 %v732, %v870
      %872 = vdwg.mxu0
      %873 = vmatprep.subr.mxu0 %v356
      %874 = vmatpush1.msra.mxu0 %v355
      %875 = vmatprep.subr.mxu0 %v358
      %876 = vmatpush1.msra.mxu0 %v357
      %877 = vmatprep.subr.mxu0 %v360
      %878 = vmatpush1.msra.mxu0 %v359
      %879 = vmatprep.subr.mxu0 %v362
      %880 = vmatpush1.msra.mxu0 %v361
      %881 = vmatprep.subr.mxu0 %v364
      %882 = vmatpush1.msra.mxu0 %v363
      %883 = vmatprep.subr.mxu0 %v366
      %884 = vmatpush1.msra.mxu0 %v365
      %885 = vmatprep.subr.mxu0 %v368
      %886 = vmatpush1.msra.mxu0 %v367
      %887 = vmatprep.subr.mxu0 %v370
      %888 = vmatpush1.msra.mxu0 %v369
      %889 = vmatprep.subr.mxu0 %v372
      %890 = vmatpush1.msra.mxu0 %v371
      %891 = vmatprep.subr.mxu0 %v374
      %892 = vmatpush1.msra.mxu0 %v373
      %893 = vmatprep.subr.mxu0 %v376
      %894 = vmatpush1.msra.mxu0 %v375
      %895 = vmatprep.subr.mxu0 %v378
      %896 = vmatpush1.msra.mxu0 %v377
      %897 = vmatprep.subr.mxu0 %v380
      %898 = vmatpush1.msra.mxu0 %v379
      %899 = vmatprep.subr.mxu0 %v382
      %900 = vmatpush1.msra.mxu0 %v381
      %901 = vmatprep.subr.mxu0 %v384
      %902 = vmatpush1.msra.mxu0 %v383
      %903 = vmatprep.subr.mxu0 %v386
      %904 = vmatpush1.msra.mxu0 %v385
      %905 = vmatprep.subr.mxu0 %v388
      %906 = vmatpush1.msra.mxu0 %v387
      %907 = vmatprep.subr.mxu0 %v390
      %908 = vmatpush1.msra.mxu0 %v389
      %909 = vmatprep.subr.mxu0 %v392
      %910 = vmatpush1.msra.mxu0 %v391
      %911 = vmatprep.subr.mxu0 %v394
      %912 = vmatpush1.msra.mxu0 %v393
      %913 = vmatprep.subr.mxu0 %v396
      %914 = vmatpush1.msra.mxu0 %v395
      %915 = vmatprep.subr.mxu0 %v398
      %916 = vmatpush1.msra.mxu0 %v397
      %917 = vmatprep.subr.mxu0 %v400
      %918 = vmatpush1.msra.mxu0 %v399
      %919 = vmatprep.subr.mxu0 %v402
      %920 = vmatpush1.msra.mxu0 %v401
      %921 = vmatprep.subr.mxu0 %v404
      %922 = vmatpush1.msra.mxu0 %v403
      %923 = vmatprep.subr.mxu0 %v406
      %924 = vmatpush1.msra.mxu0 %v405
      %925 = vmatprep.subr.mxu0 %v408
      %926 = vmatpush1.msra.mxu0 %v407
      %927 = vmatprep.subr.mxu0 %v410
      %928 = vmatpush1.msra.mxu0 %v409
      %929 = vmatprep.subr.mxu0 %v412
      %930 = vmatpush1.msra.mxu0 %v411
      %931 = vmatprep.subr.mxu0 %v414
      %932 = vmatpush1.msra.mxu0 %v413
      %933 = vmatprep.subr.mxu0 %v416
      %934 = vmatpush1.msra.mxu0 %v415
      %935 = vmatprep.subr.mxu0 %v418
      %936 = vmatpush1.msra.mxu0 %v417
      %937 = vmatprep.mubr.f32.mxu0 %v182
      %938 = vmatmul.mubr.f32.gmra.mrb[0].mxu0 %v181
      %v939 = vpop.f32.mrb[0].mxu0
      %v940 = vadd.f32 %v827, %v939
      %v941 = vpop.f32.mrb[0].mxu0
      %v942 = vadd.f32 %v829, %v941
      %943 = vmatprep.mubr.f32.mxu0 %v196
      %944 = vmatmul.mubr.f32.gmra.mrb[0].mxu0 %v195
      %v945 = vpop.f32.mrb[0].mxu0
      %v946 = vadd.f32 %v833, %v945
      %v947 = vpop.f32.mrb[0].mxu0
      %v948 = vadd.f32 %v835, %v947
      %949 = vmatprep.mubr.f32.mxu0 %v210
      %950 = vmatmul.mubr.f32.gmra.mrb[0].mxu0 %v209
      %v951 = vpop.f32.mrb[0].mxu0
      %v952 = vadd.f32 %v839, %v951
      %v953 = vpop.f32.mrb[0].mxu0
      %v954 = vadd.f32 %v841, %v953
      %955 = vmatprep.mubr.f32.mxu0 %v224
      %956 = vmatmul.mubr.f32.gmra.mrb[0].mxu0 %v223
      %v957 = vpop.f32.mrb[0].mxu0
      %v958 = vadd.f32 %v845, %v957
      %v959 = vpop.f32.mrb[0].mxu0
      %v960 = vadd.f32 %v847, %v959
      %961 = vmatprep.mubr.f32.mxu0 %v238
      %962 = vmatmul.mubr.f32.gmra.mrb[0].mxu0 %v237
      %v963 = vpop.f32.mrb[0].mxu0
      %v964 = vadd.f32 %v851, %v963
      %v965 = vpop.f32.mrb[0].mxu0
      %v966 = vadd.f32 %v853, %v965
      %967 = vmatprep.mubr.f32.mxu0 %v252
      %968 = vmatmul.mubr.f32.gmra.mrb[0].mxu0 %v251
      %v969 = vpop.f32.mrb[0].mxu0
      %v970 = vadd.f32 %v857, %v969
      %v971 = vpop.f32.mrb[0].mxu0
      %v972 = vadd.f32 %v859, %v971
      %973 = vmatprep.mubr.f32.mxu0 %v266
      %974 = vmatmul.mubr.f32.gmra.mrb[0].mxu0 %v265
      %v975 = vpop.f32.mrb[0].mxu0
      %v976 = vadd.f32 %v863, %v975
      %v977 = vpop.f32.mrb[0].mxu0
      %v978 = vadd.f32 %v865, %v977
      %979 = vmatprep.mubr.f32.mxu0 %v280
      %980 = vmatmul.mubr.f32.gmra.mrb[0].mxu0 %v279
      %v981 = vpop.f32.mrb[0].mxu0
      %v982 = vadd.f32 %v869, %v981
      %v983 = vpop.f32.mrb[0].mxu0
      %v984 = vadd.f32 %v871, %v983
      %985 = vdwg.mxu0
      %986 = vmatprep.subr.mxu0 %v420
      %987 = vmatpush1.msra.mxu0 %v419
      %988 = vmatprep.subr.mxu0 %v422
      %989 = vmatpush1.msra.mxu0 %v421
      %990 = vmatprep.subr.mxu0 %v424
      %991 = vmatpush1.msra.mxu0 %v423
      %992 = vmatprep.subr.mxu0 %v426
      %993 = vmatpush1.msra.mxu0 %v425
      %994 = vmatprep.subr.mxu0 %v428
      %995 = vmatpush1.msra.mxu0 %v427
      %996 = vmatprep.subr.mxu0 %v430
      %997 = vmatpush1.msra.mxu0 %v429
      %998 = vmatprep.subr.mxu0 %v432
      %999 = vmatpush1.msra.mxu0 %v431
      %1000 = vmatprep.subr.mxu0 %v434
      %1001 = vmatpush1.msra.mxu0 %v433
      %1002 = vmatprep.subr.mxu0 %v436
      %1003 = vmatpush1.msra.mxu0 %v435
      %1004 = vmatprep.subr.mxu0 %v438
      %1005 = vmatpush1.msra.mxu0 %v437
      %1006 = vmatprep.subr.mxu0 %v440
      %1007 = vmatpush1.msra.mxu0 %v439
      %1008 = vmatprep.subr.mxu0 %v442
      %1009 = vmatpush1.msra.mxu0 %v441
      %1010 = vmatprep.subr.mxu0 %v444
      %1011 = vmatpush1.msra.mxu0 %v443
      %1012 = vmatprep.subr.mxu0 %v446
      %1013 = vmatpush1.msra.mxu0 %v445
      %1014 = vmatprep.subr.mxu0 %v448
      %1015 = vmatpush1.msra.mxu0 %v447
      %1016 = vmatprep.subr.mxu0 %v450
      %1017 = vmatpush1.msra.mxu0 %v449
      %1018 = vmatprep.subr.mxu0 %v452
      %1019 = vmatpush1.msra.mxu0 %v451
      %1020 = vmatprep.subr.mxu0 %v454
      %1021 = vmatpush1.msra.mxu0 %v453
      %1022 = vmatprep.subr.mxu0 %v456
      %1023 = vmatpush1.msra.mxu0 %v455
      %1024 = vmatprep.subr.mxu0 %v458
      %1025 = vmatpush1.msra.mxu0 %v457
      %1026 = vmatprep.subr.mxu0 %v460
      %1027 = vmatpush1.msra.mxu0 %v459
      %1028 = vmatprep.subr.mxu0 %v462
      %1029 = vmatpush1.msra.mxu0 %v461
      %1030 = vmatprep.subr.mxu0 %v464
      %1031 = vmatpush1.msra.mxu0 %v463
      %1032 = vmatprep.subr.mxu0 %v466
      %1033 = vmatpush1.msra.mxu0 %v465
      %1034 = vmatprep.subr.mxu0 %v468
      %1035 = vmatpush1.msra.mxu0 %v467
      %1036 = vmatprep.subr.mxu0 %v470
      %1037 = vmatpush1.msra.mxu0 %v469
      %1038 = vmatprep.subr.mxu0 %v472
      %1039 = vmatpush1.msra.mxu0 %v471
      %1040 = vmatprep.subr.mxu0 %v474
      %1041 = vmatpush1.msra.mxu0 %v473
      %1042 = vmatprep.subr.mxu0 %v476
      %1043 = vmatpush1.msra.mxu0 %v475
      %1044 = vmatprep.subr.mxu0 %v478
      %1045 = vmatpush1.msra.mxu0 %v477
      %1046 = vmatprep.subr.mxu0 %v480
      %1047 = vmatpush1.msra.mxu0 %v479
      %1048 = vmatprep.subr.mxu0 %v482
      %1049 = vmatpush1.msra.mxu0 %v481
      %1050 = vmatprep.mubr.f32.mxu0 %v184
      %1051 = vmatmul.mubr.f32.gmra.mrb[0].mxu0 %v183
      %v1052 = vpop.f32.mrb[0].mxu0
      %v1053 = vadd.f32 %v940, %v1052
      %v1054 = vpop.f32.mrb[0].mxu0
      %v1055 = vadd.f32 %v942, %v1054
      %1056 = vmatprep.mubr.f32.mxu0 %v198
      %1057 = vmatmul.mubr.f32.gmra.mrb[0].mxu0 %v197
      %v1058 = vpop.f32.mrb[0].mxu0
      %v1059 = vadd.f32 %v946, %v1058
      %v1060 = vpop.f32.mrb[0].mxu0
      %v1061 = vadd.f32 %v948, %v1060
      %1062 = vmatprep.mubr.f32.mxu0 %v212
      %1063 = vmatmul.mubr.f32.gmra.mrb[0].mxu0 %v211
      %v1064 = vpop.f32.mrb[0].mxu0
      %v1065 = vadd.f32 %v952, %v1064
      %v1066 = vpop.f32.mrb[0].mxu0
      %v1067 = vadd.f32 %v954, %v1066
      %1068 = vmatprep.mubr.f32.mxu0 %v226
      %1069 = vmatmul.mubr.f32.gmra.mrb[0].mxu0 %v225
      %v1070 = vpop.f32.mrb[0].mxu0
      %v1071 = vadd.f32 %v958, %v1070
      %v1072 = vpop.f32.mrb[0].mxu0
      %v1073 = vadd.f32 %v960, %v1072
      %1074 = vmatprep.mubr.f32.mxu0 %v240
      %1075 = vmatmul.mubr.f32.gmra.mrb[0].mxu0 %v239
      %v1076 = vpop.f32.mrb[0].mxu0
      %v1077 = vadd.f32 %v964, %v1076
      %v1078 = vpop.f32.mrb[0].mxu0
      %v1079 = vadd.f32 %v966, %v1078
      %1080 = vmatprep.mubr.f32.mxu0 %v254
      %1081 = vmatmul.mubr.f32.gmra.mrb[0].mxu0 %v253
      %v1082 = vpop.f32.mrb[0].mxu0
      %v1083 = vadd.f32 %v970, %v1082
      %v1084 = vpop.f32.mrb[0].mxu0
      %v1085 = vadd.f32 %v972, %v1084
      %1086 = vmatprep.mubr.f32.mxu0 %v268
      %1087 = vmatmul.mubr.f32.gmra.mrb[0].mxu0 %v267
      %v1088 = vpop.f32.mrb[0].mxu0
      %v1089 = vadd.f32 %v976, %v1088
      %v1090 = vpop.f32.mrb[0].mxu0
      %v1091 = vadd.f32 %v978, %v1090
      %1092 = vmatprep.mubr.f32.mxu0 %v282
      %1093 = vmatmul.mubr.f32.gmra.mrb[0].mxu0 %v281
      %v1094 = vpop.f32.mrb[0].mxu0
      %v1095 = vadd.f32 %v982, %v1094
      %v1096 = vpop.f32.mrb[0].mxu0
      %v1097 = vadd.f32 %v984, %v1096
      %1098 = vdwg.mxu0
      %1099 = vmatprep.subr.mxu0 %v484
      %1100 = vmatpush1.msra.mxu0 %v483
      %1101 = vmatprep.subr.mxu0 %v486
      %1102 = vmatpush1.msra.mxu0 %v485
      %1103 = vmatprep.subr.mxu0 %v488
      %1104 = vmatpush1.msra.mxu0 %v487
      %1105 = vmatprep.subr.mxu0 %v490
      %1106 = vmatpush1.msra.mxu0 %v489
      %1107 = vmatprep.subr.mxu0 %v492
      %1108 = vmatpush1.msra.mxu0 %v491
      %1109 = vmatprep.subr.mxu0 %v494
      %1110 = vmatpush1.msra.mxu0 %v493
      %1111 = vmatprep.subr.mxu0 %v496
      %1112 = vmatpush1.msra.mxu0 %v495
      %1113 = vmatprep.subr.mxu0 %v498
      %1114 = vmatpush1.msra.mxu0 %v497
      %1115 = vmatprep.subr.mxu0 %v500
      %1116 = vmatpush1.msra.mxu0 %v499
      %1117 = vmatprep.subr.mxu0 %v502
      %1118 = vmatpush1.msra.mxu0 %v501
      %1119 = vmatprep.subr.mxu0 %v504
      %1120 = vmatpush1.msra.mxu0 %v503
      %1121 = vmatprep.subr.mxu0 %v506
      %1122 = vmatpush1.msra.mxu0 %v505
      %1123 = vmatprep.subr.mxu0 %v508
      %1124 = vmatpush1.msra.mxu0 %v507
      %1125 = vmatprep.subr.mxu0 %v510
      %1126 = vmatpush1.msra.mxu0 %v509
      %1127 = vmatprep.subr.mxu0 %v512
      %1128 = vmatpush1.msra.mxu0 %v511
      %1129 = vmatprep.subr.mxu0 %v514
      %1130 = vmatpush1.msra.mxu0 %v513
      %1131 = vmatprep.subr.mxu0 %v516
      %1132 = vmatpush1.msra.mxu0 %v515
      %1133 = vmatprep.subr.mxu0 %v518
      %1134 = vmatpush1.msra.mxu0 %v517
      %1135 = vmatprep.subr.mxu0 %v520
      %1136 = vmatpush1.msra.mxu0 %v519
      %1137 = vmatprep.subr.mxu0 %v522
      %1138 = vmatpush1.msra.mxu0 %v521
      %1139 = vmatprep.subr.mxu0 %v524
      %1140 = vmatpush1.msra.mxu0 %v523
      %1141 = vmatprep.subr.mxu0 %v526
      %1142 = vmatpush1.msra.mxu0 %v525
      %1143 = vmatprep.subr.mxu0 %v528
      %1144 = vmatpush1.msra.mxu0 %v527
      %1145 = vmatprep.subr.mxu0 %v530
      %1146 = vmatpush1.msra.mxu0 %v529
      %1147 = vmatprep.subr.mxu0 %v532
      %1148 = vmatpush1.msra.mxu0 %v531
      %1149 = vmatprep.subr.mxu0 %v534
      %1150 = vmatpush1.msra.mxu0 %v533
      %1151 = vmatprep.subr.mxu0 %v536
      %1152 = vmatpush1.msra.mxu0 %v535
      %1153 = vmatprep.subr.mxu0 %v538
      %1154 = vmatpush1.msra.mxu0 %v537
      %1155 = vmatprep.subr.mxu0 %v540
      %1156 = vmatpush1.msra.mxu0 %v539
      %1157 = vmatprep.subr.mxu0 %v542
      %1158 = vmatpush1.msra.mxu0 %v541
      %1159 = vmatprep.subr.mxu0 %v544
      %1160 = vmatpush1.msra.mxu0 %v543
      %1161 = vmatprep.subr.mxu0 %v546
      %1162 = vmatpush1.msra.mxu0 %v545
      %1163 = vmatprep.mubr.f32.mxu0 %v186
      %1164 = vmatmul.mubr.f32.gmra.mrb[0].mxu0 %v185
      %v1165 = vpop.f32.mrb[0].mxu0
      %v1166 = vadd.f32 %v1053, %v1165
      %v1167 = vpop.f32.mrb[0].mxu0
      %v1168 = vadd.f32 %v1055, %v1167
      %1169 = vmatprep.mubr.f32.mxu0 %v200
      %1170 = vmatmul.mubr.f32.gmra.mrb[0].mxu0 %v199
      %v1171 = vpop.f32.mrb[0].mxu0
      %v1172 = vadd.f32 %v1059, %v1171
      %v1173 = vpop.f32.mrb[0].mxu0
      %v1174 = vadd.f32 %v1061, %v1173
      %1175 = vmatprep.mubr.f32.mxu0 %v214
      %1176 = vmatmul.mubr.f32.gmra.mrb[0].mxu0 %v213
      %v1177 = vpop.f32.mrb[0].mxu0
      %v1178 = vadd.f32 %v1065, %v1177
      %v1179 = vpop.f32.mrb[0].mxu0
      %v1180 = vadd.f32 %v1067, %v1179
      %1181 = vmatprep.mubr.f32.mxu0 %v228
      %1182 = vmatmul.mubr.f32.gmra.mrb[0].mxu0 %v227
      %v1183 = vpop.f32.mrb[0].mxu0
      %v1184 = vadd.f32 %v1071, %v1183
      %v1185 = vpop.f32.mrb[0].mxu0
      %v1186 = vadd.f32 %v1073, %v1185
      %1187 = vmatprep.mubr.f32.mxu0 %v242
      %1188 = vmatmul.mubr.f32.gmra.mrb[0].mxu0 %v241
      %v1189 = vpop.f32.mrb[0].mxu0
      %v1190 = vadd.f32 %v1077, %v1189
      %v1191 = vpop.f32.mrb[0].mxu0
      %v1192 = vadd.f32 %v1079, %v1191
      %1193 = vmatprep.mubr.f32.mxu0 %v256
      %1194 = vmatmul.mubr.f32.gmra.mrb[0].mxu0 %v255
      %v1195 = vpop.f32.mrb[0].mxu0
      %v1196 = vadd.f32 %v1083, %v1195
      %v1197 = vpop.f32.mrb[0].mxu0
      %v1198 = vadd.f32 %v1085, %v1197
      %1199 = vmatprep.mubr.f32.mxu0 %v270
      %1200 = vmatmul.mubr.f32.gmra.mrb[0].mxu0 %v269
      %v1201 = vpop.f32.mrb[0].mxu0
      %v1202 = vadd.f32 %v1089, %v1201
      %v1203 = vpop.f32.mrb[0].mxu0
      %v1204 = vadd.f32 %v1091, %v1203
      %1205 = vmatprep.mubr.f32.mxu0 %v284
      %1206 = vmatmul.mubr.f32.gmra.mrb[0].mxu0 %v283
      %v1207 = vpop.f32.mrb[0].mxu0
      %v1208 = vadd.f32 %v1095, %v1207
      %v1209 = vpop.f32.mrb[0].mxu0
      %v1210 = vadd.f32 %v1097, %v1209
      %1211 = vdwg.mxu0
      %1212 = vmatprep.subr.mxu0 %v548
      %1213 = vmatpush1.msra.mxu0 %v547
      %1214 = vmatprep.subr.mxu0 %v550
      %1215 = vmatpush1.msra.mxu0 %v549
      %1216 = vmatprep.subr.mxu0 %v552
      %1217 = vmatpush1.msra.mxu0 %v551
      %1218 = vmatprep.subr.mxu0 %v554
      %1219 = vmatpush1.msra.mxu0 %v553
      %1220 = vmatprep.subr.mxu0 %v556
      %1221 = vmatpush1.msra.mxu0 %v555
      %1222 = vmatprep.subr.mxu0 %v558
      %1223 = vmatpush1.msra.mxu0 %v557
      %1224 = vmatprep.subr.mxu0 %v560
      %1225 = vmatpush1.msra.mxu0 %v559
      %1226 = vmatprep.subr.mxu0 %v562
      %1227 = vmatpush1.msra.mxu0 %v561
      %1228 = vmatprep.subr.mxu0 %v564
      %1229 = vmatpush1.msra.mxu0 %v563
      %1230 = vmatprep.subr.mxu0 %v566
      %1231 = vmatpush1.msra.mxu0 %v565
      %1232 = vmatprep.subr.mxu0 %v568
      %1233 = vmatpush1.msra.mxu0 %v567
      %1234 = vmatprep.subr.mxu0 %v570
      %1235 = vmatpush1.msra.mxu0 %v569
      %1236 = vmatprep.subr.mxu0 %v572
      %1237 = vmatpush1.msra.mxu0 %v571
      %1238 = vmatprep.subr.mxu0 %v574
      %1239 = vmatpush1.msra.mxu0 %v573
      %1240 = vmatprep.subr.mxu0 %v576
      %1241 = vmatpush1.msra.mxu0 %v575
      %1242 = vmatprep.subr.mxu0 %v578
      %1243 = vmatpush1.msra.mxu0 %v577
      %1244 = vmatprep.subr.mxu0 %v580
      %1245 = vmatpush1.msra.mxu0 %v579
      %1246 = vmatprep.subr.mxu0 %v582
      %1247 = vmatpush1.msra.mxu0 %v581
      %1248 = vmatprep.subr.mxu0 %v584
      %1249 = vmatpush1.msra.mxu0 %v583
      %1250 = vmatprep.subr.mxu0 %v586
      %1251 = vmatpush1.msra.mxu0 %v585
      %1252 = vmatprep.subr.mxu0 %v588
      %1253 = vmatpush1.msra.mxu0 %v587
      %1254 = vmatprep.subr.mxu0 %v590
      %1255 = vmatpush1.msra.mxu0 %v589
      %1256 = vmatprep.subr.mxu0 %v592
      %1257 = vmatpush1.msra.mxu0 %v591
      %1258 = vmatprep.subr.mxu0 %v594
      %1259 = vmatpush1.msra.mxu0 %v593
      %1260 = vmatprep.subr.mxu0 %v596
      %1261 = vmatpush1.msra.mxu0 %v595
      %1262 = vmatprep.subr.mxu0 %v598
      %1263 = vmatpush1.msra.mxu0 %v597
      %1264 = vmatprep.subr.mxu0 %v600
      %1265 = vmatpush1.msra.mxu0 %v599
      %1266 = vmatprep.subr.mxu0 %v602
      %1267 = vmatpush1.msra.mxu0 %v601
      %1268 = vmatprep.subr.mxu0 %v604
      %1269 = vmatpush1.msra.mxu0 %v603
      %1270 = vmatprep.subr.mxu0 %v606
      %1271 = vmatpush1.msra.mxu0 %v605
      %1272 = vmatprep.subr.mxu0 %v608
      %1273 = vmatpush1.msra.mxu0 %v607
      %1274 = vmatprep.subr.mxu0 %v610
      %1275 = vmatpush1.msra.mxu0 %v609
      %1276 = vmatprep.mubr.f32.mxu0 %v188
      %1277 = vmatmul.mubr.f32.gmra.mrb[0].mxu0 %v187
      %v1278 = vpop.f32.mrb[0].mxu0
      %v1279 = vadd.f32 %v1166, %v1278
      %v1280 = vpop.f32.mrb[0].mxu0
      %v1281 = vadd.f32 %v1168, %v1280
      %1282 = vmatprep.mubr.f32.mxu0 %v202
      %1283 = vmatmul.mubr.f32.gmra.mrb[0].mxu0 %v201
      %v1284 = vpop.f32.mrb[0].mxu0
      %v1285 = vadd.f32 %v1172, %v1284
      %v1286 = vpop.f32.mrb[0].mxu0
      %v1287 = vadd.f32 %v1174, %v1286
      %1288 = vmatprep.mubr.f32.mxu0 %v216
      %1289 = vmatmul.mubr.f32.gmra.mrb[0].mxu0 %v215
      %v1290 = vpop.f32.mrb[0].mxu0
      %v1291 = vadd.f32 %v1178, %v1290
      %v1292 = vpop.f32.mrb[0].mxu0
      %v1293 = vadd.f32 %v1180, %v1292
      %1294 = vmatprep.mubr.f32.mxu0 %v230
      %1295 = vmatmul.mubr.f32.gmra.mrb[0].mxu0 %v229
      %v1296 = vpop.f32.mrb[0].mxu0
      %v1297 = vadd.f32 %v1184, %v1296
      %v1298 = vpop.f32.mrb[0].mxu0
      %v1299 = vadd.f32 %v1186, %v1298
      %1300 = vmatprep.mubr.f32.mxu0 %v244
      %1301 = vmatmul.mubr.f32.gmra.mrb[0].mxu0 %v243
      %v1302 = vpop.f32.mrb[0].mxu0
      %v1303 = vadd.f32 %v1190, %v1302
      %v1304 = vpop.f32.mrb[0].mxu0
      %v1305 = vadd.f32 %v1192, %v1304
      %1306 = vmatprep.mubr.f32.mxu0 %v258
      %1307 = vmatmul.mubr.f32.gmra.mrb[0].mxu0 %v257
      %v1308 = vpop.f32.mrb[0].mxu0
      %v1309 = vadd.f32 %v1196, %v1308
      %v1310 = vpop.f32.mrb[0].mxu0
      %v1311 = vadd.f32 %v1198, %v1310
      %1312 = vmatprep.mubr.f32.mxu0 %v272
      %1313 = vmatmul.mubr.f32.gmra.mrb[0].mxu0 %v271
      %v1314 = vpop.f32.mrb[0].mxu0
      %v1315 = vadd.f32 %v1202, %v1314
      %v1316 = vpop.f32.mrb[0].mxu0
      %v1317 = vadd.f32 %v1204, %v1316
      %1318 = vmatprep.mubr.f32.mxu0 %v286
      %1319 = vmatmul.mubr.f32.gmra.mrb[0].mxu0 %v285
      %v1320 = vpop.f32.mrb[0].mxu0
      %v1321 = vadd.f32 %v1208, %v1320
      %v1322 = vpop.f32.mrb[0].mxu0
      %v1323 = vadd.f32 %v1210, %v1322
      %1324 = vdwg.mxu0
      %1325 = vmatprep.subr.mxu0 %v612
      %1326 = vmatpush1.msra.mxu0 %v611
      %1327 = vmatprep.subr.mxu0 %v614
      %1328 = vmatpush1.msra.mxu0 %v613
      %1329 = vmatprep.subr.mxu0 %v616
      %1330 = vmatpush1.msra.mxu0 %v615
      %1331 = vmatprep.subr.mxu0 %v618
      %1332 = vmatpush1.msra.mxu0 %v617
      %1333 = vmatprep.subr.mxu0 %v620
      %1334 = vmatpush1.msra.mxu0 %v619
      %1335 = vmatprep.subr.mxu0 %v622
      %1336 = vmatpush1.msra.mxu0 %v621
      %1337 = vmatprep.subr.mxu0 %v624
      %1338 = vmatpush1.msra.mxu0 %v623
      %1339 = vmatprep.subr.mxu0 %v626
      %1340 = vmatpush1.msra.mxu0 %v625
      %1341 = vmatprep.subr.mxu0 %v628
      %1342 = vmatpush1.msra.mxu0 %v627
      %1343 = vmatprep.subr.mxu0 %v630
      %1344 = vmatpush1.msra.mxu0 %v629
      %1345 = vmatprep.subr.mxu0 %v632
      %1346 = vmatpush1.msra.mxu0 %v631
      %1347 = vmatprep.subr.mxu0 %v634
      %1348 = vmatpush1.msra.mxu0 %v633
      %1349 = vmatprep.subr.mxu0 %v636
      %1350 = vmatpush1.msra.mxu0 %v635
      %1351 = vmatprep.subr.mxu0 %v638
      %1352 = vmatpush1.msra.mxu0 %v637
      %1353 = vmatprep.subr.mxu0 %v640
      %1354 = vmatpush1.msra.mxu0 %v639
      %1355 = vmatprep.subr.mxu0 %v642
      %1356 = vmatpush1.msra.mxu0 %v641
      %1357 = vmatprep.subr.mxu0 %v644
      %1358 = vmatpush1.msra.mxu0 %v643
      %1359 = vmatprep.subr.mxu0 %v646
      %1360 = vmatpush1.msra.mxu0 %v645
      %1361 = vmatprep.subr.mxu0 %v648
      %1362 = vmatpush1.msra.mxu0 %v647
      %1363 = vmatprep.subr.mxu0 %v650
      %1364 = vmatpush1.msra.mxu0 %v649
      %1365 = vmatprep.subr.mxu0 %v652
      %1366 = vmatpush1.msra.mxu0 %v651
      %1367 = vmatprep.subr.mxu0 %v654
      %1368 = vmatpush1.msra.mxu0 %v653
      %1369 = vmatprep.subr.mxu0 %v656
      %1370 = vmatpush1.msra.mxu0 %v655
      %1371 = vmatprep.subr.mxu0 %v658
      %1372 = vmatpush1.msra.mxu0 %v657
      %1373 = vmatprep.subr.mxu0 %v660
      %1374 = vmatpush1.msra.mxu0 %v659
      %1375 = vmatprep.subr.mxu0 %v662
      %1376 = vmatpush1.msra.mxu0 %v661
      %1377 = vmatprep.subr.mxu0 %v664
      %1378 = vmatpush1.msra.mxu0 %v663
      %1379 = vmatprep.subr.mxu0 %v666
      %1380 = vmatpush1.msra.mxu0 %v665
      %1381 = vmatprep.subr.mxu0 %v668
      %1382 = vmatpush1.msra.mxu0 %v667
      %1383 = vmatprep.subr.mxu0 %v670
      %1384 = vmatpush1.msra.mxu0 %v669
      %1385 = vmatprep.subr.mxu0 %v672
      %1386 = vmatpush1.msra.mxu0 %v671
      %1387 = vmatprep.subr.mxu0 %v674
      %1388 = vmatpush1.msra.mxu0 %v673
      %1389 = vmatprep.mubr.f32.mxu0 %v190
      %1390 = vmatmul.mubr.f32.gmra.mrb[0].mxu0 %v189
      %v1391 = vpop.f32.mrb[0].mxu0
      %v1392 = vadd.f32 %v1279, %v1391
      %v1393 = vpop.f32.mrb[0].mxu0
      %v1394 = vadd.f32 %v1281, %v1393
      %1395 = vmatprep.mubr.f32.mxu0 %v204
      %1396 = vmatmul.mubr.f32.gmra.mrb[0].mxu0 %v203
      %v1397 = vpop.f32.mrb[0].mxu0
      %v1398 = vadd.f32 %v1285, %v1397
      %v1399 = vpop.f32.mrb[0].mxu0
      %v1400 = vadd.f32 %v1287, %v1399
      %1401 = vmatprep.mubr.f32.mxu0 %v218
      %1402 = vmatmul.mubr.f32.gmra.mrb[0].mxu0 %v217
      %v1403 = vpop.f32.mrb[0].mxu0
      %v1404 = vadd.f32 %v1291, %v1403
      %v1405 = vpop.f32.mrb[0].mxu0
      %v1406 = vadd.f32 %v1293, %v1405
      %1407 = vmatprep.mubr.f32.mxu0 %v232
      %1408 = vmatmul.mubr.f32.gmra.mrb[0].mxu0 %v231
      %v1409 = vpop.f32.mrb[0].mxu0
      %v1410 = vadd.f32 %v1297, %v1409
      %v1411 = vpop.f32.mrb[0].mxu0
      %v1412 = vadd.f32 %v1299, %v1411
      %1413 = vmatprep.mubr.f32.mxu0 %v246
      %1414 = vmatmul.mubr.f32.gmra.mrb[0].mxu0 %v245
      %v1415 = vpop.f32.mrb[0].mxu0
      %v1416 = vadd.f32 %v1303, %v1415
      %v1417 = vpop.f32.mrb[0].mxu0
      %v1418 = vadd.f32 %v1305, %v1417
      %1419 = vmatprep.mubr.f32.mxu0 %v260
      %1420 = vmatmul.mubr.f32.gmra.mrb[0].mxu0 %v259
      %v1421 = vpop.f32.mrb[0].mxu0
      %v1422 = vadd.f32 %v1309, %v1421
      %v1423 = vpop.f32.mrb[0].mxu0
      %v1424 = vadd.f32 %v1311, %v1423
      %1425 = vmatprep.mubr.f32.mxu0 %v274
      %1426 = vmatmul.mubr.f32.gmra.mrb[0].mxu0 %v273
      %v1427 = vpop.f32.mrb[0].mxu0
      %v1428 = vadd.f32 %v1315, %v1427
      %v1429 = vpop.f32.mrb[0].mxu0
      %v1430 = vadd.f32 %v1317, %v1429
      %1431 = vmatprep.mubr.f32.mxu0 %v288
      %1432 = vmatmul.mubr.f32.gmra.mrb[0].mxu0 %v287
      %v1433 = vpop.f32.mrb[0].mxu0
      %v1434 = vadd.f32 %v1321, %v1433
      %v1435 = vpop.f32.mrb[0].mxu0
      %v1436 = vadd.f32 %v1323, %v1435
      %1437 = vdwg.mxu0
      %1438 = vmatprep.subr.mxu0 %v676
      %1439 = vmatpush1.msra.mxu0 %v675
      %1440 = vmatprep.subr.mxu0 %v678
      %1441 = vmatpush1.msra.mxu0 %v677
      %1442 = vmatprep.subr.mxu0 %v680
      %1443 = vmatpush1.msra.mxu0 %v679
      %1444 = vmatprep.subr.mxu0 %v682
      %1445 = vmatpush1.msra.mxu0 %v681
      %1446 = vmatprep.subr.mxu0 %v684
      %1447 = vmatpush1.msra.mxu0 %v683
      %1448 = vmatprep.subr.mxu0 %v686
      %1449 = vmatpush1.msra.mxu0 %v685
      %1450 = vmatprep.subr.mxu0 %v688
      %1451 = vmatpush1.msra.mxu0 %v687
      %1452 = vmatprep.subr.mxu0 %v690
      %1453 = vmatpush1.msra.mxu0 %v689
      %1454 = vmatprep.subr.mxu0 %v692
      %1455 = vmatpush1.msra.mxu0 %v691
      %1456 = vmatprep.subr.mxu0 %v694
      %1457 = vmatpush1.msra.mxu0 %v693
      %1458 = vmatprep.subr.mxu0 %v696
      %1459 = vmatpush1.msra.mxu0 %v695
      %1460 = vmatprep.subr.mxu0 %v698
      %1461 = vmatpush1.msra.mxu0 %v697
      %1462 = vmatprep.subr.mxu0 %v700
      %1463 = vmatpush1.msra.mxu0 %v699
      %1464 = vmatprep.subr.mxu0 %v702
      %1465 = vmatpush1.msra.mxu0 %v701
      %1466 = vmatprep.subr.mxu0 %v704
      %1467 = vmatpush1.msra.mxu0 %v703
      %1468 = vmatprep.subr.mxu0 %v706
      %1469 = vmatpush1.msra.mxu0 %v705
      %1470 = vmatprep.subr.mxu0 %v708
      %1471 = vmatpush1.msra.mxu0 %v707
      %1472 = vmatprep.subr.mxu0 %v710
      %1473 = vmatpush1.msra.mxu0 %v709
      %1474 = vmatprep.subr.mxu0 %v712
      %1475 = vmatpush1.msra.mxu0 %v711
      %1476 = vmatprep.subr.mxu0 %v714
      %1477 = vmatpush1.msra.mxu0 %v713
      %1478 = vmatprep.subr.mxu0 %v716
      %1479 = vmatpush1.msra.mxu0 %v715
      %1480 = vmatprep.subr.mxu0 %v718
      %1481 = vmatpush1.msra.mxu0 %v717
      %1482 = vmatprep.subr.mxu0 %v720
      %1483 = vmatpush1.msra.mxu0 %v719
      %1484 = vmatprep.subr.mxu0 %v722
      %1485 = vmatpush1.msra.mxu0 %v721
      %1486 = vmatprep.subr.mxu0 0.0
      %1487 = vmatpush1.msra.mxu0 0.0
      %1488 = vmatprep.subr.mxu0 0.0
      %1489 = vmatpush1.msra.mxu0 0.0
      %1490 = vmatprep.subr.mxu0 0.0
      %1491 = vmatpush1.msra.mxu0 0.0
      %1492 = vmatprep.subr.mxu0 0.0
      %1493 = vmatpush1.msra.mxu0 0.0
      %1494 = vmatprep.subr.mxu0 0.0
      %1495 = vmatpush1.msra.mxu0 0.0
      %1496 = vmatprep.subr.mxu0 0.0
      %1497 = vmatpush1.msra.mxu0 0.0
      %1498 = vmatprep.subr.mxu0 0.0
      %1499 = vmatpush1.msra.mxu0 0.0
      %1500 = vmatprep.subr.mxu0 0.0
      %1501 = vmatpush1.msra.mxu0 0.0
      %1502 = vmatprep.mubr.f32.mxu0 %v737
      %1503 = vmatmul.mubr.f32.gmra.mrb[0].mxu0 %v191
      %v1504 = vpop.f32.mrb[0].mxu0
      %v1505 = vadd.f32 %v1392, %v1504
      %v1506 = vpop.f32.mrb[0].mxu0
      %v1507 = vadd.f32 %v1394, %v1506
      %1508 = vmatprep.mubr.f32.mxu0 %v740
      %1509 = vmatmul.mubr.f32.gmra.mrb[0].mxu0 %v205
      %v1510 = vpop.f32.mrb[0].mxu0
      %v1511 = vadd.f32 %v1398, %v1510
      %v1512 = vpop.f32.mrb[0].mxu0
      %v1513 = vadd.f32 %v1400, %v1512
      %1514 = vmatprep.mubr.f32.mxu0 %v743
      %1515 = vmatmul.mubr.f32.gmra.mrb[0].mxu0 %v219
      %v1516 = vpop.f32.mrb[0].mxu0
      %v1517 = vadd.f32 %v1404, %v1516
      %v1518 = vpop.f32.mrb[0].mxu0
      %v1519 = vadd.f32 %v1406, %v1518
      %1520 = vmatprep.mubr.f32.mxu0 %v746
      %1521 = vmatmul.mubr.f32.gmra.mrb[0].mxu0 %v233
      %v1522 = vpop.f32.mrb[0].mxu0
      %v1523 = vadd.f32 %v1410, %v1522
      %v1524 = vpop.f32.mrb[0].mxu0
      %v1525 = vadd.f32 %v1412, %v1524
      %1526 = vmatprep.mubr.f32.mxu0 %v749
      %1527 = vmatmul.mubr.f32.gmra.mrb[0].mxu0 %v247
      %v1528 = vpop.f32.mrb[0].mxu0
      %v1529 = vadd.f32 %v1416, %v1528
      %v1530 = vpop.f32.mrb[0].mxu0
      %v1531 = vadd.f32 %v1418, %v1530
      %1532 = vmatprep.mubr.f32.mxu0 %v752
      %1533 = vmatmul.mubr.f32.gmra.mrb[0].mxu0 %v261
      %v1534 = vpop.f32.mrb[0].mxu0
      %v1535 = vadd.f32 %v1422, %v1534
      %v1536 = vpop.f32.mrb[0].mxu0
      %v1537 = vadd.f32 %v1424, %v1536
      %1538 = vmatprep.mubr.f32.mxu0 %v755
      %1539 = vmatmul.mubr.f32.gmra.mrb[0].mxu0 %v275
      %v1540 = vpop.f32.mrb[0].mxu0
      %v1541 = vadd.f32 %v1428, %v1540
      %v1542 = vpop.f32.mrb[0].mxu0
      %v1543 = vadd.f32 %v1430, %v1542
      %1544 = vmatprep.mubr.f32.mxu0 %v758
      %1545 = vmatmul.mubr.f32.gmra.mrb[0].mxu0 %v289
      %v1546 = vpop.f32.mrb[0].mxu0
      %v1547 = vadd.f32 %v1434, %v1546
      %v1548 = vpop.f32.mrb[0].mxu0
      %v1549 = vadd.f32 %v1436, %v1548
      %1550 = vdwg.mxu0
      %v1551 = vmax.f32 %v1505, 0.0
      %v1552 = vmax.f32 %v1507, 0.0
      %v1553 = vmax.f32 %v1511, 0.0
      %v1554 = vmax.f32 %v1513, 0.0
      %v1555 = vmax.f32 %v1517, 0.0
      %v1556 = vmax.f32 %v1519, 0.0
      %v1557 = vmax.f32 %v1523, 0.0
      %v1558 = vmax.f32 %v1525, 0.0
      %v1559 = vmax.f32 %v1529, 0.0
      %v1560 = vmax.f32 %v1531, 0.0
      %v1561 = vmax.f32 %v1535, 0.0
      %v1562 = vmax.f32 %v1537, 0.0
      %v1563 = vmax.f32 %v1541, 0.0
      %v1564 = vmax.f32 %v1543, 0.0
      %v1565 = vmax.f32 %v1547, 0.0
      %v1566 = vmax.f32 %v1549, 0.0
      %1567 = vst [vmem:[%s177] sm:$0xff] %v1551
      %1568 = vst.msk [vmem:[%s177 + $0x8] sm:$0xff] %vm735, %v1552
      %1569 = vst [vmem:[%s177 + $0x10] sm:$0xff] %v1553
      %1570 = vst.msk [vmem:[%s177 + $0x18] sm:$0xff] %vm735, %v1554
      %1571 = vst [vmem:[%s177 + $0x20] sm:$0xff] %v1555
      %1572 = vst.msk [vmem:[%s177 + $0x28] sm:$0xff] %vm735, %v1556
      %1573 = vst [vmem:[%s177 + $0x30] sm:$0xff] %v1557
      %1574 = vst.msk [vmem:[%s177 + $0x38] sm:$0xff] %vm735, %v1558
      %1575 = vst [vmem:[%s177 + $0x40] sm:$0xff] %v1559
      %1576 = vst.msk [vmem:[%s177 + $0x48] sm:$0xff] %vm735, %v1560
      %1577 = vst [vmem:[%s177 + $0x50] sm:$0xff] %v1561
      %1578 = vst.msk [vmem:[%s177 + $0x58] sm:$0xff] %vm735, %v1562
      %1579 = vst [vmem:[%s177 + $0x60] sm:$0xff] %v1563
      %1580 = vst.msk [vmem:[%s177 + $0x68] sm:$0xff] %vm735, %v1564
      %1581 = vst [vmem:[%s177 + $0x70] sm:$0xff] %v1565
      %1582 = vst.msk [vmem:[%s177 + $0x78] sm:$0xff] %vm735, %v1566
      %s1583 = smul.u32 8, %s14
      %p1584 = scmp.lt.s32.totalorder %s1583, 15
      %s1585 = scalar_select %p1584, %s1583, 15
      %s1586 = smul.addr %s1585, 2
      %s1587 = smul.addr %s1586, 8
      %s1588 = scalar_lea.vmem %s3, %s1587
      // Predicated region
      $region33: #{inception_d_forward.12} parent=31 // pred_check
        %p1589 = pneg %p100
      $region34: #{inception_d_forward.12} parent=31 // pred_check_branch
        %1591 = sbr.rel (%p1589) target = $region36
      $region35: #{inception_d_forward.12} parent=31 // pred_region
        %s1592 = smul.u32 8, %s14
      $region36: #{inception_d_forward.12} parent=31 // pred_fallthru
        _
    $region32: #{inception_d_forward.12} parent=5 // pred_fallthru
      _
    %p1593 = scmp.le.s32.totalorder 2, %s9
    // Predicated region
    $region37: #{inception_d_forward.12} parent=5 // pred_check
      %p1594 = pneg %p1593
    $region38: #{inception_d_forward.12} parent=5 // pred_check_branch
      %1596 = sbr.rel (%p1594) target = $region40
    $region39: #{inception_d_forward.12} parent=5 // pred_region
      %s1597 = ssub.s32 %s9, 2
      // Predicated region
      $region41: #{inception_d_forward.12} parent=39 // pred_check
        %p1598 = pneg %p106
      $region42: #{inception_d_forward.12} parent=39 // pred_check_branch
        %1600 = sbr.rel (%p1598) target = $region44
      $region43: #{inception_d_forward.12} parent=39 // pred_region
        %s1601 = smul.u32 8, %s15
        %p1602 = scmp.lt.s32.totalorder %s1601, 15
        %s1603 = scalar_select %p1602, %s1601, 15
        %s1604 = smul.addr %s1603, 2
        %s1605 = smul.addr %s1604, 8
        %s1606 = scalar_lea.vmem %s3, %s1605
      $region44: #{inception_d_forward.12} parent=39 // pred_fallthru
        _
    $region40: #{inception_d_forward.12} parent=5 // pred_fallthru
      _
  $region6: #{inception_d_forward.12} parent=0 // loop_footer
    %s13 = sadd.s32 1, %s9
  $region7: #{inception_d_forward.12} parent=0 // loop_footer_branch
    %8 = sbr.rel target = $region3
  $region8: #{inception_d_forward.12} parent=0 // loop_exit
    _

// kernel: inception_d_forward.8
$region0: #{inception_d_forward.8}
  #allocation0 [shape = 'u32[]', space=smem, size = 0x4, offset = 0x4, fixed_abs, tag = 'smem constant byte address 0x4 - core index']
  #allocation1 [shape = 'u32[144,128]{1,0:T(1,128)}', space=vmem, size = 0x12000, scoped, tag = 'internal scratch']
  %s0 = inlined_call_operand.vmem [shape: f32[128,1728], index: 0, kind: input, shape index: {}]
  %s1 = inlined_call_operand.vmem [shape: f32[1728,320], index: 1, kind: input, shape index: {}]
  %s2 = inlined_call_operand.vmem [shape: f32[1,320], index: 2, kind: input, shape index: {}]
  %s3 = inlined_call_operand.vmem [shape: f32[128,320], index: 3, kind: output, shape index: {}]
  %s4 = sld [smem:[#allocation0]]
  $region45: #{inception_d_forward.8} parent=0
    _
  %s6 = ssub.s32 1, %s4
  %s7 = scalar_select 0, %s6, %s4
  loop: start=0, step=1, limit=4
  $region2: #{inception_d_forward.8} parent=0 // loop_pre_header
    _
  $region3: #{inception_d_forward.8} parent=0 // loop_header
    %s9 = sphi 0, %s13
    %p10 = scmp.ge.s32.totalorder %s9, 4
    %s19 = sphi 0, %s21
    %s22 = sphi 0, %s19
    %s23 = sphi 0, %s22
    %s39 = sphi 0, %s23
    %s43 = sphi 0, %s43
    %s45 = sphi 0, %s43
    %s46 = sphi 0, %s45
    %s60 = sphi 0, %s46
    %s64 = sphi 0, %s64
    %s66 = sphi 0, %s64
    %s67 = sphi 0, %s66
    %s81 = sphi 0, %s67
    %s87 = sphi 0, %s89
    %s90 = sphi 0, %s87
    %s91 = sphi 0, %s90
    %s107 = sphi 0, %s91
  $region4: #{inception_d_forward.8} parent=0 // loop_header_branch
    %12 = sbr.rel (%p10) target = $region8
  $region5: #{inception_d_forward.8} parent=0 // loop_body
    %s14 = ssub.s32 %s9, 1
    %s15 = ssub.s32 %s9, 2
    %s16 = sadd.s32 %s9, 1
    %s17 = ssub.s32 %s9, %s16
    %p18 = scmp.eq.s32.totalorder %s17, 0
    %s20 = sadd.s32 %s19, 1
    %s21 = scalar_select %p18, %s19, %s20
    %p24 = pneg %p18
    %p25 = scmp.eq.s32.totalorder %s9, 1
    %p26 = por %p24, %p25
    %p27 = scmp.ne.s32.totalorder %s19, %s22
    %p28 = scmp.eq.s32.totalorder %s9, 0
    %p29 = por %p27, %p28
    %p30 = scmp.ne.s32.totalorder %s19, %s22
    %p31 = scmp.eq.s32.totalorder %s14, 1
    %p32 = por %p30, %p31
    %p33 = scmp.ne.s32.totalorder %s22, %s23
    %p34 = scmp.eq.s32.totalorder %s14, 0
    %p35 = por %p33, %p34
    %p36 = scmp.ne.s32.totalorder %s22, %s23
    %p37 = scmp.eq.s32.totalorder %s15, 1
    %p38 = por %p36, %p37
    %p40 = scmp.ne.s32.totalorder %s23, %s39
    %p41 = scmp.eq.s32.totalorder %s15, 0
    %p42 = por %p40, %p41
    %s44 = sadd.s32 %s43, 1
    %p47 = scmp.eq.s32.totalorder %s9, 1
    %p48 = scmp.ne.s32.totalorder %s43, %s45
    %p49 = scmp.eq.s32.totalorder %s9, 0
    %p50 = por %p48, %p49
    %p51 = scmp.ne.s32.totalorder %s43, %s45
    %p52 = scmp.eq.s32.totalorder %s14, 1
    %p53 = por %p51, %p52
    %p54 = scmp.ne.s32.totalorder %s45, %s46
    %p55 = scmp.eq.s32.totalorder %s14, 0
    %p56 = por %p54, %p55
    %p57 = scmp.ne.s32.totalorder %s45, %s46
    %p58 = scmp.eq.s32.totalorder %s15, 1
    %p59 = por %p57, %p58
    %p61 = scmp.ne.s32.totalorder %s46, %s60
    %p62 = scmp.eq.s32.totalorder %s15, 0
    %p63 = por %p61, %p62
    %s65 = sadd.s32 %s64, 1
    %p68 = scmp.eq.s32.totalorder %s9, 1
    %p69 = scmp.ne.s32.totalorder %s64, %s66
    %p70 = scmp.eq.s32.totalorder %s9, 0
    %p71 = por %p69, %p70
    %p72 = scmp.ne.s32.totalorder %s64, %s66
    %p73 = scmp.eq.s32.totalorder %s14, 1
    %p74 = por %p72, %p73
    %p75 = scmp.ne.s32.totalorder %s66, %s67
    %p76 = scmp.eq.s32.totalorder %s14, 0
    %p77 = por %p75, %p76
    %p78 = scmp.ne.s32.totalorder %s66, %s67
    %p79 = scmp.eq.s32.totalorder %s15, 1
    %p80 = por %p78, %p79
    %p82 = scmp.ne.s32.totalorder %s67, %s81
    %p83 = scmp.eq.s32.totalorder %s15, 0
    %p84 = por %p82, %p83
    %s85 = ssub.s32 %s9, %s16
    %p86 = scmp.eq.s32.totalorder %s85, 0
    %s88 = sadd.s32 %s87, 1
    %s89 = scalar_select %p86, %s87, %s88
    %p92 = pneg %p86
    %p93 = scmp.eq.s32.totalorder %s9, 1
    %p94 = por %p92, %p93
    %p95 = scmp.ne.s32.totalorder %s87, %s90
    %p96 = scmp.eq.s32.totalorder %s9, 0
    %p97 = por %p95, %p96
    %p98 = scmp.ne.s32.totalorder %s87, %s90
    %p99 = scmp.eq.s32.totalorder %s14, 1
    %p100 = por %p98, %p99
    %p101 = scmp.ne.s32.totalorder %s90, %s91
    %p102 = scmp.eq.s32.totalorder %s14, 0
    %p103 = por %p101, %p102
    %p104 = scmp.ne.s32.totalorder %s90, %s91
    %p105 = scmp.eq.s32.totalorder %s15, 1
    %p106 = por %p104, %p105
    %p108 = scmp.ne.s32.totalorder %s91, %s107
    %p109 = scmp.eq.s32.totalorder %s15, 0
    %p110 = por %p108, %p109
    %p111 = scmp.le.s32.totalorder 1, %s9
    %p112 = scmp.lt.s32.totalorder %s9, 3
    %p113 = pnand %p111, %p112
    %p114 = pneg %p113
    // Predicated region
    $region9: #{inception_d_forward.8} parent=5 // pred_check
      _
    $region10: #{inception_d_forward.8} parent=5 // pred_check_branch
      %116 = sbr.rel (%p113) target = $region12
    $region11: #{inception_d_forward.8} parent=5 // pred_region
      %s117 = ssub.s32 %s9, 1
      // Predicated region
      $region13: #{inception_d_forward.8} parent=11 // pred_check
        %p118 = pneg %p56
      $region14: #{inception_d_forward.8} parent=11 // pred_check_branch
        %120 = sbr.rel (%p118) target = $region16
      $region15: #{inception_d_forward.8} parent=11 // pred_region
        _
      $region16: #{inception_d_forward.8} parent=11 // pred_fallthru
        _
      // Predicated region
      $region17: #{inception_d_forward.8} parent=11 // pred_check
        %p121 = pneg %p77
      $region18: #{inception_d_forward.8} parent=11 // pred_check_branch
        %123 = sbr.rel (%p121) target = $region20
      $region19: #{inception_d_forward.8} parent=11 // pred_region
        _
      $region20: #{inception_d_forward.8} parent=11 // pred_fallthru
        _
    $region12: #{inception_d_forward.8} parent=5 // pred_fallthru
      _
    %p124 = scmp.lt.s32.totalorder %s9, 2
    // Predicated region
    $region21: #{inception_d_forward.8} parent=5 // pred_check
      %p125 = pneg %p124
    $region22: #{inception_d_forward.8} parent=5 // pred_check_branch
      %127 = sbr.rel (%p125) target = $region24
    $region23: #{inception_d_forward.8} parent=5 // pred_region
      // Predicated region
      $region25: #{inception_d_forward.8} parent=23 // pred_check
        %p128 = pneg %p29
      $region26: #{inception_d_forward.8} parent=23 // pred_check_branch
        %130 = sbr.rel (%p128) target = $region28
      $region27: #{inception_d_forward.8} parent=23 // pred_region
        %s131 = smul.u32 8, %s9
        %p132 = scmp.lt.s32.totalorder %s131, 15
        %s133 = scalar_select %p132, %s131, 15
        %s134 = smul.addr %s133, 14
        %s135 = smul.addr %s134, 8
        %s136 = scalar_lea.vmem %s0, %s135
        %s137 = smul.u32 8, %s9
      $region28: #{inception_d_forward.8} parent=23 // pred_fallthru
        _
    $region24: #{inception_d_forward.8} parent=5 // pred_fallthru
      _
    %p138 = scmp.le.s32.totalorder 1, %s9
    %p139 = scmp.lt.s32.totalorder %s9, 3
    %p140 = pnand %p138, %p139
    %p141 = pneg %p140
    // Predicated region
    $region29: #{inception_d_forward.8} parent=5 // pred_check
      _
    $region30: #{inception_d_forward.8} parent=5 // pred_check_branch
      %143 = sbr.rel (%p140) target = $region32
    $region31: #{inception_d_forward.8} parent=5 // pred_region
      %s144 = ssub.s32 %s9, 1
      %s145 = smul.u32 8, %s14
      %p146 = scmp.lt.s32.totalorder %s145, 15
      %s147 = scalar_select %p146, %s145, 15
      %s148 = smul.addr %s147, 14
      %s149 = smul.addr %s148, 8
      %s150 = scalar_lea.vmem %s0, %s149
      %p151 = pneg %p35
      %p152 = pneg %p32
      %p153 = pneg %p56
      %p154 = pneg %p53
      %p155 = pneg %p77
      %p156 = pneg %p74
      %p157 = pneg %p103
      %p158 = pneg %p100
      %s159 = smul.u32 8, %s14
      %p160 = scmp.lt.s32.totalorder %s159, 15
      %s161 = scalar_select %p160, %s159, 15
      %s162 = smul.addr %s161, 3
      %s163 = smul.addr %s162, 8
      %s164 = scalar_lea.vmem %s3, %s163
      %s165 = smul.u32 8, %s14
      %p166 = scmp.lt.s32.totalorder %s165, 15
      %s167 = scalar_select %p166, %s165, 15
      %s168 = smul.addr %s167, 14
      %s169 = smul.addr %s168, 8
      %s170 = scalar_lea.vmem %s0, %s169
      %s171 = smul.u32 8, %s14
      %s172 = smul.u32 8, %s14
      %p173 = scmp.lt.s32.totalorder %s172, 15
      %s174 = scalar_select %p173, %s172, 15
      %s175 = smul.addr %s174, 3
      %s176 = smul.addr %s175, 8
      %s177 = scalar_lea.vmem %s3, %s176
      %s178 = smul.u32 8, %s14
      %v179 = vld [vmem:[%s170] sm:$0xff]
      %v180 = vld [vmem:[%s170 + $0x8] sm:$0xff]
      %v181 = vld [vmem:[%s170 + $0x10] sm:$0xff]
      %v182 = vld [vmem:[%s170 + $0x18] sm:$0xff]
      %v183 = vld [vmem:[%s170 + $0x20] sm:$0xff]
      %v184 = vld [vmem:[%s170 + $0x28] sm:$0xff]
      %v185 = vld [vmem:[%s170 + $0x30] sm:$0xff]
      %v186 = vld [vmem:[%s170 + $0x38] sm:$0xff]
      %v187 = vld [vmem:[%s170 + $0x40] sm:$0xff]
      %v188 = vld [vmem:[%s170 + $0x48] sm:$0xff]
      %v189 = vld [vmem:[%s170 + $0x50] sm:$0xff]
      %v190 = vld [vmem:[%s170 + $0x58] sm:$0xff]
      %v191 = vld [vmem:[%s170 + $0x60] sm:$0xff]
      %v192 = vld [vmem:[%s170 + $0x68] sm:$0xff]
      %v193 = vld [vmem:[%s170 + $0x70] sm:$0xff]
      %v194 = vld [vmem:[%s170 + $0x78] sm:$0xff]
      %v195 = vld [vmem:[%s170 + $0x80] sm:$0xff]
      %v196 = vld [vmem:[%s170 + $0x88] sm:$0xff]
      %v197 = vld [vmem:[%s170 + $0x90] sm:$0xff]
      %v198 = vld [vmem:[%s170 + $0x98] sm:$0xff]
      %v199 = vld [vmem:[%s170 + $0xa0] sm:$0xff]
      %v200 = vld [vmem:[%s170 + $0xa8] sm:$0xff]
      %v201 = vld [vmem:[%s170 + $0xb0] sm:$0xff]
      %v202 = vld [vmem:[%s170 + $0xb8] sm:$0xff]
      %v203 = vld [vmem:[%s170 + $0xc0] sm:$0xff]
      %v204 = vld [vmem:[%s170 + $0xc8] sm:$0xff]
      %v205 = vld [vmem:[%s170 + $0xd0] sm:$0xff]
      %v206 = vld [vmem:[%s170 + $0xd8] sm:$0xff]
      %v207 = vld [vmem:[%s170 + $0xe0] sm:$0xff]
      %v208 = vld [vmem:[%s170 + $0xe8] sm:$0xff]
      %v209 = vld [vmem:[%s170 + $0xf0] sm:$0xff]
      %v210 = vld [vmem:[%s170 + $0xf8] sm:$0xff]
      %v211 = vld [vmem:[%s170 + $0x100] sm:$0xff]
      %v212 = vld [vmem:[%s170 + $0x108] sm:$0xff]
      %v213 = vld [vmem:[%s170 + $0x110] sm:$0xff]
      %v214 = vld [vmem:[%s170 + $0x118] sm:$0xff]
      %v215 = vld [vmem:[%s170 + $0x120] sm:$0xff]
      %v216 = vld [vmem:[%s170 + $0x128] sm:$0xff]
      %v217 = vld [vmem:[%s170 + $0x130] sm:$0xff]
      %v218 = vld [vmem:[%s170 + $0x138] sm:$0xff]
      %v219 = vld [vmem:[%s170 + $0x140] sm:$0xff]
      %v220 = vld [vmem:[%s170 + $0x148] sm:$0xff]
      %v221 = vld [vmem:[%s170 + $0x150] sm:$0xff]
      %v222 = vld [vmem:[%s170 + $0x158] sm:$0xff]
      %v223 = vld [vmem:[%s170 + $0x160] sm:$0xff]
      %v224 = vld [vmem:[%s170 + $0x168] sm:$0xff]
      %v225 = vld [vmem:[%s170 + $0x170] sm:$0xff]
      %v226 = vld [vmem:[%s170 + $0x178] sm:$0xff]
      %v227 = vld [vmem:[%s170 + $0x180] sm:$0xff]
      %v228 = vld [vmem:[%s170 + $0x188] sm:$0xff]
      %v229 = vld [vmem:[%s170 + $0x190] sm:$0xff]
      %v230 = vld [vmem:[%s170 + $0x198] sm:$0xff]
      %v231 = vld [vmem:[%s170 + $0x1a0] sm:$0xff]
      %v232 = vld [vmem:[%s170 + $0x1a8] sm:$0xff]
      %v233 = vld [vmem:[%s170 + $0x1b0] sm:$0xff]
      %v234 = vld [vmem:[%s170 + $0x1b8] sm:$0xff]
      %v235 = vld [vmem:[%s170 + $0x1c0] sm:$0xff]
      %v236 = vld [vmem:[%s170 + $0x1c8] sm:$0xff]
      %v237 = vld [vmem:[%s170 + $0x1d0] sm:$0xff]
      %v238 = vld [vmem:[%s170 + $0x1d8] sm:$0xff]
      %v239 = vld [vmem:[%s170 + $0x1e0] sm:$0xff]
      %v240 = vld [vmem:[%s170 + $0x1e8] sm:$0xff]
      %v241 = vld [vmem:[%s170 + $0x1f0] sm:$0xff]
      %v242 = vld [vmem:[%s170 + $0x1f8] sm:$0xff]
      %v243 = vld [vmem:[%s170 + $0x200] sm:$0xff]
      %v244 = vld [vmem:[%s170 + $0x208] sm:$0xff]
      %v245 = vld [vmem:[%s170 + $0x210] sm:$0xff]
      %v246 = vld [vmem:[%s170 + $0x218] sm:$0xff]
      %v247 = vld [vmem:[%s170 + $0x220] sm:$0xff]
      %v248 = vld [vmem:[%s170 + $0x228] sm:$0xff]
      %v249 = vld [vmem:[%s170 + $0x230] sm:$0xff]
      %v250 = vld [vmem:[%s170 + $0x238] sm:$0xff]
      %v251 = vld [vmem:[%s170 + $0x240] sm:$0xff]
      %v252 = vld [vmem:[%s170 + $0x248] sm:$0xff]
      %v253 = vld [vmem:[%s170 + $0x250] sm:$0xff]
      %v254 = vld [vmem:[%s170 + $0x258] sm:$0xff]
      %v255 = vld [vmem:[%s170 + $0x260] sm:$0xff]
      %v256 = vld [vmem:[%s170 + $0x268] sm:$0xff]
      %v257 = vld [vmem:[%s170 + $0x270] sm:$0xff]
      %v258 = vld [vmem:[%s170 + $0x278] sm:$0xff]
      %v259 = vld [vmem:[%s170 + $0x280] sm:$0xff]
      %v260 = vld [vmem:[%s170 + $0x288] sm:$0xff]
      %v261 = vld [vmem:[%s170 + $0x290] sm:$0xff]
      %v262 = vld [vmem:[%s170 + $0x298] sm:$0xff]
      %v263 = vld [vmem:[%s170 + $0x2a0] sm:$0xff]
      %v264 = vld [vmem:[%s170 + $0x2a8] sm:$0xff]
      %v265 = vld [vmem:[%s170 + $0x2b0] sm:$0xff]
      %v266 = vld [vmem:[%s170 + $0x2b8] sm:$0xff]
      %v267 = vld [vmem:[%s170 + $0x2c0] sm:$0xff]
      %v268 = vld [vmem:[%s170 + $0x2c8] sm:$0xff]
      %v269 = vld [vmem:[%s170 + $0x2d0] sm:$0xff]
      %v270 = vld [vmem:[%s170 + $0x2d8] sm:$0xff]
      %v271 = vld [vmem:[%s170 + $0x2e0] sm:$0xff]
      %v272 = vld [vmem:[%s170 + $0x2e8] sm:$0xff]
      %v273 = vld [vmem:[%s170 + $0x2f0] sm:$0xff]
      %v274 = vld [vmem:[%s170 + $0x2f8] sm:$0xff]
      %v275 = vld [vmem:[%s170 + $0x300] sm:$0xff]
      %v276 = vld [vmem:[%s170 + $0x308] sm:$0xff]
      %v277 = vld [vmem:[%s170 + $0x310] sm:$0xff]
      %v278 = vld [vmem:[%s170 + $0x318] sm:$0xff]
      %v279 = vld [vmem:[%s170 + $0x320] sm:$0xff]
      %v280 = vld [vmem:[%s170 + $0x328] sm:$0xff]
      %v281 = vld [vmem:[%s170 + $0x330] sm:$0xff]
      %v282 = vld [vmem:[%s170 + $0x338] sm:$0xff]
      %v283 = vld [vmem:[%s170 + $0x340] sm:$0xff]
      %v284 = vld [vmem:[%s170 + $0x348] sm:$0xff]
      %v285 = vld [vmem:[%s170 + $0x350] sm:$0xff]
      %v286 = vld [vmem:[%s170 + $0x358] sm:$0xff]
      %v287 = vld [vmem:[%s170 + $0x360] sm:$0xff]
      %v288 = vld [vmem:[%s170 + $0x368] sm:$0xff]
      %v289 = vld [vmem:[%s170 + $0x370] sm:$0xff]
      %v290 = vld [vmem:[%s170 + $0x378] sm:$0xff]
      %v291 = vld [vmem:[%s1] sm:$0xff]
      %v292 = vld [vmem:[%s1 + $0x8] sm:$0xff]
      %v293 = vld [vmem:[%s1 + $0x10] sm:$0xff]
      %v294 = vld [vmem:[%s1 + $0x18] sm:$0xff]
      %v295 = vld [vmem:[%s1 + $0x20] sm:$0xff]
      %v296 = vld [vmem:[%s1 + $0x28] sm:$0xff]
      %v297 = vld [vmem:[%s1 + $0x30] sm:$0xff]
      %v298 = vld [vmem:[%s1 + $0x38] sm:$0xff]
      %v299 = vld [vmem:[%s1 + $0x40] sm:$0xff]
      %v300 = vld [vmem:[%s1 + $0x48] sm:$0xff]
      %v301 = vld [vmem:[%s1 + $0x50] sm:$0xff]
      %v302 = vld [vmem:[%s1 + $0x58] sm:$0xff]
      %v303 = vld [vmem:[%s1 + $0x60] sm:$0xff]
      %v304 = vld [vmem:[%s1 + $0x68] sm:$0xff]
      %v305 = vld [vmem:[%s1 + $0x70] sm:$0xff]
      %v306 = vld [vmem:[%s1 + $0x78] sm:$0xff]
      %v307 = vld [vmem:[%s1 + $0x80] sm:$0xff]
      %v308 = vld [vmem:[%s1 + $0x88] sm:$0xff]
      %v309 = vld [vmem:[%s1 + $0x90] sm:$0xff]
      %v310 = vld [vmem:[%s1 + $0x98] sm:$0xff]
      %v311 = vld [vmem:[%s1 + $0xa0] sm:$0xff]
      %v312 = vld [vmem:[%s1 + $0xa8] sm:$0xff]
      %v313 = vld [vmem:[%s1 + $0xb0] sm:$0xff]
      %v314 = vld [vmem:[%s1 + $0xb8] sm:$0xff]
      %v315 = vld [vmem:[%s1 + $0xc0] sm:$0xff]
      %v316 = vld [vmem:[%s1 + $0xc8] sm:$0xff]
      %v317 = vld [vmem:[%s1 + $0xd0] sm:$0xff]
      %v318 = vld [vmem:[%s1 + $0xd8] sm:$0xff]
      %v319 = vld [vmem:[%s1 + $0xe0] sm:$0xff]
      %v320 = vld [vmem:[%s1 + $0xe8] sm:$0xff]
      %v321 = vld [vmem:[%s1 + $0xf0] sm:$0xff]
      %v322 = vld [vmem:[%s1 + $0xf8] sm:$0xff]
      %v323 = vld [vmem:[%s1 + $0x100] sm:$0xff]
      %v324 = vld [vmem:[%s1 + $0x108] sm:$0xff]
      %v325 = vld [vmem:[%s1 + $0x110] sm:$0xff]
      %v326 = vld [vmem:[%s1 + $0x118] sm:$0xff]
      %v327 = vld [vmem:[%s1 + $0x120] sm:$0xff]
      %v328 = vld [vmem:[%s1 + $0x128] sm:$0xff]
      %v329 = vld [vmem:[%s1 + $0x130] sm:$0xff]
      %v330 = vld [vmem:[%s1 + $0x138] sm:$0xff]
      %v331 = vld [vmem:[%s1 + $0x140] sm:$0xff]
      %v332 = vld [vmem:[%s1 + $0x148] sm:$0xff]
      %v333 = vld [vmem:[%s1 + $0x150] sm:$0xff]
      %v334 = vld [vmem:[%s1 + $0x158] sm:$0xff]
      %v335 = vld [vmem:[%s1 + $0x160] sm:$0xff]
      %v336 = vld [vmem:[%s1 + $0x168] sm:$0xff]
      %v337 = vld [vmem:[%s1 + $0x170] sm:$0xff]
      %v338 = vld [vmem:[%s1 + $0x178] sm:$0xff]
      %v339 = vld [vmem:[%s1 + $0x180] sm:$0xff]
      %v340 = vld [vmem:[%s1 + $0x188] sm:$0xff]
      %v341 = vld [vmem:[%s1 + $0x190] sm:$0xff]
      %v342 = vld [vmem:[%s1 + $0x198] sm:$0xff]
      %v343 = vld [vmem:[%s1 + $0x1a0] sm:$0xff]
      %v344 = vld [vmem:[%s1 + $0x1a8] sm:$0xff]
      %v345 = vld [vmem:[%s1 + $0x1b0] sm:$0xff]
      %v346 = vld [vmem:[%s1 + $0x1b8] sm:$0xff]
      %v347 = vld [vmem:[%s1 + $0x1c0] sm:$0xff]
      %v348 = vld [vmem:[%s1 + $0x1c8] sm:$0xff]
      %v349 = vld [vmem:[%s1 + $0x1d0] sm:$0xff]
      %v350 = vld [vmem:[%s1 + $0x1d8] sm:$0xff]
      %v351 = vld [vmem:[%s1 + $0x1e0] sm:$0xff]
      %v352 = vld [vmem:[%s1 + $0x1e8] sm:$0xff]
      %v353 = vld [vmem:[%s1 + $0x1f0] sm:$0xff]
      %v354 = vld [vmem:[%s1 + $0x1f8] sm:$0xff]
      %v355 = vld [vmem:[%s1 + $0x200] sm:$0xff]
      %v356 = vld [vmem:[%s1 + $0x208] sm:$0xff]
      %v357 = vld [vmem:[%s1 + $0x210] sm:$0xff]
      %v358 = vld [vmem:[%s1 + $0x218] sm:$0xff]
      %v359 = vld [vmem:[%s1 + $0x220] sm:$0xff]
      %v360 = vld [vmem:[%s1 + $0x228] sm:$0xff]
      %v361 = vld [vmem:[%s1 + $0x230] sm:$0xff]
      %v362 = vld [vmem:[%s1 + $0x238] sm:$0xff]
      %v363 = vld [vmem:[%s1 + $0x240] sm:$0xff]
      %v364 = vld [vmem:[%s1 + $0x248] sm:$0xff]
      %v365 = vld [vmem:[%s1 + $0x250] sm:$0xff]
      %v366 = vld [vmem:[%s1 + $0x258] sm:$0xff]
      %v367 = vld [vmem:[%s1 + $0x260] sm:$0xff]
      %v368 = vld [vmem:[%s1 + $0x268] sm:$0xff]
      %v369 = vld [vmem:[%s1 + $0x270] sm:$0xff]
      %v370 = vld [vmem:[%s1 + $0x278] sm:$0xff]
      %v371 = vld [vmem:[%s1 + $0x280] sm:$0xff]
      %v372 = vld [vmem:[%s1 + $0x288] sm:$0xff]
      %v373 = vld [vmem:[%s1 + $0x290] sm:$0xff]
      %v374 = vld [vmem:[%s1 + $0x298] sm:$0xff]
      %v375 = vld [vmem:[%s1 + $0x2a0] sm:$0xff]
      %v376 = vld [vmem:[%s1 + $0x2a8] sm:$0xff]
      %v377 = vld [vmem:[%s1 + $0x2b0] sm:$0xff]
      %v378 = vld [vmem:[%s1 + $0x2b8] sm:$0xff]
      %v379 = vld [vmem:[%s1 + $0x2c0] sm:$0xff]
      %v380 = vld [vmem:[%s1 + $0x2c8] sm:$0xff]
      %v381 = vld [vmem:[%s1 + $0x2d0] sm:$0xff]
      %v382 = vld [vmem:[%s1 + $0x2d8] sm:$0xff]
      %v383 = vld [vmem:[%s1 + $0x2e0] sm:$0xff]
      %v384 = vld [vmem:[%s1 + $0x2e8] sm:$0xff]
      %v385 = vld [vmem:[%s1 + $0x2f0] sm:$0xff]
      %v386 = vld [vmem:[%s1 + $0x2f8] sm:$0xff]
      %v387 = vld [vmem:[%s1 + $0x300] sm:$0xff]
      %v388 = vld [vmem:[%s1 + $0x308] sm:$0xff]
      %v389 = vld [vmem:[%s1 + $0x310] sm:$0xff]
      %v390 = vld [vmem:[%s1 + $0x318] sm:$0xff]
      %v391 = vld [vmem:[%s1 + $0x320] sm:$0xff]
      %v392 = vld [vmem:[%s1 + $0x328] sm:$0xff]
      %v393 = vld [vmem:[%s1 + $0x330] sm:$0xff]
      %v394 = vld [vmem:[%s1 + $0x338] sm:$0xff]
      %v395 = vld [vmem:[%s1 + $0x340] sm:$0xff]
      %v396 = vld [vmem:[%s1 + $0x348] sm:$0xff]
      %v397 = vld [vmem:[%s1 + $0x350] sm:$0xff]
      %v398 = vld [vmem:[%s1 + $0x358] sm:$0xff]
      %v399 = vld [vmem:[%s1 + $0x360] sm:$0xff]
      %v400 = vld [vmem:[%s1 + $0x368] sm:$0xff]
      %v401 = vld [vmem:[%s1 + $0x370] sm:$0xff]
      %v402 = vld [vmem:[%s1 + $0x378] sm:$0xff]
      %v403 = vld [vmem:[%s1 + $0x380] sm:$0xff]
      %v404 = vld [vmem:[%s1 + $0x388] sm:$0xff]
      %v405 = vld [vmem:[%s1 + $0x390] sm:$0xff]
      %v406 = vld [vmem:[%s1 + $0x398] sm:$0xff]
      %v407 = vld [vmem:[%s1 + $0x3a0] sm:$0xff]
      %v408 = vld [vmem:[%s1 + $0x3a8] sm:$0xff]
      %v409 = vld [vmem:[%s1 + $0x3b0] sm:$0xff]
      %v410 = vld [vmem:[%s1 + $0x3b8] sm:$0xff]
      %v411 = vld [vmem:[%s1 + $0x3c0] sm:$0xff]
      %v412 = vld [vmem:[%s1 + $0x3c8] sm:$0xff]
      %v413 = vld [vmem:[%s1 + $0x3d0] sm:$0xff]
      %v414 = vld [vmem:[%s1 + $0x3d8] sm:$0xff]
      %v415 = vld [vmem:[%s1 + $0x3e0] sm:$0xff]
      %v416 = vld [vmem:[%s1 + $0x3e8] sm:$0xff]
      %v417 = vld [vmem:[%s1 + $0x3f0] sm:$0xff]
      %v418 = vld [vmem:[%s1 + $0x3f8] sm:$0xff]
      %v419 = vld [vmem:[%s1 + $0x400] sm:$0xff]
      %v420 = vld [vmem:[%s1 + $0x408] sm:$0xff]
      %v421 = vld [vmem:[%s1 + $0x410] sm:$0xff]
      %v422 = vld [vmem:[%s1 + $0x418] sm:$0xff]
      %v423 = vld [vmem:[%s1 + $0x420] sm:$0xff]
      %v424 = vld [vmem:[%s1 + $0x428] sm:$0xff]
      %v425 = vld [vmem:[%s1 + $0x430] sm:$0xff]
      %v426 = vld [vmem:[%s1 + $0x438] sm:$0xff]
      %v427 = vld [vmem:[%s1 + $0x440] sm:$0xff]
      %v428 = vld [vmem:[%s1 + $0x448] sm:$0xff]
      %v429 = vld [vmem:[%s1 + $0x450] sm:$0xff]
      %v430 = vld [vmem:[%s1 + $0x458] sm:$0xff]
      %v431 = vld [vmem:[%s1 + $0x460] sm:$0xff]
      %v432 = vld [vmem:[%s1 + $0x468] sm:$0xff]
      %v433 = vld [vmem:[%s1 + $0x470] sm:$0xff]
      %v434 = vld [vmem:[%s1 + $0x478] sm:$0xff]
      %v435 = vld [vmem:[%s1 + $0x480] sm:$0xff]
      %v436 = vld [vmem:[%s1 + $0x488] sm:$0xff]
      %v437 = vld [vmem:[%s1 + $0x490] sm:$0xff]
      %v438 = vld [vmem:[%s1 + $0x498] sm:$0xff]
      %v439 = vld [vmem:[%s1 + $0x4a0] sm:$0xff]
      %v440 = vld [vmem:[%s1 + $0x4a8] sm:$0xff]
      %v441 = vld [vmem:[%s1 + $0x4b0] sm:$0xff]
      %v442 = vld [vmem:[%s1 + $0x4b8] sm:$0xff]
      %v443 = vld [vmem:[%s1 + $0x4c0] sm:$0xff]
      %v444 = vld [vmem:[%s1 + $0x4c8] sm:$0xff]
      %v445 = vld [vmem:[%s1 + $0x4d0] sm:$0xff]
      %v446 = vld [vmem:[%s1 + $0x4d8] sm:$0xff]
      %v447 = vld [vmem:[%s1 + $0x4e0] sm:$0xff]
      %v448 = vld [vmem:[%s1 + $0x4e8] sm:$0xff]
      %v449 = vld [vmem:[%s1 + $0x4f0] sm:$0xff]
      %v450 = vld [vmem:[%s1 + $0x4f8] sm:$0xff]
      %v451 = vld [vmem:[%s1 + $0x500] sm:$0xff]
      %v452 = vld [vmem:[%s1 + $0x508] sm:$0xff]
      %v453 = vld [vmem:[%s1 + $0x510] sm:$0xff]
      %v454 = vld [vmem:[%s1 + $0x518] sm:$0xff]
      %v455 = vld [vmem:[%s1 + $0x520] sm:$0xff]
      %v456 = vld [vmem:[%s1 + $0x528] sm:$0xff]
      %v457 = vld [vmem:[%s1 + $0x530] sm:$0xff]
      %v458 = vld [vmem:[%s1 + $0x538] sm:$0xff]
      %v459 = vld [vmem:[%s1 + $0x540] sm:$0xff]
      %v460 = vld [vmem:[%s1 + $0x548] sm:$0xff]
      %v461 = vld [vmem:[%s1 + $0x550] sm:$0xff]
      %v462 = vld [vmem:[%s1 + $0x558] sm:$0xff]
      %v463 = vld [vmem:[%s1 + $0x560] sm:$0xff]
      %v464 = vld [vmem:[%s1 + $0x568] sm:$0xff]
      %v465 = vld [vmem:[%s1 + $0x570] sm:$0xff]
      %v466 = vld [vmem:[%s1 + $0x578] sm:$0xff]
      %v467 = vld [vmem:[%s1 + $0x580] sm:$0xff]
      %v468 = vld [vmem:[%s1 + $0x588] sm:$0xff]
      %v469 = vld [vmem:[%s1 + $0x590] sm:$0xff]
      %v470 = vld [vmem:[%s1 + $0x598] sm:$0xff]
      %v471 = vld [vmem:[%s1 + $0x5a0] sm:$0xff]
      %v472 = vld [vmem:[%s1 + $0x5a8] sm:$0xff]
      %v473 = vld [vmem:[%s1 + $0x5b0] sm:$0xff]
      %v474 = vld [vmem:[%s1 + $0x5b8] sm:$0xff]
      %v475 = vld [vmem:[%s1 + $0x5c0] sm:$0xff]
      %v476 = vld [vmem:[%s1 + $0x5c8] sm:$0xff]
      %v477 = vld [vmem:[%s1 + $0x5d0] sm:$0xff]
      %v478 = vld [vmem:[%s1 + $0x5d8] sm:$0xff]
      %v479 = vld [vmem:[%s1 + $0x5e0] sm:$0xff]
      %v480 = vld [vmem:[%s1 + $0x5e8] sm:$0xff]
      %v481 = vld [vmem:[%s1 + $0x5f0] sm:$0xff]
      %v482 = vld [vmem:[%s1 + $0x5f8] sm:$0xff]
      %v483 = vld [vmem:[%s1 + $0x600] sm:$0xff]
      %v484 = vld [vmem:[%s1 + $0x608] sm:$0xff]
      %v485 = vld [vmem:[%s1 + $0x610] sm:$0xff]
      %v486 = vld [vmem:[%s1 + $0x618] sm:$0xff]
      %v487 = vld [vmem:[%s1 + $0x620] sm:$0xff]
      %v488 = vld [vmem:[%s1 + $0x628] sm:$0xff]
      %v489 = vld [vmem:[%s1 + $0x630] sm:$0xff]
      %v490 = vld [vmem:[%s1 + $0x638] sm:$0xff]
      %v491 = vld [vmem:[%s1 + $0x640] sm:$0xff]
      %v492 = vld [vmem:[%s1 + $0x648] sm:$0xff]
      %v493 = vld [vmem:[%s1 + $0x650] sm:$0xff]
      %v494 = vld [vmem:[%s1 + $0x658] sm:$0xff]
      %v495 = vld [vmem:[%s1 + $0x660] sm:$0xff]
      %v496 = vld [vmem:[%s1 + $0x668] sm:$0xff]
      %v497 = vld [vmem:[%s1 + $0x670] sm:$0xff]
      %v498 = vld [vmem:[%s1 + $0x678] sm:$0xff]
      %v499 = vld [vmem:[%s1 + $0x680] sm:$0xff]
      %v500 = vld [vmem:[%s1 + $0x688] sm:$0xff]
      %v501 = vld [vmem:[%s1 + $0x690] sm:$0xff]
      %v502 = vld [vmem:[%s1 + $0x698] sm:$0xff]
      %v503 = vld [vmem:[%s1 + $0x6a0] sm:$0xff]
      %v504 = vld [vmem:[%s1 + $0x6a8] sm:$0xff]
      %v505 = vld [vmem:[%s1 + $0x6b0] sm:$0xff]
      %v506 = vld [vmem:[%s1 + $0x6b8] sm:$0xff]
      %v507 = vld [vmem:[%s1 + $0x6c0] sm:$0xff]
      %v508 = vld [vmem:[%s1 + $0x6c8] sm:$0xff]
      %v509 = vld [vmem:[%s1 + $0x6d0] sm:$0xff]
      %v510 = vld [vmem:[%s1 + $0x6d8] sm:$0xff]
      %v511 = vld [vmem:[%s1 + $0x6e0] sm:$0xff]
      %v512 = vld [vmem:[%s1 + $0x6e8] sm:$0xff]
      %v513 = vld [vmem:[%s1 + $0x6f0] sm:$0xff]
      %v514 = vld [vmem:[%s1 + $0x6f8] sm:$0xff]
      %v515 = vld [vmem:[%s1 + $0x700] sm:$0xff]
      %v516 = vld [vmem:[%s1 + $0x708] sm:$0xff]
      %v517 = vld [vmem:[%s1 + $0x710] sm:$0xff]
      %v518 = vld [vmem:[%s1 + $0x718] sm:$0xff]
      %v519 = vld [vmem:[%s1 + $0x720] sm:$0xff]
      %v520 = vld [vmem:[%s1 + $0x728] sm:$0xff]
      %v521 = vld [vmem:[%s1 + $0x730] sm:$0xff]
      %v522 = vld [vmem:[%s1 + $0x738] sm:$0xff]
      %v523 = vld [vmem:[%s1 + $0x740] sm:$0xff]
      %v524 = vld [vmem:[%s1 + $0x748] sm:$0xff]
      %v525 = vld [vmem:[%s1 + $0x750] sm:$0xff]
      %v526 = vld [vmem:[%s1 + $0x758] sm:$0xff]
      %v527 = vld [vmem:[%s1 + $0x760] sm:$0xff]
      %v528 = vld [vmem:[%s1 + $0x768] sm:$0xff]
      %v529 = vld [vmem:[%s1 + $0x770] sm:$0xff]
      %v530 = vld [vmem:[%s1 + $0x778] sm:$0xff]
      %v531 = vld [vmem:[%s1 + $0x780] sm:$0xff]
      %v532 = vld [vmem:[%s1 + $0x788] sm:$0xff]
      %v533 = vld [vmem:[%s1 + $0x790] sm:$0xff]
      %v534 = vld [vmem:[%s1 + $0x798] sm:$0xff]
      %v535 = vld [vmem:[%s1 + $0x7a0] sm:$0xff]
      %v536 = vld [vmem:[%s1 + $0x7a8] sm:$0xff]
      %v537 = vld [vmem:[%s1 + $0x7b0] sm:$0xff]
      %v538 = vld [vmem:[%s1 + $0x7b8] sm:$0xff]
      %v539 = vld [vmem:[%s1 + $0x7c0] sm:$0xff]
      %v540 = vld [vmem:[%s1 + $0x7c8] sm:$0xff]
      %v541 = vld [vmem:[%s1 + $0x7d0] sm:$0xff]
      %v542 = vld [vmem:[%s1 + $0x7d8] sm:$0xff]
      %v543 = vld [vmem:[%s1 + $0x7e0] sm:$0xff]
      %v544 = vld [vmem:[%s1 + $0x7e8] sm:$0xff]
      %v545 = vld [vmem:[%s1 + $0x7f0] sm:$0xff]
      %v546 = vld [vmem:[%s1 + $0x7f8] sm:$0xff]
      %v547 = vld [vmem:[%s1 + $0x800] sm:$0xff]
      %v548 = vld [vmem:[%s1 + $0x808] sm:$0xff]
      %v549 = vld [vmem:[%s1 + $0x810] sm:$0xff]
      %v550 = vld [vmem:[%s1 + $0x818] sm:$0xff]
      %v551 = vld [vmem:[%s1 + $0x820] sm:$0xff]
      %v552 = vld [vmem:[%s1 + $0x828] sm:$0xff]
      %v553 = vld [vmem:[%s1 + $0x830] sm:$0xff]
      %v554 = vld [vmem:[%s1 + $0x838] sm:$0xff]
      %v555 = vld [vmem:[%s1 + $0x840] sm:$0xff]
      %v556 = vld [vmem:[%s1 + $0x848] sm:$0xff]
      %v557 = vld [vmem:[%s1 + $0x850] sm:$0xff]
      %v558 = vld [vmem:[%s1 + $0x858] sm:$0xff]
      %v559 = vld [vmem:[%s1 + $0x860] sm:$0xff]
      %v560 = vld [vmem:[%s1 + $0x868] sm:$0xff]
      %v561 = vld [vmem:[%s1 + $0x870] sm:$0xff]
      %v562 = vld [vmem:[%s1 + $0x878] sm:$0xff]
      %v563 = vld [vmem:[%s1 + $0x880] sm:$0xff]
      %v564 = vld [vmem:[%s1 + $0x888] sm:$0xff]
      %v565 = vld [vmem:[%s1 + $0x890] sm:$0xff]
      %v566 = vld [vmem:[%s1 + $0x898] sm:$0xff]
      %v567 = vld [vmem:[%s1 + $0x8a0] sm:$0xff]
      %v568 = vld [vmem:[%s1 + $0x8a8] sm:$0xff]
      %v569 = vld [vmem:[%s1 + $0x8b0] sm:$0xff]
      %v570 = vld [vmem:[%s1 + $0x8b8] sm:$0xff]
      %v571 = vld [vmem:[%s1 + $0x8c0] sm:$0xff]
      %v572 = vld [vmem:[%s1 + $0x8c8] sm:$0xff]
      %v573 = vld [vmem:[%s1 + $0x8d0] sm:$0xff]
      %v574 = vld [vmem:[%s1 + $0x8d8] sm:$0xff]
      %v575 = vld [vmem:[%s1 + $0x8e0] sm:$0xff]
      %v576 = vld [vmem:[%s1 + $0x8e8] sm:$0xff]
      %v577 = vld [vmem:[%s1 + $0x8f0] sm:$0xff]
      %v578 = vld [vmem:[%s1 + $0x8f8] sm:$0xff]
      %v579 = vld [vmem:[%s1 + $0x900] sm:$0xff]
      %v580 = vld [vmem:[%s1 + $0x908] sm:$0xff]
      %v581 = vld [vmem:[%s1 + $0x910] sm:$0xff]
      %v582 = vld [vmem:[%s1 + $0x918] sm:$0xff]
      %v583 = vld [vmem:[%s1 + $0x920] sm:$0xff]
      %v584 = vld [vmem:[%s1 + $0x928] sm:$0xff]
      %v585 = vld [vmem:[%s1 + $0x930] sm:$0xff]
      %v586 = vld [vmem:[%s1 + $0x938] sm:$0xff]
      %v587 = vld [vmem:[%s1 + $0x940] sm:$0xff]
      %v588 = vld [vmem:[%s1 + $0x948] sm:$0xff]
      %v589 = vld [vmem:[%s1 + $0x950] sm:$0xff]
      %v590 = vld [vmem:[%s1 + $0x958] sm:$0xff]
      %v591 = vld [vmem:[%s1 + $0x960] sm:$0xff]
      %v592 = vld [vmem:[%s1 + $0x968] sm:$0xff]
      %v593 = vld [vmem:[%s1 + $0x970] sm:$0xff]
      %v594 = vld [vmem:[%s1 + $0x978] sm:$0xff]
      %v595 = vld [vmem:[%s1 + $0x980] sm:$0xff]
      %v596 = vld [vmem:[%s1 + $0x988] sm:$0xff]
      %v597 = vld [vmem:[%s1 + $0x990] sm:$0xff]
      %v598 = vld [vmem:[%s1 + $0x998] sm:$0xff]
      %v599 = vld [vmem:[%s1 + $0x9a0] sm:$0xff]
      %v600 = vld [vmem:[%s1 + $0x9a8] sm:$0xff]
      %v601 = vld [vmem:[%s1 + $0x9b0] sm:$0xff]
      %v602 = vld [vmem:[%s1 + $0x9b8] sm:$0xff]
      %v603 = vld [vmem:[%s1 + $0x9c0] sm:$0xff]
      %v604 = vld [vmem:[%s1 + $0x9c8] sm:$0xff]
      %v605 = vld [vmem:[%s1 + $0x9d0] sm:$0xff]
      %v606 = vld [vmem:[%s1 + $0x9d8] sm:$0xff]
      %v607 = vld [vmem:[%s1 + $0x9e0] sm:$0xff]
      %v608 = vld [vmem:[%s1 + $0x9e8] sm:$0xff]
      %v609 = vld [vmem:[%s1 + $0x9f0] sm:$0xff]
      %v610 = vld [vmem:[%s1 + $0x9f8] sm:$0xff]
      %v611 = vld [vmem:[%s1 + $0xa00] sm:$0xff]
      %v612 = vld [vmem:[%s1 + $0xa08] sm:$0xff]
      %v613 = vld [vmem:[%s1 + $0xa10] sm:$0xff]
      %v614 = vld [vmem:[%s1 + $0xa18] sm:$0xff]
      %v615 = vld [vmem:[%s1 + $0xa20] sm:$0xff]
      %v616 = vld [vmem:[%s1 + $0xa28] sm:$0xff]
      %v617 = vld [vmem:[%s1 + $0xa30] sm:$0xff]
      %v618 = vld [vmem:[%s1 + $0xa38] sm:$0xff]
      %v619 = vld [vmem:[%s1 + $0xa40] sm:$0xff]
      %v620 = vld [vmem:[%s1 + $0xa48] sm:$0xff]
      %v621 = vld [vmem:[%s1 + $0xa50] sm:$0xff]
      %v622 = vld [vmem:[%s1 + $0xa58] sm:$0xff]
      %v623 = vld [vmem:[%s1 + $0xa60] sm:$0xff]
      %v624 = vld [vmem:[%s1 + $0xa68] sm:$0xff]
      %v625 = vld [vmem:[%s1 + $0xa70] sm:$0xff]
      %v626 = vld [vmem:[%s1 + $0xa78] sm:$0xff]
      %v627 = vld [vmem:[%s1 + $0xa80] sm:$0xff]
      %v628 = vld [vmem:[%s1 + $0xa88] sm:$0xff]
      %v629 = vld [vmem:[%s1 + $0xa90] sm:$0xff]
      %v630 = vld [vmem:[%s1 + $0xa98] sm:$0xff]
      %v631 = vld [vmem:[%s1 + $0xaa0] sm:$0xff]
      %v632 = vld [vmem:[%s1 + $0xaa8] sm:$0xff]
      %v633 = vld [vmem:[%s1 + $0xab0] sm:$0xff]
      %v634 = vld [vmem:[%s1 + $0xab8] sm:$0xff]
      %v635 = vld [vmem:[%s1 + $0xac0] sm:$0xff]
      %v636 = vld [vmem:[%s1 + $0xac8] sm:$0xff]
      %v637 = vld [vmem:[%s1 + $0xad0] sm:$0xff]
      %v638 = vld [vmem:[%s1 + $0xad8] sm:$0xff]
      %v639 = vld [vmem:[%s1 + $0xae0] sm:$0xff]
      %v640 = vld [vmem:[%s1 + $0xae8] sm:$0xff]
      %v641 = vld [vmem:[%s1 + $0xaf0] sm:$0xff]
      %v642 = vld [vmem:[%s1 + $0xaf8] sm:$0xff]
      %v643 = vld [vmem:[%s1 + $0xb00] sm:$0xff]
      %v644 = vld [vmem:[%s1 + $0xb08] sm:$0xff]
      %v645 = vld [vmem:[%s1 + $0xb10] sm:$0xff]
      %v646 = vld [vmem:[%s1 + $0xb18] sm:$0xff]
      %v647 = vld [vmem:[%s1 + $0xb20] sm:$0xff]
      %v648 = vld [vmem:[%s1 + $0xb28] sm:$0xff]
      %v649 = vld [vmem:[%s1 + $0xb30] sm:$0xff]
      %v650 = vld [vmem:[%s1 + $0xb38] sm:$0xff]
      %v651 = vld [vmem:[%s1 + $0xb40] sm:$0xff]
      %v652 = vld [vmem:[%s1 + $0xb48] sm:$0xff]
      %v653 = vld [vmem:[%s1 + $0xb50] sm:$0xff]
      %v654 = vld [vmem:[%s1 + $0xb58] sm:$0xff]
      %v655 = vld [vmem:[%s1 + $0xb60] sm:$0xff]
      %v656 = vld [vmem:[%s1 + $0xb68] sm:$0xff]
      %v657 = vld [vmem:[%s1 + $0xb70] sm:$0xff]
      %v658 = vld [vmem:[%s1 + $0xb78] sm:$0xff]
      %v659 = vld [vmem:[%s1 + $0xb80] sm:$0xff]
      %v660 = vld [vmem:[%s1 + $0xb88] sm:$0xff]
      %v661 = vld [vmem:[%s1 + $0xb90] sm:$0xff]
      %v662 = vld [vmem:[%s1 + $0xb98] sm:$0xff]
      %v663 = vld [vmem:[%s1 + $0xba0] sm:$0xff]
      %v664 = vld [vmem:[%s1 + $0xba8] sm:$0xff]
      %v665 = vld [vmem:[%s1 + $0xbb0] sm:$0xff]
      %v666 = vld [vmem:[%s1 + $0xbb8] sm:$0xff]
      %v667 = vld [vmem:[%s1 + $0xbc0] sm:$0xff]
      %v668 = vld [vmem:[%s1 + $0xbc8] sm:$0xff]
      %v669 = vld [vmem:[%s1 + $0xbd0] sm:$0xff]
      %v670 = vld [vmem:[%s1 + $0xbd8] sm:$0xff]
      %v671 = vld [vmem:[%s1 + $0xbe0] sm:$0xff]
      %v672 = vld [vmem:[%s1 + $0xbe8] sm:$0xff]
      %v673 = vld [vmem:[%s1 + $0xbf0] sm:$0xff]
      %v674 = vld [vmem:[%s1 + $0xbf8] sm:$0xff]
      %v675 = vld [vmem:[%s1 + $0xc00] sm:$0xff]
      %v676 = vld [vmem:[%s1 + $0xc08] sm:$0xff]
      %v677 = vld [vmem:[%s1 + $0xc10] sm:$0xff]
      %v678 = vld [vmem:[%s1 + $0xc18] sm:$0xff]
      %v679 = vld [vmem:[%s1 + $0xc20] sm:$0xff]
      %v680 = vld [vmem:[%s1 + $0xc28] sm:$0xff]
      %v681 = vld [vmem:[%s1 + $0xc30] sm:$0xff]
      %v682 = vld [vmem:[%s1 + $0xc38] sm:$0xff]
      %v683 = vld [vmem:[%s1 + $0xc40] sm:$0xff]
      %v684 = vld [vmem:[%s1 + $0xc48] sm:$0xff]
      %v685 = vld [vmem:[%s1 + $0xc50] sm:$0xff]
      %v686 = vld [vmem:[%s1 + $0xc58] sm:$0xff]
      %v687 = vld [vmem:[%s1 + $0xc60] sm:$0xff]
      %v688 = vld [vmem:[%s1 + $0xc68] sm:$0xff]
      %v689 = vld [vmem:[%s1 + $0xc70] sm:$0xff]
      %v690 = vld [vmem:[%s1 + $0xc78] sm:$0xff]
      %v691 = vld [vmem:[%s1 + $0xc80] sm:$0xff]
      %v692 = vld [vmem:[%s1 + $0xc88] sm:$0xff]
      %v693 = vld [vmem:[%s1 + $0xc90] sm:$0xff]
      %v694 = vld [vmem:[%s1 + $0xc98] sm:$0xff]
      %v695 = vld [vmem:[%s1 + $0xca0] sm:$0xff]
      %v696 = vld [vmem:[%s1 + $0xca8] sm:$0xff]
      %v697 = vld [vmem:[%s1 + $0xcb0] sm:$0xff]
      %v698 = vld [vmem:[%s1 + $0xcb8] sm:$0xff]
      %v699 = vld [vmem:[%s1 + $0xcc0] sm:$0xff]
      %v700 = vld [vmem:[%s1 + $0xcc8] sm:$0xff]
      %v701 = vld [vmem:[%s1 + $0xcd0] sm:$0xff]
      %v702 = vld [vmem:[%s1 + $0xcd8] sm:$0xff]
      %v703 = vld [vmem:[%s1 + $0xce0] sm:$0xff]
      %v704 = vld [vmem:[%s1 + $0xce8] sm:$0xff]
      %v705 = vld [vmem:[%s1 + $0xcf0] sm:$0xff]
      %v706 = vld [vmem:[%s1 + $0xcf8] sm:$0xff]
      %v707 = vld [vmem:[%s1 + $0xd00] sm:$0xff]
      %v708 = vld [vmem:[%s1 + $0xd08] sm:$0xff]
      %v709 = vld [vmem:[%s1 + $0xd10] sm:$0xff]
      %v710 = vld [vmem:[%s1 + $0xd18] sm:$0xff]
      %v711 = vld [vmem:[%s1 + $0xd20] sm:$0xff]
      %v712 = vld [vmem:[%s1 + $0xd28] sm:$0xff]
      %v713 = vld [vmem:[%s1 + $0xd30] sm:$0xff]
      %v714 = vld [vmem:[%s1 + $0xd38] sm:$0xff]
      %v715 = vld [vmem:[%s1 + $0xd40] sm:$0xff]
      %v716 = vld [vmem:[%s1 + $0xd48] sm:$0xff]
      %v717 = vld [vmem:[%s1 + $0xd50] sm:$0xff]
      %v718 = vld [vmem:[%s1 + $0xd58] sm:$0xff]
      %v719 = vld [vmem:[%s1 + $0xd60] sm:$0xff]
      %v720 = vld [vmem:[%s1 + $0xd68] sm:$0xff]
      %v721 = vld [vmem:[%s1 + $0xd70] sm:$0xff]
      %v722 = vld [vmem:[%s1 + $0xd78] sm:$0xff]
      %v723 = vld [vmem:[%s1 + $0xd80] sm:$0xff]
      %v724 = vld [vmem:[%s1 + $0xd88] sm:$0xff]
      %v725 = vld [vmem:[%s1 + $0xd90] sm:$0xff]
      %v726 = vld [vmem:[%s1 + $0xd98] sm:$0xff]
      %v727 = vld [vmem:[%s1 + $0xda0] sm:$0xff]
      %v728 = vld [vmem:[%s1 + $0xda8] sm:$0xff]
      %v729 = vld [vmem:[%s1 + $0xdb0] sm:$0xff]
      %v730 = vld [vmem:[%s1 + $0xdb8] sm:$0xff]
      %v731 = vld [vmem:[%s1 + $0xdc0] sm:$0xff]
      %v732 = vld [vmem:[%s1 + $0xdc8] sm:$0xff]
      %v733 = vld [vmem:[%s1 + $0xdd0] sm:$0xff]
      %v734 = vld [vmem:[%s1 + $0xdd8] sm:$0xff]
      %v735 = vld [vmem:[%s1 + $0xde0] sm:$0xff]
      %v736 = vld [vmem:[%s1 + $0xde8] sm:$0xff]
      %v737 = vld [vmem:[%s1 + $0xdf0] sm:$0xff]
      %v738 = vld [vmem:[%s1 + $0xdf8] sm:$0xff]
      %v739 = vld [vmem:[%s1 + $0xe00] sm:$0xff]
      %v740 = vld [vmem:[%s1 + $0xe08] sm:$0xff]
      %v741 = vld [vmem:[%s1 + $0xe10] sm:$0xff]
      %v742 = vld [vmem:[%s1 + $0xe18] sm:$0xff]
      %v743 = vld [vmem:[%s1 + $0xe20] sm:$0xff]
      %v744 = vld [vmem:[%s1 + $0xe28] sm:$0xff]
      %v745 = vld [vmem:[%s1 + $0xe30] sm:$0xff]
      %v746 = vld [vmem:[%s1 + $0xe38] sm:$0xff]
      %v747 = vld [vmem:[%s1 + $0xe40] sm:$0xff]
      %v748 = vld [vmem:[%s1 + $0xe48] sm:$0xff]
      %v749 = vld [vmem:[%s1 + $0xe50] sm:$0xff]
      %v750 = vld [vmem:[%s1 + $0xe58] sm:$0xff]
      %v751 = vld [vmem:[%s1 + $0xe60] sm:$0xff]
      %v752 = vld [vmem:[%s1 + $0xe68] sm:$0xff]
      %v753 = vld [vmem:[%s1 + $0xe70] sm:$0xff]
      %v754 = vld [vmem:[%s1 + $0xe78] sm:$0xff]
      %v755 = vld [vmem:[%s1 + $0xe80] sm:$0xff]
      %v756 = vld [vmem:[%s1 + $0xe88] sm:$0xff]
      %v757 = vld [vmem:[%s1 + $0xe90] sm:$0xff]
      %v758 = vld [vmem:[%s1 + $0xe98] sm:$0xff]
      %v759 = vld [vmem:[%s1 + $0xea0] sm:$0xff]
      %v760 = vld [vmem:[%s1 + $0xea8] sm:$0xff]
      %v761 = vld [vmem:[%s1 + $0xeb0] sm:$0xff]
      %v762 = vld [vmem:[%s1 + $0xeb8] sm:$0xff]
      %v763 = vld [vmem:[%s1 + $0xec0] sm:$0xff]
      %v764 = vld [vmem:[%s1 + $0xec8] sm:$0xff]
      %v765 = vld [vmem:[%s1 + $0xed0] sm:$0xff]
      %v766 = vld [vmem:[%s1 + $0xed8] sm:$0xff]
      %v767 = vld [vmem:[%s1 + $0xee0] sm:$0xff]
      %v768 = vld [vmem:[%s1 + $0xee8] sm:$0xff]
      %v769 = vld [vmem:[%s1 + $0xef0] sm:$0xff]
      %v770 = vld [vmem:[%s1 + $0xef8] sm:$0xff]
      %v771 = vld [vmem:[%s1 + $0xf00] sm:$0xff]
      %v772 = vld [vmem:[%s1 + $0xf08] sm:$0xff]
      %v773 = vld [vmem:[%s1 + $0xf10] sm:$0xff]
      %v774 = vld [vmem:[%s1 + $0xf18] sm:$0xff]
      %v775 = vld [vmem:[%s1 + $0xf20] sm:$0xff]
      %v776 = vld [vmem:[%s1 + $0xf28] sm:$0xff]
      %v777 = vld [vmem:[%s1 + $0xf30] sm:$0xff]
      %v778 = vld [vmem:[%s1 + $0xf38] sm:$0xff]
      %v779 = vld [vmem:[%s1 + $0xf40] sm:$0xff]
      %v780 = vld [vmem:[%s1 + $0xf48] sm:$0xff]
      %v781 = vld [vmem:[%s1 + $0xf50] sm:$0xff]
      %v782 = vld [vmem:[%s1 + $0xf58] sm:$0xff]
      %v783 = vld [vmem:[%s1 + $0xf60] sm:$0xff]
      %v784 = vld [vmem:[%s1 + $0xf68] sm:$0xff]
      %v785 = vld [vmem:[%s1 + $0xf70] sm:$0xff]
      %v786 = vld [vmem:[%s1 + $0xf78] sm:$0xff]
      %v787 = vld [vmem:[%s1 + $0xf80] sm:$0xff]
      %v788 = vld [vmem:[%s1 + $0xf88] sm:$0xff]
      %v789 = vld [vmem:[%s1 + $0xf90] sm:$0xff]
      %v790 = vld [vmem:[%s1 + $0xf98] sm:$0xff]
      %v791 = vld [vmem:[%s1 + $0xfa0] sm:$0xff]
      %v792 = vld [vmem:[%s1 + $0xfa8] sm:$0xff]
      %v793 = vld [vmem:[%s1 + $0xfb0] sm:$0xff]
      %v794 = vld [vmem:[%s1 + $0xfb8] sm:$0xff]
      %v795 = vld [vmem:[%s1 + $0xfc0] sm:$0xff]
      %v796 = vld [vmem:[%s1 + $0xfc8] sm:$0xff]
      %v797 = vld [vmem:[%s1 + $0xfd0] sm:$0xff]
      %v798 = vld [vmem:[%s1 + $0xfd8] sm:$0xff]
      %v799 = vld [vmem:[%s1 + $0xfe0] sm:$0xff]
      %v800 = vld [vmem:[%s1 + $0xfe8] sm:$0xff]
      %v801 = vld [vmem:[%s1 + $0xff0] sm:$0xff]
      %v802 = vld [vmem:[%s1 + $0xff8] sm:$0xff]
      %v803 = vld [vmem:[%s1 + $0x1000] sm:$0xff]
      %v804 = vld [vmem:[%s1 + $0x1008] sm:$0xff]
      %v805 = vld [vmem:[%s1 + $0x1010] sm:$0xff]
      %v806 = vld [vmem:[%s1 + $0x1018] sm:$0xff]
      %v807 = vld [vmem:[%s1 + $0x1020] sm:$0xff]
      %v808 = vld [vmem:[%s1 + $0x1028] sm:$0xff]
      %v809 = vld [vmem:[%s1 + $0x1030] sm:$0xff]
      %v810 = vld [vmem:[%s1 + $0x1038] sm:$0xff]
      %v811 = vld [vmem:[%s1 + $0x1040] sm:$0xff]
      %v812 = vld [vmem:[%s1 + $0x1048] sm:$0xff]
      %v813 = vld [vmem:[%s1 + $0x1050] sm:$0xff]
      %v814 = vld [vmem:[%s1 + $0x1058] sm:$0xff]
      %v815 = vld [vmem:[%s1 + $0x1060] sm:$0xff]
      %v816 = vld [vmem:[%s1 + $0x1068] sm:$0xff]
      %v817 = vld [vmem:[%s1 + $0x1070] sm:$0xff]
      %v818 = vld [vmem:[%s1 + $0x1078] sm:$0xff]
      %v819 = vld [vmem:[%s1 + $0x1080] sm:$0xff]
      %v820 = vld [vmem:[%s1 + $0x1088] sm:$0xff]
      %v821 = vld [vmem:[%s1 + $0x1090] sm:$0xff]
      %v822 = vld [vmem:[%s1 + $0x1098] sm:$0xff]
      %v823 = vld [vmem:[%s1 + $0x10a0] sm:$0xff]
      %v824 = vld [vmem:[%s1 + $0x10a8] sm:$0xff]
      %v825 = vld [vmem:[%s1 + $0x10b0] sm:$0xff]
      %v826 = vld [vmem:[%s1 + $0x10b8] sm:$0xff]
      %v827 = vld [vmem:[%s1 + $0x10c0] sm:$0xff]
      %v828 = vld [vmem:[%s1 + $0x10c8] sm:$0xff]
      %v829 = vld [vmem:[%s1 + $0x10d0] sm:$0xff]
      %v830 = vld [vmem:[%s1 + $0x10d8] sm:$0xff]
      %v831 = vld [vmem:[%s1 + $0x10e0] sm:$0xff]
      %v832 = vld [vmem:[%s1 + $0x10e8] sm:$0xff]
      %v833 = vld [vmem:[%s1 + $0x10f0] sm:$0xff]
      %v834 = vld [vmem:[%s1 + $0x10f8] sm:$0xff]
      %v835 = vld [vmem:[%s1 + $0x1100] sm:$0xff]
      %v836 = vld [vmem:[%s1 + $0x1108] sm:$0xff]
      %v837 = vld [vmem:[%s1 + $0x1110] sm:$0xff]
      %v838 = vld [vmem:[%s1 + $0x1118] sm:$0xff]
      %v839 = vld [vmem:[%s1 + $0x1120] sm:$0xff]
      %v840 = vld [vmem:[%s1 + $0x1128] sm:$0xff]
      %v841 = vld [vmem:[%s1 + $0x1130] sm:$0xff]
      %v842 = vld [vmem:[%s1 + $0x1138] sm:$0xff]
      %v843 = vld [vmem:[%s1 + $0x1140] sm:$0xff]
      %v844 = vld [vmem:[%s1 + $0x1148] sm:$0xff]
      %v845 = vld [vmem:[%s1 + $0x1150] sm:$0xff]
      %v846 = vld [vmem:[%s1 + $0x1158] sm:$0xff]
      %v847 = vld [vmem:[%s1 + $0x1160] sm:$0xff]
      %v848 = vld [vmem:[%s1 + $0x1168] sm:$0xff]
      %v849 = vld [vmem:[%s1 + $0x1170] sm:$0xff]
      %v850 = vld [vmem:[%s1 + $0x1178] sm:$0xff]
      %v851 = vld [vmem:[%s1 + $0x1180] sm:$0xff]
      %v852 = vld [vmem:[%s1 + $0x1188] sm:$0xff]
      %v853 = vld [vmem:[%s1 + $0x1190] sm:$0xff]
      %v854 = vld [vmem:[%s1 + $0x1198] sm:$0xff]
      %v855 = vld [vmem:[%s1 + $0x11a0] sm:$0xff]
      %v856 = vld [vmem:[%s1 + $0x11a8] sm:$0xff]
      %v857 = vld [vmem:[%s1 + $0x11b0] sm:$0xff]
      %v858 = vld [vmem:[%s1 + $0x11b8] sm:$0xff]
      %v859 = vld [vmem:[%s1 + $0x11c0] sm:$0xff]
      %v860 = vld [vmem:[%s1 + $0x11c8] sm:$0xff]
      %v861 = vld [vmem:[%s1 + $0x11d0] sm:$0xff]
      %v862 = vld [vmem:[%s1 + $0x11d8] sm:$0xff]
      %v863 = vld [vmem:[%s1 + $0x11e0] sm:$0xff]
      %v864 = vld [vmem:[%s1 + $0x11e8] sm:$0xff]
      %v865 = vld [vmem:[%s1 + $0x11f0] sm:$0xff]
      %v866 = vld [vmem:[%s1 + $0x11f8] sm:$0xff]
      %v867 = vld [vmem:[%s1 + $0x1200] sm:$0xff]
      %v868 = vld [vmem:[%s1 + $0x1208] sm:$0xff]
      %v869 = vld [vmem:[%s1 + $0x1210] sm:$0xff]
      %v870 = vld [vmem:[%s1 + $0x1218] sm:$0xff]
      %v871 = vld [vmem:[%s1 + $0x1220] sm:$0xff]
      %v872 = vld [vmem:[%s1 + $0x1228] sm:$0xff]
      %v873 = vld [vmem:[%s1 + $0x1230] sm:$0xff]
      %v874 = vld [vmem:[%s1 + $0x1238] sm:$0xff]
      %v875 = vld [vmem:[%s1 + $0x1240] sm:$0xff]
      %v876 = vld [vmem:[%s1 + $0x1248] sm:$0xff]
      %v877 = vld [vmem:[%s1 + $0x1250] sm:$0xff]
      %v878 = vld [vmem:[%s1 + $0x1258] sm:$0xff]
      %v879 = vld [vmem:[%s1 + $0x1260] sm:$0xff]
      %v880 = vld [vmem:[%s1 + $0x1268] sm:$0xff]
      %v881 = vld [vmem:[%s1 + $0x1270] sm:$0xff]
      %v882 = vld [vmem:[%s1 + $0x1278] sm:$0xff]
      %v883 = vld [vmem:[%s1 + $0x1280] sm:$0xff]
      %v884 = vld [vmem:[%s1 + $0x1288] sm:$0xff]
      %v885 = vld [vmem:[%s1 + $0x1290] sm:$0xff]
      %v886 = vld [vmem:[%s1 + $0x1298] sm:$0xff]
      %v887 = vld [vmem:[%s1 + $0x12a0] sm:$0xff]
      %v888 = vld [vmem:[%s1 + $0x12a8] sm:$0xff]
      %v889 = vld [vmem:[%s1 + $0x12b0] sm:$0xff]
      %v890 = vld [vmem:[%s1 + $0x12b8] sm:$0xff]
      %v891 = vld [vmem:[%s1 + $0x12c0] sm:$0xff]
      %v892 = vld [vmem:[%s1 + $0x12c8] sm:$0xff]
      %v893 = vld [vmem:[%s1 + $0x12d0] sm:$0xff]
      %v894 = vld [vmem:[%s1 + $0x12d8] sm:$0xff]
      %v895 = vld [vmem:[%s1 + $0x12e0] sm:$0xff]
      %v896 = vld [vmem:[%s1 + $0x12e8] sm:$0xff]
      %v897 = vld [vmem:[%s1 + $0x12f0] sm:$0xff]
      %v898 = vld [vmem:[%s1 + $0x12f8] sm:$0xff]
      %v899 = vld [vmem:[%s1 + $0x1300] sm:$0xff]
      %v900 = vld [vmem:[%s1 + $0x1308] sm:$0xff]
      %v901 = vld [vmem:[%s1 + $0x1310] sm:$0xff]
      %v902 = vld [vmem:[%s1 + $0x1318] sm:$0xff]
      %v903 = vld [vmem:[%s1 + $0x1320] sm:$0xff]
      %v904 = vld [vmem:[%s1 + $0x1328] sm:$0xff]
      %v905 = vld [vmem:[%s1 + $0x1330] sm:$0xff]
      %v906 = vld [vmem:[%s1 + $0x1338] sm:$0xff]
      %v907 = vld [vmem:[%s1 + $0x1340] sm:$0xff]
      %v908 = vld [vmem:[%s1 + $0x1348] sm:$0xff]
      %v909 = vld [vmem:[%s1 + $0x1350] sm:$0xff]
      %v910 = vld [vmem:[%s1 + $0x1358] sm:$0xff]
      %v911 = vld [vmem:[%s1 + $0x1360] sm:$0xff]
      %v912 = vld [vmem:[%s1 + $0x1368] sm:$0xff]
      %v913 = vld [vmem:[%s1 + $0x1370] sm:$0xff]
      %v914 = vld [vmem:[%s1 + $0x1378] sm:$0xff]
      %v915 = vld [vmem:[%s1 + $0x1380] sm:$0xff]
      %v916 = vld [vmem:[%s1 + $0x1388] sm:$0xff]
      %v917 = vld [vmem:[%s1 + $0x1390] sm:$0xff]
      %v918 = vld [vmem:[%s1 + $0x1398] sm:$0xff]
      %v919 = vld [vmem:[%s1 + $0x13a0] sm:$0xff]
      %v920 = vld [vmem:[%s1 + $0x13a8] sm:$0xff]
      %v921 = vld [vmem:[%s1 + $0x13b0] sm:$0xff]
      %v922 = vld [vmem:[%s1 + $0x13b8] sm:$0xff]
      %v923 = vld [vmem:[%s1 + $0x13c0] sm:$0xff]
      %v924 = vld [vmem:[%s1 + $0x13c8] sm:$0xff]
      %v925 = vld [vmem:[%s1 + $0x13d0] sm:$0xff]
      %v926 = vld [vmem:[%s1 + $0x13d8] sm:$0xff]
      %v927 = vld [vmem:[%s1 + $0x13e0] sm:$0xff]
      %v928 = vld [vmem:[%s1 + $0x13e8] sm:$0xff]
      %v929 = vld [vmem:[%s1 + $0x13f0] sm:$0xff]
      %v930 = vld [vmem:[%s1 + $0x13f8] sm:$0xff]
      %v931 = vld [vmem:[%s1 + $0x1400] sm:$0xff]
      %v932 = vld [vmem:[%s1 + $0x1408] sm:$0xff]
      %v933 = vld [vmem:[%s1 + $0x1410] sm:$0xff]
      %v934 = vld [vmem:[%s1 + $0x1418] sm:$0xff]
      %v935 = vld [vmem:[%s1 + $0x1420] sm:$0xff]
      %v936 = vld [vmem:[%s1 + $0x1428] sm:$0xff]
      %v937 = vld [vmem:[%s1 + $0x1430] sm:$0xff]
      %v938 = vld [vmem:[%s1 + $0x1438] sm:$0xff]
      %v939 = vld [vmem:[%s2] sm:$0x7]
      %v941 = vlaneseq
      %v942 = vshrl.u32 %v941, 7
      %v943 = vsub.s32 0, %v942
      %v944 = vrot.slane %v939, %v943
      %v945 = vlaneseq
      %v946 = vshrl.u32 %v945, 7
      %v947 = vsub.s32 1, %v946
      %v948 = vrot.slane %v939, %v947
      %v949 = vlaneseq
      %v950 = vshrl.u32 %v949, 7
      %v951 = vsub.s32 2, %v950
      %v952 = vrot.slane %v939, %v951
      %vm956 = vcmask 523264
      %v958 = vsel %vm956, %v192, 0
      %v961 = vsel %vm956, %v206, 0
      %v964 = vsel %vm956, %v220, 0
      %v967 = vsel %vm956, %v234, 0
      %v970 = vsel %vm956, %v248, 0
      %v973 = vsel %vm956, %v262, 0
      %v976 = vsel %vm956, %v276, 0
      %v979 = vsel %vm956, %v290, 0
      %981 = vmatprep.subr.mxu0 %v292
      %982 = vmatpush1.msra.mxu0 %v291
      %983 = vmatprep.subr.mxu0 %v295
      %984 = vmatpush1.msra.mxu0 %v294
      %985 = vmatprep.subr.mxu0 %v298
      %986 = vmatpush1.msra.mxu0 %v297
      %987 = vmatprep.subr.mxu0 %v301
      %988 = vmatpush1.msra.mxu0 %v300
      %989 = vmatprep.subr.mxu0 %v304
      %990 = vmatpush1.msra.mxu0 %v303
      %991 = vmatprep.subr.mxu0 %v307
      %992 = vmatpush1.msra.mxu0 %v306
      %993 = vmatprep.subr.mxu0 %v310
      %994 = vmatpush1.msra.mxu0 %v309
      %995 = vmatprep.subr.mxu0 %v313
      %996 = vmatpush1.msra.mxu0 %v312
      %997 = vmatprep.subr.mxu0 %v316
      %998 = vmatpush1.msra.mxu0 %v315
      %999 = vmatprep.subr.mxu0 %v319
      %1000 = vmatpush1.msra.mxu0 %v318
      %1001 = vmatprep.subr.mxu0 %v322
      %1002 = vmatpush1.msra.mxu0 %v321
      %1003 = vmatprep.subr.mxu0 %v325
      %1004 = vmatpush1.msra.mxu0 %v324
      %1005 = vmatprep.subr.mxu0 %v328
      %1006 = vmatpush1.msra.mxu0 %v327
      %1007 = vmatprep.subr.mxu0 %v331
      %1008 = vmatpush1.msra.mxu0 %v330
      %1009 = vmatprep.subr.mxu0 %v334
      %1010 = vmatpush1.msra.mxu0 %v333
      %1011 = vmatprep.subr.mxu0 %v337
      %1012 = vmatpush1.msra.mxu0 %v336
      %1013 = vmatprep.subr.mxu0 %v340
      %1014 = vmatpush1.msra.mxu0 %v339
      %1015 = vmatprep.subr.mxu0 %v343
      %1016 = vmatpush1.msra.mxu0 %v342
      %1017 = vmatprep.subr.mxu0 %v346
      %1018 = vmatpush1.msra.mxu0 %v345
      %1019 = vmatprep.subr.mxu0 %v349
      %1020 = vmatpush1.msra.mxu0 %v348
      %1021 = vmatprep.subr.mxu0 %v352
      %1022 = vmatpush1.msra.mxu0 %v351
      %1023 = vmatprep.subr.mxu0 %v355
      %1024 = vmatpush1.msra.mxu0 %v354
      %1025 = vmatprep.subr.mxu0 %v358
      %1026 = vmatpush1.msra.mxu0 %v357
      %1027 = vmatprep.subr.mxu0 %v361
      %1028 = vmatpush1.msra.mxu0 %v360
      %1029 = vmatprep.subr.mxu0 %v364
      %1030 = vmatpush1.msra.mxu0 %v363
      %1031 = vmatprep.subr.mxu0 %v367
      %1032 = vmatpush1.msra.mxu0 %v366
      %1033 = vmatprep.subr.mxu0 %v370
      %1034 = vmatpush1.msra.mxu0 %v369
      %1035 = vmatprep.subr.mxu0 %v373
      %1036 = vmatpush1.msra.mxu0 %v372
      %1037 = vmatprep.subr.mxu0 %v376
      %1038 = vmatpush1.msra.mxu0 %v375
      %1039 = vmatprep.subr.mxu0 %v379
      %1040 = vmatpush1.msra.mxu0 %v378
      %1041 = vmatprep.subr.mxu0 %v382
      %1042 = vmatpush1.msra.mxu0 %v381
      %1043 = vmatprep.subr.mxu0 %v385
      %1044 = vmatpush1.msra.mxu0 %v384
      %1045 = vmatprep.mubr.f32.mxu0 %v180
      %1046 = vmatmul.mubr.f32.gmra.mrb[0].mxu0 %v179
      %v1047 = vpop.f32.mrb[0].mxu0
      %v1048 = vadd.f32 %v944, %v1047
      %v1049 = vpop.f32.mrb[0].mxu0
      %v1050 = vadd.f32 %v948, %v1049
      %1051 = vmatprep.mubr.f32.mxu0 %v194
      %1052 = vmatmul.mubr.f32.gmra.mrb[0].mxu0 %v193
      %v1053 = vpop.f32.mrb[0].mxu0
      %v1054 = vadd.f32 %v944, %v1053
      %v1055 = vpop.f32.mrb[0].mxu0
      %v1056 = vadd.f32 %v948, %v1055
      %1057 = vmatprep.mubr.f32.mxu0 %v208
      %1058 = vmatmul.mubr.f32.gmra.mrb[0].mxu0 %v207
      %v1059 = vpop.f32.mrb[0].mxu0
      %v1060 = vadd.f32 %v944, %v1059
      %v1061 = vpop.f32.mrb[0].mxu0
      %v1062 = vadd.f32 %v948, %v1061
      %1063 = vmatprep.mubr.f32.mxu0 %v222
      %1064 = vmatmul.mubr.f32.gmra.mrb[0].mxu0 %v221
      %v1065 = vpop.f32.mrb[0].mxu0
      %v1066 = vadd.f32 %v944, %v1065
      %v1067 = vpop.f32.mrb[0].mxu0
      %v1068 = vadd.f32 %v948, %v1067
      %1069 = vmatprep.mubr.f32.mxu0 %v236
      %1070 = vmatmul.mubr.f32.gmra.mrb[0].mxu0 %v235
      %v1071 = vpop.f32.mrb[0].mxu0
      %v1072 = vadd.f32 %v944, %v1071
      %v1073 = vpop.f32.mrb[0].mxu0
      %v1074 = vadd.f32 %v948, %v1073
      %1075 = vmatprep.mubr.f32.mxu0 %v250
      %1076 = vmatmul.mubr.f32.gmra.mrb[0].mxu0 %v249
      %v1077 = vpop.f32.mrb[0].mxu0
      %v1078 = vadd.f32 %v944, %v1077
      %v1079 = vpop.f32.mrb[0].mxu0
      %v1080 = vadd.f32 %v948, %v1079
      %1081 = vmatprep.mubr.f32.mxu0 %v264
      %1082 = vmatmul.mubr.f32.gmra.mrb[0].mxu0 %v263
      %v1083 = vpop.f32.mrb[0].mxu0
      %v1084 = vadd.f32 %v944, %v1083
      %v1085 = vpop.f32.mrb[0].mxu0
      %v1086 = vadd.f32 %v948, %v1085
      %1087 = vmatprep.mubr.f32.mxu0 %v278
      %1088 = vmatmul.mubr.f32.gmra.mrb[0].mxu0 %v277
      %v1089 = vpop.f32.mrb[0].mxu0
      %v1090 = vadd.f32 %v944, %v1089
      %v1091 = vpop.f32.mrb[0].mxu0
      %v1092 = vadd.f32 %v948, %v1091
      %1093 = vdwg.mxu0
      %1094 = vmatprep.subr.mxu0 %v388
      %1095 = vmatpush1.msra.mxu0 %v387
      %1096 = vmatprep.subr.mxu0 %v391
      %1097 = vmatpush1.msra.mxu0 %v390
      %1098 = vmatprep.subr.mxu0 %v394
      %1099 = vmatpush1.msra.mxu0 %v393
      %1100 = vmatprep.subr.mxu0 %v397
      %1101 = vmatpush1.msra.mxu0 %v396
      %1102 = vmatprep.subr.mxu0 %v400
      %1103 = vmatpush1.msra.mxu0 %v399
      %1104 = vmatprep.subr.mxu0 %v403
      %1105 = vmatpush1.msra.mxu0 %v402
      %1106 = vmatprep.subr.mxu0 %v406
      %1107 = vmatpush1.msra.mxu0 %v405
      %1108 = vmatprep.subr.mxu0 %v409
      %1109 = vmatpush1.msra.mxu0 %v408
      %1110 = vmatprep.subr.mxu0 %v412
      %1111 = vmatpush1.msra.mxu0 %v411
      %1112 = vmatprep.subr.mxu0 %v415
      %1113 = vmatpush1.msra.mxu0 %v414
      %1114 = vmatprep.subr.mxu0 %v418
      %1115 = vmatpush1.msra.mxu0 %v417
      %1116 = vmatprep.subr.mxu0 %v421
      %1117 = vmatpush1.msra.mxu0 %v420
      %1118 = vmatprep.subr.mxu0 %v424
      %1119 = vmatpush1.msra.mxu0 %v423
      %1120 = vmatprep.subr.mxu0 %v427
      %1121 = vmatpush1.msra.mxu0 %v426
      %1122 = vmatprep.subr.mxu0 %v430
      %1123 = vmatpush1.msra.mxu0 %v429
      %1124 = vmatprep.subr.mxu0 %v433
      %1125 = vmatpush1.msra.mxu0 %v432
      %1126 = vmatprep.subr.mxu0 %v436
      %1127 = vmatpush1.msra.mxu0 %v435
      %1128 = vmatprep.subr.mxu0 %v439
      %1129 = vmatpush1.msra.mxu0 %v438
      %1130 = vmatprep.subr.mxu0 %v442
      %1131 = vmatpush1.msra.mxu0 %v441
      %1132 = vmatprep.subr.mxu0 %v445
      %1133 = vmatpush1.msra.mxu0 %v444
      %1134 = vmatprep.subr.mxu0 %v448
      %1135 = vmatpush1.msra.mxu0 %v447
      %1136 = vmatprep.subr.mxu0 %v451
      %1137 = vmatpush1.msra.mxu0 %v450
      %1138 = vmatprep.subr.mxu0 %v454
      %1139 = vmatpush1.msra.mxu0 %v453
      %1140 = vmatprep.subr.mxu0 %v457
      %1141 = vmatpush1.msra.mxu0 %v456
      %1142 = vmatprep.subr.mxu0 %v460
      %1143 = vmatpush1.msra.mxu0 %v459
      %1144 = vmatprep.subr.mxu0 %v463
      %1145 = vmatpush1.msra.mxu0 %v462
      %1146 = vmatprep.subr.mxu0 %v466
      %1147 = vmatpush1.msra.mxu0 %v465
      %1148 = vmatprep.subr.mxu0 %v469
      %1149 = vmatpush1.msra.mxu0 %v468
      %1150 = vmatprep.subr.mxu0 %v472
      %1151 = vmatpush1.msra.mxu0 %v471
      %1152 = vmatprep.subr.mxu0 %v475
      %1153 = vmatpush1.msra.mxu0 %v474
      %1154 = vmatprep.subr.mxu0 %v478
      %1155 = vmatpush1.msra.mxu0 %v477
      %1156 = vmatprep.subr.mxu0 %v481
      %1157 = vmatpush1.msra.mxu0 %v480
      %1158 = vmatprep.mubr.f32.mxu0 %v182
      %1159 = vmatmul.mubr.f32.gmra.mrb[0].mxu0 %v181
      %v1160 = vpop.f32.mrb[0].mxu0
      %v1161 = vadd.f32 %v1048, %v1160
      %v1162 = vpop.f32.mrb[0].mxu0
      %v1163 = vadd.f32 %v1050, %v1162
      %1164 = vmatprep.mubr.f32.mxu0 %v196
      %1165 = vmatmul.mubr.f32.gmra.mrb[0].mxu0 %v195
      %v1166 = vpop.f32.mrb[0].mxu0
      %v1167 = vadd.f32 %v1054, %v1166
      %v1168 = vpop.f32.mrb[0].mxu0
      %v1169 = vadd.f32 %v1056, %v1168
      %1170 = vmatprep.mubr.f32.mxu0 %v210
      %1171 = vmatmul.mubr.f32.gmra.mrb[0].mxu0 %v209
      %v1172 = vpop.f32.mrb[0].mxu0
      %v1173 = vadd.f32 %v1060, %v1172
      %v1174 = vpop.f32.mrb[0].mxu0
      %v1175 = vadd.f32 %v1062, %v1174
      %1176 = vmatprep.mubr.f32.mxu0 %v224
      %1177 = vmatmul.mubr.f32.gmra.mrb[0].mxu0 %v223
      %v1178 = vpop.f32.mrb[0].mxu0
      %v1179 = vadd.f32 %v1066, %v1178
      %v1180 = vpop.f32.mrb[0].mxu0
      %v1181 = vadd.f32 %v1068, %v1180
      %1182 = vmatprep.mubr.f32.mxu0 %v238
      %1183 = vmatmul.mubr.f32.gmra.mrb[0].mxu0 %v237
      %v1184 = vpop.f32.mrb[0].mxu0
      %v1185 = vadd.f32 %v1072, %v1184
      %v1186 = vpop.f32.mrb[0].mxu0
      %v1187 = vadd.f32 %v1074, %v1186
      %1188 = vmatprep.mubr.f32.mxu0 %v252
      %1189 = vmatmul.mubr.f32.gmra.mrb[0].mxu0 %v251
      %v1190 = vpop.f32.mrb[0].mxu0
      %v1191 = vadd.f32 %v1078, %v1190
      %v1192 = vpop.f32.mrb[0].mxu0
      %v1193 = vadd.f32 %v1080, %v1192
      %1194 = vmatprep.mubr.f32.mxu0 %v266
      %1195 = vmatmul.mubr.f32.gmra.mrb[0].mxu0 %v265
      %v1196 = vpop.f32.mrb[0].mxu0
      %v1197 = vadd.f32 %v1084, %v1196
      %v1198 = vpop.f32.mrb[0].mxu0
      %v1199 = vadd.f32 %v1086, %v1198
      %1200 = vmatprep.mubr.f32.mxu0 %v280
      %1201 = vmatmul.mubr.f32.gmra.mrb[0].mxu0 %v279
      %v1202 = vpop.f32.mrb[0].mxu0
      %v1203 = vadd.f32 %v1090, %v1202
      %v1204 = vpop.f32.mrb[0].mxu0
      %v1205 = vadd.f32 %v1092, %v1204
      %1206 = vdwg.mxu0
      %1207 = vmatprep.subr.mxu0 %v484
      %1208 = vmatpush1.msra.mxu0 %v483
      %1209 = vmatprep.subr.mxu0 %v487
      %1210 = vmatpush1.msra.mxu0 %v486
      %1211 = vmatprep.subr.mxu0 %v490
      %1212 = vmatpush1.msra.mxu0 %v489
      %1213 = vmatprep.subr.mxu0 %v493
      %1214 = vmatpush1.msra.mxu0 %v492
      %1215 = vmatprep.subr.mxu0 %v496
      %1216 = vmatpush1.msra.mxu0 %v495
      %1217 = vmatprep.subr.mxu0 %v499
      %1218 = vmatpush1.msra.mxu0 %v498
      %1219 = vmatprep.subr.mxu0 %v502
      %1220 = vmatpush1.msra.mxu0 %v501
      %1221 = vmatprep.subr.mxu0 %v505
      %1222 = vmatpush1.msra.mxu0 %v504
      %1223 = vmatprep.subr.mxu0 %v508
      %1224 = vmatpush1.msra.mxu0 %v507
      %1225 = vmatprep.subr.mxu0 %v511
      %1226 = vmatpush1.msra.mxu0 %v510
      %1227 = vmatprep.subr.mxu0 %v514
      %1228 = vmatpush1.msra.mxu0 %v513
      %1229 = vmatprep.subr.mxu0 %v517
      %1230 = vmatpush1.msra.mxu0 %v516
      %1231 = vmatprep.subr.mxu0 %v520
      %1232 = vmatpush1.msra.mxu0 %v519
      %1233 = vmatprep.subr.mxu0 %v523
      %1234 = vmatpush1.msra.mxu0 %v522
      %1235 = vmatprep.subr.mxu0 %v526
      %1236 = vmatpush1.msra.mxu0 %v525
      %1237 = vmatprep.subr.mxu0 %v529
      %1238 = vmatpush1.msra.mxu0 %v528
      %1239 = vmatprep.subr.mxu0 %v532
      %1240 = vmatpush1.msra.mxu0 %v531
      %1241 = vmatprep.subr.mxu0 %v535
      %1242 = vmatpush1.msra.mxu0 %v534
      %1243 = vmatprep.subr.mxu0 %v538
      %1244 = vmatpush1.msra.mxu0 %v537
      %1245 = vmatprep.subr.mxu0 %v541
      %1246 = vmatpush1.msra.mxu0 %v540
      %1247 = vmatprep.subr.mxu0 %v544
      %1248 = vmatpush1.msra.mxu0 %v543
      %1249 = vmatprep.subr.mxu0 %v547
      %1250 = vmatpush1.msra.mxu0 %v546
      %1251 = vmatprep.subr.mxu0 %v550
      %1252 = vmatpush1.msra.mxu0 %v549
      %1253 = vmatprep.subr.mxu0 %v553
      %1254 = vmatpush1.msra.mxu0 %v552
      %1255 = vmatprep.subr.mxu0 %v556
      %1256 = vmatpush1.msra.mxu0 %v555
      %1257 = vmatprep.subr.mxu0 %v559
      %1258 = vmatpush1.msra.mxu0 %v558
      %1259 = vmatprep.subr.mxu0 %v562
      %1260 = vmatpush1.msra.mxu0 %v561
      %1261 = vmatprep.subr.mxu0 %v565
      %1262 = vmatpush1.msra.mxu0 %v564
      %1263 = vmatprep.subr.mxu0 %v568
      %1264 = vmatpush1.msra.mxu0 %v567
      %1265 = vmatprep.subr.mxu0 %v571
      %1266 = vmatpush1.msra.mxu0 %v570
      %1267 = vmatprep.subr.mxu0 %v574
      %1268 = vmatpush1.msra.mxu0 %v573
      %1269 = vmatprep.subr.mxu0 %v577
      %1270 = vmatpush1.msra.mxu0 %v576
      %1271 = vmatprep.mubr.f32.mxu0 %v184
      %1272 = vmatmul.mubr.f32.gmra.mrb[0].mxu0 %v183
      %v1273 = vpop.f32.mrb[0].mxu0
      %v1274 = vadd.f32 %v1161, %v1273
      %v1275 = vpop.f32.mrb[0].mxu0
      %v1276 = vadd.f32 %v1163, %v1275
      %1277 = vmatprep.mubr.f32.mxu0 %v198
      %1278 = vmatmul.mubr.f32.gmra.mrb[0].mxu0 %v197
      %v1279 = vpop.f32.mrb[0].mxu0
      %v1280 = vadd.f32 %v1167, %v1279
      %v1281 = vpop.f32.mrb[0].mxu0
      %v1282 = vadd.f32 %v1169, %v1281
      %1283 = vmatprep.mubr.f32.mxu0 %v212
      %1284 = vmatmul.mubr.f32.gmra.mrb[0].mxu0 %v211
      %v1285 = vpop.f32.mrb[0].mxu0
      %v1286 = vadd.f32 %v1173, %v1285
      %v1287 = vpop.f32.mrb[0].mxu0
      %v1288 = vadd.f32 %v1175, %v1287
      %1289 = vmatprep.mubr.f32.mxu0 %v226
      %1290 = vmatmul.mubr.f32.gmra.mrb[0].mxu0 %v225
      %v1291 = vpop.f32.mrb[0].mxu0
      %v1292 = vadd.f32 %v1179, %v1291
      %v1293 = vpop.f32.mrb[0].mxu0
      %v1294 = vadd.f32 %v1181, %v1293
      %1295 = vmatprep.mubr.f32.mxu0 %v240
      %1296 = vmatmul.mubr.f32.gmra.mrb[0].mxu0 %v239
      %v1297 = vpop.f32.mrb[0].mxu0
      %v1298 = vadd.f32 %v1185, %v1297
      %v1299 = vpop.f32.mrb[0].mxu0
      %v1300 = vadd.f32 %v1187, %v1299
      %1301 = vmatprep.mubr.f32.mxu0 %v254
      %1302 = vmatmul.mubr.f32.gmra.mrb[0].mxu0 %v253
      %v1303 = vpop.f32.mrb[0].mxu0
      %v1304 = vadd.f32 %v1191, %v1303
      %v1305 = vpop.f32.mrb[0].mxu0
      %v1306 = vadd.f32 %v1193, %v1305
      %1307 = vmatprep.mubr.f32.mxu0 %v268
      %1308 = vmatmul.mubr.f32.gmra.mrb[0].mxu0 %v267
      %v1309 = vpop.f32.mrb[0].mxu0
      %v1310 = vadd.f32 %v1197, %v1309
      %v1311 = vpop.f32.mrb[0].mxu0
      %v1312 = vadd.f32 %v1199, %v1311
      %1313 = vmatprep.mubr.f32.mxu0 %v282
      %1314 = vmatmul.mubr.f32.gmra.mrb[0].mxu0 %v281
      %v1315 = vpop.f32.mrb[0].mxu0
      %v1316 = vadd.f32 %v1203, %v1315
      %v1317 = vpop.f32.mrb[0].mxu0
      %v1318 = vadd.f32 %v1205, %v1317
      %1319 = vdwg.mxu0
      %1320 = vmatprep.subr.mxu0 %v580
      %1321 = vmatpush1.msra.mxu0 %v579
      %1322 = vmatprep.subr.mxu0 %v583
      %1323 = vmatpush1.msra.mxu0 %v582
      %1324 = vmatprep.subr.mxu0 %v586
      %1325 = vmatpush1.msra.mxu0 %v585
      %1326 = vmatprep.subr.mxu0 %v589
      %1327 = vmatpush1.msra.mxu0 %v588
      %1328 = vmatprep.subr.mxu0 %v592
      %1329 = vmatpush1.msra.mxu0 %v591
      %1330 = vmatprep.subr.mxu0 %v595
      %1331 = vmatpush1.msra.mxu0 %v594
      %1332 = vmatprep.subr.mxu0 %v598
      %1333 = vmatpush1.msra.mxu0 %v597
      %1334 = vmatprep.subr.mxu0 %v601
      %1335 = vmatpush1.msra.mxu0 %v600
      %1336 = vmatprep.subr.mxu0 %v604
      %1337 = vmatpush1.msra.mxu0 %v603
      %1338 = vmatprep.subr.mxu0 %v607
      %1339 = vmatpush1.msra.mxu0 %v606
      %1340 = vmatprep.subr.mxu0 %v610
      %1341 = vmatpush1.msra.mxu0 %v609
      %1342 = vmatprep.subr.mxu0 %v613
      %1343 = vmatpush1.msra.mxu0 %v612
      %1344 = vmatprep.subr.mxu0 %v616
      %1345 = vmatpush1.msra.mxu0 %v615
      %1346 = vmatprep.subr.mxu0 %v619
      %1347 = vmatpush1.msra.mxu0 %v618
      %1348 = vmatprep.subr.mxu0 %v622
      %1349 = vmatpush1.msra.mxu0 %v621
      %1350 = vmatprep.subr.mxu0 %v625
      %1351 = vmatpush1.msra.mxu0 %v624
      %1352 = vmatprep.subr.mxu0 %v628
      %1353 = vmatpush1.msra.mxu0 %v627
      %1354 = vmatprep.subr.mxu0 %v631
      %1355 = vmatpush1.msra.mxu0 %v630
      %1356 = vmatprep.subr.mxu0 %v634
      %1357 = vmatpush1.msra.mxu0 %v633
      %1358 = vmatprep.subr.mxu0 %v637
      %1359 = vmatpush1.msra.mxu0 %v636
      %1360 = vmatprep.subr.mxu0 %v640
      %1361 = vmatpush1.msra.mxu0 %v639
      %1362 = vmatprep.subr.mxu0 %v643
      %1363 = vmatpush1.msra.mxu0 %v642
      %1364 = vmatprep.subr.mxu0 %v646
      %1365 = vmatpush1.msra.mxu0 %v645
      %1366 = vmatprep.subr.mxu0 %v649
      %1367 = vmatpush1.msra.mxu0 %v648
      %1368 = vmatprep.subr.mxu0 %v652
      %1369 = vmatpush1.msra.mxu0 %v651
      %1370 = vmatprep.subr.mxu0 %v655
      %1371 = vmatpush1.msra.mxu0 %v654
      %1372 = vmatprep.subr.mxu0 %v658
      %1373 = vmatpush1.msra.mxu0 %v657
      %1374 = vmatprep.subr.mxu0 %v661
      %1375 = vmatpush1.msra.mxu0 %v660
      %1376 = vmatprep.subr.mxu0 %v664
      %1377 = vmatpush1.msra.mxu0 %v663
      %1378 = vmatprep.subr.mxu0 %v667
      %1379 = vmatpush1.msra.mxu0 %v666
      %1380 = vmatprep.subr.mxu0 %v670
      %1381 = vmatpush1.msra.mxu0 %v669
      %1382 = vmatprep.subr.mxu0 %v673
      %1383 = vmatpush1.msra.mxu0 %v672
      %1384 = vmatprep.mubr.f32.mxu0 %v186
      %1385 = vmatmul.mubr.f32.gmra.mrb[0].mxu0 %v185
      %v1386 = vpop.f32.mrb[0].mxu0
      %v1387 = vadd.f32 %v1274, %v1386
      %v1388 = vpop.f32.mrb[0].mxu0
      %v1389 = vadd.f32 %v1276, %v1388
      %1390 = vmatprep.mubr.f32.mxu0 %v200
      %1391 = vmatmul.mubr.f32.gmra.mrb[0].mxu0 %v199
      %v1392 = vpop.f32.mrb[0].mxu0
      %v1393 = vadd.f32 %v1280, %v1392
      %v1394 = vpop.f32.mrb[0].mxu0
      %v1395 = vadd.f32 %v1282, %v1394
      %1396 = vmatprep.mubr.f32.mxu0 %v214
      %1397 = vmatmul.mubr.f32.gmra.mrb[0].mxu0 %v213
      %v1398 = vpop.f32.mrb[0].mxu0
      %v1399 = vadd.f32 %v1286, %v1398
      %v1400 = vpop.f32.mrb[0].mxu0
      %v1401 = vadd.f32 %v1288, %v1400
      %1402 = vmatprep.mubr.f32.mxu0 %v228
      %1403 = vmatmul.mubr.f32.gmra.mrb[0].mxu0 %v227
      %v1404 = vpop.f32.mrb[0].mxu0
      %v1405 = vadd.f32 %v1292, %v1404
      %v1406 = vpop.f32.mrb[0].mxu0
      %v1407 = vadd.f32 %v1294, %v1406
      %1408 = vmatprep.mubr.f32.mxu0 %v242
      %1409 = vmatmul.mubr.f32.gmra.mrb[0].mxu0 %v241
      %v1410 = vpop.f32.mrb[0].mxu0
      %v1411 = vadd.f32 %v1298, %v1410
      %v1412 = vpop.f32.mrb[0].mxu0
      %v1413 = vadd.f32 %v1300, %v1412
      %1414 = vmatprep.mubr.f32.mxu0 %v256
      %1415 = vmatmul.mubr.f32.gmra.mrb[0].mxu0 %v255
      %v1416 = vpop.f32.mrb[0].mxu0
      %v1417 = vadd.f32 %v1304, %v1416
      %v1418 = vpop.f32.mrb[0].mxu0
      %v1419 = vadd.f32 %v1306, %v1418
      %1420 = vmatprep.mubr.f32.mxu0 %v270
      %1421 = vmatmul.mubr.f32.gmra.mrb[0].mxu0 %v269
      %v1422 = vpop.f32.mrb[0].mxu0
      %v1423 = vadd.f32 %v1310, %v1422
      %v1424 = vpop.f32.mrb[0].mxu0
      %v1425 = vadd.f32 %v1312, %v1424
      %1426 = vmatprep.mubr.f32.mxu0 %v284
      %1427 = vmatmul.mubr.f32.gmra.mrb[0].mxu0 %v283
      %v1428 = vpop.f32.mrb[0].mxu0
      %v1429 = vadd.f32 %v1316, %v1428
      %v1430 = vpop.f32.mrb[0].mxu0
      %v1431 = vadd.f32 %v1318, %v1430
      %1432 = vdwg.mxu0
      %1433 = vmatprep.subr.mxu0 %v676
      %1434 = vmatpush1.msra.mxu0 %v675
      %1435 = vmatprep.subr.mxu0 %v679
      %1436 = vmatpush1.msra.mxu0 %v678
      %1437 = vmatprep.subr.mxu0 %v682
      %1438 = vmatpush1.msra.mxu0 %v681
      %1439 = vmatprep.subr.mxu0 %v685
      %1440 = vmatpush1.msra.mxu0 %v684
      %1441 = vmatprep.subr.mxu0 %v688
      %1442 = vmatpush1.msra.mxu0 %v687
      %1443 = vmatprep.subr.mxu0 %v691
      %1444 = vmatpush1.msra.mxu0 %v690
      %1445 = vmatprep.subr.mxu0 %v694
      %1446 = vmatpush1.msra.mxu0 %v693
      %1447 = vmatprep.subr.mxu0 %v697
      %1448 = vmatpush1.msra.mxu0 %v696
      %1449 = vmatprep.subr.mxu0 %v700
      %1450 = vmatpush1.msra.mxu0 %v699
      %1451 = vmatprep.subr.mxu0 %v703
      %1452 = vmatpush1.msra.mxu0 %v702
      %1453 = vmatprep.subr.mxu0 %v706
      %1454 = vmatpush1.msra.mxu0 %v705
      %1455 = vmatprep.subr.mxu0 %v709
      %1456 = vmatpush1.msra.mxu0 %v708
      %1457 = vmatprep.subr.mxu0 %v712
      %1458 = vmatpush1.msra.mxu0 %v711
      %1459 = vmatprep.subr.mxu0 %v715
      %1460 = vmatpush1.msra.mxu0 %v714
      %1461 = vmatprep.subr.mxu0 %v718
      %1462 = vmatpush1.msra.mxu0 %v717
      %1463 = vmatprep.subr.mxu0 %v721
      %1464 = vmatpush1.msra.mxu0 %v720
      %1465 = vmatprep.subr.mxu0 %v724
      %1466 = vmatpush1.msra.mxu0 %v723
      %1467 = vmatprep.subr.mxu0 %v727
      %1468 = vmatpush1.msra.mxu0 %v726
      %1469 = vmatprep.subr.mxu0 %v730
      %1470 = vmatpush1.msra.mxu0 %v729
      %1471 = vmatprep.subr.mxu0 %v733
      %1472 = vmatpush1.msra.mxu0 %v732
      %1473 = vmatprep.subr.mxu0 %v736
      %1474 = vmatpush1.msra.mxu0 %v735
      %1475 = vmatprep.subr.mxu0 %v739
      %1476 = vmatpush1.msra.mxu0 %v738
      %1477 = vmatprep.subr.mxu0 %v742
      %1478 = vmatpush1.msra.mxu0 %v741
      %1479 = vmatprep.subr.mxu0 %v745
      %1480 = vmatpush1.msra.mxu0 %v744
      %1481 = vmatprep.subr.mxu0 %v748
      %1482 = vmatpush1.msra.mxu0 %v747
      %1483 = vmatprep.subr.mxu0 %v751
      %1484 = vmatpush1.msra.mxu0 %v750
      %1485 = vmatprep.subr.mxu0 %v754
      %1486 = vmatpush1.msra.mxu0 %v753
      %1487 = vmatprep.subr.mxu0 %v757
      %1488 = vmatpush1.msra.mxu0 %v756
      %1489 = vmatprep.subr.mxu0 %v760
      %1490 = vmatpush1.msra.mxu0 %v759
      %1491 = vmatprep.subr.mxu0 %v763
      %1492 = vmatpush1.msra.mxu0 %v762
      %1493 = vmatprep.subr.mxu0 %v766
      %1494 = vmatpush1.msra.mxu0 %v765
      %1495 = vmatprep.subr.mxu0 %v769
      %1496 = vmatpush1.msra.mxu0 %v768
      %1497 = vmatprep.mubr.f32.mxu0 %v188
      %1498 = vmatmul.mubr.f32.gmra.mrb[0].mxu0 %v187
      %v1499 = vpop.f32.mrb[0].mxu0
      %v1500 = vadd.f32 %v1387, %v1499
      %v1501 = vpop.f32.mrb[0].mxu0
      %v1502 = vadd.f32 %v1389, %v1501
      %1503 = vmatprep.mubr.f32.mxu0 %v202
      %1504 = vmatmul.mubr.f32.gmra.mrb[0].mxu0 %v201
      %v1505 = vpop.f32.mrb[0].mxu0
      %v1506 = vadd.f32 %v1393, %v1505
      %v1507 = vpop.f32.mrb[0].mxu0
      %v1508 = vadd.f32 %v1395, %v1507
      %1509 = vmatprep.mubr.f32.mxu0 %v216
      %1510 = vmatmul.mubr.f32.gmra.mrb[0].mxu0 %v215
      %v1511 = vpop.f32.mrb[0].mxu0
      %v1512 = vadd.f32 %v1399, %v1511
      %v1513 = vpop.f32.mrb[0].mxu0
      %v1514 = vadd.f32 %v1401, %v1513
      %1515 = vmatprep.mubr.f32.mxu0 %v230
      %1516 = vmatmul.mubr.f32.gmra.mrb[0].mxu0 %v229
      %v1517 = vpop.f32.mrb[0].mxu0
      %v1518 = vadd.f32 %v1405, %v1517
      %v1519 = vpop.f32.mrb[0].mxu0
      %v1520 = vadd.f32 %v1407, %v1519
      %1521 = vmatprep.mubr.f32.mxu0 %v244
      %1522 = vmatmul.mubr.f32.gmra.mrb[0].mxu0 %v243
      %v1523 = vpop.f32.mrb[0].mxu0
      %v1524 = vadd.f32 %v1411, %v1523
      %v1525 = vpop.f32.mrb[0].mxu0
      %v1526 = vadd.f32 %v1413, %v1525
      %1527 = vmatprep.mubr.f32.mxu0 %v258
      %1528 = vmatmul.mubr.f32.gmra.mrb[0].mxu0 %v257
      %v1529 = vpop.f32.mrb[0].mxu0
      %v1530 = vadd.f32 %v1417, %v1529
      %v1531 = vpop.f32.mrb[0].mxu0
      %v1532 = vadd.f32 %v1419, %v1531
      %1533 = vmatprep.mubr.f32.mxu0 %v272
      %1534 = vmatmul.mubr.f32.gmra.mrb[0].mxu0 %v271
      %v1535 = vpop.f32.mrb[0].mxu0
      %v1536 = vadd.f32 %v1423, %v1535
      %v1537 = vpop.f32.mrb[0].mxu0
      %v1538 = vadd.f32 %v1425, %v1537
      %1539 = vmatprep.mubr.f32.mxu0 %v286
      %1540 = vmatmul.mubr.f32.gmra.mrb[0].mxu0 %v285
      %v1541 = vpop.f32.mrb[0].mxu0
      %v1542 = vadd.f32 %v1429, %v1541
      %v1543 = vpop.f32.mrb[0].mxu0
      %v1544 = vadd.f32 %v1431, %v1543
      %1545 = vdwg.mxu0
      %1546 = vmatprep.subr.mxu0 %v772
      %1547 = vmatpush1.msra.mxu0 %v771
      %1548 = vmatprep.subr.mxu0 %v775
      %1549 = vmatpush1.msra.mxu0 %v774
      %1550 = vmatprep.subr.mxu0 %v778
      %1551 = vmatpush1.msra.mxu0 %v777
      %1552 = vmatprep.subr.mxu0 %v781
      %1553 = vmatpush1.msra.mxu0 %v780
      %1554 = vmatprep.subr.mxu0 %v784
      %1555 = vmatpush1.msra.mxu0 %v783
      %1556 = vmatprep.subr.mxu0 %v787
      %1557 = vmatpush1.msra.mxu0 %v786
      %1558 = vmatprep.subr.mxu0 %v790
      %1559 = vmatpush1.msra.mxu0 %v789
      %1560 = vmatprep.subr.mxu0 %v793
      %1561 = vmatpush1.msra.mxu0 %v792
      %1562 = vmatprep.subr.mxu0 %v796
      %1563 = vmatpush1.msra.mxu0 %v795
      %1564 = vmatprep.subr.mxu0 %v799
      %1565 = vmatpush1.msra.mxu0 %v798
      %1566 = vmatprep.subr.mxu0 %v802
      %1567 = vmatpush1.msra.mxu0 %v801
      %1568 = vmatprep.subr.mxu0 %v805
      %1569 = vmatpush1.msra.mxu0 %v804
      %1570 = vmatprep.subr.mxu0 %v808
      %1571 = vmatpush1.msra.mxu0 %v807
      %1572 = vmatprep.subr.mxu0 %v811
      %1573 = vmatpush1.msra.mxu0 %v810
      %1574 = vmatprep.subr.mxu0 %v814
      %1575 = vmatpush1.msra.mxu0 %v813
      %1576 = vmatprep.subr.mxu0 %v817
      %1577 = vmatpush1.msra.mxu0 %v816
      %1578 = vmatprep.subr.mxu0 %v820
      %1579 = vmatpush1.msra.mxu0 %v819
      %1580 = vmatprep.subr.mxu0 %v823
      %1581 = vmatpush1.msra.mxu0 %v822
      %1582 = vmatprep.subr.mxu0 %v826
      %1583 = vmatpush1.msra.mxu0 %v825
      %1584 = vmatprep.subr.mxu0 %v829
      %1585 = vmatpush1.msra.mxu0 %v828
      %1586 = vmatprep.subr.mxu0 %v832
      %1587 = vmatpush1.msra.mxu0 %v831
      %1588 = vmatprep.subr.mxu0 %v835
      %1589 = vmatpush1.msra.mxu0 %v834
      %1590 = vmatprep.subr.mxu0 %v838
      %1591 = vmatpush1.msra.mxu0 %v837
      %1592 = vmatprep.subr.mxu0 %v841
      %1593 = vmatpush1.msra.mxu0 %v840
      %1594 = vmatprep.subr.mxu0 %v844
      %1595 = vmatpush1.msra.mxu0 %v843
      %1596 = vmatprep.subr.mxu0 %v847
      %1597 = vmatpush1.msra.mxu0 %v846
      %1598 = vmatprep.subr.mxu0 %v850
      %1599 = vmatpush1.msra.mxu0 %v849
      %1600 = vmatprep.subr.mxu0 %v853
      %1601 = vmatpush1.msra.mxu0 %v852
      %1602 = vmatprep.subr.mxu0 %v856
      %1603 = vmatpush1.msra.mxu0 %v855
      %1604 = vmatprep.subr.mxu0 %v859
      %1605 = vmatpush1.msra.mxu0 %v858
      %1606 = vmatprep.subr.mxu0 %v862
      %1607 = vmatpush1.msra.mxu0 %v861
      %1608 = vmatprep.subr.mxu0 %v865
      %1609 = vmatpush1.msra.mxu0 %v864
      %1610 = vmatprep.mubr.f32.mxu0 %v190
      %1611 = vmatmul.mubr.f32.gmra.mrb[0].mxu0 %v189
      %v1612 = vpop.f32.mrb[0].mxu0
      %v1613 = vadd.f32 %v1500, %v1612
      %v1614 = vpop.f32.mrb[0].mxu0
      %v1615 = vadd.f32 %v1502, %v1614
      %1616 = vmatprep.mubr.f32.mxu0 %v204
      %1617 = vmatmul.mubr.f32.gmra.mrb[0].mxu0 %v203
      %v1618 = vpop.f32.mrb[0].mxu0
      %v1619 = vadd.f32 %v1506, %v1618
      %v1620 = vpop.f32.mrb[0].mxu0
      %v1621 = vadd.f32 %v1508, %v1620
      %1622 = vmatprep.mubr.f32.mxu0 %v218
      %1623 = vmatmul.mubr.f32.gmra.mrb[0].mxu0 %v217
      %v1624 = vpop.f32.mrb[0].mxu0
      %v1625 = vadd.f32 %v1512, %v1624
      %v1626 = vpop.f32.mrb[0].mxu0
      %v1627 = vadd.f32 %v1514, %v1626
      %1628 = vmatprep.mubr.f32.mxu0 %v232
      %1629 = vmatmul.mubr.f32.gmra.mrb[0].mxu0 %v231
      %v1630 = vpop.f32.mrb[0].mxu0
      %v1631 = vadd.f32 %v1518, %v1630
      %v1632 = vpop.f32.mrb[0].mxu0
      %v1633 = vadd.f32 %v1520, %v1632
      %1634 = vmatprep.mubr.f32.mxu0 %v246
      %1635 = vmatmul.mubr.f32.gmra.mrb[0].mxu0 %v245
      %v1636 = vpop.f32.mrb[0].mxu0
      %v1637 = vadd.f32 %v1524, %v1636
      %v1638 = vpop.f32.mrb[0].mxu0
      %v1639 = vadd.f32 %v1526, %v1638
      %1640 = vmatprep.mubr.f32.mxu0 %v260
      %1641 = vmatmul.mubr.f32.gmra.mrb[0].mxu0 %v259
      %v1642 = vpop.f32.mrb[0].mxu0
      %v1643 = vadd.f32 %v1530, %v1642
      %v1644 = vpop.f32.mrb[0].mxu0
      %v1645 = vadd.f32 %v1532, %v1644
      %1646 = vmatprep.mubr.f32.mxu0 %v274
      %1647 = vmatmul.mubr.f32.gmra.mrb[0].mxu0 %v273
      %v1648 = vpop.f32.mrb[0].mxu0
      %v1649 = vadd.f32 %v1536, %v1648
      %v1650 = vpop.f32.mrb[0].mxu0
      %v1651 = vadd.f32 %v1538, %v1650
      %1652 = vmatprep.mubr.f32.mxu0 %v288
      %1653 = vmatmul.mubr.f32.gmra.mrb[0].mxu0 %v287
      %v1654 = vpop.f32.mrb[0].mxu0
      %v1655 = vadd.f32 %v1542, %v1654
      %v1656 = vpop.f32.mrb[0].mxu0
      %v1657 = vadd.f32 %v1544, %v1656
      %1658 = vdwg.mxu0
      %1659 = vmatprep.subr.mxu0 %v868
      %1660 = vmatpush1.msra.mxu0 %v867
      %1661 = vmatprep.subr.mxu0 %v871
      %1662 = vmatpush1.msra.mxu0 %v870
      %1663 = vmatprep.subr.mxu0 %v874
      %1664 = vmatpush1.msra.mxu0 %v873
      %1665 = vmatprep.subr.mxu0 %v877
      %1666 = vmatpush1.msra.mxu0 %v876
      %1667 = vmatprep.subr.mxu0 %v880
      %1668 = vmatpush1.msra.mxu0 %v879
      %1669 = vmatprep.subr.mxu0 %v883
      %1670 = vmatpush1.msra.mxu0 %v882
      %1671 = vmatprep.subr.mxu0 %v886
      %1672 = vmatpush1.msra.mxu0 %v885
      %1673 = vmatprep.subr.mxu0 %v889
      %1674 = vmatpush1.msra.mxu0 %v888
      %1675 = vmatprep.subr.mxu0 %v892
      %1676 = vmatpush1.msra.mxu0 %v891
      %1677 = vmatprep.subr.mxu0 %v895
      %1678 = vmatpush1.msra.mxu0 %v894
      %1679 = vmatprep.subr.mxu0 %v898
      %1680 = vmatpush1.msra.mxu0 %v897
      %1681 = vmatprep.subr.mxu0 %v901
      %1682 = vmatpush1.msra.mxu0 %v900
      %1683 = vmatprep.subr.mxu0 %v904
      %1684 = vmatpush1.msra.mxu0 %v903
      %1685 = vmatprep.subr.mxu0 %v907
      %1686 = vmatpush1.msra.mxu0 %v906
      %1687 = vmatprep.subr.mxu0 %v910
      %1688 = vmatpush1.msra.mxu0 %v909
      %1689 = vmatprep.subr.mxu0 %v913
      %1690 = vmatpush1.msra.mxu0 %v912
      %1691 = vmatprep.subr.mxu0 %v916
      %1692 = vmatpush1.msra.mxu0 %v915
      %1693 = vmatprep.subr.mxu0 %v919
      %1694 = vmatpush1.msra.mxu0 %v918
      %1695 = vmatprep.subr.mxu0 %v922
      %1696 = vmatpush1.msra.mxu0 %v921
      %1697 = vmatprep.subr.mxu0 %v925
      %1698 = vmatpush1.msra.mxu0 %v924
      %1699 = vmatprep.subr.mxu0 %v928
      %1700 = vmatpush1.msra.mxu0 %v927
      %1701 = vmatprep.subr.mxu0 %v931
      %1702 = vmatpush1.msra.mxu0 %v930
      %1703 = vmatprep.subr.mxu0 %v934
      %1704 = vmatpush1.msra.mxu0 %v933
      %1705 = vmatprep.subr.mxu0 %v937
      %1706 = vmatpush1.msra.mxu0 %v936
      %1707 = vmatprep.subr.mxu0 0.0
      %1708 = vmatpush1.msra.mxu0 0.0
      %1709 = vmatprep.subr.mxu0 0.0
      %1710 = vmatpush1.msra.mxu0 0.0
      %1711 = vmatprep.subr.mxu0 0.0
      %1712 = vmatpush1.msra.mxu0 0.0
      %1713 = vmatprep.subr.mxu0 0.0
      %1714 = vmatpush1.msra.mxu0 0.0
      %1715 = vmatprep.subr.mxu0 0.0
      %1716 = vmatpush1.msra.mxu0 0.0
      %1717 = vmatprep.subr.mxu0 0.0
      %1718 = vmatpush1.msra.mxu0 0.0
      %1719 = vmatprep.subr.mxu0 0.0
      %1720 = vmatpush1.msra.mxu0 0.0
      %1721 = vmatprep.subr.mxu0 0.0
      %1722 = vmatpush1.msra.mxu0 0.0
      %1723 = vmatprep.mubr.f32.mxu0 %v958
      %1724 = vmatmul.mubr.f32.gmra.mrb[0].mxu0 %v191
      %v1725 = vpop.f32.mrb[0].mxu0
      %v1726 = vadd.f32 %v1613, %v1725
      %v1727 = vpop.f32.mrb[0].mxu0
      %v1728 = vadd.f32 %v1615, %v1727
      %1729 = vmatprep.mubr.f32.mxu0 %v961
      %1730 = vmatmul.mubr.f32.gmra.mrb[0].mxu0 %v205
      %v1731 = vpop.f32.mrb[0].mxu0
      %v1732 = vadd.f32 %v1619, %v1731
      %v1733 = vpop.f32.mrb[0].mxu0
      %v1734 = vadd.f32 %v1621, %v1733
      %1735 = vmatprep.mubr.f32.mxu0 %v964
      %1736 = vmatmul.mubr.f32.gmra.mrb[0].mxu0 %v219
      %v1737 = vpop.f32.mrb[0].mxu0
      %v1738 = vadd.f32 %v1625, %v1737
      %v1739 = vpop.f32.mrb[0].mxu0
      %v1740 = vadd.f32 %v1627, %v1739
      %1741 = vmatprep.mubr.f32.mxu0 %v967
      %1742 = vmatmul.mubr.f32.gmra.mrb[0].mxu0 %v233
      %v1743 = vpop.f32.mrb[0].mxu0
      %v1744 = vadd.f32 %v1631, %v1743
      %v1745 = vpop.f32.mrb[0].mxu0
      %v1746 = vadd.f32 %v1633, %v1745
      %1747 = vmatprep.mubr.f32.mxu0 %v970
      %1748 = vmatmul.mubr.f32.gmra.mrb[0].mxu0 %v247
      %v1749 = vpop.f32.mrb[0].mxu0
      %v1750 = vadd.f32 %v1637, %v1749
      %v1751 = vpop.f32.mrb[0].mxu0
      %v1752 = vadd.f32 %v1639, %v1751
      %1753 = vmatprep.mubr.f32.mxu0 %v973
      %1754 = vmatmul.mubr.f32.gmra.mrb[0].mxu0 %v261
      %v1755 = vpop.f32.mrb[0].mxu0
      %v1756 = vadd.f32 %v1643, %v1755
      %v1757 = vpop.f32.mrb[0].mxu0
      %v1758 = vadd.f32 %v1645, %v1757
      %1759 = vmatprep.mubr.f32.mxu0 %v976
      %1760 = vmatmul.mubr.f32.gmra.mrb[0].mxu0 %v275
      %v1761 = vpop.f32.mrb[0].mxu0
      %v1762 = vadd.f32 %v1649, %v1761
      %v1763 = vpop.f32.mrb[0].mxu0
      %v1764 = vadd.f32 %v1651, %v1763
      %1765 = vmatprep.mubr.f32.mxu0 %v979
      %1766 = vmatmul.mubr.f32.gmra.mrb[0].mxu0 %v289
      %v1767 = vpop.f32.mrb[0].mxu0
      %v1768 = vadd.f32 %v1655, %v1767
      %v1769 = vpop.f32.mrb[0].mxu0
      %v1770 = vadd.f32 %v1657, %v1769
      %1771 = vdwg.mxu0
      %1772 = vmatprep.subr.mxu0 0.0
      %1773 = vmatpush1.msra.mxu0 %v293
      %1774 = vmatprep.subr.mxu0 0.0
      %1775 = vmatpush1.msra.mxu0 %v296
      %1776 = vmatprep.subr.mxu0 0.0
      %1777 = vmatpush1.msra.mxu0 %v299
      %1778 = vmatprep.subr.mxu0 0.0
      %1779 = vmatpush1.msra.mxu0 %v302
      %1780 = vmatprep.subr.mxu0 0.0
      %1781 = vmatpush1.msra.mxu0 %v305
      %1782 = vmatprep.subr.mxu0 0.0
      %1783 = vmatpush1.msra.mxu0 %v308
      %1784 = vmatprep.subr.mxu0 0.0
      %1785 = vmatpush1.msra.mxu0 %v311
      %1786 = vmatprep.subr.mxu0 0.0
      %1787 = vmatpush1.msra.mxu0 %v314
      %1788 = vmatprep.subr.mxu0 0.0
      %1789 = vmatpush1.msra.mxu0 %v317
      %1790 = vmatprep.subr.mxu0 0.0
      %1791 = vmatpush1.msra.mxu0 %v320
      %1792 = vmatprep.subr.mxu0 0.0
      %1793 = vmatpush1.msra.mxu0 %v323
      %1794 = vmatprep.subr.mxu0 0.0
      %1795 = vmatpush1.msra.mxu0 %v326
      %1796 = vmatprep.subr.mxu0 0.0
      %1797 = vmatpush1.msra.mxu0 %v329
      %1798 = vmatprep.subr.mxu0 0.0
      %1799 = vmatpush1.msra.mxu0 %v332
      %1800 = vmatprep.subr.mxu0 0.0
      %1801 = vmatpush1.msra.mxu0 %v335
      %1802 = vmatprep.subr.mxu0 0.0
      %1803 = vmatpush1.msra.mxu0 %v338
      %1804 = vmatprep.subr.mxu0 0.0
      %1805 = vmatpush1.msra.mxu0 %v341
      %1806 = vmatprep.subr.mxu0 0.0
      %1807 = vmatpush1.msra.mxu0 %v344
      %1808 = vmatprep.subr.mxu0 0.0
      %1809 = vmatpush1.msra.mxu0 %v347
      %1810 = vmatprep.subr.mxu0 0.0
      %1811 = vmatpush1.msra.mxu0 %v350
      %1812 = vmatprep.subr.mxu0 0.0
      %1813 = vmatpush1.msra.mxu0 %v353
      %1814 = vmatprep.subr.mxu0 0.0
      %1815 = vmatpush1.msra.mxu0 %v356
      %1816 = vmatprep.subr.mxu0 0.0
      %1817 = vmatpush1.msra.mxu0 %v359
      %1818 = vmatprep.subr.mxu0 0.0
      %1819 = vmatpush1.msra.mxu0 %v362
      %1820 = vmatprep.subr.mxu0 0.0
      %1821 = vmatpush1.msra.mxu0 %v365
      %1822 = vmatprep.subr.mxu0 0.0
      %1823 = vmatpush1.msra.mxu0 %v368
      %1824 = vmatprep.subr.mxu0 0.0
      %1825 = vmatpush1.msra.mxu0 %v371
      %1826 = vmatprep.subr.mxu0 0.0
      %1827 = vmatpush1.msra.mxu0 %v374
      %1828 = vmatprep.subr.mxu0 0.0
      %1829 = vmatpush1.msra.mxu0 %v377
      %1830 = vmatprep.subr.mxu0 0.0
      %1831 = vmatpush1.msra.mxu0 %v380
      %1832 = vmatprep.subr.mxu0 0.0
      %1833 = vmatpush1.msra.mxu0 %v383
      %1834 = vmatprep.subr.mxu0 0.0
      %1835 = vmatpush1.msra.mxu0 %v386
      %1836 = vmatprep.mubr.f32.mxu0 %v180
      %1837 = vmatmul.mubr.f32.gmra.mrb[0].mxu0 %v179
      %v1838 = vpop.f32.mrb[0].mxu0
      %v1839 = vadd.f32 %v952, %v1838
      %v1840 = vpop.f32.mrb[0].mxu0
      %1841 = vmatprep.mubr.f32.mxu0 %v194
      %1842 = vmatmul.mubr.f32.gmra.mrb[0].mxu0 %v193
      %v1843 = vpop.f32.mrb[0].mxu0
      %v1844 = vadd.f32 %v952, %v1843
      %v1845 = vpop.f32.mrb[0].mxu0
      %1846 = vmatprep.mubr.f32.mxu0 %v208
      %1847 = vmatmul.mubr.f32.gmra.mrb[0].mxu0 %v207
      %v1848 = vpop.f32.mrb[0].mxu0
      %v1849 = vadd.f32 %v952, %v1848
      %v1850 = vpop.f32.mrb[0].mxu0
      %1851 = vmatprep.mubr.f32.mxu0 %v222
      %1852 = vmatmul.mubr.f32.gmra.mrb[0].mxu0 %v221
      %v1853 = vpop.f32.mrb[0].mxu0
      %v1854 = vadd.f32 %v952, %v1853
      %v1855 = vpop.f32.mrb[0].mxu0
      %1856 = vmatprep.mubr.f32.mxu0 %v236
      %1857 = vmatmul.mubr.f32.gmra.mrb[0].mxu0 %v235
      %v1858 = vpop.f32.mrb[0].mxu0
      %v1859 = vadd.f32 %v952, %v1858
      %v1860 = vpop.f32.mrb[0].mxu0
      %1861 = vmatprep.mubr.f32.mxu0 %v250
      %1862 = vmatmul.mubr.f32.gmra.mrb[0].mxu0 %v249
      %v1863 = vpop.f32.mrb[0].mxu0
      %v1864 = vadd.f32 %v952, %v1863
      %v1865 = vpop.f32.mrb[0].mxu0
      %1866 = vmatprep.mubr.f32.mxu0 %v264
      %1867 = vmatmul.mubr.f32.gmra.mrb[0].mxu0 %v263
      %v1868 = vpop.f32.mrb[0].mxu0
      %v1869 = vadd.f32 %v952, %v1868
      %v1870 = vpop.f32.mrb[0].mxu0
      %1871 = vmatprep.mubr.f32.mxu0 %v278
      %1872 = vmatmul.mubr.f32.gmra.mrb[0].mxu0 %v277
      %v1873 = vpop.f32.mrb[0].mxu0
      %v1874 = vadd.f32 %v952, %v1873
      %v1875 = vpop.f32.mrb[0].mxu0
      %1876 = vdwg.mxu0
      %1877 = vmatprep.subr.mxu0 0.0
      %1878 = vmatpush1.msra.mxu0 %v389
      %1879 = vmatprep.subr.mxu0 0.0
      %1880 = vmatpush1.msra.mxu0 %v392
      %1881 = vmatprep.subr.mxu0 0.0
      %1882 = vmatpush1.msra.mxu0 %v395
      %1883 = vmatprep.subr.mxu0 0.0
      %1884 = vmatpush1.msra.mxu0 %v398
      %1885 = vmatprep.subr.mxu0 0.0
      %1886 = vmatpush1.msra.mxu0 %v401
      %1887 = vmatprep.subr.mxu0 0.0
      %1888 = vmatpush1.msra.mxu0 %v404
      %1889 = vmatprep.subr.mxu0 0.0
      %1890 = vmatpush1.msra.mxu0 %v407
      %1891 = vmatprep.subr.mxu0 0.0
      %1892 = vmatpush1.msra.mxu0 %v410
      %1893 = vmatprep.subr.mxu0 0.0
      %1894 = vmatpush1.msra.mxu0 %v413
      %1895 = vmatprep.subr.mxu0 0.0
      %1896 = vmatpush1.msra.mxu0 %v416
      %1897 = vmatprep.subr.mxu0 0.0
      %1898 = vmatpush1.msra.mxu0 %v419
      %1899 = vmatprep.subr.mxu0 0.0
      %1900 = vmatpush1.msra.mxu0 %v422
      %1901 = vmatprep.subr.mxu0 0.0
      %1902 = vmatpush1.msra.mxu0 %v425
      %1903 = vmatprep.subr.mxu0 0.0
      %1904 = vmatpush1.msra.mxu0 %v428
      %1905 = vmatprep.subr.mxu0 0.0
      %1906 = vmatpush1.msra.mxu0 %v431
      %1907 = vmatprep.subr.mxu0 0.0
      %1908 = vmatpush1.msra.mxu0 %v434
      %1909 = vmatprep.subr.mxu0 0.0
      %1910 = vmatpush1.msra.mxu0 %v437
      %1911 = vmatprep.subr.mxu0 0.0
      %1912 = vmatpush1.msra.mxu0 %v440
      %1913 = vmatprep.subr.mxu0 0.0
      %1914 = vmatpush1.msra.mxu0 %v443
      %1915 = vmatprep.subr.mxu0 0.0
      %1916 = vmatpush1.msra.mxu0 %v446
      %1917 = vmatprep.subr.mxu0 0.0
      %1918 = vmatpush1.msra.mxu0 %v449
      %1919 = vmatprep.subr.mxu0 0.0
      %1920 = vmatpush1.msra.mxu0 %v452
      %1921 = vmatprep.subr.mxu0 0.0
      %1922 = vmatpush1.msra.mxu0 %v455
      %1923 = vmatprep.subr.mxu0 0.0
      %1924 = vmatpush1.msra.mxu0 %v458
      %1925 = vmatprep.subr.mxu0 0.0
      %1926 = vmatpush1.msra.mxu0 %v461
      %1927 = vmatprep.subr.mxu0 0.0
      %1928 = vmatpush1.msra.mxu0 %v464
      %1929 = vmatprep.subr.mxu0 0.0
      %1930 = vmatpush1.msra.mxu0 %v467
      %1931 = vmatprep.subr.mxu0 0.0
      %1932 = vmatpush1.msra.mxu0 %v470
      %1933 = vmatprep.subr.mxu0 0.0
      %1934 = vmatpush1.msra.mxu0 %v473
      %1935 = vmatprep.subr.mxu0 0.0
      %1936 = vmatpush1.msra.mxu0 %v476
      %1937 = vmatprep.subr.mxu0 0.0
      %1938 = vmatpush1.msra.mxu0 %v479
      %1939 = vmatprep.subr.mxu0 0.0
      %1940 = vmatpush1.msra.mxu0 %v482
      %1941 = vmatprep.mubr.f32.mxu0 %v182
      %1942 = vmatmul.mubr.f32.gmra.mrb[0].mxu0 %v181
      %v1943 = vpop.f32.mrb[0].mxu0
      %v1944 = vadd.f32 %v1839, %v1943
      %v1945 = vpop.f32.mrb[0].mxu0
      %1946 = vmatprep.mubr.f32.mxu0 %v196
      %1947 = vmatmul.mubr.f32.gmra.mrb[0].mxu0 %v195
      %v1948 = vpop.f32.mrb[0].mxu0
      %v1949 = vadd.f32 %v1844, %v1948
      %v1950 = vpop.f32.mrb[0].mxu0
      %1951 = vmatprep.mubr.f32.mxu0 %v210
      %1952 = vmatmul.mubr.f32.gmra.mrb[0].mxu0 %v209
      %v1953 = vpop.f32.mrb[0].mxu0
      %v1954 = vadd.f32 %v1849, %v1953
      %v1955 = vpop.f32.mrb[0].mxu0
      %1956 = vmatprep.mubr.f32.mxu0 %v224
      %1957 = vmatmul.mubr.f32.gmra.mrb[0].mxu0 %v223
      %v1958 = vpop.f32.mrb[0].mxu0
      %v1959 = vadd.f32 %v1854, %v1958
      %v1960 = vpop.f32.mrb[0].mxu0
      %1961 = vmatprep.mubr.f32.mxu0 %v238
      %1962 = vmatmul.mubr.f32.gmra.mrb[0].mxu0 %v237
      %v1963 = vpop.f32.mrb[0].mxu0
      %v1964 = vadd.f32 %v1859, %v1963
      %v1965 = vpop.f32.mrb[0].mxu0
      %1966 = vmatprep.mubr.f32.mxu0 %v252
      %1967 = vmatmul.mubr.f32.gmra.mrb[0].mxu0 %v251
      %v1968 = vpop.f32.mrb[0].mxu0
      %v1969 = vadd.f32 %v1864, %v1968
      %v1970 = vpop.f32.mrb[0].mxu0
      %1971 = vmatprep.mubr.f32.mxu0 %v266
      %1972 = vmatmul.mubr.f32.gmra.mrb[0].mxu0 %v265
      %v1973 = vpop.f32.mrb[0].mxu0
      %v1974 = vadd.f32 %v1869, %v1973
      %v1975 = vpop.f32.mrb[0].mxu0
      %1976 = vmatprep.mubr.f32.mxu0 %v280
      %1977 = vmatmul.mubr.f32.gmra.mrb[0].mxu0 %v279
      %v1978 = vpop.f32.mrb[0].mxu0
      %v1979 = vadd.f32 %v1874, %v1978
      %v1980 = vpop.f32.mrb[0].mxu0
      %1981 = vdwg.mxu0
      %1982 = vmatprep.subr.mxu0 0.0
      %1983 = vmatpush1.msra.mxu0 %v485
      %1984 = vmatprep.subr.mxu0 0.0
      %1985 = vmatpush1.msra.mxu0 %v488
      %1986 = vmatprep.subr.mxu0 0.0
      %1987 = vmatpush1.msra.mxu0 %v491
      %1988 = vmatprep.subr.mxu0 0.0
      %1989 = vmatpush1.msra.mxu0 %v494
      %1990 = vmatprep.subr.mxu0 0.0
      %1991 = vmatpush1.msra.mxu0 %v497
      %1992 = vmatprep.subr.mxu0 0.0
      %1993 = vmatpush1.msra.mxu0 %v500
      %1994 = vmatprep.subr.mxu0 0.0
      %1995 = vmatpush1.msra.mxu0 %v503
      %1996 = vmatprep.subr.mxu0 0.0
      %1997 = vmatpush1.msra.mxu0 %v506
      %1998 = vmatprep.subr.mxu0 0.0
      %1999 = vmatpush1.msra.mxu0 %v509
      %2000 = vmatprep.subr.mxu0 0.0
      %2001 = vmatpush1.msra.mxu0 %v512
      %2002 = vmatprep.subr.mxu0 0.0
      %2003 = vmatpush1.msra.mxu0 %v515
      %2004 = vmatprep.subr.mxu0 0.0
      %2005 = vmatpush1.msra.mxu0 %v518
      %2006 = vmatprep.subr.mxu0 0.0
      %2007 = vmatpush1.msra.mxu0 %v521
      %2008 = vmatprep.subr.mxu0 0.0
      %2009 = vmatpush1.msra.mxu0 %v524
      %2010 = vmatprep.subr.mxu0 0.0
      %2011 = vmatpush1.msra.mxu0 %v527
      %2012 = vmatprep.subr.mxu0 0.0
      %2013 = vmatpush1.msra.mxu0 %v530
      %2014 = vmatprep.subr.mxu0 0.0
      %2015 = vmatpush1.msra.mxu0 %v533
      %2016 = vmatprep.subr.mxu0 0.0
      %2017 = vmatpush1.msra.mxu0 %v536
      %2018 = vmatprep.subr.mxu0 0.0
      %2019 = vmatpush1.msra.mxu0 %v539
      %2020 = vmatprep.subr.mxu0 0.0
      %2021 = vmatpush1.msra.mxu0 %v542
      %2022 = vmatprep.subr.mxu0 0.0
      %2023 = vmatpush1.msra.mxu0 %v545
      %2024 = vmatprep.subr.mxu0 0.0
      %2025 = vmatpush1.msra.mxu0 %v548
      %2026 = vmatprep.subr.mxu0 0.0
      %2027 = vmatpush1.msra.mxu0 %v551
      %2028 = vmatprep.subr.mxu0 0.0
      %2029 = vmatpush1.msra.mxu0 %v554
      %2030 = vmatprep.subr.mxu0 0.0
      %2031 = vmatpush1.msra.mxu0 %v557
      %2032 = vmatprep.subr.mxu0 0.0
      %2033 = vmatpush1.msra.mxu0 %v560
      %2034 = vmatprep.subr.mxu0 0.0
      %2035 = vmatpush1.msra.mxu0 %v563
      %2036 = vmatprep.subr.mxu0 0.0
      %2037 = vmatpush1.msra.mxu0 %v566
      %2038 = vmatprep.subr.mxu0 0.0
      %2039 = vmatpush1.msra.mxu0 %v569
      %2040 = vmatprep.subr.mxu0 0.0
      %2041 = vmatpush1.msra.mxu0 %v572
      %2042 = vmatprep.subr.mxu0 0.0
      %2043 = vmatpush1.msra.mxu0 %v575
      %2044 = vmatprep.subr.mxu0 0.0
      %2045 = vmatpush1.msra.mxu0 %v578
      %2046 = vmatprep.mubr.f32.mxu0 %v184
      %2047 = vmatmul.mubr.f32.gmra.mrb[0].mxu0 %v183
      %v2048 = vpop.f32.mrb[0].mxu0
      %v2049 = vadd.f32 %v1944, %v2048
      %v2050 = vpop.f32.mrb[0].mxu0
      %2051 = vmatprep.mubr.f32.mxu0 %v198
      %2052 = vmatmul.mubr.f32.gmra.mrb[0].mxu0 %v197
      %v2053 = vpop.f32.mrb[0].mxu0
      %v2054 = vadd.f32 %v1949, %v2053
      %v2055 = vpop.f32.mrb[0].mxu0
      %2056 = vmatprep.mubr.f32.mxu0 %v212
      %2057 = vmatmul.mubr.f32.gmra.mrb[0].mxu0 %v211
      %v2058 = vpop.f32.mrb[0].mxu0
      %v2059 = vadd.f32 %v1954, %v2058
      %v2060 = vpop.f32.mrb[0].mxu0
      %2061 = vmatprep.mubr.f32.mxu0 %v226
      %2062 = vmatmul.mubr.f32.gmra.mrb[0].mxu0 %v225
      %v2063 = vpop.f32.mrb[0].mxu0
      %v2064 = vadd.f32 %v1959, %v2063
      %v2065 = vpop.f32.mrb[0].mxu0
      %2066 = vmatprep.mubr.f32.mxu0 %v240
      %2067 = vmatmul.mubr.f32.gmra.mrb[0].mxu0 %v239
      %v2068 = vpop.f32.mrb[0].mxu0
      %v2069 = vadd.f32 %v1964, %v2068
      %v2070 = vpop.f32.mrb[0].mxu0
      %2071 = vmatprep.mubr.f32.mxu0 %v254
      %2072 = vmatmul.mubr.f32.gmra.mrb[0].mxu0 %v253
      %v2073 = vpop.f32.mrb[0].mxu0
      %v2074 = vadd.f32 %v1969, %v2073
      %v2075 = vpop.f32.mrb[0].mxu0
      %2076 = vmatprep.mubr.f32.mxu0 %v268
      %2077 = vmatmul.mubr.f32.gmra.mrb[0].mxu0 %v267
      %v2078 = vpop.f32.mrb[0].mxu0
      %v2079 = vadd.f32 %v1974, %v2078
      %v2080 = vpop.f32.mrb[0].mxu0
      %2081 = vmatprep.mubr.f32.mxu0 %v282
      %2082 = vmatmul.mubr.f32.gmra.mrb[0].mxu0 %v281
      %v2083 = vpop.f32.mrb[0].mxu0
      %v2084 = vadd.f32 %v1979, %v2083
      %v2085 = vpop.f32.mrb[0].mxu0
      %2086 = vdwg.mxu0
      %2087 = vmatprep.subr.mxu0 0.0
      %2088 = vmatpush1.msra.mxu0 %v581
      %2089 = vmatprep.subr.mxu0 0.0
      %2090 = vmatpush1.msra.mxu0 %v584
      %2091 = vmatprep.subr.mxu0 0.0
      %2092 = vmatpush1.msra.mxu0 %v587
      %2093 = vmatprep.subr.mxu0 0.0
      %2094 = vmatpush1.msra.mxu0 %v590
      %2095 = vmatprep.subr.mxu0 0.0
      %2096 = vmatpush1.msra.mxu0 %v593
      %2097 = vmatprep.subr.mxu0 0.0
      %2098 = vmatpush1.msra.mxu0 %v596
      %2099 = vmatprep.subr.mxu0 0.0
      %2100 = vmatpush1.msra.mxu0 %v599
      %2101 = vmatprep.subr.mxu0 0.0
      %2102 = vmatpush1.msra.mxu0 %v602
      %2103 = vmatprep.subr.mxu0 0.0
      %2104 = vmatpush1.msra.mxu0 %v605
      %2105 = vmatprep.subr.mxu0 0.0
      %2106 = vmatpush1.msra.mxu0 %v608
      %2107 = vmatprep.subr.mxu0 0.0
      %2108 = vmatpush1.msra.mxu0 %v611
      %2109 = vmatprep.subr.mxu0 0.0
      %2110 = vmatpush1.msra.mxu0 %v614
      %2111 = vmatprep.subr.mxu0 0.0
      %2112 = vmatpush1.msra.mxu0 %v617
      %2113 = vmatprep.subr.mxu0 0.0
      %2114 = vmatpush1.msra.mxu0 %v620
      %2115 = vmatprep.subr.mxu0 0.0
      %2116 = vmatpush1.msra.mxu0 %v623
      %2117 = vmatprep.subr.mxu0 0.0
      %2118 = vmatpush1.msra.mxu0 %v626
      %2119 = vmatprep.subr.mxu0 0.0
      %2120 = vmatpush1.msra.mxu0 %v629
      %2121 = vmatprep.subr.mxu0 0.0
      %2122 = vmatpush1.msra.mxu0 %v632
      %2123 = vmatprep.subr.mxu0 0.0
      %2124 = vmatpush1.msra.mxu0 %v635
      %2125 = vmatprep.subr.mxu0 0.0
      %2126 = vmatpush1.msra.mxu0 %v638
      %2127 = vmatprep.subr.mxu0 0.0
      %2128 = vmatpush1.msra.mxu0 %v641
      %2129 = vmatprep.subr.mxu0 0.0
      %2130 = vmatpush1.msra.mxu0 %v644
      %2131 = vmatprep.subr.mxu0 0.0
      %2132 = vmatpush1.msra.mxu0 %v647
      %2133 = vmatprep.subr.mxu0 0.0
      %2134 = vmatpush1.msra.mxu0 %v650
      %2135 = vmatprep.subr.mxu0 0.0
      %2136 = vmatpush1.msra.mxu0 %v653
      %2137 = vmatprep.subr.mxu0 0.0
      %2138 = vmatpush1.msra.mxu0 %v656
      %2139 = vmatprep.subr.mxu0 0.0
      %2140 = vmatpush1.msra.mxu0 %v659
      %2141 = vmatprep.subr.mxu0 0.0
      %2142 = vmatpush1.msra.mxu0 %v662
      %2143 = vmatprep.subr.mxu0 0.0
      %2144 = vmatpush1.msra.mxu0 %v665
      %2145 = vmatprep.subr.mxu0 0.0
      %2146 = vmatpush1.msra.mxu0 %v668
      %2147 = vmatprep.subr.mxu0 0.0
      %2148 = vmatpush1.msra.mxu0 %v671
      %2149 = vmatprep.subr.mxu0 0.0
      %2150 = vmatpush1.msra.mxu0 %v674
      %2151 = vmatprep.mubr.f32.mxu0 %v186
      %2152 = vmatmul.mubr.f32.gmra.mrb[0].mxu0 %v185
      %v2153 = vpop.f32.mrb[0].mxu0
      %v2154 = vadd.f32 %v2049, %v2153
      %v2155 = vpop.f32.mrb[0].mxu0
      %2156 = vmatprep.mubr.f32.mxu0 %v200
      %2157 = vmatmul.mubr.f32.gmra.mrb[0].mxu0 %v199
      %v2158 = vpop.f32.mrb[0].mxu0
      %v2159 = vadd.f32 %v2054, %v2158
      %v2160 = vpop.f32.mrb[0].mxu0
      %2161 = vmatprep.mubr.f32.mxu0 %v214
      %2162 = vmatmul.mubr.f32.gmra.mrb[0].mxu0 %v213
      %v2163 = vpop.f32.mrb[0].mxu0
      %v2164 = vadd.f32 %v2059, %v2163
      %v2165 = vpop.f32.mrb[0].mxu0
      %2166 = vmatprep.mubr.f32.mxu0 %v228
      %2167 = vmatmul.mubr.f32.gmra.mrb[0].mxu0 %v227
      %v2168 = vpop.f32.mrb[0].mxu0
      %v2169 = vadd.f32 %v2064, %v2168
      %v2170 = vpop.f32.mrb[0].mxu0
      %2171 = vmatprep.mubr.f32.mxu0 %v242
      %2172 = vmatmul.mubr.f32.gmra.mrb[0].mxu0 %v241
      %v2173 = vpop.f32.mrb[0].mxu0
      %v2174 = vadd.f32 %v2069, %v2173
      %v2175 = vpop.f32.mrb[0].mxu0
      %2176 = vmatprep.mubr.f32.mxu0 %v256
      %2177 = vmatmul.mubr.f32.gmra.mrb[0].mxu0 %v255
      %v2178 = vpop.f32.mrb[0].mxu0
      %v2179 = vadd.f32 %v2074, %v2178
      %v2180 = vpop.f32.mrb[0].mxu0
      %2181 = vmatprep.mubr.f32.mxu0 %v270
      %2182 = vmatmul.mubr.f32.gmra.mrb[0].mxu0 %v269
      %v2183 = vpop.f32.mrb[0].mxu0
      %v2184 = vadd.f32 %v2079, %v2183
      %v2185 = vpop.f32.mrb[0].mxu0
      %2186 = vmatprep.mubr.f32.mxu0 %v284
      %2187 = vmatmul.mubr.f32.gmra.mrb[0].mxu0 %v283
      %v2188 = vpop.f32.mrb[0].mxu0
      %v2189 = vadd.f32 %v2084, %v2188
      %v2190 = vpop.f32.mrb[0].mxu0
      %2191 = vdwg.mxu0
      %2192 = vmatprep.subr.mxu0 0.0
      %2193 = vmatpush1.msra.mxu0 %v677
      %2194 = vmatprep.subr.mxu0 0.0
      %2195 = vmatpush1.msra.mxu0 %v680
      %2196 = vmatprep.subr.mxu0 0.0
      %2197 = vmatpush1.msra.mxu0 %v683
      %2198 = vmatprep.subr.mxu0 0.0
      %2199 = vmatpush1.msra.mxu0 %v686
      %2200 = vmatprep.subr.mxu0 0.0
      %2201 = vmatpush1.msra.mxu0 %v689
      %2202 = vmatprep.subr.mxu0 0.0
      %2203 = vmatpush1.msra.mxu0 %v692
      %2204 = vmatprep.subr.mxu0 0.0
      %2205 = vmatpush1.msra.mxu0 %v695
      %2206 = vmatprep.subr.mxu0 0.0
      %2207 = vmatpush1.msra.mxu0 %v698
      %2208 = vmatprep.subr.mxu0 0.0
      %2209 = vmatpush1.msra.mxu0 %v701
      %2210 = vmatprep.subr.mxu0 0.0
      %2211 = vmatpush1.msra.mxu0 %v704
      %2212 = vmatprep.subr.mxu0 0.0
      %2213 = vmatpush1.msra.mxu0 %v707
      %2214 = vmatprep.subr.mxu0 0.0
      %2215 = vmatpush1.msra.mxu0 %v710
      %2216 = vmatprep.subr.mxu0 0.0
      %2217 = vmatpush1.msra.mxu0 %v713
      %2218 = vmatprep.subr.mxu0 0.0
      %2219 = vmatpush1.msra.mxu0 %v716
      %2220 = vmatprep.subr.mxu0 0.0
      %2221 = vmatpush1.msra.mxu0 %v719
      %2222 = vmatprep.subr.mxu0 0.0
      %2223 = vmatpush1.msra.mxu0 %v722
      %2224 = vmatprep.subr.mxu0 0.0
      %2225 = vmatpush1.msra.mxu0 %v725
      %2226 = vmatprep.subr.mxu0 0.0
      %2227 = vmatpush1.msra.mxu0 %v728
      %2228 = vmatprep.subr.mxu0 0.0
      %2229 = vmatpush1.msra.mxu0 %v731
      %2230 = vmatprep.subr.mxu0 0.0
      %2231 = vmatpush1.msra.mxu0 %v734
      %2232 = vmatprep.subr.mxu0 0.0
      %2233 = vmatpush1.msra.mxu0 %v737
      %2234 = vmatprep.subr.mxu0 0.0
      %2235 = vmatpush1.msra.mxu0 %v740
      %2236 = vmatprep.subr.mxu0 0.0
      %2237 = vmatpush1.msra.mxu0 %v743
      %2238 = vmatprep.subr.mxu0 0.0
      %2239 = vmatpush1.msra.mxu0 %v746
      %2240 = vmatprep.subr.mxu0 0.0
      %2241 = vmatpush1.msra.mxu0 %v749
      %2242 = vmatprep.subr.mxu0 0.0
      %2243 = vmatpush1.msra.mxu0 %v752
      %2244 = vmatprep.subr.mxu0 0.0
      %2245 = vmatpush1.msra.mxu0 %v755
      %2246 = vmatprep.subr.mxu0 0.0
      %2247 = vmatpush1.msra.mxu0 %v758
      %2248 = vmatprep.subr.mxu0 0.0
      %2249 = vmatpush1.msra.mxu0 %v761
      %2250 = vmatprep.subr.mxu0 0.0
      %2251 = vmatpush1.msra.mxu0 %v764
      %2252 = vmatprep.subr.mxu0 0.0
      %2253 = vmatpush1.msra.mxu0 %v767
      %2254 = vmatprep.subr.mxu0 0.0
      %2255 = vmatpush1.msra.mxu0 %v770
      %2256 = vmatprep.mubr.f32.mxu0 %v188
      %2257 = vmatmul.mubr.f32.gmra.mrb[0].mxu0 %v187
      %v2258 = vpop.f32.mrb[0].mxu0
      %v2259 = vadd.f32 %v2154, %v2258
      %v2260 = vpop.f32.mrb[0].mxu0
      %2261 = vmatprep.mubr.f32.mxu0 %v202
      %2262 = vmatmul.mubr.f32.gmra.mrb[0].mxu0 %v201
      %v2263 = vpop.f32.mrb[0].mxu0
      %v2264 = vadd.f32 %v2159, %v2263
      %v2265 = vpop.f32.mrb[0].mxu0
      %2266 = vmatprep.mubr.f32.mxu0 %v216
      %2267 = vmatmul.mubr.f32.gmra.mrb[0].mxu0 %v215
      %v2268 = vpop.f32.mrb[0].mxu0
      %v2269 = vadd.f32 %v2164, %v2268
      %v2270 = vpop.f32.mrb[0].mxu0
      %2271 = vmatprep.mubr.f32.mxu0 %v230
      %2272 = vmatmul.mubr.f32.gmra.mrb[0].mxu0 %v229
      %v2273 = vpop.f32.mrb[0].mxu0
      %v2274 = vadd.f32 %v2169, %v2273
      %v2275 = vpop.f32.mrb[0].mxu0
      %2276 = vmatprep.mubr.f32.mxu0 %v244
      %2277 = vmatmul.mubr.f32.gmra.mrb[0].mxu0 %v243
      %v2278 = vpop.f32.mrb[0].mxu0
      %v2279 = vadd.f32 %v2174, %v2278
      %v2280 = vpop.f32.mrb[0].mxu0
      %2281 = vmatprep.mubr.f32.mxu0 %v258
      %2282 = vmatmul.mubr.f32.gmra.mrb[0].mxu0 %v257
      %v2283 = vpop.f32.mrb[0].mxu0
      %v2284 = vadd.f32 %v2179, %v2283
      %v2285 = vpop.f32.mrb[0].mxu0
      %2286 = vmatprep.mubr.f32.mxu0 %v272
      %2287 = vmatmul.mubr.f32.gmra.mrb[0].mxu0 %v271
      %v2288 = vpop.f32.mrb[0].mxu0
      %v2289 = vadd.f32 %v2184, %v2288
      %v2290 = vpop.f32.mrb[0].mxu0
      %2291 = vmatprep.mubr.f32.mxu0 %v286
      %2292 = vmatmul.mubr.f32.gmra.mrb[0].mxu0 %v285
      %v2293 = vpop.f32.mrb[0].mxu0
      %v2294 = vadd.f32 %v2189, %v2293
      %v2295 = vpop.f32.mrb[0].mxu0
      %2296 = vdwg.mxu0
      %2297 = vmatprep.subr.mxu0 0.0
      %2298 = vmatpush1.msra.mxu0 %v773
      %2299 = vmatprep.subr.mxu0 0.0
      %2300 = vmatpush1.msra.mxu0 %v776
      %2301 = vmatprep.subr.mxu0 0.0
      %2302 = vmatpush1.msra.mxu0 %v779
      %2303 = vmatprep.subr.mxu0 0.0
      %2304 = vmatpush1.msra.mxu0 %v782
      %2305 = vmatprep.subr.mxu0 0.0
      %2306 = vmatpush1.msra.mxu0 %v785
      %2307 = vmatprep.subr.mxu0 0.0
      %2308 = vmatpush1.msra.mxu0 %v788
      %2309 = vmatprep.subr.mxu0 0.0
      %2310 = vmatpush1.msra.mxu0 %v791
      %2311 = vmatprep.subr.mxu0 0.0
      %2312 = vmatpush1.msra.mxu0 %v794
      %2313 = vmatprep.subr.mxu0 0.0
      %2314 = vmatpush1.msra.mxu0 %v797
      %2315 = vmatprep.subr.mxu0 0.0
      %2316 = vmatpush1.msra.mxu0 %v800
      %2317 = vmatprep.subr.mxu0 0.0
      %2318 = vmatpush1.msra.mxu0 %v803
      %2319 = vmatprep.subr.mxu0 0.0
      %2320 = vmatpush1.msra.mxu0 %v806
      %2321 = vmatprep.subr.mxu0 0.0
      %2322 = vmatpush1.msra.mxu0 %v809
      %2323 = vmatprep.subr.mxu0 0.0
      %2324 = vmatpush1.msra.mxu0 %v812
      %2325 = vmatprep.subr.mxu0 0.0
      %2326 = vmatpush1.msra.mxu0 %v815
      %2327 = vmatprep.subr.mxu0 0.0
      %2328 = vmatpush1.msra.mxu0 %v818
      %2329 = vmatprep.subr.mxu0 0.0
      %2330 = vmatpush1.msra.mxu0 %v821
      %2331 = vmatprep.subr.mxu0 0.0
      %2332 = vmatpush1.msra.mxu0 %v824
      %2333 = vmatprep.subr.mxu0 0.0
      %2334 = vmatpush1.msra.mxu0 %v827
      %2335 = vmatprep.subr.mxu0 0.0
      %2336 = vmatpush1.msra.mxu0 %v830
      %2337 = vmatprep.subr.mxu0 0.0
      %2338 = vmatpush1.msra.mxu0 %v833
      %2339 = vmatprep.subr.mxu0 0.0
      %2340 = vmatpush1.msra.mxu0 %v836
      %2341 = vmatprep.subr.mxu0 0.0
      %2342 = vmatpush1.msra.mxu0 %v839
      %2343 = vmatprep.subr.mxu0 0.0
      %2344 = vmatpush1.msra.mxu0 %v842
      %2345 = vmatprep.subr.mxu0 0.0
      %2346 = vmatpush1.msra.mxu0 %v845
      %2347 = vmatprep.subr.mxu0 0.0
      %2348 = vmatpush1.msra.mxu0 %v848
      %2349 = vmatprep.subr.mxu0 0.0
      %2350 = vmatpush1.msra.mxu0 %v851
      %2351 = vmatprep.subr.mxu0 0.0
      %2352 = vmatpush1.msra.mxu0 %v854
      %2353 = vmatprep.subr.mxu0 0.0
      %2354 = vmatpush1.msra.mxu0 %v857
      %2355 = vmatprep.subr.mxu0 0.0
      %2356 = vmatpush1.msra.mxu0 %v860
      %2357 = vmatprep.subr.mxu0 0.0
      %2358 = vmatpush1.msra.mxu0 %v863
      %2359 = vmatprep.subr.mxu0 0.0
      %2360 = vmatpush1.msra.mxu0 %v866
      %2361 = vmatprep.mubr.f32.mxu0 %v190
      %2362 = vmatmul.mubr.f32.gmra.mrb[0].mxu0 %v189
      %v2363 = vpop.f32.mrb[0].mxu0
      %v2364 = vadd.f32 %v2259, %v2363
      %v2365 = vpop.f32.mrb[0].mxu0
      %2366 = vmatprep.mubr.f32.mxu0 %v204
      %2367 = vmatmul.mubr.f32.gmra.mrb[0].mxu0 %v203
      %v2368 = vpop.f32.mrb[0].mxu0
      %v2369 = vadd.f32 %v2264, %v2368
      %v2370 = vpop.f32.mrb[0].mxu0
      %2371 = vmatprep.mubr.f32.mxu0 %v218
      %2372 = vmatmul.mubr.f32.gmra.mrb[0].mxu0 %v217
      %v2373 = vpop.f32.mrb[0].mxu0
      %v2374 = vadd.f32 %v2269, %v2373
      %v2375 = vpop.f32.mrb[0].mxu0
      %2376 = vmatprep.mubr.f32.mxu0 %v232
      %2377 = vmatmul.mubr.f32.gmra.mrb[0].mxu0 %v231
      %v2378 = vpop.f32.mrb[0].mxu0
      %v2379 = vadd.f32 %v2274, %v2378
      %v2380 = vpop.f32.mrb[0].mxu0
      %2381 = vmatprep.mubr.f32.mxu0 %v246
      %2382 = vmatmul.mubr.f32.gmra.mrb[0].mxu0 %v245
      %v2383 = vpop.f32.mrb[0].mxu0
      %v2384 = vadd.f32 %v2279, %v2383
      %v2385 = vpop.f32.mrb[0].mxu0
      %2386 = vmatprep.mubr.f32.mxu0 %v260
      %2387 = vmatmul.mubr.f32.gmra.mrb[0].mxu0 %v259
      %v2388 = vpop.f32.mrb[0].mxu0
      %v2389 = vadd.f32 %v2284, %v2388
      %v2390 = vpop.f32.mrb[0].mxu0
      %2391 = vmatprep.mubr.f32.mxu0 %v274
      %2392 = vmatmul.mubr.f32.gmra.mrb[0].mxu0 %v273
      %v2393 = vpop.f32.mrb[0].mxu0
      %v2394 = vadd.f32 %v2289, %v2393
      %v2395 = vpop.f32.mrb[0].mxu0
      %2396 = vmatprep.mubr.f32.mxu0 %v288
      %2397 = vmatmul.mubr.f32.gmra.mrb[0].mxu0 %v287
      %v2398 = vpop.f32.mrb[0].mxu0
      %v2399 = vadd.f32 %v2294, %v2398
      %v2400 = vpop.f32.mrb[0].mxu0
      %2401 = vdwg.mxu0
      %2402 = vmatprep.subr.mxu0 0.0
      %2403 = vmatpush1.msra.mxu0 %v869
      %2404 = vmatprep.subr.mxu0 0.0
      %2405 = vmatpush1.msra.mxu0 %v872
      %2406 = vmatprep.subr.mxu0 0.0
      %2407 = vmatpush1.msra.mxu0 %v875
      %2408 = vmatprep.subr.mxu0 0.0
      %2409 = vmatpush1.msra.mxu0 %v878
      %2410 = vmatprep.subr.mxu0 0.0
      %2411 = vmatpush1.msra.mxu0 %v881
      %2412 = vmatprep.subr.mxu0 0.0
      %2413 = vmatpush1.msra.mxu0 %v884
      %2414 = vmatprep.subr.mxu0 0.0
      %2415 = vmatpush1.msra.mxu0 %v887
      %2416 = vmatprep.subr.mxu0 0.0
      %2417 = vmatpush1.msra.mxu0 %v890
      %2418 = vmatprep.subr.mxu0 0.0
      %2419 = vmatpush1.msra.mxu0 %v893
      %2420 = vmatprep.subr.mxu0 0.0
      %2421 = vmatpush1.msra.mxu0 %v896
      %2422 = vmatprep.subr.mxu0 0.0
      %2423 = vmatpush1.msra.mxu0 %v899
      %2424 = vmatprep.subr.mxu0 0.0
      %2425 = vmatpush1.msra.mxu0 %v902
      %2426 = vmatprep.subr.mxu0 0.0
      %2427 = vmatpush1.msra.mxu0 %v905
      %2428 = vmatprep.subr.mxu0 0.0
      %2429 = vmatpush1.msra.mxu0 %v908
      %2430 = vmatprep.subr.mxu0 0.0
      %2431 = vmatpush1.msra.mxu0 %v911
      %2432 = vmatprep.subr.mxu0 0.0
      %2433 = vmatpush1.msra.mxu0 %v914
      %2434 = vmatprep.subr.mxu0 0.0
      %2435 = vmatpush1.msra.mxu0 %v917
      %2436 = vmatprep.subr.mxu0 0.0
      %2437 = vmatpush1.msra.mxu0 %v920
      %2438 = vmatprep.subr.mxu0 0.0
      %2439 = vmatpush1.msra.mxu0 %v923
      %2440 = vmatprep.subr.mxu0 0.0
      %2441 = vmatpush1.msra.mxu0 %v926
      %2442 = vmatprep.subr.mxu0 0.0
      %2443 = vmatpush1.msra.mxu0 %v929
      %2444 = vmatprep.subr.mxu0 0.0
      %2445 = vmatpush1.msra.mxu0 %v932
      %2446 = vmatprep.subr.mxu0 0.0
      %2447 = vmatpush1.msra.mxu0 %v935
      %2448 = vmatprep.subr.mxu0 0.0
      %2449 = vmatpush1.msra.mxu0 %v938
      %2450 = vmatprep.subr.mxu0 0.0
      %2451 = vmatpush1.msra.mxu0 0.0
      %2452 = vmatprep.subr.mxu0 0.0
      %2453 = vmatpush1.msra.mxu0 0.0
      %2454 = vmatprep.subr.mxu0 0.0
      %2455 = vmatpush1.msra.mxu0 0.0
      %2456 = vmatprep.subr.mxu0 0.0
      %2457 = vmatpush1.msra.mxu0 0.0
      %2458 = vmatprep.subr.mxu0 0.0
      %2459 = vmatpush1.msra.mxu0 0.0
      %2460 = vmatprep.subr.mxu0 0.0
      %2461 = vmatpush1.msra.mxu0 0.0
      %2462 = vmatprep.subr.mxu0 0.0
      %2463 = vmatpush1.msra.mxu0 0.0
      %2464 = vmatprep.subr.mxu0 0.0
      %2465 = vmatpush1.msra.mxu0 0.0
      %2466 = vmatprep.mubr.f32.mxu0 %v958
      %2467 = vmatmul.mubr.f32.gmra.mrb[0].mxu0 %v191
      %v2468 = vpop.f32.mrb[0].mxu0
      %v2469 = vadd.f32 %v2364, %v2468
      %v2470 = vpop.f32.mrb[0].mxu0
      %2471 = vmatprep.mubr.f32.mxu0 %v961
      %2472 = vmatmul.mubr.f32.gmra.mrb[0].mxu0 %v205
      %v2473 = vpop.f32.mrb[0].mxu0
      %v2474 = vadd.f32 %v2369, %v2473
      %v2475 = vpop.f32.mrb[0].mxu0
      %2476 = vmatprep.mubr.f32.mxu0 %v964
      %2477 = vmatmul.mubr.f32.gmra.mrb[0].mxu0 %v219
      %v2478 = vpop.f32.mrb[0].mxu0
      %v2479 = vadd.f32 %v2374, %v2478
      %v2480 = vpop.f32.mrb[0].mxu0
      %2481 = vmatprep.mubr.f32.mxu0 %v967
      %2482 = vmatmul.mubr.f32.gmra.mrb[0].mxu0 %v233
      %v2483 = vpop.f32.mrb[0].mxu0
      %v2484 = vadd.f32 %v2379, %v2483
      %v2485 = vpop.f32.mrb[0].mxu0
      %2486 = vmatprep.mubr.f32.mxu0 %v970
      %2487 = vmatmul.mubr.f32.gmra.mrb[0].mxu0 %v247
      %v2488 = vpop.f32.mrb[0].mxu0
      %v2489 = vadd.f32 %v2384, %v2488
      %v2490 = vpop.f32.mrb[0].mxu0
      %2491 = vmatprep.mubr.f32.mxu0 %v973
      %2492 = vmatmul.mubr.f32.gmra.mrb[0].mxu0 %v261
      %v2493 = vpop.f32.mrb[0].mxu0
      %v2494 = vadd.f32 %v2389, %v2493
      %v2495 = vpop.f32.mrb[0].mxu0
      %2496 = vmatprep.mubr.f32.mxu0 %v976
      %2497 = vmatmul.mubr.f32.gmra.mrb[0].mxu0 %v275
      %v2498 = vpop.f32.mrb[0].mxu0
      %v2499 = vadd.f32 %v2394, %v2498
      %v2500 = vpop.f32.mrb[0].mxu0
      %2501 = vmatprep.mubr.f32.mxu0 %v979
      %2502 = vmatmul.mubr.f32.gmra.mrb[0].mxu0 %v289
      %v2503 = vpop.f32.mrb[0].mxu0
      %v2504 = vadd.f32 %v2399, %v2503
      %v2505 = vpop.f32.mrb[0].mxu0
      %2506 = vdwg.mxu0
      %v2507 = vmax.f32 %v1726, 0.0
      %v2508 = vmax.f32 %v1728, 0.0
      %v2509 = vmax.f32 %v2469, 0.0
      %v2510 = vmax.f32 %v1732, 0.0
      %v2511 = vmax.f32 %v1734, 0.0
      %v2512 = vmax.f32 %v2474, 0.0
      %v2513 = vmax.f32 %v1738, 0.0
      %v2514 = vmax.f32 %v1740, 0.0
      %v2515 = vmax.f32 %v2479, 0.0
      %v2516 = vmax.f32 %v1744, 0.0
      %v2517 = vmax.f32 %v1746, 0.0
      %v2518 = vmax.f32 %v2484, 0.0
      %v2519 = vmax.f32 %v1750, 0.0
      %v2520 = vmax.f32 %v1752, 0.0
      %v2521 = vmax.f32 %v2489, 0.0
      %v2522 = vmax.f32 %v1756, 0.0
      %v2523 = vmax.f32 %v1758, 0.0
      %v2524 = vmax.f32 %v2494, 0.0
      %v2525 = vmax.f32 %v1762, 0.0
      %v2526 = vmax.f32 %v1764, 0.0
      %v2527 = vmax.f32 %v2499, 0.0
      %v2528 = vmax.f32 %v1768, 0.0
      %v2529 = vmax.f32 %v1770, 0.0
      %v2530 = vmax.f32 %v2504, 0.0
      %2531 = vst [vmem:[%s177] sm:$0xff] %v2507
      %2532 = vst [vmem:[%s177 + $0x8] sm:$0xff] %v2508
      %2533 = vst.msk [vmem:[%s177 + $0x10] sm:$0xff] %vm956, %v2509
      %2534 = vst [vmem:[%s177 + $0x18] sm:$0xff] %v2510
      %2535 = vst [vmem:[%s177 + $0x20] sm:$0xff] %v2511
      %2536 = vst.msk [vmem:[%s177 + $0x28] sm:$0xff] %vm956, %v2512
      %2537 = vst [vmem:[%s177 + $0x30] sm:$0xff] %v2513
      %2538 = vst [vmem:[%s177 + $0x38] sm:$0xff] %v2514
      %2539 = vst.msk [vmem:[%s177 + $0x40] sm:$0xff] %vm956, %v2515
      %2540 = vst [vmem:[%s177 + $0x48] sm:$0xff] %v2516
      %2541 = vst [vmem:[%s177 + $0x50] sm:$0xff] %v2517
      %2542 = vst.msk [vmem:[%s177 + $0x58] sm:$0xff] %vm956, %v2518
      %2543 = vst [vmem:[%s177 + $0x60] sm:$0xff] %v2519
      %2544 = vst [vmem:[%s177 + $0x68] sm:$0xff] %v2520
      %2545 = vst.msk [vmem:[%s177 + $0x70] sm:$0xff] %vm956, %v2521
      %2546 = vst [vmem:[%s177 + $0x78] sm:$0xff] %v2522
      %2547 = vst [vmem:[%s177 + $0x80] sm:$0xff] %v2523
      %2548 = vst.msk [vmem:[%s177 + $0x88] sm:$0xff] %vm956, %v2524
      %2549 = vst [vmem:[%s177 + $0x90] sm:$0xff] %v2525
      %2550 = vst [vmem:[%s177 + $0x98] sm:$0xff] %v2526
      %2551 = vst.msk [vmem:[%s177 + $0xa0] sm:$0xff] %vm956, %v2527
      %2552 = vst [vmem:[%s177 + $0xa8] sm:$0xff] %v2528
      %2553 = vst [vmem:[%s177 + $0xb0] sm:$0xff] %v2529
      %2554 = vst.msk [vmem:[%s177 + $0xb8] sm:$0xff] %vm956, %v2530
      %s2555 = smul.u32 8, %s14
      %p2556 = scmp.lt.s32.totalorder %s2555, 15
      %s2557 = scalar_select %p2556, %s2555, 15
      %s2558 = smul.addr %s2557, 3
      %s2559 = smul.addr %s2558, 8
      %s2560 = scalar_lea.vmem %s3, %s2559
      // Predicated region
      $region33: #{inception_d_forward.8} parent=31 // pred_check
        %p2561 = pneg %p100
      $region34: #{inception_d_forward.8} parent=31 // pred_check_branch
        %2563 = sbr.rel (%p2561) target = $region36
      $region35: #{inception_d_forward.8} parent=31 // pred_region
        %s2564 = smul.u32 8, %s14
      $region36: #{inception_d_forward.8} parent=31 // pred_fallthru
        _
    $region32: #{inception_d_forward.8} parent=5 // pred_fallthru
      _
    %p2565 = scmp.le.s32.totalorder 2, %s9
    // Predicated region
    $region37: #{inception_d_forward.8} parent=5 // pred_check
      %p2566 = pneg %p2565
    $region38: #{inception_d_forward.8} parent=5 // pred_check_branch
      %2568 = sbr.rel (%p2566) target = $region40
    $region39: #{inception_d_forward.8} parent=5 // pred_region
      %s2569 = ssub.s32 %s9, 2
      // Predicated region
      $region41: #{inception_d_forward.8} parent=39 // pred_check
        %p2570 = pneg %p106
      $region42: #{inception_d_forward.8} parent=39 // pred_check_branch
        %2572 = sbr.rel (%p2570) target = $region44
      $region43: #{inception_d_forward.8} parent=39 // pred_region
        %s2573 = smul.u32 8, %s15
        %p2574 = scmp.lt.s32.totalorder %s2573, 15
        %s2575 = scalar_select %p2574, %s2573, 15
        %s2576 = smul.addr %s2575, 3
        %s2577 = smul.addr %s2576, 8
        %s2578 = scalar_lea.vmem %s3, %s2577
      $region44: #{inception_d_forward.8} parent=39 // pred_fallthru
        _
    $region40: #{inception_d_forward.8} parent=5 // pred_fallthru
      _
  $region6: #{inception_d_forward.8} parent=0 // loop_footer
    %s13 = sadd.s32 1, %s9
  $region7: #{inception_d_forward.8} parent=0 // loop_footer_branch
    %8 = sbr.rel target = $region3
  $region8: #{inception_d_forward.8} parent=0 // loop_exit
    _

</llo_original>
